<compile_context>
chip_gen: v5e
topology: v5e:2x2
jax: 0.10.0
libtpu: 0.0.40
codegen_flags: <defaults>
</compile_context>

<pallas_src>
import math

import jax
import jax.numpy as jnp
from jax.experimental import pallas as pl
from jax.experimental.pallas import tpu as pltpu


_OFF = 2             # zero border ring (>= every conv pad / deconv phase offset)
_MAX_K_ROWS = 512    # cap on the folded contraction depth per MXU call
_CPAD = 16           # channel padding: bf16 native sublane tile


def _padc(n):
    return ((n + _CPAD - 1) // _CPAD) * _CPAD


def _round_up(n, m):
    return ((n + m - 1) // m) * m


# -----------------------------------------------------------------------------
# Parameters (deterministic, matching the PyTorch module's shapes / init).
# -----------------------------------------------------------------------------
def init_fsrcnn_params(key, scale_factor, c=1, d=56, s=12, m=4):
    keys = iter(jax.random.split(key, 8 + m))

    def kaiming(k, kh, kw, cin, cout):
        std = math.sqrt(2.0 / (cin * kh * kw))          # fan_in, relu
        return jax.random.normal(k, (kh, kw, cin, cout), jnp.float32) * std

    layers = []
    layers.append(dict(w=kaiming(next(keys), 5, 5, c, d),
                       b=jnp.zeros((d,), jnp.float32),
                       a=jnp.full((d,), 0.25, jnp.float32), pad=2))
    layers.append(dict(w=kaiming(next(keys), 1, 1, d, s),
                       b=jnp.zeros((s,), jnp.float32),
                       a=jnp.full((s,), 0.25, jnp.float32), pad=0))
    for _ in range(m):
        layers.append(dict(w=kaiming(next(keys), 3, 3, s, s),
                           b=jnp.zeros((s,), jnp.float32),
                           a=jnp.full((s,), 0.25, jnp.float32), pad=1))
    layers.append(dict(w=kaiming(next(keys), 1, 1, s, d),
                       b=jnp.zeros((d,), jnp.float32),
                       a=jnp.full((d,), 0.25, jnp.float32), pad=0))

    # ConvTranspose2d(d, c, 9, stride=r, padding=4, output_padding=r-1),
    # normal(std=1e-3), stored directly in the equivalent forward-conv HWIO
    # layout (flip/transpose of an iid Gaussian is still iid Gaussian).
    # TODO(synk): to load real PyTorch deconv weights (Cin, Cout, KH, KW) use
    #   w_hwio = transpose(flip(w, (-2, -1)), (2, 3, 0, 1)).
    deconv_w = jax.random.normal(next(keys), (9, 9, d, c), jnp.float32) * 1e-3
    deconv_b = jnp.zeros((c,), jnp.float32)
    return dict(layers=layers, deconv_w=deconv_w, deconv_b=deconv_b,
                scale=scale_factor)


# -----------------------------------------------------------------------------
# Pack the network into static op metadata + a flat list of kernel arrays.
# Weights become (Cout_pad, ntaps*Cin_pad) bf16 matrices (tap-major), matching
# the in-kernel im2col patch layout; biases / PReLU slopes are (Cout_pad, 1)
# f32 columns (broadcast along lanes).
# -----------------------------------------------------------------------------
def pack_fsrcnn_for_kernel(params):
    r = int(params["scale"])
    ops, arrays = [], []

    def add(a):
        arrays.append(a)
        return len(arrays) - 1

    def pack_conv(w_hwio, bias, slope):
        K, _, cin, cout = w_hwio.shape
        cin_p, cout_p = _padc(cin), _padc(cout)
        p = K // 2
        taps = tuple((kh - p, kw - p) for kh in range(K) for kw in range(K))
        wp = jnp.zeros((K, K, cin_p, cout_p), jnp.float32)
        wp = wp.at[:, :, :cin, :cout].set(w_hwio)
        wm = jnp.transpose(wp.reshape(K * K, cin_p, cout_p), (2, 0, 1))
        wm = wm.reshape(cout_p, K * K * cin_p).astype(jnp.bfloat16)
        bp = jnp.zeros((cout_p, 1), jnp.float32).at[:cout, 0].set(bias)
        ap = jnp.zeros((cout_p, 1), jnp.float32).at[:cout, 0].set(slope)
        return taps, cin_p, cout_p, wm, bp, ap

    src = "A"
    for layer in params["layers"]:
        taps, cin_p, cout_p, wm, bp, ap = pack_conv(layer["w"], layer["b"],
                                                    layer["a"])
        dst = "B" if src == "A" else "A"
        ops.append(dict(taps=taps, cin=cin_p, cout=cout_p, w=add(wm), b=add(bp),
                        a=add(ap), src=src, dst=("buf", dst)))
        src = dst

    # Sub-pixel decomposition of the ConvTranspose2d, FUSED across all r*r
    # phases.  Output phase (ph, pw) only uses deconv taps with
    # kh ≡ (K-1-pad-ph) (mod r), applied at un-dilated input offset
    # (ph + kh - (K-1-pad)) / r (same in w).  All phases are stacked along the
    # matmul M dim with missing union taps zero-filled, so the expensive im2col
    # patch is built once per K-chunk for every phase.
    K, pad = 9, 4
    lo = K - 1 - pad
    wd = params["deconv_w"]
    cin, cout = wd.shape[2], wd.shape[3]
    cin_p, cout_p = _padc(cin), _padc(cout)

    phase_taps = []
    for ph in range(r):
        for pw in range(r):
            tapmap = {}
            for kh in range(K):
                if (kh - (lo - ph)) % r:
                    continue
                oh = (ph + kh - lo) // r
                for kw in range(K):
                    if (kw - (lo - pw)) % r:
                        continue
                    ow = (pw + kw - lo) // r
                    tapmap[(oh, ow)] = (kh, kw)
            phase_taps.append(tapmap)

    union = tuple(sorted({t for d in phase_taps for t in d}))
    zero_blk = jnp.zeros((cin_p, cout_p), jnp.float32)
    phase_rows = []
    for tapmap in phase_taps:
        mats = []
        for t in union:
            if t in tapmap:
                kh, kw = tapmap[t]
                mats.append(zero_blk.at[:cin, :cout].set(wd[kh, kw]))
            else:
                mats.append(zero_blk)
        wm = jnp.transpose(jnp.stack(mats, 0), (2, 0, 1))     # (cout_p, T, cin_p)
        phase_rows.append(wm.reshape(cout_p, len(union) * cin_p))
    w_dec = jnp.concatenate(phase_rows, axis=0).astype(jnp.bfloat16)
    b_dec = jnp.zeros((r * r * cout_p, 1), jnp.float32)
    for p in range(r * r):
        b_dec = b_dec.at[p * cout_p:p * cout_p + cout, 0].set(params["deconv_b"])

    ops.append(dict(taps=union, cin=cin_p, cout=r * r * cout_p, w=add(w_dec),
                    b=add(b_dec), a=None, src=src, dst=("out", None)))

    assert all(abs(dh) <= _OFF and abs(dw) <= _OFF
               for op in ops for (dh, dw) in op["taps"])

    cin0 = ops[0]["cin"]
    size_a, size_b = cin0, _CPAD          # only B ever holds the d=56(->64) rows
    for op in ops:
        kind, which = op["dst"]
        if kind == "buf":
            if which == "A":
                size_a = max(size_a, op["cout"])
            else:
                size_b = max(size_b, op["cout"])

    return dict(ops=ops, arrays=arrays, r=r, cin0=cin0,
                size_a=size_a, size_b=size_b,
                cout_dec_p=cout_p, c_out=cout)


# -----------------------------------------------------------------------------
# Fused Pallas kernel: the whole FSRCNN forward for one batch element.
# -----------------------------------------------------------------------------
def _make_fused_kernel(ops, n_arrays, WP, La, q0, H, W, C, cin0,
                       cout_dec_p, c_out, n_phases):
    def kernel(*refs):
        x_ref, mask_ref = refs[0], refs[1]
        prefs = refs[2:2 + n_arrays]
        o_ref = refs[2 + n_arrays]
        buf = {"A": refs[3 + n_arrays], "B": refs[4 + n_arrays]}

        # Zero only the border ring / alignment slack of both canvases (the
        # interior [q0, q0+La) of every destination is overwritten by each
        # layer's masked store).  Done every grid step -> megacore-safe.
        for name in ("A", "B"):
            cref = buf[name]
            rows, total = cref.shape
            cref[:, 0:q0] = jnp.zeros((rows, q0), jnp.bfloat16)
            cref[:, q0 + La:total] = jnp.zeros((rows, total - q0 - La),
                                               jnp.bfloat16)

        # Place the raw input rows into canvas A.  The interior of the input
        # rows is cleared first (wrap columns between rows + padded channels).
        buf["A"][0:cin0, q0:q0 + La] = jnp.zeros((cin0, La), jnp.bfloat16)
        for h in range(H):
            buf["A"][0:C, q0 + h * WP:q0 + h * WP + W] = (
                x_ref[0, :, h * W:(h + 1) * W].astype(jnp.bfloat16))

        mask = mask_ref[...]                      # (1, La) validity of the run

        for op in ops:
            src, taps = buf[op["src"]], op["taps"]
            cin, cout = op["cin"], op["cout"]
            w_ref = prefs[op["w"]]
            tpc = max(1, _MAX_K_ROWS // cin)      # taps folded per MXU call
            acc = None
            for t0 in range(0, len(taps), tpc):
                chunk = taps[t0:t0 + tpc]
                # im2col: statically shifted bf16 lane-slices of the flat
                # canvas, stacked on sublanes -> one deep-K MXU matmul / chunk.
                sl = [src[0:cin, q0 + dh * WP + dw:q0 + dh * WP + dw + La]
                      for (dh, dw) in chunk]
                patch = sl[0] if len(sl) == 1 else jnp.concatenate(sl, axis=0)
                wc = w_ref[:, t0 * cin:(t0 + len(chunk)) * cin]      # bf16
                part = jnp.dot(wc, patch, preferred_element_type=jnp.float32)
                acc = part if acc is None else acc + part

            y = acc + prefs[op["b"]][...]         # f32 bias (cout, 1)
            if op["a"] is not None:               # per-channel PReLU (f32, VPU)
                a = prefs[op["a"]][...]
                y = jnp.where(y > 0, y, a * y)

            kind, which = op["dst"]
            if kind == "buf":
                # Mask the wrap / tail columns so the zero-border invariant of
                # the destination canvas holds for the next layer's padding;
                # single cast to the bf16 canvas here.
                buf[which][0:cout, q0:q0 + La] = (y * mask).astype(jnp.bfloat16)
            else:                                 # fused deconv phases -> out
                for p in range(n_phases):
                    o_ref[0, p, :, :] = y[p * cout_dec_p:p * cout_dec_p + c_out, :]

    return kernel


def _pick_vmem_limit():
    # ~96 MiB on v5e/v6e (128 MiB physical), ~48 MiB on v7x (64 MiB physical).
    try:
        cap = int(pltpu.get_tpu_info().vmem_capacity_bytes)
        return min((cap * 3) // 4, 100 * 1024 * 1024)
    except Exception:
        return 48 * 1024 * 1024


def fsrcnn_forward_pallas(packed, x_nchw):
    """Fused FSRCNN forward: (N, c, H, W) NCHW -> (N, c, H*r, W*r) NCHW."""
    ops, arrays, r = packed["ops"], packed["arrays"], packed["r"]
    N, C, H, W = x_nchw.shape
    WP = W + 2 * _OFF                        # flat row stride of the canvas
    L = (H - 1) * WP + W                     # valid flat run covering all rows
    La = _round_up(L, 128)                   # stored run, 128-lane aligned
    q0 = _round_up(_OFF * WP + _OFF, 128)    # 128-aligned flat index of (0,0)
    NT = _round_up(q0 + La + _OFF * WP + _OFF, 128)   # canvas lanes (+tail halo)
    cin0, c_out = packed["cin0"], packed["c_out"]
    cout_dec_p, n_phases = packed["cout_dec_p"], r * r

    x_flat = x_nchw.reshape(N, C, H * W)     # raw input; padded in-kernel

    i = jnp.arange(La)                       # lane-validity mask of the run
    mask = ((i < L) & (i % WP < W)).astype(jnp.float32).reshape(1, La)

    kernel = _make_fused_kernel(ops, len(arrays), WP, La, q0, H, W, C, cin0,
                                cout_dec_p, c_out, n_phases)
    in_specs = [pl.BlockSpec((1, C, H * W), lambda n: (n, 0, 0)),
                pl.BlockSpec((1, La), lambda n: (0, 0))]
    in_specs += [pl.BlockSpec(a.shape, lambda n: (0, 0)) for a in arrays]

    out = pl.pallas_call(
        kernel,
        out_shape=jax.ShapeDtypeStruct((N, n_phases, c_out, La), jnp.float32),
        grid=(N,),
        in_specs=in_specs,
        out_specs=pl.BlockSpec((1, n_phases, c_out, La),
                               lambda n: (n, 0, 0, 0)),
        scratch_shapes=[pltpu.VMEM((packed["size_a"], NT), jnp.bfloat16),
                        pltpu.VMEM((packed["size_b"], NT), jnp.bfloat16)],
        compiler_params=pltpu.CompilerParams(
            dimension_semantics=("parallel",),   # batch across megacore TCs
            vmem_limit_bytes=_pick_vmem_limit()),
    )(x_flat, mask, *arrays)

    # Crop + pixel-shuffle the r*r phases (cheap JAX glue).
    need = H * WP
    if La >= need:
        flat = out[..., :need]
    else:
        flat = jnp.pad(out, ((0, 0), (0, 0), (0, 0), (0, need - La)))
    img = flat.reshape(N, r, r, c_out, H, WP)[..., :W]   # (N, ph, pw, c, qh, qw)
    y = jnp.transpose(img, (0, 3, 4, 1, 5, 2)).reshape(N, c_out, H * r, W * r)
    return y


# -----------------------------------------------------------------------------
# Pure-JAX reference (same bf16-operand / f32-accumulation precision).
# -----------------------------------------------------------------------------
def fsrcnn_forward_ref(params, x_nchw):
    def conv(x, w, pad):
        xp = jnp.pad(x, ((0, 0), (pad, pad), (pad, pad), (0, 0)))
        return jax.lax.conv_general_dilated(
            xp.astype(jnp.bfloat16), w.astype(jnp.bfloat16), (1, 1), "VALID",
            dimension_numbers=("NHWC", "HWIO", "NHWC"),
            preferred_element_type=jnp.float32)

    x = jnp.transpose(x_nchw, (0, 2, 3, 1)).astype(jnp.float32)
    for layer in params["layers"]:
        y = conv(x, layer["w"], layer["pad"]) + layer["b"]
        x = jnp.where(y > 0, y, layer["a"] * y)

    # ConvTranspose2d == zero-dilate by r, asymmetric pad, VALID conv (HWIO).
    r = params["scale"]
    K, p = 9, 4
    N, H, W, C = x.shape
    xd = jnp.zeros((N, (H - 1) * r + 1, (W - 1) * r + 1, C), x.dtype)
    xd = xd.at[:, ::r, ::r, :].set(x)
    lo, hi = K - 1 - p, K - 1 - p + (r - 1)
    xp = jnp.pad(xd, ((0, 0), (lo, hi), (lo, hi), (0, 0)))
    y = jax.lax.conv_general_dilated(
        xp.astype(jnp.bfloat16), params["deconv_w"].astype(jnp.bfloat16),
        (1, 1), "VALID", dimension_numbers=("NHWC", "HWIO", "NHWC"),
        preferred_element_type=jnp.float32) + params["deconv_b"]
    return jnp.transpose(y, (0, 3, 1, 2))


if __name__ == "__main__":
    key = jax.random.PRNGKey(0)
    k_params, k_x = jax.random.split(key)

    scale_factor = 2
    params = init_fsrcnn_params(k_params, scale_factor, c=1, d=56, s=12, m=4)
    packed = pack_fsrcnn_for_kernel(params)

    # NCHW input, matching the PyTorch module's (N, c=1, H, W) convention.
    x = jax.random.normal(k_x, (2, 1, 16, 16), jnp.float32)

    out = jax.block_until_ready(fsrcnn_forward_pallas(packed, x))

    assert out.shape == (2, 1, 16 * scale_factor, 16 * scale_factor), out.shape
    assert bool(jnp.all(jnp.isfinite(out)))

    # End-to-end numerical check (conv stack + fused sub-pixel deconv) against
    # a pure-JAX lax.conv reference using matching precision.
    ref = fsrcnn_forward_ref(params, x)
    err = float(jnp.max(jnp.abs(out - ref)))
    assert jnp.allclose(out, ref, rtol=1e-2, atol=1e-2), err

    print("KERNEL_OK")
</pallas_src>

<mosaic_0001>
module attributes {stable_mosaic.version = 11 : i64} {
  func.func @kernel(%arg0: i32, %arg1: memref<1x1x256xf32, #tpu.memory_space<vmem>>, %arg2: memref<1x384xf32, #tpu.memory_space<vmem>>, %arg3: memref<64x400xbf16, #tpu.memory_space<vmem>>, %arg4: memref<64x1xf32, #tpu.memory_space<vmem>>, %arg5: memref<64x1xf32, #tpu.memory_space<vmem>>, %arg6: memref<16x64xbf16, #tpu.memory_space<vmem>>, %arg7: memref<16x1xf32, #tpu.memory_space<vmem>>, %arg8: memref<16x1xf32, #tpu.memory_space<vmem>>, %arg9: memref<16x144xbf16, #tpu.memory_space<vmem>>, %arg10: memref<16x1xf32, #tpu.memory_space<vmem>>, %arg11: memref<16x1xf32, #tpu.memory_space<vmem>>, %arg12: memref<16x144xbf16, #tpu.memory_space<vmem>>, %arg13: memref<16x1xf32, #tpu.memory_space<vmem>>, %arg14: memref<16x1xf32, #tpu.memory_space<vmem>>, %arg15: memref<16x144xbf16, #tpu.memory_space<vmem>>, %arg16: memref<16x1xf32, #tpu.memory_space<vmem>>, %arg17: memref<16x1xf32, #tpu.memory_space<vmem>>, %arg18: memref<16x144xbf16, #tpu.memory_space<vmem>>, %arg19: memref<16x1xf32, #tpu.memory_space<vmem>>, %arg20: memref<16x1xf32, #tpu.memory_space<vmem>>, %arg21: memref<64x16xbf16, #tpu.memory_space<vmem>>, %arg22: memref<64x1xf32, #tpu.memory_space<vmem>>, %arg23: memref<64x1xf32, #tpu.memory_space<vmem>>, %arg24: memref<64x1600xbf16, #tpu.memory_space<vmem>>, %arg25: memref<64x1xf32, #tpu.memory_space<vmem>>, %arg26: memref<1x4x1x384xf32, #tpu.memory_space<vmem>>, %arg27: memref<16x640xbf16, #tpu.memory_space<vmem>>, %arg28: memref<64x640xbf16, #tpu.memory_space<vmem>>) attributes {dimension_semantics = [#tpu.dimension_semantics<parallel>], iteration_bounds = array<i64: 2>, scalar_prefetch = 0 : i64, scratch_operands = 2 : i64, tpu.core_type = #tpu.core_type<tc>, window_params = [{transform_indices = @transform_0, window_bounds = array<i64: 1, 1, 256>}, {pipeline_mode = #tpu.pipeline_mode<synchronous>, transform_indices = @transform_1, window_bounds = array<i64: 1, 384>}, {pipeline_mode = #tpu.pipeline_mode<synchronous>, transform_indices = @transform_2, window_bounds = array<i64: 64, 400>}, {pipeline_mode = #tpu.pipeline_mode<synchronous>, transform_indices = @transform_3, window_bounds = array<i64: 64, 1>}, {pipeline_mode = #tpu.pipeline_mode<synchronous>, transform_indices = @transform_4, window_bounds = array<i64: 64, 1>}, {pipeline_mode = #tpu.pipeline_mode<synchronous>, transform_indices = @transform_5, window_bounds = array<i64: 16, 64>}, {pipeline_mode = #tpu.pipeline_mode<synchronous>, transform_indices = @transform_6, window_bounds = array<i64: 16, 1>}, {pipeline_mode = #tpu.pipeline_mode<synchronous>, transform_indices = @transform_7, window_bounds = array<i64: 16, 1>}, {pipeline_mode = #tpu.pipeline_mode<synchronous>, transform_indices = @transform_8, window_bounds = array<i64: 16, 144>}, {pipeline_mode = #tpu.pipeline_mode<synchronous>, transform_indices = @transform_9, window_bounds = array<i64: 16, 1>}, {pipeline_mode = #tpu.pipeline_mode<synchronous>, transform_indices = @transform_10, window_bounds = array<i64: 16, 1>}, {pipeline_mode = #tpu.pipeline_mode<synchronous>, transform_indices = @transform_11, window_bounds = array<i64: 16, 144>}, {pipeline_mode = #tpu.pipeline_mode<synchronous>, transform_indices = @transform_12, window_bounds = array<i64: 16, 1>}, {pipeline_mode = #tpu.pipeline_mode<synchronous>, transform_indices = @transform_13, window_bounds = array<i64: 16, 1>}, {pipeline_mode = #tpu.pipeline_mode<synchronous>, transform_indices = @transform_14, window_bounds = array<i64: 16, 144>}, {pipeline_mode = #tpu.pipeline_mode<synchronous>, transform_indices = @transform_15, window_bounds = array<i64: 16, 1>}, {pipeline_mode = #tpu.pipeline_mode<synchronous>, transform_indices = @transform_16, window_bounds = array<i64: 16, 1>}, {pipeline_mode = #tpu.pipeline_mode<synchronous>, transform_indices = @transform_17, window_bounds = array<i64: 16, 144>}, {pipeline_mode = #tpu.pipeline_mode<synchronous>, transform_indices = @transform_18, window_bounds = array<i64: 16, 1>}, {pipeline_mode = #tpu.pipeline_mode<synchronous>, transform_indices = @transform_19, window_bounds = array<i64: 16, 1>}, {pipeline_mode = #tpu.pipeline_mode<synchronous>, transform_indices = @transform_20, window_bounds = array<i64: 64, 16>}, {pipeline_mode = #tpu.pipeline_mode<synchronous>, transform_indices = @transform_21, window_bounds = array<i64: 64, 1>}, {pipeline_mode = #tpu.pipeline_mode<synchronous>, transform_indices = @transform_22, window_bounds = array<i64: 64, 1>}, {pipeline_mode = #tpu.pipeline_mode<synchronous>, transform_indices = @transform_23, window_bounds = array<i64: 64, 1600>}, {pipeline_mode = #tpu.pipeline_mode<synchronous>, transform_indices = @transform_24, window_bounds = array<i64: 64, 1>}, {transform_indices = @transform_25, window_bounds = array<i64: 1, 4, 1, 384>}]} {
    %cst = arith.constant 0.000000e+00 : bf16
    %0 = vector.broadcast %cst : bf16 to vector<16x128xbf16>
    %c0 = arith.constant 0 : index
    %c0_0 = arith.constant 0 : index
    %1 = vector.load %arg27[%c0, %c0_0] : memref<16x640xbf16, #tpu.memory_space<vmem>>, vector<16x128xbf16>
    tpu.vector_store %arg27[%c0, %c0_0], %0 {strides = array<i32>} : memref<16x640xbf16, #tpu.memory_space<vmem>>, vector<16x128xbf16>,
    %cst_1 = arith.constant 0.000000e+00 : bf16
    %2 = vector.broadcast %cst_1 : bf16 to vector<16x128xbf16>
    %c0_2 = arith.constant 0 : index
    %c512 = arith.constant 512 : index
    %3 = vector.load %arg27[%c0_2, %c512] : memref<16x640xbf16, #tpu.memory_space<vmem>>, vector<16x128xbf16>
    tpu.vector_store %arg27[%c0_2, %c512], %2 {strides = array<i32>} : memref<16x640xbf16, #tpu.memory_space<vmem>>, vector<16x128xbf16>,
    %cst_3 = arith.constant 0.000000e+00 : bf16
    %4 = vector.broadcast %cst_3 : bf16 to vector<64x128xbf16>
    %c0_4 = arith.constant 0 : index
    %c0_5 = arith.constant 0 : index
    %5 = vector.load %arg28[%c0_4, %c0_5] : memref<64x640xbf16, #tpu.memory_space<vmem>>, vector<64x128xbf16>
    tpu.vector_store %arg28[%c0_4, %c0_5], %4 {strides = array<i32>} : memref<64x640xbf16, #tpu.memory_space<vmem>>, vector<64x128xbf16>,
    %cst_6 = arith.constant 0.000000e+00 : bf16
    %6 = vector.broadcast %cst_6 : bf16 to vector<64x128xbf16>
    %c0_7 = arith.constant 0 : index
    %c512_8 = arith.constant 512 : index
    %7 = vector.load %arg28[%c0_7, %c512_8] : memref<64x640xbf16, #tpu.memory_space<vmem>>, vector<64x128xbf16>
    tpu.vector_store %arg28[%c0_7, %c512_8], %6 {strides = array<i32>} : memref<64x640xbf16, #tpu.memory_space<vmem>>, vector<64x128xbf16>,
    %cst_9 = arith.constant 0.000000e+00 : bf16
    %8 = vector.broadcast %cst_9 : bf16 to vector<16x384xbf16>
    %c0_10 = arith.constant 0 : index
    %c128 = arith.constant 128 : index
    %9 = vector.load %arg27[%c0_10, %c128] : memref<16x640xbf16, #tpu.memory_space<vmem>>, vector<16x384xbf16>
    tpu.vector_store %arg27[%c0_10, %c128], %8 {strides = array<i32>} : memref<16x640xbf16, #tpu.memory_space<vmem>>, vector<16x384xbf16>,
    %c0_11 = arith.constant 0 : index
    %c0_12 = arith.constant 0 : index
    %c0_13 = arith.constant 0 : index
    %10 = vector.load %arg1[%c0_11, %c0_12, %c0_13] : memref<1x1x256xf32, #tpu.memory_space<vmem>>, vector<1x1x16xf32>
    %11 = vector.shape_cast %10 : vector<1x1x16xf32> to vector<1x16xf32>
    %12 = arith.truncf %11 : vector<1x16xf32> to vector<1x16xbf16>
    %c0_14 = arith.constant 0 : index
    %c128_15 = arith.constant 128 : index
    %13 = vector.load %arg27[%c0_14, %c128_15] : memref<16x640xbf16, #tpu.memory_space<vmem>>, vector<1x16xbf16>
    tpu.vector_store %arg27[%c0_14, %c128_15], %12 {strides = array<i32>} : memref<16x640xbf16, #tpu.memory_space<vmem>>, vector<1x16xbf16>,
    %c0_16 = arith.constant 0 : index
    %c0_17 = arith.constant 0 : index
    %c16 = arith.constant 16 : index
    %14 = vector.load %arg1[%c0_16, %c0_17, %c16] : memref<1x1x256xf32, #tpu.memory_space<vmem>>, vector<1x1x16xf32>
    %15 = vector.shape_cast %14 : vector<1x1x16xf32> to vector<1x16xf32>
    %16 = arith.truncf %15 : vector<1x16xf32> to vector<1x16xbf16>
    %c0_18 = arith.constant 0 : index
    %c148 = arith.constant 148 : index
    %17 = vector.load %arg27[%c0_18, %c148] : memref<16x640xbf16, #tpu.memory_space<vmem>>, vector<1x16xbf16>
    tpu.vector_store %arg27[%c0_18, %c148], %16 {strides = array<i32>} : memref<16x640xbf16, #tpu.memory_space<vmem>>, vector<1x16xbf16>,
    %c0_19 = arith.constant 0 : index
    %c0_20 = arith.constant 0 : index
    %c32 = arith.constant 32 : index
    %18 = vector.load %arg1[%c0_19, %c0_20, %c32] : memref<1x1x256xf32, #tpu.memory_space<vmem>>, vector<1x1x16xf32>
    %19 = vector.shape_cast %18 : vector<1x1x16xf32> to vector<1x16xf32>
    %20 = arith.truncf %19 : vector<1x16xf32> to vector<1x16xbf16>
    %c0_21 = arith.constant 0 : index
    %c168 = arith.constant 168 : index
    %21 = vector.load %arg27[%c0_21, %c168] : memref<16x640xbf16, #tpu.memory_space<vmem>>, vector<1x16xbf16>
    tpu.vector_store %arg27[%c0_21, %c168], %20 {strides = array<i32>} : memref<16x640xbf16, #tpu.memory_space<vmem>>, vector<1x16xbf16>,
    %c0_22 = arith.constant 0 : index
    %c0_23 = arith.constant 0 : index
    %c48 = arith.constant 48 : index
    %22 = vector.load %arg1[%c0_22, %c0_23, %c48] : memref<1x1x256xf32, #tpu.memory_space<vmem>>, vector<1x1x16xf32>
    %23 = vector.shape_cast %22 : vector<1x1x16xf32> to vector<1x16xf32>
    %24 = arith.truncf %23 : vector<1x16xf32> to vector<1x16xbf16>
    %c0_24 = arith.constant 0 : index
    %c188 = arith.constant 188 : index
    %25 = vector.load %arg27[%c0_24, %c188] : memref<16x640xbf16, #tpu.memory_space<vmem>>, vector<1x16xbf16>
    tpu.vector_store %arg27[%c0_24, %c188], %24 {strides = array<i32>} : memref<16x640xbf16, #tpu.memory_space<vmem>>, vector<1x16xbf16>,
    %c0_25 = arith.constant 0 : index
    %c0_26 = arith.constant 0 : index
    %c64 = arith.constant 64 : index
    %26 = vector.load %arg1[%c0_25, %c0_26, %c64] : memref<1x1x256xf32, #tpu.memory_space<vmem>>, vector<1x1x16xf32>
    %27 = vector.shape_cast %26 : vector<1x1x16xf32> to vector<1x16xf32>
    %28 = arith.truncf %27 : vector<1x16xf32> to vector<1x16xbf16>
    %c0_27 = arith.constant 0 : index
    %c208 = arith.constant 208 : index
    %29 = vector.load %arg27[%c0_27, %c208] : memref<16x640xbf16, #tpu.memory_space<vmem>>, vector<1x16xbf16>
    tpu.vector_store %arg27[%c0_27, %c208], %28 {strides = array<i32>} : memref<16x640xbf16, #tpu.memory_space<vmem>>, vector<1x16xbf16>,
    %c0_28 = arith.constant 0 : index
    %c0_29 = arith.constant 0 : index
    %c80 = arith.constant 80 : index
    %30 = vector.load %arg1[%c0_28, %c0_29, %c80] : memref<1x1x256xf32, #tpu.memory_space<vmem>>, vector<1x1x16xf32>
    %31 = vector.shape_cast %30 : vector<1x1x16xf32> to vector<1x16xf32>
    %32 = arith.truncf %31 : vector<1x16xf32> to vector<1x16xbf16>
    %c0_30 = arith.constant 0 : index
    %c228 = arith.constant 228 : index
    %33 = vector.load %arg27[%c0_30, %c228] : memref<16x640xbf16, #tpu.memory_space<vmem>>, vector<1x16xbf16>
    tpu.vector_store %arg27[%c0_30, %c228], %32 {strides = array<i32>} : memref<16x640xbf16, #tpu.memory_space<vmem>>, vector<1x16xbf16>,
    %c0_31 = arith.constant 0 : index
    %c0_32 = arith.constant 0 : index
    %c96 = arith.constant 96 : index
    %34 = vector.load %arg1[%c0_31, %c0_32, %c96] : memref<1x1x256xf32, #tpu.memory_space<vmem>>, vector<1x1x16xf32>
    %35 = vector.shape_cast %34 : vector<1x1x16xf32> to vector<1x16xf32>
    %36 = arith.truncf %35 : vector<1x16xf32> to vector<1x16xbf16>
    %c0_33 = arith.constant 0 : index
    %c248 = arith.constant 248 : index
    %37 = vector.load %arg27[%c0_33, %c248] : memref<16x640xbf16, #tpu.memory_space<vmem>>, vector<1x16xbf16>
    tpu.vector_store %arg27[%c0_33, %c248], %36 {strides = array<i32>} : memref<16x640xbf16, #tpu.memory_space<vmem>>, vector<1x16xbf16>,
    %c0_34 = arith.constant 0 : index
    %c0_35 = arith.constant 0 : index
    %c112 = arith.constant 112 : index
    %38 = vector.load %arg1[%c0_34, %c0_35, %c112] : memref<1x1x256xf32, #tpu.memory_space<vmem>>, vector<1x1x16xf32>
    %39 = vector.shape_cast %38 : vector<1x1x16xf32> to vector<1x16xf32>
    %40 = arith.truncf %39 : vector<1x16xf32> to vector<1x16xbf16>
    %c0_36 = arith.constant 0 : index
    %c268 = arith.constant 268 : index
    %41 = vector.load %arg27[%c0_36, %c268] : memref<16x640xbf16, #tpu.memory_space<vmem>>, vector<1x16xbf16>
    tpu.vector_store %arg27[%c0_36, %c268], %40 {strides = array<i32>} : memref<16x640xbf16, #tpu.memory_space<vmem>>, vector<1x16xbf16>,
    %c0_37 = arith.constant 0 : index
    %c0_38 = arith.constant 0 : index
    %c128_39 = arith.constant 128 : index
    %42 = vector.load %arg1[%c0_37, %c0_38, %c128_39] : memref<1x1x256xf32, #tpu.memory_space<vmem>>, vector<1x1x16xf32>
    %43 = vector.shape_cast %42 : vector<1x1x16xf32> to vector<1x16xf32>
    %44 = arith.truncf %43 : vector<1x16xf32> to vector<1x16xbf16>
    %c0_40 = arith.constant 0 : index
    %c288 = arith.constant 288 : index
    %45 = vector.load %arg27[%c0_40, %c288] : memref<16x640xbf16, #tpu.memory_space<vmem>>, vector<1x16xbf16>
    tpu.vector_store %arg27[%c0_40, %c288], %44 {strides = array<i32>} : memref<16x640xbf16, #tpu.memory_space<vmem>>, vector<1x16xbf16>,
    %c0_41 = arith.constant 0 : index
    %c0_42 = arith.constant 0 : index
    %c144 = arith.constant 144 : index
    %46 = vector.load %arg1[%c0_41, %c0_42, %c144] : memref<1x1x256xf32, #tpu.memory_space<vmem>>, vector<1x1x16xf32>
    %47 = vector.shape_cast %46 : vector<1x1x16xf32> to vector<1x16xf32>
    %48 = arith.truncf %47 : vector<1x16xf32> to vector<1x16xbf16>
    %c0_43 = arith.constant 0 : index
    %c308 = arith.constant 308 : index
    %49 = vector.load %arg27[%c0_43, %c308] : memref<16x640xbf16, #tpu.memory_space<vmem>>, vector<1x16xbf16>
    tpu.vector_store %arg27[%c0_43, %c308], %48 {strides = array<i32>} : memref<16x640xbf16, #tpu.memory_space<vmem>>, vector<1x16xbf16>,
    %c0_44 = arith.constant 0 : index
    %c0_45 = arith.constant 0 : index
    %c160 = arith.constant 160 : index
    %50 = vector.load %arg1[%c0_44, %c0_45, %c160] : memref<1x1x256xf32, #tpu.memory_space<vmem>>, vector<1x1x16xf32>
    %51 = vector.shape_cast %50 : vector<1x1x16xf32> to vector<1x16xf32>
    %52 = arith.truncf %51 : vector<1x16xf32> to vector<1x16xbf16>
    %c0_46 = arith.constant 0 : index
    %c328 = arith.constant 328 : index
    %53 = vector.load %arg27[%c0_46, %c328] : memref<16x640xbf16, #tpu.memory_space<vmem>>, vector<1x16xbf16>
    tpu.vector_store %arg27[%c0_46, %c328], %52 {strides = array<i32>} : memref<16x640xbf16, #tpu.memory_space<vmem>>, vector<1x16xbf16>,
    %c0_47 = arith.constant 0 : index
    %c0_48 = arith.constant 0 : index
    %c176 = arith.constant 176 : index
    %54 = vector.load %arg1[%c0_47, %c0_48, %c176] : memref<1x1x256xf32, #tpu.memory_space<vmem>>, vector<1x1x16xf32>
    %55 = vector.shape_cast %54 : vector<1x1x16xf32> to vector<1x16xf32>
    %56 = arith.truncf %55 : vector<1x16xf32> to vector<1x16xbf16>
    %c0_49 = arith.constant 0 : index
    %c348 = arith.constant 348 : index
    %57 = vector.load %arg27[%c0_49, %c348] : memref<16x640xbf16, #tpu.memory_space<vmem>>, vector<1x16xbf16>
    tpu.vector_store %arg27[%c0_49, %c348], %56 {strides = array<i32>} : memref<16x640xbf16, #tpu.memory_space<vmem>>, vector<1x16xbf16>,
    %c0_50 = arith.constant 0 : index
    %c0_51 = arith.constant 0 : index
    %c192 = arith.constant 192 : index
    %58 = vector.load %arg1[%c0_50, %c0_51, %c192] : memref<1x1x256xf32, #tpu.memory_space<vmem>>, vector<1x1x16xf32>
    %59 = vector.shape_cast %58 : vector<1x1x16xf32> to vector<1x16xf32>
    %60 = arith.truncf %59 : vector<1x16xf32> to vector<1x16xbf16>
    %c0_52 = arith.constant 0 : index
    %c368 = arith.constant 368 : index
    %61 = vector.load %arg27[%c0_52, %c368] : memref<16x640xbf16, #tpu.memory_space<vmem>>, vector<1x16xbf16>
    tpu.vector_store %arg27[%c0_52, %c368], %60 {strides = array<i32>} : memref<16x640xbf16, #tpu.memory_space<vmem>>, vector<1x16xbf16>,
    %c0_53 = arith.constant 0 : index
    %c0_54 = arith.constant 0 : index
    %c208_55 = arith.constant 208 : index
    %62 = vector.load %arg1[%c0_53, %c0_54, %c208_55] : memref<1x1x256xf32, #tpu.memory_space<vmem>>, vector<1x1x16xf32>
    %63 = vector.shape_cast %62 : vector<1x1x16xf32> to vector<1x16xf32>
    %64 = arith.truncf %63 : vector<1x16xf32> to vector<1x16xbf16>
    %c0_56 = arith.constant 0 : index
    %c388 = arith.constant 388 : index
    %65 = vector.load %arg27[%c0_56, %c388] : memref<16x640xbf16, #tpu.memory_space<vmem>>, vector<1x16xbf16>
    tpu.vector_store %arg27[%c0_56, %c388], %64 {strides = array<i32>} : memref<16x640xbf16, #tpu.memory_space<vmem>>, vector<1x16xbf16>,
    %c0_57 = arith.constant 0 : index
    %c0_58 = arith.constant 0 : index
    %c224 = arith.constant 224 : index
    %66 = vector.load %arg1[%c0_57, %c0_58, %c224] : memref<1x1x256xf32, #tpu.memory_space<vmem>>, vector<1x1x16xf32>
    %67 = vector.shape_cast %66 : vector<1x1x16xf32> to vector<1x16xf32>
    %68 = arith.truncf %67 : vector<1x16xf32> to vector<1x16xbf16>
    %c0_59 = arith.constant 0 : index
    %c408 = arith.constant 408 : index
    %69 = vector.load %arg27[%c0_59, %c408] : memref<16x640xbf16, #tpu.memory_space<vmem>>, vector<1x16xbf16>
    tpu.vector_store %arg27[%c0_59, %c408], %68 {strides = array<i32>} : memref<16x640xbf16, #tpu.memory_space<vmem>>, vector<1x16xbf16>,
    %c0_60 = arith.constant 0 : index
    %c0_61 = arith.constant 0 : index
    %c240 = arith.constant 240 : index
    %70 = vector.load %arg1[%c0_60, %c0_61, %c240] : memref<1x1x256xf32, #tpu.memory_space<vmem>>, vector<1x1x16xf32>
    %71 = vector.shape_cast %70 : vector<1x1x16xf32> to vector<1x16xf32>
    %72 = arith.truncf %71 : vector<1x16xf32> to vector<1x16xbf16>
    %c0_62 = arith.constant 0 : index
    %c428 = arith.constant 428 : index
    %73 = vector.load %arg27[%c0_62, %c428] : memref<16x640xbf16, #tpu.memory_space<vmem>>, vector<1x16xbf16>
    tpu.vector_store %arg27[%c0_62, %c428], %72 {strides = array<i32>} : memref<16x640xbf16, #tpu.memory_space<vmem>>, vector<1x16xbf16>,
    %c0_63 = arith.constant 0 : index
    %c0_64 = arith.constant 0 : index
    %74 = vector.load %arg2[%c0_63, %c0_64] : memref<1x384xf32, #tpu.memory_space<vmem>>, vector<1x384xf32>
    %c0_65 = arith.constant 0 : index
    %c86 = arith.constant 86 : index
    %75 = vector.load %arg27[%c0_65, %c86] : memref<16x640xbf16, #tpu.memory_space<vmem>>, vector<16x384xbf16>
    %c0_66 = arith.constant 0 : index
    %c87 = arith.constant 87 : index
    %76 = vector.load %arg27[%c0_66, %c87] : memref<16x640xbf16, #tpu.memory_space<vmem>>, vector<16x384xbf16>
    %c0_67 = arith.constant 0 : index
    %c88 = arith.constant 88 : index
    %77 = vector.load %arg27[%c0_67, %c88] : memref<16x640xbf16, #tpu.memory_space<vmem>>, vector<16x384xbf16>
    %c0_68 = arith.constant 0 : index
    %c89 = arith.constant 89 : index
    %78 = vector.load %arg27[%c0_68, %c89] : memref<16x640xbf16, #tpu.memory_space<vmem>>, vector<16x384xbf16>
    %c0_69 = arith.constant 0 : index
    %c90 = arith.constant 90 : index
    %79 = vector.load %arg27[%c0_69, %c90] : memref<16x640xbf16, #tpu.memory_space<vmem>>, vector<16x384xbf16>
    %c0_70 = arith.constant 0 : index
    %c106 = arith.constant 106 : index
    %80 = vector.load %arg27[%c0_70, %c106] : memref<16x640xbf16, #tpu.memory_space<vmem>>, vector<16x384xbf16>
    %c0_71 = arith.constant 0 : index
    %c107 = arith.constant 107 : index
    %81 = vector.load %arg27[%c0_71, %c107] : memref<16x640xbf16, #tpu.memory_space<vmem>>, vector<16x384xbf16>
    %c0_72 = arith.constant 0 : index
    %c108 = arith.constant 108 : index
    %82 = vector.load %arg27[%c0_72, %c108] : memref<16x640xbf16, #tpu.memory_space<vmem>>, vector<16x384xbf16>
    %c0_73 = arith.constant 0 : index
    %c109 = arith.constant 109 : index
    %83 = vector.load %arg27[%c0_73, %c109] : memref<16x640xbf16, #tpu.memory_space<vmem>>, vector<16x384xbf16>
    %c0_74 = arith.constant 0 : index
    %c110 = arith.constant 110 : index
    %84 = vector.load %arg27[%c0_74, %c110] : memref<16x640xbf16, #tpu.memory_space<vmem>>, vector<16x384xbf16>
    %c0_75 = arith.constant 0 : index
    %c126 = arith.constant 126 : index
    %85 = vector.load %arg27[%c0_75, %c126] : memref<16x640xbf16, #tpu.memory_space<vmem>>, vector<16x384xbf16>
    %c0_76 = arith.constant 0 : index
    %c127 = arith.constant 127 : index
    %86 = vector.load %arg27[%c0_76, %c127] : memref<16x640xbf16, #tpu.memory_space<vmem>>, vector<16x384xbf16>
    %c0_77 = arith.constant 0 : index
    %c128_78 = arith.constant 128 : index
    %87 = vector.load %arg27[%c0_77, %c128_78] : memref<16x640xbf16, #tpu.memory_space<vmem>>, vector<16x384xbf16>
    %c0_79 = arith.constant 0 : index
    %c129 = arith.constant 129 : index
    %88 = vector.load %arg27[%c0_79, %c129] : memref<16x640xbf16, #tpu.memory_space<vmem>>, vector<16x384xbf16>
    %c0_80 = arith.constant 0 : index
    %c130 = arith.constant 130 : index
    %89 = vector.load %arg27[%c0_80, %c130] : memref<16x640xbf16, #tpu.memory_space<vmem>>, vector<16x384xbf16>
    %c0_81 = arith.constant 0 : index
    %c146 = arith.constant 146 : index
    %90 = vector.load %arg27[%c0_81, %c146] : memref<16x640xbf16, #tpu.memory_space<vmem>>, vector<16x384xbf16>
    %c0_82 = arith.constant 0 : index
    %c147 = arith.constant 147 : index
    %91 = vector.load %arg27[%c0_82, %c147] : memref<16x640xbf16, #tpu.memory_space<vmem>>, vector<16x384xbf16>
    %c0_83 = arith.constant 0 : index
    %c148_84 = arith.constant 148 : index
    %92 = vector.load %arg27[%c0_83, %c148_84] : memref<16x640xbf16, #tpu.memory_space<vmem>>, vector<16x384xbf16>
    %c0_85 = arith.constant 0 : index
    %c149 = arith.constant 149 : index
    %93 = vector.load %arg27[%c0_85, %c149] : memref<16x640xbf16, #tpu.memory_space<vmem>>, vector<16x384xbf16>
    %c0_86 = arith.constant 0 : index
    %c150 = arith.constant 150 : index
    %94 = vector.load %arg27[%c0_86, %c150] : memref<16x640xbf16, #tpu.memory_space<vmem>>, vector<16x384xbf16>
    %c0_87 = arith.constant 0 : index
    %c166 = arith.constant 166 : index
    %95 = vector.load %arg27[%c0_87, %c166] : memref<16x640xbf16, #tpu.memory_space<vmem>>, vector<16x384xbf16>
    %c0_88 = arith.constant 0 : index
    %c167 = arith.constant 167 : index
    %96 = vector.load %arg27[%c0_88, %c167] : memref<16x640xbf16, #tpu.memory_space<vmem>>, vector<16x384xbf16>
    %c0_89 = arith.constant 0 : index
    %c168_90 = arith.constant 168 : index
    %97 = vector.load %arg27[%c0_89, %c168_90] : memref<16x640xbf16, #tpu.memory_space<vmem>>, vector<16x384xbf16>
    %c0_91 = arith.constant 0 : index
    %c169 = arith.constant 169 : index
    %98 = vector.load %arg27[%c0_91, %c169] : memref<16x640xbf16, #tpu.memory_space<vmem>>, vector<16x384xbf16>
    %c0_92 = arith.constant 0 : index
    %c170 = arith.constant 170 : index
    %99 = vector.load %arg27[%c0_92, %c170] : memref<16x640xbf16, #tpu.memory_space<vmem>>, vector<16x384xbf16>
    %100 = tpu.concatenate %75, %76, %77, %78, %79, %80, %81, %82, %83, %84, %85, %86, %87, %88, %89, %90 in 0 : vector<16x384xbf16>, vector<16x384xbf16>, vector<16x384xbf16>, vector<16x384xbf16>, vector<16x384xbf16>, vector<16x384xbf16>, vector<16x384xbf16>, vector<16x384xbf16>, vector<16x384xbf16>, vector<16x384xbf16>, vector<16x384xbf16>, vector<16x384xbf16>, vector<16x384xbf16>, vector<16x384xbf16>, vector<16x384xbf16>, vector<16x384xbf16> -> vector<256x384xbf16>
    %101 = tpu.concatenate %91, %92, %93, %94, %95, %96, %97, %98, %99 in 0 : vector<16x384xbf16>, vector<16x384xbf16>, vector<16x384xbf16>, vector<16x384xbf16>, vector<16x384xbf16>, vector<16x384xbf16>, vector<16x384xbf16>, vector<16x384xbf16>, vector<16x384xbf16> -> vector<144x384xbf16>
    %102 = tpu.concatenate %100, %101 in 0 : vector<256x384xbf16>, vector<144x384xbf16> -> vector<400x384xbf16>
    %c0_93 = arith.constant 0 : index
    %c0_94 = arith.constant 0 : index
    %103 = vector.load %arg3[%c0_93, %c0_94] : memref<64x400xbf16, #tpu.memory_space<vmem>>, vector<64x400xbf16>
    %cst_95 = arith.constant dense<0.000000e+00> : vector<64x384xf32>
    %104 = tpu.matmul %103, %102, %cst_95 {dimension_numbers = #tpu.dot_dimension_numbers<[1], [0], [0], [1], [0, 0, 1, 1], [], []>} : vector<64x400xbf16>, vector<400x384xbf16>, vector<64x384xf32> -> vector<64x384xf32>
    %c0_96 = arith.constant 0 : index
    %c0_97 = arith.constant 0 : index
    %105 = vector.load %arg4[%c0_96, %c0_97] : memref<64x1xf32, #tpu.memory_space<vmem>>, vector<64x1xf32>
    %106 = vector.broadcast %105 : vector<64x1xf32> to vector<64x384xf32>
    %107 = arith.addf %104, %106 : vector<64x384xf32>
    %c0_98 = arith.constant 0 : index
    %c0_99 = arith.constant 0 : index
    %108 = vector.load %arg5[%c0_98, %c0_99] : memref<64x1xf32, #tpu.memory_space<vmem>>, vector<64x1xf32>
    %cst_100 = arith.constant 0.000000e+00 : f32
    %109 = vector.broadcast %cst_100 : f32 to vector<64x384xf32>
    %110 = arith.cmpf ogt, %107, %109 : vector<64x384xf32>
    %111 = vector.broadcast %108 : vector<64x1xf32> to vector<64x384xf32>
    %112 = arith.mulf %111, %107 : vector<64x384xf32>
    %113 = arith.select %110, %107, %112 : vector<64x384xi1>, vector<64x384xf32>
    %114 = vector.broadcast %74 : vector<1x384xf32> to vector<64x384xf32>
    %115 = arith.mulf %113, %114 : vector<64x384xf32>
    %116 = arith.truncf %115 : vector<64x384xf32> to vector<64x384xbf16>
    %c0_101 = arith.constant 0 : index
    %c128_102 = arith.constant 128 : index
    %117 = vector.load %arg28[%c0_101, %c128_102] : memref<64x640xbf16, #tpu.memory_space<vmem>>, vector<64x384xbf16>
    tpu.vector_store %arg28[%c0_101, %c128_102], %116 {strides = array<i32>} : memref<64x640xbf16, #tpu.memory_space<vmem>>, vector<64x384xbf16>,
    %c0_103 = arith.constant 0 : index
    %c128_104 = arith.constant 128 : index
    %118 = vector.load %arg28[%c0_103, %c128_104] : memref<64x640xbf16, #tpu.memory_space<vmem>>, vector<64x384xbf16>
    %c0_105 = arith.constant 0 : index
    %c0_106 = arith.constant 0 : index
    %119 = vector.load %arg6[%c0_105, %c0_106] : memref<16x64xbf16, #tpu.memory_space<vmem>>, vector<16x64xbf16>
    %cst_107 = arith.constant dense<0.000000e+00> : vector<16x384xf32>
    %120 = tpu.matmul %119, %118, %cst_107 {dimension_numbers = #tpu.dot_dimension_numbers<[1], [0], [0], [1], [0, 0, 1, 1], [], []>} : vector<16x64xbf16>, vector<64x384xbf16>, vector<16x384xf32> -> vector<16x384xf32>
    %c0_108 = arith.constant 0 : index
    %c0_109 = arith.constant 0 : index
    %121 = vector.load %arg7[%c0_108, %c0_109] : memref<16x1xf32, #tpu.memory_space<vmem>>, vector<16x1xf32>
    %122 = vector.broadcast %121 : vector<16x1xf32> to vector<16x384xf32>
    %123 = arith.addf %120, %122 : vector<16x384xf32>
    %c0_110 = arith.constant 0 : index
    %c0_111 = arith.constant 0 : index
    %124 = vector.load %arg8[%c0_110, %c0_111] : memref<16x1xf32, #tpu.memory_space<vmem>>, vector<16x1xf32>
    %cst_112 = arith.constant 0.000000e+00 : f32
    %125 = vector.broadcast %cst_112 : f32 to vector<16x384xf32>
    %126 = arith.cmpf ogt, %123, %125 : vector<16x384xf32>
    %127 = vector.broadcast %124 : vector<16x1xf32> to vector<16x384xf32>
    %128 = arith.mulf %127, %123 : vector<16x384xf32>
    %129 = arith.select %126, %123, %128 : vector<16x384xi1>, vector<16x384xf32>
    %130 = vector.broadcast %74 : vector<1x384xf32> to vector<16x384xf32>
    %131 = arith.mulf %129, %130 : vector<16x384xf32>
    %132 = arith.truncf %131 : vector<16x384xf32> to vector<16x384xbf16>
    %c0_113 = arith.constant 0 : index
    %c128_114 = arith.constant 128 : index
    %133 = vector.load %arg27[%c0_113, %c128_114] : memref<16x640xbf16, #tpu.memory_space<vmem>>, vector<16x384xbf16>
    tpu.vector_store %arg27[%c0_113, %c128_114], %132 {strides = array<i32>} : memref<16x640xbf16, #tpu.memory_space<vmem>>, vector<16x384xbf16>,
    %c0_115 = arith.constant 0 : index
    %c107_116 = arith.constant 107 : index
    %134 = vector.load %arg27[%c0_115, %c107_116] : memref<16x640xbf16, #tpu.memory_space<vmem>>, vector<16x384xbf16>
    %c0_117 = arith.constant 0 : index
    %c108_118 = arith.constant 108 : index
    %135 = vector.load %arg27[%c0_117, %c108_118] : memref<16x640xbf16, #tpu.memory_space<vmem>>, vector<16x384xbf16>
    %c0_119 = arith.constant 0 : index
    %c109_120 = arith.constant 109 : index
    %136 = vector.load %arg27[%c0_119, %c109_120] : memref<16x640xbf16, #tpu.memory_space<vmem>>, vector<16x384xbf16>
    %c0_121 = arith.constant 0 : index
    %c127_122 = arith.constant 127 : index
    %137 = vector.load %arg27[%c0_121, %c127_122] : memref<16x640xbf16, #tpu.memory_space<vmem>>, vector<16x384xbf16>
    %c0_123 = arith.constant 0 : index
    %c128_124 = arith.constant 128 : index
    %138 = vector.load %arg27[%c0_123, %c128_124] : memref<16x640xbf16, #tpu.memory_space<vmem>>, vector<16x384xbf16>
    %c0_125 = arith.constant 0 : index
    %c129_126 = arith.constant 129 : index
    %139 = vector.load %arg27[%c0_125, %c129_126] : memref<16x640xbf16, #tpu.memory_space<vmem>>, vector<16x384xbf16>
    %c0_127 = arith.constant 0 : index
    %c147_128 = arith.constant 147 : index
    %140 = vector.load %arg27[%c0_127, %c147_128] : memref<16x640xbf16, #tpu.memory_space<vmem>>, vector<16x384xbf16>
    %c0_129 = arith.constant 0 : index
    %c148_130 = arith.constant 148 : index
    %141 = vector.load %arg27[%c0_129, %c148_130] : memref<16x640xbf16, #tpu.memory_space<vmem>>, vector<16x384xbf16>
    %c0_131 = arith.constant 0 : index
    %c149_132 = arith.constant 149 : index
    %142 = vector.load %arg27[%c0_131, %c149_132] : memref<16x640xbf16, #tpu.memory_space<vmem>>, vector<16x384xbf16>
    %143 = tpu.concatenate %134, %135, %136, %137, %138, %139, %140, %141, %142 in 0 : vector<16x384xbf16>, vector<16x384xbf16>, vector<16x384xbf16>, vector<16x384xbf16>, vector<16x384xbf16>, vector<16x384xbf16>, vector<16x384xbf16>, vector<16x384xbf16>, vector<16x384xbf16> -> vector<144x384xbf16>
    %c0_133 = arith.constant 0 : index
    %c0_134 = arith.constant 0 : index
    %144 = vector.load %arg9[%c0_133, %c0_134] : memref<16x144xbf16, #tpu.memory_space<vmem>>, vector<16x144xbf16>
    %cst_135 = arith.constant dense<0.000000e+00> : vector<16x384xf32>
    %145 = tpu.matmul %144, %143, %cst_135 {dimension_numbers = #tpu.dot_dimension_numbers<[1], [0], [0], [1], [0, 0, 1, 1], [], []>} : vector<16x144xbf16>, vector<144x384xbf16>, vector<16x384xf32> -> vector<16x384xf32>
    %c0_136 = arith.constant 0 : index
    %c0_137 = arith.constant 0 : index
    %146 = vector.load %arg10[%c0_136, %c0_137] : memref<16x1xf32, #tpu.memory_space<vmem>>, vector<16x1xf32>
    %147 = vector.broadcast %146 : vector<16x1xf32> to vector<16x384xf32>
    %148 = arith.addf %145, %147 : vector<16x384xf32>
    %c0_138 = arith.constant 0 : index
    %c0_139 = arith.constant 0 : index
    %149 = vector.load %arg11[%c0_138, %c0_139] : memref<16x1xf32, #tpu.memory_space<vmem>>, vector<16x1xf32>
    %cst_140 = arith.constant 0.000000e+00 : f32
    %150 = vector.broadcast %cst_140 : f32 to vector<16x384xf32>
    %151 = arith.cmpf ogt, %148, %150 : vector<16x384xf32>
    %152 = vector.broadcast %149 : vector<16x1xf32> to vector<16x384xf32>
    %153 = arith.mulf %152, %148 : vector<16x384xf32>
    %154 = arith.select %151, %148, %153 : vector<16x384xi1>, vector<16x384xf32>
    %155 = vector.broadcast %74 : vector<1x384xf32> to vector<16x384xf32>
    %156 = arith.mulf %154, %155 : vector<16x384xf32>
    %157 = arith.truncf %156 : vector<16x384xf32> to vector<16x384xbf16>
    %c0_141 = arith.constant 0 : index
    %c128_142 = arith.constant 128 : index
    %158 = vector.load %arg28[%c0_141, %c128_142] : memref<64x640xbf16, #tpu.memory_space<vmem>>, vector<16x384xbf16>
    tpu.vector_store %arg28[%c0_141, %c128_142], %157 {strides = array<i32>} : memref<64x640xbf16, #tpu.memory_space<vmem>>, vector<16x384xbf16>,
    %c0_143 = arith.constant 0 : index
    %c107_144 = arith.constant 107 : index
    %159 = vector.load %arg28[%c0_143, %c107_144] : memref<64x640xbf16, #tpu.memory_space<vmem>>, vector<16x384xbf16>
    %c0_145 = arith.constant 0 : index
    %c108_146 = arith.constant 108 : index
    %160 = vector.load %arg28[%c0_145, %c108_146] : memref<64x640xbf16, #tpu.memory_space<vmem>>, vector<16x384xbf16>
    %c0_147 = arith.constant 0 : index
    %c109_148 = arith.constant 109 : index
    %161 = vector.load %arg28[%c0_147, %c109_148] : memref<64x640xbf16, #tpu.memory_space<vmem>>, vector<16x384xbf16>
    %c0_149 = arith.constant 0 : index
    %c127_150 = arith.constant 127 : index
    %162 = vector.load %arg28[%c0_149, %c127_150] : memref<64x640xbf16, #tpu.memory_space<vmem>>, vector<16x384xbf16>
    %c0_151 = arith.constant 0 : index
    %c128_152 = arith.constant 128 : index
    %163 = vector.load %arg28[%c0_151, %c128_152] : memref<64x640xbf16, #tpu.memory_space<vmem>>, vector<16x384xbf16>
    %c0_153 = arith.constant 0 : index
    %c129_154 = arith.constant 129 : index
    %164 = vector.load %arg28[%c0_153, %c129_154] : memref<64x640xbf16, #tpu.memory_space<vmem>>, vector<16x384xbf16>
    %c0_155 = arith.constant 0 : index
    %c147_156 = arith.constant 147 : index
    %165 = vector.load %arg28[%c0_155, %c147_156] : memref<64x640xbf16, #tpu.memory_space<vmem>>, vector<16x384xbf16>
    %c0_157 = arith.constant 0 : index
    %c148_158 = arith.constant 148 : index
    %166 = vector.load %arg28[%c0_157, %c148_158] : memref<64x640xbf16, #tpu.memory_space<vmem>>, vector<16x384xbf16>
    %c0_159 = arith.constant 0 : index
    %c149_160 = arith.constant 149 : index
    %167 = vector.load %arg28[%c0_159, %c149_160] : memref<64x640xbf16, #tpu.memory_space<vmem>>, vector<16x384xbf16>
    %168 = tpu.concatenate %159, %160, %161, %162, %163, %164, %165, %166, %167 in 0 : vector<16x384xbf16>, vector<16x384xbf16>, vector<16x384xbf16>, vector<16x384xbf16>, vector<16x384xbf16>, vector<16x384xbf16>, vector<16x384xbf16>, vector<16x384xbf16>, vector<16x384xbf16> -> vector<144x384xbf16>
    %c0_161 = arith.constant 0 : index
    %c0_162 = arith.constant 0 : index
    %169 = vector.load %arg12[%c0_161, %c0_162] : memref<16x144xbf16, #tpu.memory_space<vmem>>, vector<16x144xbf16>
    %cst_163 = arith.constant dense<0.000000e+00> : vector<16x384xf32>
    %170 = tpu.matmul %169, %168, %cst_163 {dimension_numbers = #tpu.dot_dimension_numbers<[1], [0], [0], [1], [0, 0, 1, 1], [], []>} : vector<16x144xbf16>, vector<144x384xbf16>, vector<16x384xf32> -> vector<16x384xf32>
    %c0_164 = arith.constant 0 : index
    %c0_165 = arith.constant 0 : index
    %171 = vector.load %arg13[%c0_164, %c0_165] : memref<16x1xf32, #tpu.memory_space<vmem>>, vector<16x1xf32>
    %172 = vector.broadcast %171 : vector<16x1xf32> to vector<16x384xf32>
    %173 = arith.addf %170, %172 : vector<16x384xf32>
    %c0_166 = arith.constant 0 : index
    %c0_167 = arith.constant 0 : index
    %174 = vector.load %arg14[%c0_166, %c0_167] : memref<16x1xf32, #tpu.memory_space<vmem>>, vector<16x1xf32>
    %cst_168 = arith.constant 0.000000e+00 : f32
    %175 = vector.broadcast %cst_168 : f32 to vector<16x384xf32>
    %176 = arith.cmpf ogt, %173, %175 : vector<16x384xf32>
    %177 = vector.broadcast %174 : vector<16x1xf32> to vector<16x384xf32>
    %178 = arith.mulf %177, %173 : vector<16x384xf32>
    %179 = arith.select %176, %173, %178 : vector<16x384xi1>, vector<16x384xf32>
    %180 = vector.broadcast %74 : vector<1x384xf32> to vector<16x384xf32>
    %181 = arith.mulf %179, %180 : vector<16x384xf32>
    %182 = arith.truncf %181 : vector<16x384xf32> to vector<16x384xbf16>
    %c0_169 = arith.constant 0 : index
    %c128_170 = arith.constant 128 : index
    %183 = vector.load %arg27[%c0_169, %c128_170] : memref<16x640xbf16, #tpu.memory_space<vmem>>, vector<16x384xbf16>
    tpu.vector_store %arg27[%c0_169, %c128_170], %182 {strides = array<i32>} : memref<16x640xbf16, #tpu.memory_space<vmem>>, vector<16x384xbf16>,
    %c0_171 = arith.constant 0 : index
    %c107_172 = arith.constant 107 : index
    %184 = vector.load %arg27[%c0_171, %c107_172] : memref<16x640xbf16, #tpu.memory_space<vmem>>, vector<16x384xbf16>
    %c0_173 = arith.constant 0 : index
    %c108_174 = arith.constant 108 : index
    %185 = vector.load %arg27[%c0_173, %c108_174] : memref<16x640xbf16, #tpu.memory_space<vmem>>, vector<16x384xbf16>
    %c0_175 = arith.constant 0 : index
    %c109_176 = arith.constant 109 : index
    %186 = vector.load %arg27[%c0_175, %c109_176] : memref<16x640xbf16, #tpu.memory_space<vmem>>, vector<16x384xbf16>
    %c0_177 = arith.constant 0 : index
    %c127_178 = arith.constant 127 : index
    %187 = vector.load %arg27[%c0_177, %c127_178] : memref<16x640xbf16, #tpu.memory_space<vmem>>, vector<16x384xbf16>
    %c0_179 = arith.constant 0 : index
    %c128_180 = arith.constant 128 : index
    %188 = vector.load %arg27[%c0_179, %c128_180] : memref<16x640xbf16, #tpu.memory_space<vmem>>, vector<16x384xbf16>
    %c0_181 = arith.constant 0 : index
    %c129_182 = arith.constant 129 : index
    %189 = vector.load %arg27[%c0_181, %c129_182] : memref<16x640xbf16, #tpu.memory_space<vmem>>, vector<16x384xbf16>
    %c0_183 = arith.constant 0 : index
    %c147_184 = arith.constant 147 : index
    %190 = vector.load %arg27[%c0_183, %c147_184] : memref<16x640xbf16, #tpu.memory_space<vmem>>, vector<16x384xbf16>
    %c0_185 = arith.constant 0 : index
    %c148_186 = arith.constant 148 : index
    %191 = vector.load %arg27[%c0_185, %c148_186] : memref<16x640xbf16, #tpu.memory_space<vmem>>, vector<16x384xbf16>
    %c0_187 = arith.constant 0 : index
    %c149_188 = arith.constant 149 : index
    %192 = vector.load %arg27[%c0_187, %c149_188] : memref<16x640xbf16, #tpu.memory_space<vmem>>, vector<16x384xbf16>
    %193 = tpu.concatenate %184, %185, %186, %187, %188, %189, %190, %191, %192 in 0 : vector<16x384xbf16>, vector<16x384xbf16>, vector<16x384xbf16>, vector<16x384xbf16>, vector<16x384xbf16>, vector<16x384xbf16>, vector<16x384xbf16>, vector<16x384xbf16>, vector<16x384xbf16> -> vector<144x384xbf16>
    %c0_189 = arith.constant 0 : index
    %c0_190 = arith.constant 0 : index
    %194 = vector.load %arg15[%c0_189, %c0_190] : memref<16x144xbf16, #tpu.memory_space<vmem>>, vector<16x144xbf16>
    %cst_191 = arith.constant dense<0.000000e+00> : vector<16x384xf32>
    %195 = tpu.matmul %194, %193, %cst_191 {dimension_numbers = #tpu.dot_dimension_numbers<[1], [0], [0], [1], [0, 0, 1, 1], [], []>} : vector<16x144xbf16>, vector<144x384xbf16>, vector<16x384xf32> -> vector<16x384xf32>
    %c0_192 = arith.constant 0 : index
    %c0_193 = arith.constant 0 : index
    %196 = vector.load %arg16[%c0_192, %c0_193] : memref<16x1xf32, #tpu.memory_space<vmem>>, vector<16x1xf32>
    %197 = vector.broadcast %196 : vector<16x1xf32> to vector<16x384xf32>
    %198 = arith.addf %195, %197 : vector<16x384xf32>
    %c0_194 = arith.constant 0 : index
    %c0_195 = arith.constant 0 : index
    %199 = vector.load %arg17[%c0_194, %c0_195] : memref<16x1xf32, #tpu.memory_space<vmem>>, vector<16x1xf32>
    %cst_196 = arith.constant 0.000000e+00 : f32
    %200 = vector.broadcast %cst_196 : f32 to vector<16x384xf32>
    %201 = arith.cmpf ogt, %198, %200 : vector<16x384xf32>
    %202 = vector.broadcast %199 : vector<16x1xf32> to vector<16x384xf32>
    %203 = arith.mulf %202, %198 : vector<16x384xf32>
    %204 = arith.select %201, %198, %203 : vector<16x384xi1>, vector<16x384xf32>
    %205 = vector.broadcast %74 : vector<1x384xf32> to vector<16x384xf32>
    %206 = arith.mulf %204, %205 : vector<16x384xf32>
    %207 = arith.truncf %206 : vector<16x384xf32> to vector<16x384xbf16>
    %c0_197 = arith.constant 0 : index
    %c128_198 = arith.constant 128 : index
    %208 = vector.load %arg28[%c0_197, %c128_198] : memref<64x640xbf16, #tpu.memory_space<vmem>>, vector<16x384xbf16>
    tpu.vector_store %arg28[%c0_197, %c128_198], %207 {strides = array<i32>} : memref<64x640xbf16, #tpu.memory_space<vmem>>, vector<16x384xbf16>,
    %c0_199 = arith.constant 0 : index
    %c107_200 = arith.constant 107 : index
    %209 = vector.load %arg28[%c0_199, %c107_200] : memref<64x640xbf16, #tpu.memory_space<vmem>>, vector<16x384xbf16>
    %c0_201 = arith.constant 0 : index
    %c108_202 = arith.constant 108 : index
    %210 = vector.load %arg28[%c0_201, %c108_202] : memref<64x640xbf16, #tpu.memory_space<vmem>>, vector<16x384xbf16>
    %c0_203 = arith.constant 0 : index
    %c109_204 = arith.constant 109 : index
    %211 = vector.load %arg28[%c0_203, %c109_204] : memref<64x640xbf16, #tpu.memory_space<vmem>>, vector<16x384xbf16>
    %c0_205 = arith.constant 0 : index
    %c127_206 = arith.constant 127 : index
    %212 = vector.load %arg28[%c0_205, %c127_206] : memref<64x640xbf16, #tpu.memory_space<vmem>>, vector<16x384xbf16>
    %c0_207 = arith.constant 0 : index
    %c128_208 = arith.constant 128 : index
    %213 = vector.load %arg28[%c0_207, %c128_208] : memref<64x640xbf16, #tpu.memory_space<vmem>>, vector<16x384xbf16>
    %c0_209 = arith.constant 0 : index
    %c129_210 = arith.constant 129 : index
    %214 = vector.load %arg28[%c0_209, %c129_210] : memref<64x640xbf16, #tpu.memory_space<vmem>>, vector<16x384xbf16>
    %c0_211 = arith.constant 0 : index
    %c147_212 = arith.constant 147 : index
    %215 = vector.load %arg28[%c0_211, %c147_212] : memref<64x640xbf16, #tpu.memory_space<vmem>>, vector<16x384xbf16>
    %c0_213 = arith.constant 0 : index
    %c148_214 = arith.constant 148 : index
    %216 = vector.load %arg28[%c0_213, %c148_214] : memref<64x640xbf16, #tpu.memory_space<vmem>>, vector<16x384xbf16>
    %c0_215 = arith.constant 0 : index
    %c149_216 = arith.constant 149 : index
    %217 = vector.load %arg28[%c0_215, %c149_216] : memref<64x640xbf16, #tpu.memory_space<vmem>>, vector<16x384xbf16>
    %218 = tpu.concatenate %209, %210, %211, %212, %213, %214, %215, %216, %217 in 0 : vector<16x384xbf16>, vector<16x384xbf16>, vector<16x384xbf16>, vector<16x384xbf16>, vector<16x384xbf16>, vector<16x384xbf16>, vector<16x384xbf16>, vector<16x384xbf16>, vector<16x384xbf16> -> vector<144x384xbf16>
    %c0_217 = arith.constant 0 : index
    %c0_218 = arith.constant 0 : index
    %219 = vector.load %arg18[%c0_217, %c0_218] : memref<16x144xbf16, #tpu.memory_space<vmem>>, vector<16x144xbf16>
    %cst_219 = arith.constant dense<0.000000e+00> : vector<16x384xf32>
    %220 = tpu.matmul %219, %218, %cst_219 {dimension_numbers = #tpu.dot_dimension_numbers<[1], [0], [0], [1], [0, 0, 1, 1], [], []>} : vector<16x144xbf16>, vector<144x384xbf16>, vector<16x384xf32> -> vector<16x384xf32>
    %c0_220 = arith.constant 0 : index
    %c0_221 = arith.constant 0 : index
    %221 = vector.load %arg19[%c0_220, %c0_221] : memref<16x1xf32, #tpu.memory_space<vmem>>, vector<16x1xf32>
    %222 = vector.broadcast %221 : vector<16x1xf32> to vector<16x384xf32>
    %223 = arith.addf %220, %222 : vector<16x384xf32>
    %c0_222 = arith.constant 0 : index
    %c0_223 = arith.constant 0 : index
    %224 = vector.load %arg20[%c0_222, %c0_223] : memref<16x1xf32, #tpu.memory_space<vmem>>, vector<16x1xf32>
    %cst_224 = arith.constant 0.000000e+00 : f32
    %225 = vector.broadcast %cst_224 : f32 to vector<16x384xf32>
    %226 = arith.cmpf ogt, %223, %225 : vector<16x384xf32>
    %227 = vector.broadcast %224 : vector<16x1xf32> to vector<16x384xf32>
    %228 = arith.mulf %227, %223 : vector<16x384xf32>
    %229 = arith.select %226, %223, %228 : vector<16x384xi1>, vector<16x384xf32>
    %230 = vector.broadcast %74 : vector<1x384xf32> to vector<16x384xf32>
    %231 = arith.mulf %229, %230 : vector<16x384xf32>
    %232 = arith.truncf %231 : vector<16x384xf32> to vector<16x384xbf16>
    %c0_225 = arith.constant 0 : index
    %c128_226 = arith.constant 128 : index
    %233 = vector.load %arg27[%c0_225, %c128_226] : memref<16x640xbf16, #tpu.memory_space<vmem>>, vector<16x384xbf16>
    tpu.vector_store %arg27[%c0_225, %c128_226], %232 {strides = array<i32>} : memref<16x640xbf16, #tpu.memory_space<vmem>>, vector<16x384xbf16>,
    %c0_227 = arith.constant 0 : index
    %c128_228 = arith.constant 128 : index
    %234 = vector.load %arg27[%c0_227, %c128_228] : memref<16x640xbf16, #tpu.memory_space<vmem>>, vector<16x384xbf16>
    %c0_229 = arith.constant 0 : index
    %c0_230 = arith.constant 0 : index
    %235 = vector.load %arg21[%c0_229, %c0_230] : memref<64x16xbf16, #tpu.memory_space<vmem>>, vector<64x16xbf16>
    %cst_231 = arith.constant dense<0.000000e+00> : vector<64x384xf32>
    %236 = tpu.matmul %235, %234, %cst_231 {dimension_numbers = #tpu.dot_dimension_numbers<[1], [0], [0], [1], [0, 0, 1, 1], [], []>} : vector<64x16xbf16>, vector<16x384xbf16>, vector<64x384xf32> -> vector<64x384xf32>
    %c0_232 = arith.constant 0 : index
    %c0_233 = arith.constant 0 : index
    %237 = vector.load %arg22[%c0_232, %c0_233] : memref<64x1xf32, #tpu.memory_space<vmem>>, vector<64x1xf32>
    %238 = vector.broadcast %237 : vector<64x1xf32> to vector<64x384xf32>
    %239 = arith.addf %236, %238 : vector<64x384xf32>
    %c0_234 = arith.constant 0 : index
    %c0_235 = arith.constant 0 : index
    %240 = vector.load %arg23[%c0_234, %c0_235] : memref<64x1xf32, #tpu.memory_space<vmem>>, vector<64x1xf32>
    %cst_236 = arith.constant 0.000000e+00 : f32
    %241 = vector.broadcast %cst_236 : f32 to vector<64x384xf32>
    %242 = arith.cmpf ogt, %239, %241 : vector<64x384xf32>
    %243 = vector.broadcast %240 : vector<64x1xf32> to vector<64x384xf32>
    %244 = arith.mulf %243, %239 : vector<64x384xf32>
    %245 = arith.select %242, %239, %244 : vector<64x384xi1>, vector<64x384xf32>
    %246 = vector.broadcast %74 : vector<1x384xf32> to vector<64x384xf32>
    %247 = arith.mulf %245, %246 : vector<64x384xf32>
    %248 = arith.truncf %247 : vector<64x384xf32> to vector<64x384xbf16>
    %c0_237 = arith.constant 0 : index
    %c128_238 = arith.constant 128 : index
    %249 = vector.load %arg28[%c0_237, %c128_238] : memref<64x640xbf16, #tpu.memory_space<vmem>>, vector<64x384xbf16>
    tpu.vector_store %arg28[%c0_237, %c128_238], %248 {strides = array<i32>} : memref<64x640xbf16, #tpu.memory_space<vmem>>, vector<64x384xbf16>,
    %c0_239 = arith.constant 0 : index
    %c86_240 = arith.constant 86 : index
    %250 = vector.load %arg28[%c0_239, %c86_240] : memref<64x640xbf16, #tpu.memory_space<vmem>>, vector<64x384xbf16>
    %c0_241 = arith.constant 0 : index
    %c87_242 = arith.constant 87 : index
    %251 = vector.load %arg28[%c0_241, %c87_242] : memref<64x640xbf16, #tpu.memory_space<vmem>>, vector<64x384xbf16>
    %c0_243 = arith.constant 0 : index
    %c88_244 = arith.constant 88 : index
    %252 = vector.load %arg28[%c0_243, %c88_244] : memref<64x640xbf16, #tpu.memory_space<vmem>>, vector<64x384xbf16>
    %c0_245 = arith.constant 0 : index
    %c89_246 = arith.constant 89 : index
    %253 = vector.load %arg28[%c0_245, %c89_246] : memref<64x640xbf16, #tpu.memory_space<vmem>>, vector<64x384xbf16>
    %c0_247 = arith.constant 0 : index
    %c90_248 = arith.constant 90 : index
    %254 = vector.load %arg28[%c0_247, %c90_248] : memref<64x640xbf16, #tpu.memory_space<vmem>>, vector<64x384xbf16>
    %c0_249 = arith.constant 0 : index
    %c106_250 = arith.constant 106 : index
    %255 = vector.load %arg28[%c0_249, %c106_250] : memref<64x640xbf16, #tpu.memory_space<vmem>>, vector<64x384xbf16>
    %c0_251 = arith.constant 0 : index
    %c107_252 = arith.constant 107 : index
    %256 = vector.load %arg28[%c0_251, %c107_252] : memref<64x640xbf16, #tpu.memory_space<vmem>>, vector<64x384xbf16>
    %c0_253 = arith.constant 0 : index
    %c108_254 = arith.constant 108 : index
    %257 = vector.load %arg28[%c0_253, %c108_254] : memref<64x640xbf16, #tpu.memory_space<vmem>>, vector<64x384xbf16>
    %258 = tpu.concatenate %250, %251, %252, %253, %254, %255, %256, %257 in 0 : vector<64x384xbf16>, vector<64x384xbf16>, vector<64x384xbf16>, vector<64x384xbf16>, vector<64x384xbf16>, vector<64x384xbf16>, vector<64x384xbf16>, vector<64x384xbf16> -> vector<512x384xbf16>
    %c0_255 = arith.constant 0 : index
    %c0_256 = arith.constant 0 : index
    %259 = vector.load %arg24[%c0_255, %c0_256] : memref<64x1600xbf16, #tpu.memory_space<vmem>>, vector<64x512xbf16>
    %cst_257 = arith.constant dense<0.000000e+00> : vector<64x384xf32>
    %260 = tpu.matmul %259, %258, %cst_257 {dimension_numbers = #tpu.dot_dimension_numbers<[1], [0], [0], [1], [0, 0, 1, 1], [], []>} : vector<64x512xbf16>, vector<512x384xbf16>, vector<64x384xf32> -> vector<64x384xf32>
    %c0_258 = arith.constant 0 : index
    %c109_259 = arith.constant 109 : index
    %261 = vector.load %arg28[%c0_258, %c109_259] : memref<64x640xbf16, #tpu.memory_space<vmem>>, vector<64x384xbf16>
    %c0_260 = arith.constant 0 : index
    %c110_261 = arith.constant 110 : index
    %262 = vector.load %arg28[%c0_260, %c110_261] : memref<64x640xbf16, #tpu.memory_space<vmem>>, vector<64x384xbf16>
    %c0_262 = arith.constant 0 : index
    %c126_263 = arith.constant 126 : index
    %263 = vector.load %arg28[%c0_262, %c126_263] : memref<64x640xbf16, #tpu.memory_space<vmem>>, vector<64x384xbf16>
    %c0_264 = arith.constant 0 : index
    %c127_265 = arith.constant 127 : index
    %264 = vector.load %arg28[%c0_264, %c127_265] : memref<64x640xbf16, #tpu.memory_space<vmem>>, vector<64x384xbf16>
    %c0_266 = arith.constant 0 : index
    %c128_267 = arith.constant 128 : index
    %265 = vector.load %arg28[%c0_266, %c128_267] : memref<64x640xbf16, #tpu.memory_space<vmem>>, vector<64x384xbf16>
    %c0_268 = arith.constant 0 : index
    %c129_269 = arith.constant 129 : index
    %266 = vector.load %arg28[%c0_268, %c129_269] : memref<64x640xbf16, #tpu.memory_space<vmem>>, vector<64x384xbf16>
    %c0_270 = arith.constant 0 : index
    %c130_271 = arith.constant 130 : index
    %267 = vector.load %arg28[%c0_270, %c130_271] : memref<64x640xbf16, #tpu.memory_space<vmem>>, vector<64x384xbf16>
    %c0_272 = arith.constant 0 : index
    %c146_273 = arith.constant 146 : index
    %268 = vector.load %arg28[%c0_272, %c146_273] : memref<64x640xbf16, #tpu.memory_space<vmem>>, vector<64x384xbf16>
    %269 = tpu.concatenate %261, %262, %263, %264, %265, %266, %267, %268 in 0 : vector<64x384xbf16>, vector<64x384xbf16>, vector<64x384xbf16>, vector<64x384xbf16>, vector<64x384xbf16>, vector<64x384xbf16>, vector<64x384xbf16>, vector<64x384xbf16> -> vector<512x384xbf16>
    %c0_274 = arith.constant 0 : index
    %c512_275 = arith.constant 512 : index
    %270 = vector.load %arg24[%c0_274, %c512_275] : memref<64x1600xbf16, #tpu.memory_space<vmem>>, vector<64x512xbf16>
    %cst_276 = arith.constant dense<0.000000e+00> : vector<64x384xf32>
    %271 = tpu.matmul %270, %269, %cst_276 {dimension_numbers = #tpu.dot_dimension_numbers<[1], [0], [0], [1], [0, 0, 1, 1], [], []>} : vector<64x512xbf16>, vector<512x384xbf16>, vector<64x384xf32> -> vector<64x384xf32>
    %272 = arith.addf %260, %271 : vector<64x384xf32>
    %c0_277 = arith.constant 0 : index
    %c147_278 = arith.constant 147 : index
    %273 = vector.load %arg28[%c0_277, %c147_278] : memref<64x640xbf16, #tpu.memory_space<vmem>>, vector<64x384xbf16>
    %c0_279 = arith.constant 0 : index
    %c148_280 = arith.constant 148 : index
    %274 = vector.load %arg28[%c0_279, %c148_280] : memref<64x640xbf16, #tpu.memory_space<vmem>>, vector<64x384xbf16>
    %c0_281 = arith.constant 0 : index
    %c149_282 = arith.constant 149 : index
    %275 = vector.load %arg28[%c0_281, %c149_282] : memref<64x640xbf16, #tpu.memory_space<vmem>>, vector<64x384xbf16>
    %c0_283 = arith.constant 0 : index
    %c150_284 = arith.constant 150 : index
    %276 = vector.load %arg28[%c0_283, %c150_284] : memref<64x640xbf16, #tpu.memory_space<vmem>>, vector<64x384xbf16>
    %c0_285 = arith.constant 0 : index
    %c166_286 = arith.constant 166 : index
    %277 = vector.load %arg28[%c0_285, %c166_286] : memref<64x640xbf16, #tpu.memory_space<vmem>>, vector<64x384xbf16>
    %c0_287 = arith.constant 0 : index
    %c167_288 = arith.constant 167 : index
    %278 = vector.load %arg28[%c0_287, %c167_288] : memref<64x640xbf16, #tpu.memory_space<vmem>>, vector<64x384xbf16>
    %c0_289 = arith.constant 0 : index
    %c168_290 = arith.constant 168 : index
    %279 = vector.load %arg28[%c0_289, %c168_290] : memref<64x640xbf16, #tpu.memory_space<vmem>>, vector<64x384xbf16>
    %c0_291 = arith.constant 0 : index
    %c169_292 = arith.constant 169 : index
    %280 = vector.load %arg28[%c0_291, %c169_292] : memref<64x640xbf16, #tpu.memory_space<vmem>>, vector<64x384xbf16>
    %281 = tpu.concatenate %273, %274, %275, %276, %277, %278, %279, %280 in 0 : vector<64x384xbf16>, vector<64x384xbf16>, vector<64x384xbf16>, vector<64x384xbf16>, vector<64x384xbf16>, vector<64x384xbf16>, vector<64x384xbf16>, vector<64x384xbf16> -> vector<512x384xbf16>
    %c0_293 = arith.constant 0 : index
    %c1024 = arith.constant 1024 : index
    %282 = vector.load %arg24[%c0_293, %c1024] : memref<64x1600xbf16, #tpu.memory_space<vmem>>, vector<64x512xbf16>
    %cst_294 = arith.constant dense<0.000000e+00> : vector<64x384xf32>
    %283 = tpu.matmul %282, %281, %cst_294 {dimension_numbers = #tpu.dot_dimension_numbers<[1], [0], [0], [1], [0, 0, 1, 1], [], []>} : vector<64x512xbf16>, vector<512x384xbf16>, vector<64x384xf32> -> vector<64x384xf32>
    %284 = arith.addf %272, %283 : vector<64x384xf32>
    %c0_295 = arith.constant 0 : index
    %c170_296 = arith.constant 170 : index
    %285 = vector.load %arg28[%c0_295, %c170_296] : memref<64x640xbf16, #tpu.memory_space<vmem>>, vector<64x384xbf16>
    %c0_297 = arith.constant 0 : index
    %c1536 = arith.constant 1536 : index
    %286 = vector.load %arg24[%c0_297, %c1536] : memref<64x1600xbf16, #tpu.memory_space<vmem>>, vector<64x64xbf16>
    %cst_298 = arith.constant dense<0.000000e+00> : vector<64x384xf32>
    %287 = tpu.matmul %286, %285, %cst_298 {dimension_numbers = #tpu.dot_dimension_numbers<[1], [0], [0], [1], [0, 0, 1, 1], [], []>} : vector<64x64xbf16>, vector<64x384xbf16>, vector<64x384xf32> -> vector<64x384xf32>
    %288 = arith.addf %284, %287 : vector<64x384xf32>
    %c0_299 = arith.constant 0 : index
    %c0_300 = arith.constant 0 : index
    %289 = vector.load %arg25[%c0_299, %c0_300] : memref<64x1xf32, #tpu.memory_space<vmem>>, vector<64x1xf32>
    %290 = vector.broadcast %289 : vector<64x1xf32> to vector<64x384xf32>
    %291 = arith.addf %288, %290 : vector<64x384xf32>
    %292 = vector.extract_strided_slice %291 {offsets = [0, 0], sizes = [1, 384], strides = [1, 1]} : vector<64x384xf32> to vector<1x384xf32>
    %c0_301 = arith.constant 0 : index
    %c0_302 = arith.constant 0 : index
    %c0_303 = arith.constant 0 : index
    %c0_304 = arith.constant 0 : index
    %293 = vector.load %arg26[%c0_301, %c0_302, %c0_303, %c0_304] : memref<1x4x1x384xf32, #tpu.memory_space<vmem>>, vector<1x1x1x384xf32>
    %294 = vector.shape_cast %293 : vector<1x1x1x384xf32> to vector<1x384xf32>
    %295 = vector.shape_cast %292 : vector<1x384xf32> to vector<1x1x1x384xf32>
    tpu.vector_store %arg26[%c0_301, %c0_302, %c0_303, %c0_304], %295 {strides = array<i32>} : memref<1x4x1x384xf32, #tpu.memory_space<vmem>>, vector<1x1x1x384xf32>,
    %296 = vector.extract_strided_slice %291 {offsets = [16, 0], sizes = [1, 384], strides = [1, 1]} : vector<64x384xf32> to vector<1x384xf32>
    %c0_305 = arith.constant 0 : index
    %c1 = arith.constant 1 : index
    %c0_306 = arith.constant 0 : index
    %c0_307 = arith.constant 0 : index
    %297 = vector.load %arg26[%c0_305, %c1, %c0_306, %c0_307] : memref<1x4x1x384xf32, #tpu.memory_space<vmem>>, vector<1x1x1x384xf32>
    %298 = vector.shape_cast %297 : vector<1x1x1x384xf32> to vector<1x384xf32>
    %299 = vector.shape_cast %296 : vector<1x384xf32> to vector<1x1x1x384xf32>
    tpu.vector_store %arg26[%c0_305, %c1, %c0_306, %c0_307], %299 {strides = array<i32>} : memref<1x4x1x384xf32, #tpu.memory_space<vmem>>, vector<1x1x1x384xf32>,
    %300 = vector.extract_strided_slice %291 {offsets = [32, 0], sizes = [1, 384], strides = [1, 1]} : vector<64x384xf32> to vector<1x384xf32>
    %c0_308 = arith.constant 0 : index
    %c2 = arith.constant 2 : index
    %c0_309 = arith.constant 0 : index
    %c0_310 = arith.constant 0 : index
    %301 = vector.load %arg26[%c0_308, %c2, %c0_309, %c0_310] : memref<1x4x1x384xf32, #tpu.memory_space<vmem>>, vector<1x1x1x384xf32>
    %302 = vector.shape_cast %301 : vector<1x1x1x384xf32> to vector<1x384xf32>
    %303 = vector.shape_cast %300 : vector<1x384xf32> to vector<1x1x1x384xf32>
    tpu.vector_store %arg26[%c0_308, %c2, %c0_309, %c0_310], %303 {strides = array<i32>} : memref<1x4x1x384xf32, #tpu.memory_space<vmem>>, vector<1x1x1x384xf32>,
    %304 = vector.extract_strided_slice %291 {offsets = [48, 0], sizes = [1, 384], strides = [1, 1]} : vector<64x384xf32> to vector<1x384xf32>
    %c0_311 = arith.constant 0 : index
    %c3 = arith.constant 3 : index
    %c0_312 = arith.constant 0 : index
    %c0_313 = arith.constant 0 : index
    %305 = vector.load %arg26[%c0_311, %c3, %c0_312, %c0_313] : memref<1x4x1x384xf32, #tpu.memory_space<vmem>>, vector<1x1x1x384xf32>
    %306 = vector.shape_cast %305 : vector<1x1x1x384xf32> to vector<1x384xf32>
    %307 = vector.shape_cast %304 : vector<1x384xf32> to vector<1x1x1x384xf32>
    tpu.vector_store %arg26[%c0_311, %c3, %c0_312, %c0_313], %307 {strides = array<i32>} : memref<1x4x1x384xf32, #tpu.memory_space<vmem>>, vector<1x1x1x384xf32>,
    return
  }
  func.func @transform_0(%arg0: i32) -> (i32, i32, i32) {
    %c0_i32 = arith.constant 0 : i32
    %c0_i32_0 = arith.constant 0 : i32
    %c0_i32_1 = arith.constant 0 : i32
    return %arg0, %c0_i32, %c0_i32_0 : i32, i32, i32
  }
  func.func @transform_1(%arg0: i32) -> (i32, i32) {
    %c0_i32 = arith.constant 0 : i32
    %c0_i32_0 = arith.constant 0 : i32
    %c0_i32_1 = arith.constant 0 : i32
    return %c0_i32, %c0_i32_0 : i32, i32
  }
  func.func @transform_2(%arg0: i32) -> (i32, i32) {
    %c0_i32 = arith.constant 0 : i32
    %c0_i32_0 = arith.constant 0 : i32
    %c0_i32_1 = arith.constant 0 : i32
    return %c0_i32, %c0_i32_0 : i32, i32
  }
  func.func @transform_3(%arg0: i32) -> (i32, i32) {
    %c0_i32 = arith.constant 0 : i32
    %c0_i32_0 = arith.constant 0 : i32
    %c0_i32_1 = arith.constant 0 : i32
    return %c0_i32, %c0_i32_0 : i32, i32
  }
  func.func @transform_4(%arg0: i32) -> (i32, i32) {
    %c0_i32 = arith.constant 0 : i32
    %c0_i32_0 = arith.constant 0 : i32
    %c0_i32_1 = arith.constant 0 : i32
    return %c0_i32, %c0_i32_0 : i32, i32
  }
  func.func @transform_5(%arg0: i32) -> (i32, i32) {
    %c0_i32 = arith.constant 0 : i32
    %c0_i32_0 = arith.constant 0 : i32
    %c0_i32_1 = arith.constant 0 : i32
    return %c0_i32, %c0_i32_0 : i32, i32
  }
  func.func @transform_6(%arg0: i32) -> (i32, i32) {
    %c0_i32 = arith.constant 0 : i32
    %c0_i32_0 = arith.constant 0 : i32
    %c0_i32_1 = arith.constant 0 : i32
    return %c0_i32, %c0_i32_0 : i32, i32
  }
  func.func @transform_7(%arg0: i32) -> (i32, i32) {
    %c0_i32 = arith.constant 0 : i32
    %c0_i32_0 = arith.constant 0 : i32
    %c0_i32_1 = arith.constant 0 : i32
    return %c0_i32, %c0_i32_0 : i32, i32
  }
  func.func @transform_8(%arg0: i32) -> (i32, i32) {
    %c0_i32 = arith.constant 0 : i32
    %c0_i32_0 = arith.constant 0 : i32
    %c0_i32_1 = arith.constant 0 : i32
    return %c0_i32, %c0_i32_0 : i32, i32
  }
  func.func @transform_9(%arg0: i32) -> (i32, i32) {
    %c0_i32 = arith.constant 0 : i32
    %c0_i32_0 = arith.constant 0 : i32
    %c0_i32_1 = arith.constant 0 : i32
    return %c0_i32, %c0_i32_0 : i32, i32
  }
  func.func @transform_10(%arg0: i32) -> (i32, i32) {
    %c0_i32 = arith.constant 0 : i32
    %c0_i32_0 = arith.constant 0 : i32
    %c0_i32_1 = arith.constant 0 : i32
    return %c0_i32, %c0_i32_0 : i32, i32
  }
  func.func @transform_11(%arg0: i32) -> (i32, i32) {
    %c0_i32 = arith.constant 0 : i32
    %c0_i32_0 = arith.constant 0 : i32
    %c0_i32_1 = arith.constant 0 : i32
    return %c0_i32, %c0_i32_0 : i32, i32
  }
  func.func @transform_12(%arg0: i32) -> (i32, i32) {
    %c0_i32 = arith.constant 0 : i32
    %c0_i32_0 = arith.constant 0 : i32
    %c0_i32_1 = arith.constant 0 : i32
    return %c0_i32, %c0_i32_0 : i32, i32
  }
  func.func @transform_13(%arg0: i32) -> (i32, i32) {
    %c0_i32 = arith.constant 0 : i32
    %c0_i32_0 = arith.constant 0 : i32
    %c0_i32_1 = arith.constant 0 : i32
    return %c0_i32, %c0_i32_0 : i32, i32
  }
  func.func @transform_14(%arg0: i32) -> (i32, i32) {
    %c0_i32 = arith.constant 0 : i32
    %c0_i32_0 = arith.constant 0 : i32
    %c0_i32_1 = arith.constant 0 : i32
    return %c0_i32, %c0_i32_0 : i32, i32
  }
  func.func @transform_15(%arg0: i32) -> (i32, i32) {
    %c0_i32 = arith.constant 0 : i32
    %c0_i32_0 = arith.constant 0 : i32
    %c0_i32_1 = arith.constant 0 : i32
    return %c0_i32, %c0_i32_0 : i32, i32
  }
  func.func @transform_16(%arg0: i32) -> (i32, i32) {
    %c0_i32 = arith.constant 0 : i32
    %c0_i32_0 = arith.constant 0 : i32
    %c0_i32_1 = arith.constant 0 : i32
    return %c0_i32, %c0_i32_0 : i32, i32
  }
  func.func @transform_17(%arg0: i32) -> (i32, i32) {
    %c0_i32 = arith.constant 0 : i32
    %c0_i32_0 = arith.constant 0 : i32
    %c0_i32_1 = arith.constant 0 : i32
    return %c0_i32, %c0_i32_0 : i32, i32
  }
  func.func @transform_18(%arg0: i32) -> (i32, i32) {
    %c0_i32 = arith.constant 0 : i32
    %c0_i32_0 = arith.constant 0 : i32
    %c0_i32_1 = arith.constant 0 : i32
    return %c0_i32, %c0_i32_0 : i32, i32
  }
  func.func @transform_19(%arg0: i32) -> (i32, i32) {
    %c0_i32 = arith.constant 0 : i32
    %c0_i32_0 = arith.constant 0 : i32
    %c0_i32_1 = arith.constant 0 : i32
    return %c0_i32, %c0_i32_0 : i32, i32
  }
  func.func @transform_20(%arg0: i32) -> (i32, i32) {
    %c0_i32 = arith.constant 0 : i32
    %c0_i32_0 = arith.constant 0 : i32
    %c0_i32_1 = arith.constant 0 : i32
    return %c0_i32, %c0_i32_0 : i32, i32
  }
  func.func @transform_21(%arg0: i32) -> (i32, i32) {
    %c0_i32 = arith.constant 0 : i32
    %c0_i32_0 = arith.constant 0 : i32
    %c0_i32_1 = arith.constant 0 : i32
    return %c0_i32, %c0_i32_0 : i32, i32
  }
  func.func @transform_22(%arg0: i32) -> (i32, i32) {
    %c0_i32 = arith.constant 0 : i32
    %c0_i32_0 = arith.constant 0 : i32
    %c0_i32_1 = arith.constant 0 : i32
    return %c0_i32, %c0_i32_0 : i32, i32
  }
  func.func @transform_23(%arg0: i32) -> (i32, i32) {
    %c0_i32 = arith.constant 0 : i32
    %c0_i32_0 = arith.constant 0 : i32
    %c0_i32_1 = arith.constant 0 : i32
    return %c0_i32, %c0_i32_0 : i32, i32
  }
  func.func @transform_24(%arg0: i32) -> (i32, i32) {
    %c0_i32 = arith.constant 0 : i32
    %c0_i32_0 = arith.constant 0 : i32
    %c0_i32_1 = arith.constant 0 : i32
    return %c0_i32, %c0_i32_0 : i32, i32
  }
  func.func @transform_25(%arg0: i32) -> (i32, i32, i32, i32) {
    %c0_i32 = arith.constant 0 : i32
    %c0_i32_0 = arith.constant 0 : i32
    %c0_i32_1 = arith.constant 0 : i32
    %c0_i32_2 = arith.constant 0 : i32
    return %arg0, %c0_i32, %c0_i32_0, %c0_i32_1 : i32, i32, i32, i32
  }
}

</mosaic_0001>

<llo_original>
// kernel: tpu_custom_call.1
$region0: #{tpu_custom_call.1}
  #allocation0 [shape = 'u32[]', space=smem, size = 0x4, offset = 0x4, fixed_abs, tag = 'smem constant byte address 0x4 - core index']
  #allocation1 [shape = 'u32[72,128]{1,0:T(1,128)}', space=vmem, size = 0x9000, scoped, tag = 'internal scratch']
  #allocation2 [shape = 'bf16[16,640]{1,0:T(8,128)(2,1)}', space=vmem, size = 0x5000, scoped, tag = 'scratch operand']
  #allocation3 [shape = 'bf16[64,640]{1,0:T(8,128)(2,1)}', space=vmem, size = 0x14000, scoped, tag = 'scratch operand']
  %s0 = inlined_call_operand.vmem [shape: f32[2,1,256], index: 0, kind: input, shape index: {}]
  %s1 = inlined_call_operand.vmem [shape: f32[1,384], index: 1, kind: input, shape index: {}]
  %s2 = inlined_call_operand.vmem [shape: bf16[64,400], index: 2, kind: input, shape index: {}]
  %s3 = inlined_call_operand.vmem [shape: f32[64,1], index: 3, kind: input, shape index: {}]
  %s4 = inlined_call_operand.vmem [shape: f32[64,1], index: 4, kind: input, shape index: {}]
  %s5 = inlined_call_operand.vmem [shape: bf16[16,64], index: 5, kind: input, shape index: {}]
  %s6 = inlined_call_operand.vmem [shape: f32[16,1], index: 6, kind: input, shape index: {}]
  %s7 = inlined_call_operand.vmem [shape: f32[16,1], index: 7, kind: input, shape index: {}]
  %s8 = inlined_call_operand.vmem [shape: bf16[16,144], index: 8, kind: input, shape index: {}]
  %s9 = inlined_call_operand.vmem [shape: f32[16,1], index: 9, kind: input, shape index: {}]
  %s10 = inlined_call_operand.vmem [shape: f32[16,1], index: 10, kind: input, shape index: {}]
  %s11 = inlined_call_operand.vmem [shape: bf16[16,144], index: 11, kind: input, shape index: {}]
  %s12 = inlined_call_operand.vmem [shape: f32[16,1], index: 12, kind: input, shape index: {}]
  %s13 = inlined_call_operand.vmem [shape: f32[16,1], index: 13, kind: input, shape index: {}]
  %s14 = inlined_call_operand.vmem [shape: bf16[16,144], index: 14, kind: input, shape index: {}]
  %s15 = inlined_call_operand.vmem [shape: f32[16,1], index: 15, kind: input, shape index: {}]
  %s16 = inlined_call_operand.vmem [shape: f32[16,1], index: 16, kind: input, shape index: {}]
  %s17 = inlined_call_operand.vmem [shape: bf16[16,144], index: 17, kind: input, shape index: {}]
  %s18 = inlined_call_operand.vmem [shape: f32[16,1], index: 18, kind: input, shape index: {}]
  %s19 = inlined_call_operand.vmem [shape: f32[16,1], index: 19, kind: input, shape index: {}]
  %s20 = inlined_call_operand.vmem [shape: bf16[64,16], index: 20, kind: input, shape index: {}]
  %s21 = inlined_call_operand.vmem [shape: f32[64,1], index: 21, kind: input, shape index: {}]
  %s22 = inlined_call_operand.vmem [shape: f32[64,1], index: 22, kind: input, shape index: {}]
  %s23 = inlined_call_operand.hbm [shape: bf16[64,1600], index: 23, kind: input, shape index: {}]
  %s24 = inlined_call_operand.vmem [shape: f32[64,1], index: 24, kind: input, shape index: {}]
  %s25 = inlined_call_operand.hbm [shape: f32[2,4,1,384], index: 25, kind: output, shape index: {}]
  %s26 = sld [smem:[#allocation0]]
  $region137: #{tpu_custom_call.1} parent=0
    _
  %s28 = ssub.s32 1, %s26
  %s29 = scalar_select 0, %s28, %s26
  $region1: #{tpu_custom_call.1} parent=0
    #allocation4 [shape = 'u8[212992]{0}', space=vmem, size = 0x34000, scoped, tag = 'input window, operand 23, single buffered']
    #allocation5 [shape = 's32[2]{0}', space=sflag, size = 0x8, scoped, tag = 'scoped memory for tpu_custom_call.1']
    #allocation6 [shape = 's32[2]{0}', space=sflag, size = 0x8, scoped, tag = 'scoped memory for tpu_custom_call.1']
    #allocation7 [shape = 'u8[12288]{0}', space=vmem, size = 0x3000, scoped, tag = 'output window, operand 0']
    %30 = vsyncpa [#allocation5], 0
    %31 = vsyncpa [#allocation6], 0
    %s32 = scalar_lea.sflag [#allocation6], 1
    %33 = vsyncpa %s32, 0
    loop: start=0, step=1, limit=4
    $region2: #{tpu_custom_call.1} parent=1 // loop_pre_header
      _
    $region3: #{tpu_custom_call.1} parent=1 // loop_header
      %s35 = sphi 0, %s39
      %p36 = scmp.ge.s32.totalorder %s35, 4
      %s45 = sphi 0, %s47
      %s48 = sphi 0, %s45
      %s49 = sphi 0, %s48
      %s65 = sphi 0, %s49
      %s69 = sphi 0, %s69
      %s71 = sphi 0, %s69
      %s72 = sphi 0, %s71
      %s86 = sphi 0, %s72
      %s90 = sphi 0, %s90
      %s92 = sphi 0, %s90
      %s93 = sphi 0, %s92
      %s107 = sphi 0, %s93
      %s111 = sphi 0, %s111
      %s113 = sphi 0, %s111
      %s114 = sphi 0, %s113
      %s128 = sphi 0, %s114
      %s132 = sphi 0, %s132
      %s134 = sphi 0, %s132
      %s135 = sphi 0, %s134
      %s149 = sphi 0, %s135
      %s153 = sphi 0, %s153
      %s155 = sphi 0, %s153
      %s156 = sphi 0, %s155
      %s170 = sphi 0, %s156
      %s174 = sphi 0, %s174
      %s176 = sphi 0, %s174
      %s177 = sphi 0, %s176
      %s191 = sphi 0, %s177
      %s195 = sphi 0, %s195
      %s197 = sphi 0, %s195
      %s198 = sphi 0, %s197
      %s212 = sphi 0, %s198
      %s216 = sphi 0, %s216
      %s218 = sphi 0, %s216
      %s219 = sphi 0, %s218
      %s233 = sphi 0, %s219
      %s237 = sphi 0, %s237
      %s239 = sphi 0, %s237
      %s240 = sphi 0, %s239
      %s254 = sphi 0, %s240
      %s258 = sphi 0, %s258
      %s260 = sphi 0, %s258
      %s261 = sphi 0, %s260
      %s275 = sphi 0, %s261
      %s279 = sphi 0, %s279
      %s281 = sphi 0, %s279
      %s282 = sphi 0, %s281
      %s296 = sphi 0, %s282
      %s300 = sphi 0, %s300
      %s302 = sphi 0, %s300
      %s303 = sphi 0, %s302
      %s317 = sphi 0, %s303
      %s321 = sphi 0, %s321
      %s323 = sphi 0, %s321
      %s324 = sphi 0, %s323
      %s338 = sphi 0, %s324
      %s342 = sphi 0, %s342
      %s344 = sphi 0, %s342
      %s345 = sphi 0, %s344
      %s359 = sphi 0, %s345
      %s363 = sphi 0, %s363
      %s365 = sphi 0, %s363
      %s366 = sphi 0, %s365
      %s380 = sphi 0, %s366
      %s384 = sphi 0, %s384
      %s386 = sphi 0, %s384
      %s387 = sphi 0, %s386
      %s401 = sphi 0, %s387
      %s405 = sphi 0, %s405
      %s407 = sphi 0, %s405
      %s408 = sphi 0, %s407
      %s422 = sphi 0, %s408
      %s426 = sphi 0, %s426
      %s428 = sphi 0, %s426
      %s429 = sphi 0, %s428
      %s443 = sphi 0, %s429
      %s447 = sphi 0, %s447
      %s449 = sphi 0, %s447
      %s450 = sphi 0, %s449
      %s464 = sphi 0, %s450
      %s468 = sphi 0, %s468
      %s470 = sphi 0, %s468
      %s471 = sphi 0, %s470
      %s485 = sphi 0, %s471
      %s489 = sphi 0, %s489
      %s491 = sphi 0, %s489
      %s492 = sphi 0, %s491
      %s506 = sphi 0, %s492
      %s510 = sphi 0, %s510
      %s512 = sphi 0, %s510
      %s513 = sphi 0, %s512
      %s527 = sphi 0, %s513
      %s531 = sphi 0, %s531
      %s533 = sphi 0, %s531
      %s534 = sphi 0, %s533
      %s548 = sphi 0, %s534
      %s552 = sphi 0, %s552
      %s554 = sphi 0, %s552
      %s555 = sphi 0, %s554
      %s569 = sphi 0, %s555
      %s575 = sphi 0, %s577
      %s578 = sphi 0, %s575
      %s579 = sphi 0, %s578
      %s595 = sphi 0, %s579
    $region4: #{tpu_custom_call.1} parent=1 // loop_header_branch
      %38 = sbr.rel (%p36) target = $region8
    $region5: #{tpu_custom_call.1} parent=1 // loop_body
      %s40 = ssub.s32 %s35, 1
      %s41 = ssub.s32 %s35, 2
      %s42 = sadd.s32 %s35, 1
      %s43 = ssub.s32 %s35, %s42
      %p44 = scmp.eq.s32.totalorder %s43, 0
      %s46 = sadd.s32 %s45, 1
      %s47 = scalar_select %p44, %s45, %s46
      %p50 = pneg %p44
      %p51 = scmp.eq.s32.totalorder %s35, 1
      %p52 = por %p50, %p51
      %p53 = scmp.ne.s32.totalorder %s45, %s48
      %p54 = scmp.eq.s32.totalorder %s35, 0
      %p55 = por %p53, %p54
      %p56 = scmp.ne.s32.totalorder %s45, %s48
      %p57 = scmp.eq.s32.totalorder %s40, 1
      %p58 = por %p56, %p57
      %p59 = scmp.ne.s32.totalorder %s48, %s49
      %p60 = scmp.eq.s32.totalorder %s40, 0
      %p61 = por %p59, %p60
      %p62 = scmp.ne.s32.totalorder %s48, %s49
      %p63 = scmp.eq.s32.totalorder %s41, 1
      %p64 = por %p62, %p63
      %p66 = scmp.ne.s32.totalorder %s49, %s65
      %p67 = scmp.eq.s32.totalorder %s41, 0
      %p68 = por %p66, %p67
      %s70 = sadd.s32 %s69, 1
      %p73 = scmp.eq.s32.totalorder %s35, 1
      %p74 = scmp.ne.s32.totalorder %s69, %s71
      %p75 = scmp.eq.s32.totalorder %s35, 0
      %p76 = por %p74, %p75
      %p77 = scmp.ne.s32.totalorder %s69, %s71
      %p78 = scmp.eq.s32.totalorder %s40, 1
      %p79 = por %p77, %p78
      %p80 = scmp.ne.s32.totalorder %s71, %s72
      %p81 = scmp.eq.s32.totalorder %s40, 0
      %p82 = por %p80, %p81
      %p83 = scmp.ne.s32.totalorder %s71, %s72
      %p84 = scmp.eq.s32.totalorder %s41, 1
      %p85 = por %p83, %p84
      %p87 = scmp.ne.s32.totalorder %s72, %s86
      %p88 = scmp.eq.s32.totalorder %s41, 0
      %p89 = por %p87, %p88
      %s91 = sadd.s32 %s90, 1
      %p94 = scmp.eq.s32.totalorder %s35, 1
      %p95 = scmp.ne.s32.totalorder %s90, %s92
      %p96 = scmp.eq.s32.totalorder %s35, 0
      %p97 = por %p95, %p96
      %p98 = scmp.ne.s32.totalorder %s90, %s92
      %p99 = scmp.eq.s32.totalorder %s40, 1
      %p100 = por %p98, %p99
      %p101 = scmp.ne.s32.totalorder %s92, %s93
      %p102 = scmp.eq.s32.totalorder %s40, 0
      %p103 = por %p101, %p102
      %p104 = scmp.ne.s32.totalorder %s92, %s93
      %p105 = scmp.eq.s32.totalorder %s41, 1
      %p106 = por %p104, %p105
      %p108 = scmp.ne.s32.totalorder %s93, %s107
      %p109 = scmp.eq.s32.totalorder %s41, 0
      %p110 = por %p108, %p109
      %s112 = sadd.s32 %s111, 1
      %p115 = scmp.eq.s32.totalorder %s35, 1
      %p116 = scmp.ne.s32.totalorder %s111, %s113
      %p117 = scmp.eq.s32.totalorder %s35, 0
      %p118 = por %p116, %p117
      %p119 = scmp.ne.s32.totalorder %s111, %s113
      %p120 = scmp.eq.s32.totalorder %s40, 1
      %p121 = por %p119, %p120
      %p122 = scmp.ne.s32.totalorder %s113, %s114
      %p123 = scmp.eq.s32.totalorder %s40, 0
      %p124 = por %p122, %p123
      %p125 = scmp.ne.s32.totalorder %s113, %s114
      %p126 = scmp.eq.s32.totalorder %s41, 1
      %p127 = por %p125, %p126
      %p129 = scmp.ne.s32.totalorder %s114, %s128
      %p130 = scmp.eq.s32.totalorder %s41, 0
      %p131 = por %p129, %p130
      %s133 = sadd.s32 %s132, 1
      %p136 = scmp.eq.s32.totalorder %s35, 1
      %p137 = scmp.ne.s32.totalorder %s132, %s134
      %p138 = scmp.eq.s32.totalorder %s35, 0
      %p139 = por %p137, %p138
      %p140 = scmp.ne.s32.totalorder %s132, %s134
      %p141 = scmp.eq.s32.totalorder %s40, 1
      %p142 = por %p140, %p141
      %p143 = scmp.ne.s32.totalorder %s134, %s135
      %p144 = scmp.eq.s32.totalorder %s40, 0
      %p145 = por %p143, %p144
      %p146 = scmp.ne.s32.totalorder %s134, %s135
      %p147 = scmp.eq.s32.totalorder %s41, 1
      %p148 = por %p146, %p147
      %p150 = scmp.ne.s32.totalorder %s135, %s149
      %p151 = scmp.eq.s32.totalorder %s41, 0
      %p152 = por %p150, %p151
      %s154 = sadd.s32 %s153, 1
      %p157 = scmp.eq.s32.totalorder %s35, 1
      %p158 = scmp.ne.s32.totalorder %s153, %s155
      %p159 = scmp.eq.s32.totalorder %s35, 0
      %p160 = por %p158, %p159
      %p161 = scmp.ne.s32.totalorder %s153, %s155
      %p162 = scmp.eq.s32.totalorder %s40, 1
      %p163 = por %p161, %p162
      %p164 = scmp.ne.s32.totalorder %s155, %s156
      %p165 = scmp.eq.s32.totalorder %s40, 0
      %p166 = por %p164, %p165
      %p167 = scmp.ne.s32.totalorder %s155, %s156
      %p168 = scmp.eq.s32.totalorder %s41, 1
      %p169 = por %p167, %p168
      %p171 = scmp.ne.s32.totalorder %s156, %s170
      %p172 = scmp.eq.s32.totalorder %s41, 0
      %p173 = por %p171, %p172
      %s175 = sadd.s32 %s174, 1
      %p178 = scmp.eq.s32.totalorder %s35, 1
      %p179 = scmp.ne.s32.totalorder %s174, %s176
      %p180 = scmp.eq.s32.totalorder %s35, 0
      %p181 = por %p179, %p180
      %p182 = scmp.ne.s32.totalorder %s174, %s176
      %p183 = scmp.eq.s32.totalorder %s40, 1
      %p184 = por %p182, %p183
      %p185 = scmp.ne.s32.totalorder %s176, %s177
      %p186 = scmp.eq.s32.totalorder %s40, 0
      %p187 = por %p185, %p186
      %p188 = scmp.ne.s32.totalorder %s176, %s177
      %p189 = scmp.eq.s32.totalorder %s41, 1
      %p190 = por %p188, %p189
      %p192 = scmp.ne.s32.totalorder %s177, %s191
      %p193 = scmp.eq.s32.totalorder %s41, 0
      %p194 = por %p192, %p193
      %s196 = sadd.s32 %s195, 1
      %p199 = scmp.eq.s32.totalorder %s35, 1
      %p200 = scmp.ne.s32.totalorder %s195, %s197
      %p201 = scmp.eq.s32.totalorder %s35, 0
      %p202 = por %p200, %p201
      %p203 = scmp.ne.s32.totalorder %s195, %s197
      %p204 = scmp.eq.s32.totalorder %s40, 1
      %p205 = por %p203, %p204
      %p206 = scmp.ne.s32.totalorder %s197, %s198
      %p207 = scmp.eq.s32.totalorder %s40, 0
      %p208 = por %p206, %p207
      %p209 = scmp.ne.s32.totalorder %s197, %s198
      %p210 = scmp.eq.s32.totalorder %s41, 1
      %p211 = por %p209, %p210
      %p213 = scmp.ne.s32.totalorder %s198, %s212
      %p214 = scmp.eq.s32.totalorder %s41, 0
      %p215 = por %p213, %p214
      %s217 = sadd.s32 %s216, 1
      %p220 = scmp.eq.s32.totalorder %s35, 1
      %p221 = scmp.ne.s32.totalorder %s216, %s218
      %p222 = scmp.eq.s32.totalorder %s35, 0
      %p223 = por %p221, %p222
      %p224 = scmp.ne.s32.totalorder %s216, %s218
      %p225 = scmp.eq.s32.totalorder %s40, 1
      %p226 = por %p224, %p225
      %p227 = scmp.ne.s32.totalorder %s218, %s219
      %p228 = scmp.eq.s32.totalorder %s40, 0
      %p229 = por %p227, %p228
      %p230 = scmp.ne.s32.totalorder %s218, %s219
      %p231 = scmp.eq.s32.totalorder %s41, 1
      %p232 = por %p230, %p231
      %p234 = scmp.ne.s32.totalorder %s219, %s233
      %p235 = scmp.eq.s32.totalorder %s41, 0
      %p236 = por %p234, %p235
      %s238 = sadd.s32 %s237, 1
      %p241 = scmp.eq.s32.totalorder %s35, 1
      %p242 = scmp.ne.s32.totalorder %s237, %s239
      %p243 = scmp.eq.s32.totalorder %s35, 0
      %p244 = por %p242, %p243
      %p245 = scmp.ne.s32.totalorder %s237, %s239
      %p246 = scmp.eq.s32.totalorder %s40, 1
      %p247 = por %p245, %p246
      %p248 = scmp.ne.s32.totalorder %s239, %s240
      %p249 = scmp.eq.s32.totalorder %s40, 0
      %p250 = por %p248, %p249
      %p251 = scmp.ne.s32.totalorder %s239, %s240
      %p252 = scmp.eq.s32.totalorder %s41, 1
      %p253 = por %p251, %p252
      %p255 = scmp.ne.s32.totalorder %s240, %s254
      %p256 = scmp.eq.s32.totalorder %s41, 0
      %p257 = por %p255, %p256
      %s259 = sadd.s32 %s258, 1
      %p262 = scmp.eq.s32.totalorder %s35, 1
      %p263 = scmp.ne.s32.totalorder %s258, %s260
      %p264 = scmp.eq.s32.totalorder %s35, 0
      %p265 = por %p263, %p264
      %p266 = scmp.ne.s32.totalorder %s258, %s260
      %p267 = scmp.eq.s32.totalorder %s40, 1
      %p268 = por %p266, %p267
      %p269 = scmp.ne.s32.totalorder %s260, %s261
      %p270 = scmp.eq.s32.totalorder %s40, 0
      %p271 = por %p269, %p270
      %p272 = scmp.ne.s32.totalorder %s260, %s261
      %p273 = scmp.eq.s32.totalorder %s41, 1
      %p274 = por %p272, %p273
      %p276 = scmp.ne.s32.totalorder %s261, %s275
      %p277 = scmp.eq.s32.totalorder %s41, 0
      %p278 = por %p276, %p277
      %s280 = sadd.s32 %s279, 1
      %p283 = scmp.eq.s32.totalorder %s35, 1
      %p284 = scmp.ne.s32.totalorder %s279, %s281
      %p285 = scmp.eq.s32.totalorder %s35, 0
      %p286 = por %p284, %p285
      %p287 = scmp.ne.s32.totalorder %s279, %s281
      %p288 = scmp.eq.s32.totalorder %s40, 1
      %p289 = por %p287, %p288
      %p290 = scmp.ne.s32.totalorder %s281, %s282
      %p291 = scmp.eq.s32.totalorder %s40, 0
      %p292 = por %p290, %p291
      %p293 = scmp.ne.s32.totalorder %s281, %s282
      %p294 = scmp.eq.s32.totalorder %s41, 1
      %p295 = por %p293, %p294
      %p297 = scmp.ne.s32.totalorder %s282, %s296
      %p298 = scmp.eq.s32.totalorder %s41, 0
      %p299 = por %p297, %p298
      %s301 = sadd.s32 %s300, 1
      %p304 = scmp.eq.s32.totalorder %s35, 1
      %p305 = scmp.ne.s32.totalorder %s300, %s302
      %p306 = scmp.eq.s32.totalorder %s35, 0
      %p307 = por %p305, %p306
      %p308 = scmp.ne.s32.totalorder %s300, %s302
      %p309 = scmp.eq.s32.totalorder %s40, 1
      %p310 = por %p308, %p309
      %p311 = scmp.ne.s32.totalorder %s302, %s303
      %p312 = scmp.eq.s32.totalorder %s40, 0
      %p313 = por %p311, %p312
      %p314 = scmp.ne.s32.totalorder %s302, %s303
      %p315 = scmp.eq.s32.totalorder %s41, 1
      %p316 = por %p314, %p315
      %p318 = scmp.ne.s32.totalorder %s303, %s317
      %p319 = scmp.eq.s32.totalorder %s41, 0
      %p320 = por %p318, %p319
      %s322 = sadd.s32 %s321, 1
      %p325 = scmp.eq.s32.totalorder %s35, 1
      %p326 = scmp.ne.s32.totalorder %s321, %s323
      %p327 = scmp.eq.s32.totalorder %s35, 0
      %p328 = por %p326, %p327
      %p329 = scmp.ne.s32.totalorder %s321, %s323
      %p330 = scmp.eq.s32.totalorder %s40, 1
      %p331 = por %p329, %p330
      %p332 = scmp.ne.s32.totalorder %s323, %s324
      %p333 = scmp.eq.s32.totalorder %s40, 0
      %p334 = por %p332, %p333
      %p335 = scmp.ne.s32.totalorder %s323, %s324
      %p336 = scmp.eq.s32.totalorder %s41, 1
      %p337 = por %p335, %p336
      %p339 = scmp.ne.s32.totalorder %s324, %s338
      %p340 = scmp.eq.s32.totalorder %s41, 0
      %p341 = por %p339, %p340
      %s343 = sadd.s32 %s342, 1
      %p346 = scmp.eq.s32.totalorder %s35, 1
      %p347 = scmp.ne.s32.totalorder %s342, %s344
      %p348 = scmp.eq.s32.totalorder %s35, 0
      %p349 = por %p347, %p348
      %p350 = scmp.ne.s32.totalorder %s342, %s344
      %p351 = scmp.eq.s32.totalorder %s40, 1
      %p352 = por %p350, %p351
      %p353 = scmp.ne.s32.totalorder %s344, %s345
      %p354 = scmp.eq.s32.totalorder %s40, 0
      %p355 = por %p353, %p354
      %p356 = scmp.ne.s32.totalorder %s344, %s345
      %p357 = scmp.eq.s32.totalorder %s41, 1
      %p358 = por %p356, %p357
      %p360 = scmp.ne.s32.totalorder %s345, %s359
      %p361 = scmp.eq.s32.totalorder %s41, 0
      %p362 = por %p360, %p361
      %s364 = sadd.s32 %s363, 1
      %p367 = scmp.eq.s32.totalorder %s35, 1
      %p368 = scmp.ne.s32.totalorder %s363, %s365
      %p369 = scmp.eq.s32.totalorder %s35, 0
      %p370 = por %p368, %p369
      %p371 = scmp.ne.s32.totalorder %s363, %s365
      %p372 = scmp.eq.s32.totalorder %s40, 1
      %p373 = por %p371, %p372
      %p374 = scmp.ne.s32.totalorder %s365, %s366
      %p375 = scmp.eq.s32.totalorder %s40, 0
      %p376 = por %p374, %p375
      %p377 = scmp.ne.s32.totalorder %s365, %s366
      %p378 = scmp.eq.s32.totalorder %s41, 1
      %p379 = por %p377, %p378
      %p381 = scmp.ne.s32.totalorder %s366, %s380
      %p382 = scmp.eq.s32.totalorder %s41, 0
      %p383 = por %p381, %p382
      %s385 = sadd.s32 %s384, 1
      %p388 = scmp.eq.s32.totalorder %s35, 1
      %p389 = scmp.ne.s32.totalorder %s384, %s386
      %p390 = scmp.eq.s32.totalorder %s35, 0
      %p391 = por %p389, %p390
      %p392 = scmp.ne.s32.totalorder %s384, %s386
      %p393 = scmp.eq.s32.totalorder %s40, 1
      %p394 = por %p392, %p393
      %p395 = scmp.ne.s32.totalorder %s386, %s387
      %p396 = scmp.eq.s32.totalorder %s40, 0
      %p397 = por %p395, %p396
      %p398 = scmp.ne.s32.totalorder %s386, %s387
      %p399 = scmp.eq.s32.totalorder %s41, 1
      %p400 = por %p398, %p399
      %p402 = scmp.ne.s32.totalorder %s387, %s401
      %p403 = scmp.eq.s32.totalorder %s41, 0
      %p404 = por %p402, %p403
      %s406 = sadd.s32 %s405, 1
      %p409 = scmp.eq.s32.totalorder %s35, 1
      %p410 = scmp.ne.s32.totalorder %s405, %s407
      %p411 = scmp.eq.s32.totalorder %s35, 0
      %p412 = por %p410, %p411
      %p413 = scmp.ne.s32.totalorder %s405, %s407
      %p414 = scmp.eq.s32.totalorder %s40, 1
      %p415 = por %p413, %p414
      %p416 = scmp.ne.s32.totalorder %s407, %s408
      %p417 = scmp.eq.s32.totalorder %s40, 0
      %p418 = por %p416, %p417
      %p419 = scmp.ne.s32.totalorder %s407, %s408
      %p420 = scmp.eq.s32.totalorder %s41, 1
      %p421 = por %p419, %p420
      %p423 = scmp.ne.s32.totalorder %s408, %s422
      %p424 = scmp.eq.s32.totalorder %s41, 0
      %p425 = por %p423, %p424
      %s427 = sadd.s32 %s426, 1
      %p430 = scmp.eq.s32.totalorder %s35, 1
      %p431 = scmp.ne.s32.totalorder %s426, %s428
      %p432 = scmp.eq.s32.totalorder %s35, 0
      %p433 = por %p431, %p432
      %p434 = scmp.ne.s32.totalorder %s426, %s428
      %p435 = scmp.eq.s32.totalorder %s40, 1
      %p436 = por %p434, %p435
      %p437 = scmp.ne.s32.totalorder %s428, %s429
      %p438 = scmp.eq.s32.totalorder %s40, 0
      %p439 = por %p437, %p438
      %p440 = scmp.ne.s32.totalorder %s428, %s429
      %p441 = scmp.eq.s32.totalorder %s41, 1
      %p442 = por %p440, %p441
      %p444 = scmp.ne.s32.totalorder %s429, %s443
      %p445 = scmp.eq.s32.totalorder %s41, 0
      %p446 = por %p444, %p445
      %s448 = sadd.s32 %s447, 1
      %p451 = scmp.eq.s32.totalorder %s35, 1
      %p452 = scmp.ne.s32.totalorder %s447, %s449
      %p453 = scmp.eq.s32.totalorder %s35, 0
      %p454 = por %p452, %p453
      %p455 = scmp.ne.s32.totalorder %s447, %s449
      %p456 = scmp.eq.s32.totalorder %s40, 1
      %p457 = por %p455, %p456
      %p458 = scmp.ne.s32.totalorder %s449, %s450
      %p459 = scmp.eq.s32.totalorder %s40, 0
      %p460 = por %p458, %p459
      %p461 = scmp.ne.s32.totalorder %s449, %s450
      %p462 = scmp.eq.s32.totalorder %s41, 1
      %p463 = por %p461, %p462
      %p465 = scmp.ne.s32.totalorder %s450, %s464
      %p466 = scmp.eq.s32.totalorder %s41, 0
      %p467 = por %p465, %p466
      %s469 = sadd.s32 %s468, 1
      %p472 = scmp.eq.s32.totalorder %s35, 1
      %p473 = scmp.ne.s32.totalorder %s468, %s470
      %p474 = scmp.eq.s32.totalorder %s35, 0
      %p475 = por %p473, %p474
      %p476 = scmp.ne.s32.totalorder %s468, %s470
      %p477 = scmp.eq.s32.totalorder %s40, 1
      %p478 = por %p476, %p477
      %p479 = scmp.ne.s32.totalorder %s470, %s471
      %p480 = scmp.eq.s32.totalorder %s40, 0
      %p481 = por %p479, %p480
      %p482 = scmp.ne.s32.totalorder %s470, %s471
      %p483 = scmp.eq.s32.totalorder %s41, 1
      %p484 = por %p482, %p483
      %p486 = scmp.ne.s32.totalorder %s471, %s485
      %p487 = scmp.eq.s32.totalorder %s41, 0
      %p488 = por %p486, %p487
      %s490 = sadd.s32 %s489, 1
      %p493 = scmp.eq.s32.totalorder %s35, 1
      %p494 = scmp.ne.s32.totalorder %s489, %s491
      %p495 = scmp.eq.s32.totalorder %s35, 0
      %p496 = por %p494, %p495
      %p497 = scmp.ne.s32.totalorder %s489, %s491
      %p498 = scmp.eq.s32.totalorder %s40, 1
      %p499 = por %p497, %p498
      %p500 = scmp.ne.s32.totalorder %s491, %s492
      %p501 = scmp.eq.s32.totalorder %s40, 0
      %p502 = por %p500, %p501
      %p503 = scmp.ne.s32.totalorder %s491, %s492
      %p504 = scmp.eq.s32.totalorder %s41, 1
      %p505 = por %p503, %p504
      %p507 = scmp.ne.s32.totalorder %s492, %s506
      %p508 = scmp.eq.s32.totalorder %s41, 0
      %p509 = por %p507, %p508
      %s511 = sadd.s32 %s510, 1
      %p514 = scmp.eq.s32.totalorder %s35, 1
      %p515 = scmp.ne.s32.totalorder %s510, %s512
      %p516 = scmp.eq.s32.totalorder %s35, 0
      %p517 = por %p515, %p516
      %p518 = scmp.ne.s32.totalorder %s510, %s512
      %p519 = scmp.eq.s32.totalorder %s40, 1
      %p520 = por %p518, %p519
      %p521 = scmp.ne.s32.totalorder %s512, %s513
      %p522 = scmp.eq.s32.totalorder %s40, 0
      %p523 = por %p521, %p522
      %p524 = scmp.ne.s32.totalorder %s512, %s513
      %p525 = scmp.eq.s32.totalorder %s41, 1
      %p526 = por %p524, %p525
      %p528 = scmp.ne.s32.totalorder %s513, %s527
      %p529 = scmp.eq.s32.totalorder %s41, 0
      %p530 = por %p528, %p529
      %s532 = sadd.s32 %s531, 1
      %p535 = scmp.eq.s32.totalorder %s35, 1
      %p536 = scmp.ne.s32.totalorder %s531, %s533
      %p537 = scmp.eq.s32.totalorder %s35, 0
      %p538 = por %p536, %p537
      %p539 = scmp.ne.s32.totalorder %s531, %s533
      %p540 = scmp.eq.s32.totalorder %s40, 1
      %p541 = por %p539, %p540
      %p542 = scmp.ne.s32.totalorder %s533, %s534
      %p543 = scmp.eq.s32.totalorder %s40, 0
      %p544 = por %p542, %p543
      %p545 = scmp.ne.s32.totalorder %s533, %s534
      %p546 = scmp.eq.s32.totalorder %s41, 1
      %p547 = por %p545, %p546
      %p549 = scmp.ne.s32.totalorder %s534, %s548
      %p550 = scmp.eq.s32.totalorder %s41, 0
      %p551 = por %p549, %p550
      %s553 = sadd.s32 %s552, 1
      %p556 = scmp.eq.s32.totalorder %s35, 1
      %p557 = scmp.ne.s32.totalorder %s552, %s554
      %p558 = scmp.eq.s32.totalorder %s35, 0
      %p559 = por %p557, %p558
      %p560 = scmp.ne.s32.totalorder %s552, %s554
      %p561 = scmp.eq.s32.totalorder %s40, 1
      %p562 = por %p560, %p561
      %p563 = scmp.ne.s32.totalorder %s554, %s555
      %p564 = scmp.eq.s32.totalorder %s40, 0
      %p565 = por %p563, %p564
      %p566 = scmp.ne.s32.totalorder %s554, %s555
      %p567 = scmp.eq.s32.totalorder %s41, 1
      %p568 = por %p566, %p567
      %p570 = scmp.ne.s32.totalorder %s555, %s569
      %p571 = scmp.eq.s32.totalorder %s41, 0
      %p572 = por %p570, %p571
      %s573 = ssub.s32 %s35, %s42
      %p574 = scmp.eq.s32.totalorder %s573, 0
      %s576 = sadd.s32 %s575, 1
      %s577 = scalar_select %p574, %s575, %s576
      %p580 = pneg %p574
      %p581 = scmp.eq.s32.totalorder %s35, 1
      %p582 = por %p580, %p581
      %p583 = scmp.ne.s32.totalorder %s575, %s578
      %p584 = scmp.eq.s32.totalorder %s35, 0
      %p585 = por %p583, %p584
      %p586 = scmp.ne.s32.totalorder %s575, %s578
      %p587 = scmp.eq.s32.totalorder %s40, 1
      %p588 = por %p586, %p587
      %p589 = scmp.ne.s32.totalorder %s578, %s579
      %p590 = scmp.eq.s32.totalorder %s40, 0
      %p591 = por %p589, %p590
      %p592 = scmp.ne.s32.totalorder %s578, %s579
      %p593 = scmp.eq.s32.totalorder %s41, 1
      %p594 = por %p592, %p593
      %p596 = scmp.ne.s32.totalorder %s579, %s595
      %p597 = scmp.eq.s32.totalorder %s41, 0
      %p598 = por %p596, %p597
      %p599 = scmp.le.s32.totalorder 1, %s35
      %p600 = scmp.lt.s32.totalorder %s35, 3
      %p601 = pnand %p599, %p600
      %p602 = pneg %p601
      // Predicated region
      $region9: #{tpu_custom_call.1} parent=5 // pred_check
        _
      $region10: #{tpu_custom_call.1} parent=5 // pred_check_branch
        %604 = sbr.rel (%p601) target = $region12
      $region11: #{tpu_custom_call.1} parent=5 // pred_region
        %s605 = ssub.s32 %s35, 1
        // Predicated region
        $region13: #{tpu_custom_call.1} parent=11 // pred_check
          %p606 = pneg %p82
        $region14: #{tpu_custom_call.1} parent=11 // pred_check_branch
          %608 = sbr.rel (%p606) target = $region16
        $region15: #{tpu_custom_call.1} parent=11 // pred_region
          _
        $region16: #{tpu_custom_call.1} parent=11 // pred_fallthru
          _
        // Predicated region
        $region17: #{tpu_custom_call.1} parent=11 // pred_check
          %p609 = pneg %p103
        $region18: #{tpu_custom_call.1} parent=11 // pred_check_branch
          %611 = sbr.rel (%p609) target = $region20
        $region19: #{tpu_custom_call.1} parent=11 // pred_region
          _
        $region20: #{tpu_custom_call.1} parent=11 // pred_fallthru
          _
        // Predicated region
        $region21: #{tpu_custom_call.1} parent=11 // pred_check
          %p612 = pneg %p124
        $region22: #{tpu_custom_call.1} parent=11 // pred_check_branch
          %614 = sbr.rel (%p612) target = $region24
        $region23: #{tpu_custom_call.1} parent=11 // pred_region
          _
        $region24: #{tpu_custom_call.1} parent=11 // pred_fallthru
          _
        // Predicated region
        $region25: #{tpu_custom_call.1} parent=11 // pred_check
          %p615 = pneg %p145
        $region26: #{tpu_custom_call.1} parent=11 // pred_check_branch
          %617 = sbr.rel (%p615) target = $region28
        $region27: #{tpu_custom_call.1} parent=11 // pred_region
          _
        $region28: #{tpu_custom_call.1} parent=11 // pred_fallthru
          _
        // Predicated region
        $region29: #{tpu_custom_call.1} parent=11 // pred_check
          %p618 = pneg %p166
        $region30: #{tpu_custom_call.1} parent=11 // pred_check_branch
          %620 = sbr.rel (%p618) target = $region32
        $region31: #{tpu_custom_call.1} parent=11 // pred_region
          _
        $region32: #{tpu_custom_call.1} parent=11 // pred_fallthru
          _
        // Predicated region
        $region33: #{tpu_custom_call.1} parent=11 // pred_check
          %p621 = pneg %p187
        $region34: #{tpu_custom_call.1} parent=11 // pred_check_branch
          %623 = sbr.rel (%p621) target = $region36
        $region35: #{tpu_custom_call.1} parent=11 // pred_region
          _
        $region36: #{tpu_custom_call.1} parent=11 // pred_fallthru
          _
        // Predicated region
        $region37: #{tpu_custom_call.1} parent=11 // pred_check
          %p624 = pneg %p208
        $region38: #{tpu_custom_call.1} parent=11 // pred_check_branch
          %626 = sbr.rel (%p624) target = $region40
        $region39: #{tpu_custom_call.1} parent=11 // pred_region
          _
        $region40: #{tpu_custom_call.1} parent=11 // pred_fallthru
          _
        // Predicated region
        $region41: #{tpu_custom_call.1} parent=11 // pred_check
          %p627 = pneg %p229
        $region42: #{tpu_custom_call.1} parent=11 // pred_check_branch
          %629 = sbr.rel (%p627) target = $region44
        $region43: #{tpu_custom_call.1} parent=11 // pred_region
          _
        $region44: #{tpu_custom_call.1} parent=11 // pred_fallthru
          _
        // Predicated region
        $region45: #{tpu_custom_call.1} parent=11 // pred_check
          %p630 = pneg %p250
        $region46: #{tpu_custom_call.1} parent=11 // pred_check_branch
          %632 = sbr.rel (%p630) target = $region48
        $region47: #{tpu_custom_call.1} parent=11 // pred_region
          _
        $region48: #{tpu_custom_call.1} parent=11 // pred_fallthru
          _
        // Predicated region
        $region49: #{tpu_custom_call.1} parent=11 // pred_check
          %p633 = pneg %p271
        $region50: #{tpu_custom_call.1} parent=11 // pred_check_branch
          %635 = sbr.rel (%p633) target = $region52
        $region51: #{tpu_custom_call.1} parent=11 // pred_region
          _
        $region52: #{tpu_custom_call.1} parent=11 // pred_fallthru
          _
        // Predicated region
        $region53: #{tpu_custom_call.1} parent=11 // pred_check
          %p636 = pneg %p292
        $region54: #{tpu_custom_call.1} parent=11 // pred_check_branch
          %638 = sbr.rel (%p636) target = $region56
        $region55: #{tpu_custom_call.1} parent=11 // pred_region
          _
        $region56: #{tpu_custom_call.1} parent=11 // pred_fallthru
          _
        // Predicated region
        $region57: #{tpu_custom_call.1} parent=11 // pred_check
          %p639 = pneg %p313
        $region58: #{tpu_custom_call.1} parent=11 // pred_check_branch
          %641 = sbr.rel (%p639) target = $region60
        $region59: #{tpu_custom_call.1} parent=11 // pred_region
          _
        $region60: #{tpu_custom_call.1} parent=11 // pred_fallthru
          _
        // Predicated region
        $region61: #{tpu_custom_call.1} parent=11 // pred_check
          %p642 = pneg %p334
        $region62: #{tpu_custom_call.1} parent=11 // pred_check_branch
          %644 = sbr.rel (%p642) target = $region64
        $region63: #{tpu_custom_call.1} parent=11 // pred_region
          _
        $region64: #{tpu_custom_call.1} parent=11 // pred_fallthru
          _
        // Predicated region
        $region65: #{tpu_custom_call.1} parent=11 // pred_check
          %p645 = pneg %p355
        $region66: #{tpu_custom_call.1} parent=11 // pred_check_branch
          %647 = sbr.rel (%p645) target = $region68
        $region67: #{tpu_custom_call.1} parent=11 // pred_region
          _
        $region68: #{tpu_custom_call.1} parent=11 // pred_fallthru
          _
        // Predicated region
        $region69: #{tpu_custom_call.1} parent=11 // pred_check
          %p648 = pneg %p376
        $region70: #{tpu_custom_call.1} parent=11 // pred_check_branch
          %650 = sbr.rel (%p648) target = $region72
        $region71: #{tpu_custom_call.1} parent=11 // pred_region
          _
        $region72: #{tpu_custom_call.1} parent=11 // pred_fallthru
          _
        // Predicated region
        $region73: #{tpu_custom_call.1} parent=11 // pred_check
          %p651 = pneg %p397
        $region74: #{tpu_custom_call.1} parent=11 // pred_check_branch
          %653 = sbr.rel (%p651) target = $region76
        $region75: #{tpu_custom_call.1} parent=11 // pred_region
          _
        $region76: #{tpu_custom_call.1} parent=11 // pred_fallthru
          _
        // Predicated region
        $region77: #{tpu_custom_call.1} parent=11 // pred_check
          %p654 = pneg %p418
        $region78: #{tpu_custom_call.1} parent=11 // pred_check_branch
          %656 = sbr.rel (%p654) target = $region80
        $region79: #{tpu_custom_call.1} parent=11 // pred_region
          _
        $region80: #{tpu_custom_call.1} parent=11 // pred_fallthru
          _
        // Predicated region
        $region81: #{tpu_custom_call.1} parent=11 // pred_check
          %p657 = pneg %p439
        $region82: #{tpu_custom_call.1} parent=11 // pred_check_branch
          %659 = sbr.rel (%p657) target = $region84
        $region83: #{tpu_custom_call.1} parent=11 // pred_region
          _
        $region84: #{tpu_custom_call.1} parent=11 // pred_fallthru
          _
        // Predicated region
        $region85: #{tpu_custom_call.1} parent=11 // pred_check
          %p660 = pneg %p460
        $region86: #{tpu_custom_call.1} parent=11 // pred_check_branch
          %662 = sbr.rel (%p660) target = $region88
        $region87: #{tpu_custom_call.1} parent=11 // pred_region
          _
        $region88: #{tpu_custom_call.1} parent=11 // pred_fallthru
          _
        // Predicated region
        $region89: #{tpu_custom_call.1} parent=11 // pred_check
          %p663 = pneg %p481
        $region90: #{tpu_custom_call.1} parent=11 // pred_check_branch
          %665 = sbr.rel (%p663) target = $region92
        $region91: #{tpu_custom_call.1} parent=11 // pred_region
          _
        $region92: #{tpu_custom_call.1} parent=11 // pred_fallthru
          _
        // Predicated region
        $region93: #{tpu_custom_call.1} parent=11 // pred_check
          %p666 = pneg %p502
        $region94: #{tpu_custom_call.1} parent=11 // pred_check_branch
          %668 = sbr.rel (%p666) target = $region96
        $region95: #{tpu_custom_call.1} parent=11 // pred_region
          _
        $region96: #{tpu_custom_call.1} parent=11 // pred_fallthru
          _
        // Predicated region
        $region97: #{tpu_custom_call.1} parent=11 // pred_check
          %p669 = pneg %p523
        $region98: #{tpu_custom_call.1} parent=11 // pred_check_branch
          %671 = sbr.rel (%p669) target = $region100
        $region99: #{tpu_custom_call.1} parent=11 // pred_region
          _
        $region100: #{tpu_custom_call.1} parent=11 // pred_fallthru
          _
        // Predicated region
        $region101: #{tpu_custom_call.1} parent=11 // pred_check
          %p672 = pneg %p544
        $region102: #{tpu_custom_call.1} parent=11 // pred_check_branch
          %674 = sbr.rel (%p672) target = $region104
        $region103: #{tpu_custom_call.1} parent=11 // pred_region
          %676 = vsyncadd [#allocation5], 0
          %s677 = sshll.u32 %s23, 4
          %s678 = int_to_ptr.hbm [resolvable:$true] %s677
          %s679 = sshll.u32 [#allocation4], 4
          %s680 = int_to_ptr.vmem [resolvable:$true] %s679
          %685 = dma.hbm_to_vmem [thread:$0]  %s678, 6656, %s680, [#allocation5], 832, 832, 52
        $region104: #{tpu_custom_call.1} parent=11 // pred_fallthru
          _
        // Predicated region
        $region105: #{tpu_custom_call.1} parent=11 // pred_check
          %p686 = pneg %p565
        $region106: #{tpu_custom_call.1} parent=11 // pred_check_branch
          %688 = sbr.rel (%p686) target = $region108
        $region107: #{tpu_custom_call.1} parent=11 // pred_region
          _
        $region108: #{tpu_custom_call.1} parent=11 // pred_fallthru
          _
      $region12: #{tpu_custom_call.1} parent=5 // pred_fallthru
        _
      %p689 = scmp.lt.s32.totalorder %s35, 2
      // Predicated region
      $region109: #{tpu_custom_call.1} parent=5 // pred_check
        %p690 = pneg %p689
      $region110: #{tpu_custom_call.1} parent=5 // pred_check_branch
        %692 = sbr.rel (%p690) target = $region112
      $region111: #{tpu_custom_call.1} parent=5 // pred_region
        // Predicated region
        $region113: #{tpu_custom_call.1} parent=111 // pred_check
          %p693 = pneg %p55
        $region114: #{tpu_custom_call.1} parent=111 // pred_check_branch
          %695 = sbr.rel (%p693) target = $region116
        $region115: #{tpu_custom_call.1} parent=111 // pred_region
          %p696 = scmp.lt.s32.totalorder %s35, 1
          %s697 = scalar_select %p696, %s35, 1
          %s698 = smul.addr %s697, 2
          %s699 = scalar_lea.vmem %s0, %s698
        $region116: #{tpu_custom_call.1} parent=111 // pred_fallthru
          _
      $region112: #{tpu_custom_call.1} parent=5 // pred_fallthru
        _
      %p700 = scmp.le.s32.totalorder 1, %s35
      %p701 = scmp.lt.s32.totalorder %s35, 3
      %p702 = pnand %p700, %p701
      %p703 = pneg %p702
      // Predicated region
      $region117: #{tpu_custom_call.1} parent=5 // pred_check
        _
      $region118: #{tpu_custom_call.1} parent=5 // pred_check_branch
        %705 = sbr.rel (%p702) target = $region120
      $region119: #{tpu_custom_call.1} parent=5 // pred_region
        %s706 = ssub.s32 %s35, 1
        // Predicated region
        $region121: #{tpu_custom_call.1} parent=119 // pred_check
          %p707 = pneg %p544
        $region122: #{tpu_custom_call.1} parent=119 // pred_check_branch
          %709 = sbr.rel (%p707) target = $region124
        $region123: #{tpu_custom_call.1} parent=119 // pred_region
          %711 = dma.done [#allocation5], 6656
        $region124: #{tpu_custom_call.1} parent=119 // pred_fallthru
          _
        %p712 = scmp.lt.s32.totalorder %s40, 1
        %s713 = scalar_select %p712, %s40, 1
        %s714 = smul.addr %s713, 2
        %s715 = scalar_lea.vmem %s0, %s714
        %p716 = pneg %p61
        %p717 = pneg %p58
        %p718 = pneg %p82
        %p719 = pneg %p79
        %p720 = pneg %p103
        %p721 = pneg %p100
        %p722 = pneg %p124
        %p723 = pneg %p121
        %p724 = pneg %p145
        %p725 = pneg %p142
        %p726 = pneg %p166
        %p727 = pneg %p163
        %p728 = pneg %p187
        %p729 = pneg %p184
        %p730 = pneg %p208
        %p731 = pneg %p205
        %p732 = pneg %p229
        %p733 = pneg %p226
        %p734 = pneg %p250
        %p735 = pneg %p247
        %p736 = pneg %p271
        %p737 = pneg %p268
        %p738 = pneg %p292
        %p739 = pneg %p289
        %p740 = pneg %p313
        %p741 = pneg %p310
        %p742 = pneg %p334
        %p743 = pneg %p331
        %p744 = pneg %p355
        %p745 = pneg %p352
        %p746 = pneg %p376
        %p747 = pneg %p373
        %p748 = pneg %p397
        %p749 = pneg %p394
        %p750 = pneg %p418
        %p751 = pneg %p415
        %p752 = pneg %p439
        %p753 = pneg %p436
        %p754 = pneg %p460
        %p755 = pneg %p457
        %p756 = pneg %p481
        %p757 = pneg %p478
        %p758 = pneg %p502
        %p759 = pneg %p499
        %p760 = pneg %p523
        %p761 = pneg %p520
        %p762 = pneg %p544
        %p763 = pneg %p541
        %p764 = pneg %p565
        %p765 = pneg %p562
        %p766 = pneg %p591
        %p767 = pneg %p588
        %s768 = sand.u32 %s578, 1
        %s769 = scalar_lea.sflag [#allocation6], %s768
        %s770 = sand.u32 %s578, 1
        %s771 = smul.addr %s770, 12
        %s772 = scalar_lea.vmem [#allocation7], %s771
        %p773 = scmp.lt.s32.totalorder %s40, 1
        %s774 = scalar_select %p773, %s40, 1
        %s775 = smul.addr %s774, 2
        %s776 = scalar_lea.vmem %s0, %s775
        %778 = vst [vmem:[#allocation2] sm:$0xf] 0
        %779 = vst [vmem:[#allocation2 + $0x14] sm:$0xf] 0
        %780 = vst [vmem:[#allocation2 + $0x10] sm:$0xf] 0
        %781 = vst [vmem:[#allocation2 + $0x24] sm:$0xf] 0
        %782 = vst [vmem:[#allocation3] sm:$0xf] 0
        %783 = vst [vmem:[#allocation3 + $0x14] sm:$0xf] 0
        %784 = vst [vmem:[#allocation3 + $0x28] sm:$0xf] 0
        %785 = vst [vmem:[#allocation3 + $0x3c] sm:$0xf] 0
        %786 = vst [vmem:[#allocation3 + $0x50] sm:$0xf] 0
        %787 = vst [vmem:[#allocation3 + $0x64] sm:$0xf] 0
        %788 = vst [vmem:[#allocation3 + $0x78] sm:$0xf] 0
        %789 = vst [vmem:[#allocation3 + $0x8c] sm:$0xf] 0
        %790 = vst [vmem:[#allocation3 + $0x10] sm:$0xf] 0
        %791 = vst [vmem:[#allocation3 + $0x24] sm:$0xf] 0
        %792 = vst [vmem:[#allocation3 + $0x38] sm:$0xf] 0
        %793 = vst [vmem:[#allocation3 + $0x4c] sm:$0xf] 0
        %794 = vst [vmem:[#allocation3 + $0x60] sm:$0xf] 0
        %795 = vst [vmem:[#allocation3 + $0x74] sm:$0xf] 0
        %796 = vst [vmem:[#allocation3 + $0x88] sm:$0xf] 0
        %797 = vst [vmem:[#allocation3 + $0x9c] sm:$0xf] 0
        %798 = vst [vmem:[#allocation2 + $0x4] sm:$0xff] 0
        %799 = vst [vmem:[#allocation2 + $0xc] sm:$0xf] 0
        %800 = vst [vmem:[#allocation2 + $0x18] sm:$0xff] 0
        %801 = vst [vmem:[#allocation2 + $0x20] sm:$0xf] 0
        %v802 = vld [vmem:[%s776] sm:$0x1]
        %v803 = vpack.c.bf16 %v802, %v802
        %vm804 = vcmask 122880
        %vm805 = vsmask.f32 256
        %vm806 = vmand %vm804, %vm805
        %v807 = vld [vmem:[#allocation2 + $0x4] sm:$0x1]
        %v808 = vsel %vm806, %v803, %v807
        %809 = vst [vmem:[#allocation2 + $0x4] sm:$0x1] %v808
        %v810 = vld [vmem:[%s776] sm:$0x1]
        %v811 = vpack.c.bf16 %v810, %v810
        %813 = vrot.lane.b32.xlu0 %v811, 4
        %v814 = vpop.permute.xlu0 %813
        %vm816 = vcmask 286880
        %vm817 = vmand %vm816, %vm805
        %v818 = vld [vmem:[#allocation2 + $0x4] sm:$0x1]
        %v819 = vsel %vm817, %v814, %v818
        %820 = vst [vmem:[#allocation2 + $0x4] sm:$0x1] %v819
        %v821 = vld [vmem:[%s776] sm:$0x1]
        %v822 = vpack.c.bf16 %v821, %v821
        %824 = vrot.lane.b32.xlu0 %v822, 8
        %v825 = vpop.permute.xlu0 %824
        %vm827 = vcmask 450880
        %vm828 = vmand %vm827, %vm805
        %v829 = vld [vmem:[#allocation2 + $0x4] sm:$0x1]
        %v830 = vsel %vm828, %v825, %v829
        %831 = vst [vmem:[#allocation2 + $0x4] sm:$0x1] %v830
        %v832 = vld [vmem:[%s776] sm:$0x1]
        %v833 = vpack.c.bf16 %v832, %v832
        %835 = vrot.lane.b32.xlu0 %v833, 12
        %v836 = vpop.permute.xlu0 %835
        %vm838 = vcmask 614880
        %vm839 = vmand %vm838, %vm805
        %v840 = vld [vmem:[#allocation2 + $0x4] sm:$0x1]
        %v841 = vsel %vm839, %v836, %v840
        %842 = vst [vmem:[#allocation2 + $0x4] sm:$0x1] %v841
        %v843 = vld [vmem:[%s776] sm:$0x1]
        %v844 = vpack.c.bf16 %v843, %v843
        %846 = vrot.lane.b32.xlu0 %v844, 16
        %v847 = vpop.permute.xlu0 %846
        %vm849 = vcmask 778880
        %vm850 = vmand %vm849, %vm805
        %v851 = vld [vmem:[#allocation2 + $0x4] sm:$0x1]
        %v852 = vsel %vm850, %v847, %v851
        %853 = vst [vmem:[#allocation2 + $0x4] sm:$0x1] %v852
        %v854 = vld [vmem:[%s776] sm:$0x1]
        %v855 = vpack.c.bf16 %v854, %v854
        %857 = vrot.lane.b32.xlu0 %v855, 20
        %v858 = vpop.permute.xlu0 %857
        %vm860 = vcmask 942880
        %vm861 = vmand %vm860, %vm805
        %v862 = vld [vmem:[#allocation2 + $0x4] sm:$0x1]
        %v863 = vsel %vm861, %v858, %v862
        %864 = vst [vmem:[#allocation2 + $0x4] sm:$0x1] %v863
        %v865 = vld [vmem:[%s776] sm:$0x1]
        %v866 = vpack.c.bf16 %v865, %v865
        %868 = vrot.lane.b32.xlu0 %v866, 24
        %v869 = vpop.permute.xlu0 %868
        %v870 = vrot.slane %v869, 4
        %vm871 = vcmask 195584
        %v872 = vsel %vm871, %v870, %v869
        %vm874 = vcmask 1041344
        %vm875 = vmand %vm874, %vm805
        %vm876 = vcmask 61444
        %vm877 = vsmask.f32 4352
        %vm878 = vmand %vm876, %vm877
        %vm879 = vmor %vm878, %vm875
        %v880 = vld [vmem:[#allocation2 + $0x4] sm:$0x11]
        %v881 = vsel %vm879, %v872, %v880
        %882 = vst [vmem:[#allocation2 + $0x4] sm:$0x11] %v881
        %v883 = vld [vmem:[%s776] sm:$0x1]
        %v884 = vpack.c.bf16 %v883, %v883
        %886 = vrot.lane.b32.xlu0 %v884, 28
        %v887 = vpop.permute.xlu0 %886
        %vm889 = vcmask 221280
        %vm890 = vmand %vm889, %vm805
        %v891 = vld [vmem:[#allocation2 + $0x8] sm:$0x1]
        %v892 = vsel %vm890, %v887, %v891
        %893 = vst [vmem:[#allocation2 + $0x8] sm:$0x1] %v892
        %v894 = vld [vmem:[%s776 + $0x1] sm:$0x1]
        %v895 = vpack.c.bf16 %v894, %v894
        %897 = vrot.lane.b32.xlu0 %v895, 32
        %v898 = vpop.permute.xlu0 %897
        %vm900 = vcmask 385280
        %vm901 = vmand %vm900, %vm805
        %v902 = vld [vmem:[#allocation2 + $0x8] sm:$0x1]
        %v903 = vsel %vm901, %v898, %v902
        %904 = vst [vmem:[#allocation2 + $0x8] sm:$0x1] %v903
        %v905 = vld [vmem:[%s776 + $0x1] sm:$0x1]
        %v906 = vpack.c.bf16 %v905, %v905
        %908 = vrot.lane.b32.xlu0 %v906, 36
        %v909 = vpop.permute.xlu0 %908
        %vm911 = vcmask 549280
        %vm912 = vmand %vm911, %vm805
        %v913 = vld [vmem:[#allocation2 + $0x8] sm:$0x1]
        %v914 = vsel %vm912, %v909, %v913
        %915 = vst [vmem:[#allocation2 + $0x8] sm:$0x1] %v914
        %v916 = vld [vmem:[%s776 + $0x1] sm:$0x1]
        %v917 = vpack.c.bf16 %v916, %v916
        %919 = vrot.lane.b32.xlu0 %v917, 40
        %v920 = vpop.permute.xlu0 %919
        %vm922 = vcmask 713280
        %vm923 = vmand %vm922, %vm805
        %v924 = vld [vmem:[#allocation2 + $0x8] sm:$0x1]
        %v925 = vsel %vm923, %v920, %v924
        %926 = vst [vmem:[#allocation2 + $0x8] sm:$0x1] %v925
        %v927 = vld [vmem:[%s776 + $0x1] sm:$0x1]
        %v928 = vpack.c.bf16 %v927, %v927
        %930 = vrot.lane.b32.xlu0 %v928, 44
        %v931 = vpop.permute.xlu0 %930
        %vm933 = vcmask 877280
        %vm934 = vmand %vm933, %vm805
        %v935 = vld [vmem:[#allocation2 + $0x8] sm:$0x1]
        %v936 = vsel %vm934, %v931, %v935
        %937 = vst [vmem:[#allocation2 + $0x8] sm:$0x1] %v936
        %v938 = vld [vmem:[%s776 + $0x1] sm:$0x1]
        %v939 = vpack.c.bf16 %v938, %v938
        %941 = vrot.lane.b32.xlu0 %v939, 48
        %v942 = vpop.permute.xlu0 %941
        %vm944 = vcmask 1041280
        %vm945 = vmand %vm944, %vm805
        %v946 = vld [vmem:[#allocation2 + $0x8] sm:$0x1]
        %v947 = vsel %vm945, %v942, %v946
        %948 = vst [vmem:[#allocation2 + $0x8] sm:$0x1] %v947
        %v949 = vld [vmem:[%s776 + $0x1] sm:$0x1]
        %v950 = vpack.c.bf16 %v949, %v949
        %952 = vrot.lane.b32.xlu0 %v950, 52
        %v953 = vpop.permute.xlu0 %952
        %vm955 = vcmask 155680
        %vm956 = vmand %vm955, %vm805
        %v957 = vld [vmem:[#allocation2 + $0xc] sm:$0x1]
        %v958 = vsel %vm956, %v953, %v957
        %959 = vst [vmem:[#allocation2 + $0xc] sm:$0x1] %v958
        %v960 = vld [vmem:[%s776 + $0x1] sm:$0x1]
        %v961 = vpack.c.bf16 %v960, %v960
        %963 = vrot.lane.b32.xlu0 %v961, 56
        %v964 = vpop.permute.xlu0 %963
        %vm966 = vcmask 319680
        %vm967 = vmand %vm966, %vm805
        %v968 = vld [vmem:[#allocation2 + $0xc] sm:$0x1]
        %v969 = vsel %vm967, %v964, %v968
        %970 = vst [vmem:[#allocation2 + $0xc] sm:$0x1] %v969
        %v971 = vld [vmem:[%s776 + $0x1] sm:$0x1]
        %v972 = vpack.c.bf16 %v971, %v971
        %974 = vrot.lane.b32.xlu0 %v972, 60
        %v975 = vpop.permute.xlu0 %974
        %vm977 = vcmask 483680
        %vm978 = vmand %vm977, %vm805
        %v979 = vld [vmem:[#allocation2 + $0xc] sm:$0x1]
        %v980 = vsel %vm978, %v975, %v979
        %981 = vst [vmem:[#allocation2 + $0xc] sm:$0x1] %v980
        %v982 = vld [vmem:[%s1] sm:$0x7]
        %v983 = vld [vmem:[#allocation2] sm:$0xff]
        %v984 = vld [vmem:[#allocation2 + $0x8] sm:$0xff]
        %v985 = vld [vmem:[#allocation2 + $0x14] sm:$0xff]
        %v986 = vld [vmem:[#allocation2 + $0x1c] sm:$0xff]
        %v987 = vld [vmem:[#allocation2 + $0x4] sm:$0xff]
        %v988 = vld [vmem:[#allocation2 + $0xc] sm:$0xf]
        %v989 = vld [vmem:[#allocation2 + $0x18] sm:$0xff]
        %v990 = vld [vmem:[#allocation2 + $0x20] sm:$0xf]
        %v991 = vld [vmem:[#allocation2 + $0x4] sm:$0xff]
        %v992 = vld [vmem:[#allocation2 + $0xc] sm:$0xff]
        %v993 = vld [vmem:[#allocation2 + $0x18] sm:$0xff]
        %v994 = vld [vmem:[#allocation2 + $0x20] sm:$0xff]
        %v999 = vunpack.c.l.b16 %v983
        %v1000 = vunpack.c.h.b16 %v983
        %v1001 = vunpack.c.l.b16 %v984
        %v1002 = vunpack.c.h.b16 %v984
        %v1003 = vunpack.c.l.b16 %v985
        %v1004 = vunpack.c.h.b16 %v985
        %v1005 = vunpack.c.l.b16 %v986
        %v1006 = vunpack.c.h.b16 %v986
        %v1007 = vpack.c.b16 %v1003, %v999
        %v1008 = vpack.c.b16 %v1004, %v1000
        %v1009 = vpack.c.b16 %v1005, %v1001
        %v1010 = vpack.c.b16 %v1006, %v1002
        %1011 = vrot.lane.b32.xlu0 %v1007, 127
        %v1012 = vpop.permute.xlu0 %1011
        %1013 = vrot.lane.b32.xlu0 %v1008, 127
        %v1014 = vpop.permute.xlu0 %1013
        %1015 = vrot.lane.b32.xlu0 %v1009, 127
        %v1016 = vpop.permute.xlu0 %1015
        %1017 = vrot.lane.b32.xlu0 %v1010, 127
        %v1018 = vpop.permute.xlu0 %1017
        %vm1019 = vcmask 1039360
        %v1020 = vsel %vm1019, %v1012, %v1014
        %v1021 = vsel %vm1019, %v1014, %v1016
        %v1022 = vsel %vm1019, %v1016, %v1018
        %1023 = vrot.lane.b32.xlu0 %v1007, 126
        %v1024 = vpop.permute.xlu0 %1023
        %1025 = vrot.lane.b32.xlu0 %v1008, 126
        %v1026 = vpop.permute.xlu0 %1025
        %1027 = vrot.lane.b32.xlu0 %v1009, 126
        %v1028 = vpop.permute.xlu0 %1027
        %1029 = vrot.lane.b32.xlu0 %v1010, 126
        %v1030 = vpop.permute.xlu0 %1029
        %vm1031 = vcmask 1031168
        %v1032 = vsel %vm1031, %v1024, %v1026
        %v1033 = vsel %vm1031, %v1026, %v1028
        %v1034 = vsel %vm1031, %v1028, %v1030
        %1035 = vrot.lane.b32.xlu0 %v1007, 125
        %v1036 = vpop.permute.xlu0 %1035
        %1037 = vrot.lane.b32.xlu0 %v1008, 125
        %v1038 = vpop.permute.xlu0 %1037
        %1039 = vrot.lane.b32.xlu0 %v1009, 125
        %v1040 = vpop.permute.xlu0 %1039
        %1041 = vrot.lane.b32.xlu0 %v1010, 125
        %v1042 = vpop.permute.xlu0 %1041
        %vm1043 = vcmask 1022976
        %v1044 = vsel %vm1043, %v1036, %v1038
        %v1045 = vsel %vm1043, %v1038, %v1040
        %v1046 = vsel %vm1043, %v1040, %v1042
        %1047 = vrot.lane.b32.xlu0 %v1007, 124
        %v1048 = vpop.permute.xlu0 %1047
        %1049 = vrot.lane.b32.xlu0 %v1008, 124
        %v1050 = vpop.permute.xlu0 %1049
        %1051 = vrot.lane.b32.xlu0 %v1009, 124
        %v1052 = vpop.permute.xlu0 %1051
        %1053 = vrot.lane.b32.xlu0 %v1010, 124
        %v1054 = vpop.permute.xlu0 %1053
        %vm1055 = vcmask 1014784
        %v1056 = vsel %vm1055, %v1048, %v1050
        %v1057 = vsel %vm1055, %v1050, %v1052
        %v1058 = vsel %vm1055, %v1052, %v1054
        %1059 = vrot.lane.b32.xlu0 %v1007, 108
        %v1060 = vpop.permute.xlu0 %1059
        %1061 = vrot.lane.b32.xlu0 %v1008, 108
        %v1062 = vpop.permute.xlu0 %1061
        %1063 = vrot.lane.b32.xlu0 %v1009, 108
        %v1064 = vpop.permute.xlu0 %1063
        %1065 = vrot.lane.b32.xlu0 %v1010, 108
        %v1066 = vpop.permute.xlu0 %1065
        %vm1067 = vcmask 883712
        %v1068 = vsel %vm1067, %v1060, %v1062
        %v1069 = vsel %vm1067, %v1062, %v1064
        %v1070 = vsel %vm1067, %v1064, %v1066
        %1071 = vrot.lane.b32.xlu0 %v1007, 107
        %v1072 = vpop.permute.xlu0 %1071
        %1073 = vrot.lane.b32.xlu0 %v1008, 107
        %v1074 = vpop.permute.xlu0 %1073
        %1075 = vrot.lane.b32.xlu0 %v1009, 107
        %v1076 = vpop.permute.xlu0 %1075
        %1077 = vrot.lane.b32.xlu0 %v1010, 107
        %v1078 = vpop.permute.xlu0 %1077
        %vm1079 = vcmask 875520
        %v1080 = vsel %vm1079, %v1072, %v1074
        %v1081 = vsel %vm1079, %v1074, %v1076
        %v1082 = vsel %vm1079, %v1076, %v1078
        %1083 = vrot.lane.b32.xlu0 %v1007, 106
        %v1084 = vpop.permute.xlu0 %1083
        %1085 = vrot.lane.b32.xlu0 %v1008, 106
        %v1086 = vpop.permute.xlu0 %1085
        %1087 = vrot.lane.b32.xlu0 %v1009, 106
        %v1088 = vpop.permute.xlu0 %1087
        %1089 = vrot.lane.b32.xlu0 %v1010, 106
        %v1090 = vpop.permute.xlu0 %1089
        %vm1091 = vcmask 867328
        %v1092 = vsel %vm1091, %v1084, %v1086
        %v1093 = vsel %vm1091, %v1086, %v1088
        %v1094 = vsel %vm1091, %v1088, %v1090
        %1095 = vrot.lane.b32.xlu0 %v1007, 105
        %v1096 = vpop.permute.xlu0 %1095
        %1097 = vrot.lane.b32.xlu0 %v1008, 105
        %v1098 = vpop.permute.xlu0 %1097
        %1099 = vrot.lane.b32.xlu0 %v1009, 105
        %v1100 = vpop.permute.xlu0 %1099
        %1101 = vrot.lane.b32.xlu0 %v1010, 105
        %v1102 = vpop.permute.xlu0 %1101
        %vm1103 = vcmask 859136
        %v1104 = vsel %vm1103, %v1096, %v1098
        %v1105 = vsel %vm1103, %v1098, %v1100
        %v1106 = vsel %vm1103, %v1100, %v1102
        %1107 = vrot.lane.b32.xlu0 %v1007, 104
        %v1108 = vpop.permute.xlu0 %1107
        %1109 = vrot.lane.b32.xlu0 %v1008, 104
        %v1110 = vpop.permute.xlu0 %1109
        %1111 = vrot.lane.b32.xlu0 %v1009, 104
        %v1112 = vpop.permute.xlu0 %1111
        %1113 = vrot.lane.b32.xlu0 %v1010, 104
        %v1114 = vpop.permute.xlu0 %1113
        %vm1115 = vcmask 850944
        %v1116 = vsel %vm1115, %v1108, %v1110
        %v1117 = vsel %vm1115, %v1110, %v1112
        %v1118 = vsel %vm1115, %v1112, %v1114
        %1119 = vrot.lane.b32.xlu0 %v1007, 88
        %v1120 = vpop.permute.xlu0 %1119
        %1121 = vrot.lane.b32.xlu0 %v1008, 88
        %v1122 = vpop.permute.xlu0 %1121
        %1123 = vrot.lane.b32.xlu0 %v1009, 88
        %v1124 = vpop.permute.xlu0 %1123
        %1125 = vrot.lane.b32.xlu0 %v1010, 88
        %v1126 = vpop.permute.xlu0 %1125
        %vm1127 = vcmask 719872
        %v1128 = vsel %vm1127, %v1120, %v1122
        %v1129 = vsel %vm1127, %v1122, %v1124
        %v1130 = vsel %vm1127, %v1124, %v1126
        %1131 = vrot.lane.b32.xlu0 %v1007, 87
        %v1132 = vpop.permute.xlu0 %1131
        %1133 = vrot.lane.b32.xlu0 %v1008, 87
        %v1134 = vpop.permute.xlu0 %1133
        %1135 = vrot.lane.b32.xlu0 %v1009, 87
        %v1136 = vpop.permute.xlu0 %1135
        %1137 = vrot.lane.b32.xlu0 %v1010, 87
        %v1138 = vpop.permute.xlu0 %1137
        %vm1139 = vcmask 711680
        %v1140 = vsel %vm1139, %v1132, %v1134
        %v1141 = vsel %vm1139, %v1134, %v1136
        %v1142 = vsel %vm1139, %v1136, %v1138
        %v1147 = vunpack.c.l.b16 %v987
        %v1148 = vunpack.c.h.b16 %v987
        %v1149 = vunpack.c.l.b16 %v988
        %v1150 = vunpack.c.l.b16 %v989
        %v1151 = vunpack.c.h.b16 %v989
        %v1152 = vunpack.c.l.b16 %v990
        %v1153 = vpack.c.b16 %v1150, %v1147
        %v1154 = vpack.c.b16 %v1151, %v1148
        %v1155 = vpack.c.b16 %v1152, %v1149
        %1156 = vrot.lane.b32.xlu0 %v1153, 86
        %v1157 = vpop.permute.xlu0 %1156
        %1158 = vrot.lane.b32.xlu0 %v1154, 86
        %v1159 = vpop.permute.xlu0 %1158
        %1160 = vrot.lane.b32.xlu0 %v1155, 86
        %v1161 = vpop.permute.xlu0 %1160
        %vm1162 = vcmask 703488
        %v1163 = vsel %vm1162, %v1157, %v1159
        %v1164 = vsel %vm1162, %v1159, %v1161
        %v1169 = vunpack.c.l.b16 %v991
        %v1170 = vunpack.c.h.b16 %v991
        %v1171 = vunpack.c.l.b16 %v992
        %v1172 = vunpack.c.h.b16 %v992
        %v1173 = vunpack.c.l.b16 %v993
        %v1174 = vunpack.c.h.b16 %v993
        %v1175 = vunpack.c.l.b16 %v994
        %v1176 = vunpack.c.h.b16 %v994
        %v1177 = vpack.c.b16 %v1173, %v1169
        %v1178 = vpack.c.b16 %v1174, %v1170
        %v1179 = vpack.c.b16 %v1175, %v1171
        %v1180 = vpack.c.b16 %v1176, %v1172
        %1181 = vrot.lane.b32.xlu0 %v1177, 85
        %v1182 = vpop.permute.xlu0 %1181
        %1183 = vrot.lane.b32.xlu0 %v1178, 85
        %v1184 = vpop.permute.xlu0 %1183
        %1185 = vrot.lane.b32.xlu0 %v1179, 85
        %v1186 = vpop.permute.xlu0 %1185
        %1187 = vrot.lane.b32.xlu0 %v1180, 85
        %v1188 = vpop.permute.xlu0 %1187
        %vm1189 = vcmask 695296
        %v1190 = vsel %vm1189, %v1182, %v1184
        %v1191 = vsel %vm1189, %v1184, %v1186
        %v1192 = vsel %vm1189, %v1186, %v1188
        %1193 = vrot.lane.b32.xlu0 %v1177, 84
        %v1194 = vpop.permute.xlu0 %1193
        %1195 = vrot.lane.b32.xlu0 %v1178, 84
        %v1196 = vpop.permute.xlu0 %1195
        %1197 = vrot.lane.b32.xlu0 %v1179, 84
        %v1198 = vpop.permute.xlu0 %1197
        %1199 = vrot.lane.b32.xlu0 %v1180, 84
        %v1200 = vpop.permute.xlu0 %1199
        %vm1201 = vcmask 687104
        %v1202 = vsel %vm1201, %v1194, %v1196
        %v1203 = vsel %vm1201, %v1196, %v1198
        %v1204 = vsel %vm1201, %v1198, %v1200
        %1205 = vrot.lane.b32.xlu0 %v1177, 68
        %v1206 = vpop.permute.xlu0 %1205
        %1207 = vrot.lane.b32.xlu0 %v1178, 68
        %v1208 = vpop.permute.xlu0 %1207
        %1209 = vrot.lane.b32.xlu0 %v1179, 68
        %v1210 = vpop.permute.xlu0 %1209
        %1211 = vrot.lane.b32.xlu0 %v1180, 68
        %v1212 = vpop.permute.xlu0 %1211
        %vm1213 = vcmask 556032
        %v1214 = vsel %vm1213, %v1206, %v1208
        %v1215 = vsel %vm1213, %v1208, %v1210
        %v1216 = vsel %vm1213, %v1210, %v1212
        %1217 = vrot.lane.b32.xlu0 %v1177, 127
        %v1218 = vpop.permute.xlu0 %1217
        %1219 = vrot.lane.b32.xlu0 %v1178, 127
        %v1220 = vpop.permute.xlu0 %1219
        %1221 = vrot.lane.b32.xlu0 %v1179, 127
        %v1222 = vpop.permute.xlu0 %1221
        %1223 = vrot.lane.b32.xlu0 %v1180, 127
        %v1224 = vpop.permute.xlu0 %1223
        %v1225 = vsel %vm1019, %v1218, %v1220
        %v1226 = vsel %vm1019, %v1220, %v1222
        %v1227 = vsel %vm1019, %v1222, %v1224
        %1228 = vrot.lane.b32.xlu0 %v1177, 126
        %v1229 = vpop.permute.xlu0 %1228
        %1230 = vrot.lane.b32.xlu0 %v1178, 126
        %v1231 = vpop.permute.xlu0 %1230
        %1232 = vrot.lane.b32.xlu0 %v1179, 126
        %v1233 = vpop.permute.xlu0 %1232
        %1234 = vrot.lane.b32.xlu0 %v1180, 126
        %v1235 = vpop.permute.xlu0 %1234
        %v1236 = vsel %vm1031, %v1229, %v1231
        %v1237 = vsel %vm1031, %v1231, %v1233
        %v1238 = vsel %vm1031, %v1233, %v1235
        %1239 = vrot.lane.b32.xlu0 %v1177, 125
        %v1240 = vpop.permute.xlu0 %1239
        %1241 = vrot.lane.b32.xlu0 %v1178, 125
        %v1242 = vpop.permute.xlu0 %1241
        %1243 = vrot.lane.b32.xlu0 %v1179, 125
        %v1244 = vpop.permute.xlu0 %1243
        %1245 = vrot.lane.b32.xlu0 %v1180, 125
        %v1246 = vpop.permute.xlu0 %1245
        %v1247 = vsel %vm1043, %v1240, %v1242
        %v1248 = vsel %vm1043, %v1242, %v1244
        %v1249 = vsel %vm1043, %v1244, %v1246
        %1250 = vrot.lane.b32.xlu0 %v1177, 109
        %v1251 = vpop.permute.xlu0 %1250
        %1252 = vrot.lane.b32.xlu0 %v1178, 109
        %v1253 = vpop.permute.xlu0 %1252
        %1254 = vrot.lane.b32.xlu0 %v1179, 109
        %v1255 = vpop.permute.xlu0 %1254
        %1256 = vrot.lane.b32.xlu0 %v1180, 109
        %v1257 = vpop.permute.xlu0 %1256
        %vm1258 = vcmask 891904
        %v1259 = vsel %vm1258, %v1251, %v1253
        %v1260 = vsel %vm1258, %v1253, %v1255
        %v1261 = vsel %vm1258, %v1255, %v1257
        %1262 = vrot.lane.b32.xlu0 %v1177, 108
        %v1263 = vpop.permute.xlu0 %1262
        %1264 = vrot.lane.b32.xlu0 %v1178, 108
        %v1265 = vpop.permute.xlu0 %1264
        %1266 = vrot.lane.b32.xlu0 %v1179, 108
        %v1267 = vpop.permute.xlu0 %1266
        %1268 = vrot.lane.b32.xlu0 %v1180, 108
        %v1269 = vpop.permute.xlu0 %1268
        %v1270 = vsel %vm1067, %v1263, %v1265
        %v1271 = vsel %vm1067, %v1265, %v1267
        %v1272 = vsel %vm1067, %v1267, %v1269
        %1273 = vrot.lane.b32.xlu0 %v1177, 107
        %v1274 = vpop.permute.xlu0 %1273
        %1275 = vrot.lane.b32.xlu0 %v1178, 107
        %v1276 = vpop.permute.xlu0 %1275
        %1277 = vrot.lane.b32.xlu0 %v1179, 107
        %v1278 = vpop.permute.xlu0 %1277
        %1279 = vrot.lane.b32.xlu0 %v1180, 107
        %v1280 = vpop.permute.xlu0 %1279
        %v1281 = vsel %vm1079, %v1274, %v1276
        %v1282 = vsel %vm1079, %v1276, %v1278
        %v1283 = vsel %vm1079, %v1278, %v1280
        %1284 = vrot.lane.b32.xlu0 %v1177, 106
        %v1285 = vpop.permute.xlu0 %1284
        %1286 = vrot.lane.b32.xlu0 %v1178, 106
        %v1287 = vpop.permute.xlu0 %1286
        %1288 = vrot.lane.b32.xlu0 %v1179, 106
        %v1289 = vpop.permute.xlu0 %1288
        %1290 = vrot.lane.b32.xlu0 %v1180, 106
        %v1291 = vpop.permute.xlu0 %1290
        %v1292 = vsel %vm1091, %v1285, %v1287
        %v1293 = vsel %vm1091, %v1287, %v1289
        %v1294 = vsel %vm1091, %v1289, %v1291
        %1295 = vrot.lane.b32.xlu0 %v1177, 105
        %v1296 = vpop.permute.xlu0 %1295
        %1297 = vrot.lane.b32.xlu0 %v1178, 105
        %v1298 = vpop.permute.xlu0 %1297
        %1299 = vrot.lane.b32.xlu0 %v1179, 105
        %v1300 = vpop.permute.xlu0 %1299
        %1301 = vrot.lane.b32.xlu0 %v1180, 105
        %v1302 = vpop.permute.xlu0 %1301
        %v1303 = vsel %vm1103, %v1296, %v1298
        %v1304 = vsel %vm1103, %v1298, %v1300
        %v1305 = vsel %vm1103, %v1300, %v1302
        %1306 = vrot.lane.b32.xlu0 %v1177, 67
        %v1307 = vpop.permute.xlu0 %1306
        %1308 = vrot.lane.b32.xlu0 %v1178, 67
        %v1309 = vpop.permute.xlu0 %1308
        %1310 = vrot.lane.b32.xlu0 %v1179, 67
        %v1311 = vpop.permute.xlu0 %1310
        %1312 = vrot.lane.b32.xlu0 %v1180, 67
        %v1313 = vpop.permute.xlu0 %1312
        %1314 = vrot.lane.b32.xlu0 %v1225, 67
        %v1315 = vpop.permute.xlu0 %1314
        %1316 = vrot.lane.b32.xlu0 %v1226, 67
        %v1317 = vpop.permute.xlu0 %1316
        %1318 = vrot.lane.b32.xlu0 %v1227, 67
        %v1319 = vpop.permute.xlu0 %1318
        %1320 = vrot.lane.b32.xlu0 %v1224, 67
        %v1321 = vpop.permute.xlu0 %1320
        %1322 = vrot.lane.b32.xlu0 %v1236, 67
        %v1323 = vpop.permute.xlu0 %1322
        %1324 = vrot.lane.b32.xlu0 %v1237, 67
        %v1325 = vpop.permute.xlu0 %1324
        %1326 = vrot.lane.b32.xlu0 %v1238, 67
        %v1327 = vpop.permute.xlu0 %1326
        %1328 = vrot.lane.b32.xlu0 %v1235, 67
        %v1329 = vpop.permute.xlu0 %1328
        %1330 = vrot.lane.b32.xlu0 %v1247, 67
        %v1331 = vpop.permute.xlu0 %1330
        %1332 = vrot.lane.b32.xlu0 %v1248, 67
        %v1333 = vpop.permute.xlu0 %1332
        %1334 = vrot.lane.b32.xlu0 %v1249, 67
        %v1335 = vpop.permute.xlu0 %1334
        %1336 = vrot.lane.b32.xlu0 %v1246, 67
        %v1337 = vpop.permute.xlu0 %1336
        %1338 = vrot.lane.b32.xlu0 %v1259, 67
        %v1339 = vpop.permute.xlu0 %1338
        %1340 = vrot.lane.b32.xlu0 %v1260, 67
        %v1341 = vpop.permute.xlu0 %1340
        %1342 = vrot.lane.b32.xlu0 %v1261, 67
        %v1343 = vpop.permute.xlu0 %1342
        %1344 = vrot.lane.b32.xlu0 %v1257, 67
        %v1345 = vpop.permute.xlu0 %1344
        %1346 = vrot.lane.b32.xlu0 %v1270, 67
        %v1347 = vpop.permute.xlu0 %1346
        %1348 = vrot.lane.b32.xlu0 %v1271, 67
        %v1349 = vpop.permute.xlu0 %1348
        %1350 = vrot.lane.b32.xlu0 %v1272, 67
        %v1351 = vpop.permute.xlu0 %1350
        %1352 = vrot.lane.b32.xlu0 %v1269, 67
        %v1353 = vpop.permute.xlu0 %1352
        %1354 = vrot.lane.b32.xlu0 %v1281, 67
        %v1355 = vpop.permute.xlu0 %1354
        %1356 = vrot.lane.b32.xlu0 %v1282, 67
        %v1357 = vpop.permute.xlu0 %1356
        %1358 = vrot.lane.b32.xlu0 %v1283, 67
        %v1359 = vpop.permute.xlu0 %1358
        %1360 = vrot.lane.b32.xlu0 %v1280, 67
        %v1361 = vpop.permute.xlu0 %1360
        %1362 = vrot.lane.b32.xlu0 %v1292, 67
        %v1363 = vpop.permute.xlu0 %1362
        %1364 = vrot.lane.b32.xlu0 %v1293, 67
        %v1365 = vpop.permute.xlu0 %1364
        %1366 = vrot.lane.b32.xlu0 %v1294, 67
        %v1367 = vpop.permute.xlu0 %1366
        %1368 = vrot.lane.b32.xlu0 %v1291, 67
        %v1369 = vpop.permute.xlu0 %1368
        %1370 = vrot.lane.b32.xlu0 %v1303, 67
        %v1371 = vpop.permute.xlu0 %1370
        %1372 = vrot.lane.b32.xlu0 %v1304, 67
        %v1373 = vpop.permute.xlu0 %1372
        %1374 = vrot.lane.b32.xlu0 %v1305, 67
        %v1375 = vpop.permute.xlu0 %1374
        %1376 = vrot.lane.b32.xlu0 %v1302, 67
        %v1377 = vpop.permute.xlu0 %1376
        %vm1378 = vcmask 547840
        %v1379 = vsel %vm1378, %v1307, %v1309
        %v1380 = vsel %vm1378, %v1309, %v1311
        %v1381 = vsel %vm1378, %v1311, %v1313
        %v1382 = vsel %vm1378, %v1315, %v1317
        %v1383 = vsel %vm1378, %v1317, %v1319
        %v1384 = vsel %vm1378, %v1319, %v1321
        %v1385 = vsel %vm1378, %v1323, %v1325
        %v1386 = vsel %vm1378, %v1325, %v1327
        %v1387 = vsel %vm1378, %v1327, %v1329
        %v1388 = vsel %vm1378, %v1331, %v1333
        %v1389 = vsel %vm1378, %v1333, %v1335
        %v1390 = vsel %vm1378, %v1335, %v1337
        %v1391 = vsel %vm1378, %v1339, %v1341
        %v1392 = vsel %vm1378, %v1341, %v1343
        %v1393 = vsel %vm1378, %v1343, %v1345
        %v1394 = vsel %vm1378, %v1347, %v1349
        %v1395 = vsel %vm1378, %v1349, %v1351
        %v1396 = vsel %vm1378, %v1351, %v1353
        %v1397 = vsel %vm1378, %v1355, %v1357
        %v1398 = vsel %vm1378, %v1357, %v1359
        %v1399 = vsel %vm1378, %v1359, %v1361
        %v1400 = vsel %vm1378, %v1363, %v1365
        %v1401 = vsel %vm1378, %v1365, %v1367
        %v1402 = vsel %vm1378, %v1367, %v1369
        %v1403 = vsel %vm1378, %v1371, %v1373
        %v1404 = vsel %vm1378, %v1373, %v1375
        %v1405 = vsel %vm1378, %v1375, %v1377
        %v1406 = vld [vmem:[%s2] sm:$0xff]
        %v1407 = vld [vmem:[%s2 + $0x8] sm:$0xff]
        %v1408 = vld [vmem:[%s2 + $0x10] sm:$0xff]
        %v1409 = vld [vmem:[%s2 + $0x18] sm:$0xff]
        %v1410 = vld [vmem:[%s2 + $0x20] sm:$0xff]
        %v1411 = vld [vmem:[%s2 + $0x28] sm:$0xff]
        %v1412 = vld [vmem:[%s2 + $0x30] sm:$0xff]
        %v1413 = vld [vmem:[%s2 + $0x38] sm:$0xff]
        %v1414 = vld [vmem:[%s2 + $0x40] sm:$0xff]
        %v1415 = vld [vmem:[%s2 + $0x48] sm:$0xff]
        %v1416 = vld [vmem:[%s2 + $0x50] sm:$0xff]
        %v1417 = vld [vmem:[%s2 + $0x58] sm:$0xff]
        %v1418 = vld [vmem:[%s2 + $0x60] sm:$0xff]
        %v1419 = vld [vmem:[%s2 + $0x68] sm:$0xff]
        %v1420 = vld [vmem:[%s2 + $0x70] sm:$0xff]
        %v1421 = vld [vmem:[%s2 + $0x78] sm:$0xff]
        %v1422 = vld [vmem:[%s3] sm:$0xff]
        %v1423 = vld [vmem:[%s3 + $0x8] sm:$0xff]
        %v1424 = vld [vmem:[%s3 + $0x10] sm:$0xff]
        %v1425 = vld [vmem:[%s3 + $0x18] sm:$0xff]
        %v1426 = vld [vmem:[%s3 + $0x20] sm:$0xff]
        %v1427 = vld [vmem:[%s3 + $0x28] sm:$0xff]
        %v1428 = vld [vmem:[%s3 + $0x30] sm:$0xff]
        %v1429 = vld [vmem:[%s3 + $0x38] sm:$0xff]
        %1431 = vset.pattern.permute.xlu0 0
        %1432 = vperm.xlu0 %1431, %v1422
        %v1433 = vpop.permute.xlu0 %1432
        %1436 = vset.pattern.permute.xlu0 0
        %1437 = vperm.xlu0 %1436, %v1423
        %v1438 = vpop.permute.xlu0 %1437
        %1441 = vset.pattern.permute.xlu0 0
        %1442 = vperm.xlu0 %1441, %v1424
        %v1443 = vpop.permute.xlu0 %1442
        %1446 = vset.pattern.permute.xlu0 0
        %1447 = vperm.xlu0 %1446, %v1425
        %v1448 = vpop.permute.xlu0 %1447
        %1451 = vset.pattern.permute.xlu0 0
        %1452 = vperm.xlu0 %1451, %v1426
        %v1453 = vpop.permute.xlu0 %1452
        %1456 = vset.pattern.permute.xlu0 0
        %1457 = vperm.xlu0 %1456, %v1427
        %v1458 = vpop.permute.xlu0 %1457
        %1461 = vset.pattern.permute.xlu0 0
        %1462 = vperm.xlu0 %1461, %v1428
        %v1463 = vpop.permute.xlu0 %1462
        %1466 = vset.pattern.permute.xlu0 0
        %1467 = vperm.xlu0 %1466, %v1429
        %v1468 = vpop.permute.xlu0 %1467
        %v1486 = vunpack.c.l.b16 %v1406
        %v1487 = vunpack.c.h.b16 %v1406
        %v1488 = vunpack.c.l.b16 %v1407
        %v1489 = vunpack.c.h.b16 %v1407
        %v1490 = vunpack.c.l.b16 %v1408
        %v1491 = vunpack.c.h.b16 %v1408
        %v1492 = vunpack.c.l.b16 %v1409
        %v1493 = vunpack.c.h.b16 %v1409
        %v1494 = vunpack.c.l.b16 %v1410
        %v1495 = vunpack.c.h.b16 %v1410
        %v1496 = vunpack.c.l.b16 %v1411
        %v1497 = vunpack.c.h.b16 %v1411
        %v1498 = vunpack.c.l.b16 %v1412
        %v1499 = vunpack.c.h.b16 %v1412
        %v1500 = vunpack.c.l.b16 %v1413
        %v1501 = vunpack.c.h.b16 %v1413
        %v1502 = vunpack.c.l.b16 %v1414
        %v1503 = vunpack.c.h.b16 %v1414
        %v1504 = vunpack.c.l.b16 %v1415
        %v1505 = vunpack.c.h.b16 %v1415
        %v1506 = vunpack.c.l.b16 %v1416
        %v1507 = vunpack.c.h.b16 %v1416
        %v1508 = vunpack.c.l.b16 %v1417
        %v1509 = vunpack.c.h.b16 %v1417
        %v1510 = vunpack.c.l.b16 %v1418
        %v1511 = vunpack.c.h.b16 %v1418
        %v1512 = vunpack.c.l.b16 %v1419
        %v1513 = vunpack.c.h.b16 %v1419
        %v1514 = vunpack.c.l.b16 %v1420
        %v1515 = vunpack.c.h.b16 %v1420
        %v1516 = vunpack.c.l.b16 %v1421
        %v1517 = vunpack.c.h.b16 %v1421
        %v1518 = vpack.c.b16 %v1490, %v1486
        %v1519 = vpack.c.b16 %v1491, %v1487
        %v1520 = vpack.c.b16 %v1492, %v1488
        %v1521 = vpack.c.b16 %v1493, %v1489
        %v1522 = vpack.c.b16 %v1498, %v1494
        %v1523 = vpack.c.b16 %v1499, %v1495
        %v1524 = vpack.c.b16 %v1500, %v1496
        %v1525 = vpack.c.b16 %v1501, %v1497
        %v1526 = vpack.c.b16 %v1506, %v1502
        %v1527 = vpack.c.b16 %v1507, %v1503
        %v1528 = vpack.c.b16 %v1508, %v1504
        %v1529 = vpack.c.b16 %v1509, %v1505
        %v1530 = vpack.c.b16 %v1514, %v1510
        %v1531 = vpack.c.b16 %v1515, %v1511
        %v1532 = vpack.c.b16 %v1516, %v1512
        %v1533 = vpack.c.b16 %v1517, %v1513
        %1546 = vrot.lane.b32.xlu0 %v1007, 42
        %v1547 = vpop.permute.xlu0 %1546
        %1548 = vrot.lane.b32.xlu0 %v1008, 42
        %v1549 = vpop.permute.xlu0 %1548
        %1550 = vrot.lane.b32.xlu0 %v1009, 42
        %v1551 = vpop.permute.xlu0 %1550
        %1552 = vrot.lane.b32.xlu0 %v1010, 42
        %v1553 = vpop.permute.xlu0 %1552
        %1554 = vrot.lane.b32.xlu0 %v1020, 42
        %v1555 = vpop.permute.xlu0 %1554
        %1556 = vrot.lane.b32.xlu0 %v1021, 42
        %v1557 = vpop.permute.xlu0 %1556
        %1558 = vrot.lane.b32.xlu0 %v1022, 42
        %v1559 = vpop.permute.xlu0 %1558
        %1560 = vrot.lane.b32.xlu0 %v1018, 42
        %v1561 = vpop.permute.xlu0 %1560
        %1562 = vrot.lane.b32.xlu0 %v1032, 42
        %v1563 = vpop.permute.xlu0 %1562
        %1564 = vrot.lane.b32.xlu0 %v1033, 42
        %v1565 = vpop.permute.xlu0 %1564
        %1566 = vrot.lane.b32.xlu0 %v1034, 42
        %v1567 = vpop.permute.xlu0 %1566
        %1568 = vrot.lane.b32.xlu0 %v1030, 42
        %v1569 = vpop.permute.xlu0 %1568
        %1570 = vrot.lane.b32.xlu0 %v1044, 42
        %v1571 = vpop.permute.xlu0 %1570
        %1572 = vrot.lane.b32.xlu0 %v1045, 42
        %v1573 = vpop.permute.xlu0 %1572
        %1574 = vrot.lane.b32.xlu0 %v1046, 42
        %v1575 = vpop.permute.xlu0 %1574
        %1576 = vrot.lane.b32.xlu0 %v1042, 42
        %v1577 = vpop.permute.xlu0 %1576
        %1578 = vrot.lane.b32.xlu0 %v1056, 42
        %v1579 = vpop.permute.xlu0 %1578
        %1580 = vrot.lane.b32.xlu0 %v1057, 42
        %v1581 = vpop.permute.xlu0 %1580
        %1582 = vrot.lane.b32.xlu0 %v1058, 42
        %v1583 = vpop.permute.xlu0 %1582
        %1584 = vrot.lane.b32.xlu0 %v1054, 42
        %v1585 = vpop.permute.xlu0 %1584
        %1586 = vrot.lane.b32.xlu0 %v1068, 42
        %v1587 = vpop.permute.xlu0 %1586
        %1588 = vrot.lane.b32.xlu0 %v1069, 42
        %v1589 = vpop.permute.xlu0 %1588
        %1590 = vrot.lane.b32.xlu0 %v1070, 42
        %v1591 = vpop.permute.xlu0 %1590
        %1592 = vrot.lane.b32.xlu0 %v1066, 42
        %v1593 = vpop.permute.xlu0 %1592
        %1594 = vrot.lane.b32.xlu0 %v1080, 42
        %v1595 = vpop.permute.xlu0 %1594
        %1596 = vrot.lane.b32.xlu0 %v1081, 42
        %v1597 = vpop.permute.xlu0 %1596
        %1598 = vrot.lane.b32.xlu0 %v1082, 42
        %v1599 = vpop.permute.xlu0 %1598
        %1600 = vrot.lane.b32.xlu0 %v1078, 42
        %v1601 = vpop.permute.xlu0 %1600
        %1602 = vrot.lane.b32.xlu0 %v1092, 42
        %v1603 = vpop.permute.xlu0 %1602
        %1604 = vrot.lane.b32.xlu0 %v1093, 42
        %v1605 = vpop.permute.xlu0 %1604
        %1606 = vrot.lane.b32.xlu0 %v1094, 42
        %v1607 = vpop.permute.xlu0 %1606
        %1608 = vrot.lane.b32.xlu0 %v1090, 42
        %v1609 = vpop.permute.xlu0 %1608
        %1610 = vrot.lane.b32.xlu0 %v1104, 42
        %v1611 = vpop.permute.xlu0 %1610
        %1612 = vrot.lane.b32.xlu0 %v1105, 42
        %v1613 = vpop.permute.xlu0 %1612
        %1614 = vrot.lane.b32.xlu0 %v1106, 42
        %v1615 = vpop.permute.xlu0 %1614
        %1616 = vrot.lane.b32.xlu0 %v1102, 42
        %v1617 = vpop.permute.xlu0 %1616
        %1618 = vrot.lane.b32.xlu0 %v1116, 42
        %v1619 = vpop.permute.xlu0 %1618
        %1620 = vrot.lane.b32.xlu0 %v1117, 42
        %v1621 = vpop.permute.xlu0 %1620
        %1622 = vrot.lane.b32.xlu0 %v1118, 42
        %v1623 = vpop.permute.xlu0 %1622
        %1624 = vrot.lane.b32.xlu0 %v1114, 42
        %v1625 = vpop.permute.xlu0 %1624
        %1626 = vrot.lane.b32.xlu0 %v1128, 42
        %v1627 = vpop.permute.xlu0 %1626
        %1628 = vrot.lane.b32.xlu0 %v1129, 42
        %v1629 = vpop.permute.xlu0 %1628
        %1630 = vrot.lane.b32.xlu0 %v1130, 42
        %v1631 = vpop.permute.xlu0 %1630
        %1632 = vrot.lane.b32.xlu0 %v1126, 42
        %v1633 = vpop.permute.xlu0 %1632
        %1634 = vrot.lane.b32.xlu0 %v1140, 42
        %v1635 = vpop.permute.xlu0 %1634
        %1636 = vrot.lane.b32.xlu0 %v1141, 42
        %v1637 = vpop.permute.xlu0 %1636
        %1638 = vrot.lane.b32.xlu0 %v1142, 42
        %v1639 = vpop.permute.xlu0 %1638
        %1640 = vrot.lane.b32.xlu0 %v1138, 42
        %v1641 = vpop.permute.xlu0 %1640
        %1642 = vrot.lane.b32.xlu0 %v1157, 42
        %v1643 = vpop.permute.xlu0 %1642
        %1644 = vrot.lane.b32.xlu0 %v1163, 42
        %v1645 = vpop.permute.xlu0 %1644
        %1646 = vrot.lane.b32.xlu0 %v1164, 42
        %v1647 = vpop.permute.xlu0 %1646
        %1648 = vrot.lane.b32.xlu0 %v1161, 42
        %v1649 = vpop.permute.xlu0 %1648
        %1650 = vrot.lane.b32.xlu0 %v1182, 42
        %v1651 = vpop.permute.xlu0 %1650
        %1652 = vrot.lane.b32.xlu0 %v1190, 42
        %v1653 = vpop.permute.xlu0 %1652
        %1654 = vrot.lane.b32.xlu0 %v1191, 42
        %v1655 = vpop.permute.xlu0 %1654
        %1656 = vrot.lane.b32.xlu0 %v1192, 42
        %v1657 = vpop.permute.xlu0 %1656
        %1658 = vrot.lane.b32.xlu0 %v1194, 42
        %v1659 = vpop.permute.xlu0 %1658
        %1660 = vrot.lane.b32.xlu0 %v1202, 42
        %v1661 = vpop.permute.xlu0 %1660
        %1662 = vrot.lane.b32.xlu0 %v1203, 42
        %v1663 = vpop.permute.xlu0 %1662
        %1664 = vrot.lane.b32.xlu0 %v1204, 42
        %v1665 = vpop.permute.xlu0 %1664
        %1666 = vrot.lane.b32.xlu0 %v1206, 42
        %v1667 = vpop.permute.xlu0 %1666
        %1668 = vrot.lane.b32.xlu0 %v1214, 42
        %v1669 = vpop.permute.xlu0 %1668
        %1670 = vrot.lane.b32.xlu0 %v1215, 42
        %v1671 = vpop.permute.xlu0 %1670
        %1672 = vrot.lane.b32.xlu0 %v1216, 42
        %v1673 = vpop.permute.xlu0 %1672
        %1674 = vrot.lane.b32.xlu0 %v1307, 42
        %v1675 = vpop.permute.xlu0 %1674
        %1676 = vrot.lane.b32.xlu0 %v1379, 42
        %v1677 = vpop.permute.xlu0 %1676
        %1678 = vrot.lane.b32.xlu0 %v1380, 42
        %v1679 = vpop.permute.xlu0 %1678
        %1680 = vrot.lane.b32.xlu0 %v1381, 42
        %v1681 = vpop.permute.xlu0 %1680
        %1682 = vrot.lane.b32.xlu0 %v1315, 42
        %v1683 = vpop.permute.xlu0 %1682
        %1684 = vrot.lane.b32.xlu0 %v1382, 42
        %v1685 = vpop.permute.xlu0 %1684
        %1686 = vrot.lane.b32.xlu0 %v1383, 42
        %v1687 = vpop.permute.xlu0 %1686
        %1688 = vrot.lane.b32.xlu0 %v1384, 42
        %v1689 = vpop.permute.xlu0 %1688
        %1690 = vrot.lane.b32.xlu0 %v1323, 42
        %v1691 = vpop.permute.xlu0 %1690
        %1692 = vrot.lane.b32.xlu0 %v1385, 42
        %v1693 = vpop.permute.xlu0 %1692
        %1694 = vrot.lane.b32.xlu0 %v1386, 42
        %v1695 = vpop.permute.xlu0 %1694
        %1696 = vrot.lane.b32.xlu0 %v1387, 42
        %v1697 = vpop.permute.xlu0 %1696
        %1698 = vrot.lane.b32.xlu0 %v1331, 42
        %v1699 = vpop.permute.xlu0 %1698
        %1700 = vrot.lane.b32.xlu0 %v1388, 42
        %v1701 = vpop.permute.xlu0 %1700
        %1702 = vrot.lane.b32.xlu0 %v1389, 42
        %v1703 = vpop.permute.xlu0 %1702
        %1704 = vrot.lane.b32.xlu0 %v1390, 42
        %v1705 = vpop.permute.xlu0 %1704
        %1706 = vrot.lane.b32.xlu0 %v1339, 42
        %v1707 = vpop.permute.xlu0 %1706
        %1708 = vrot.lane.b32.xlu0 %v1391, 42
        %v1709 = vpop.permute.xlu0 %1708
        %1710 = vrot.lane.b32.xlu0 %v1392, 42
        %v1711 = vpop.permute.xlu0 %1710
        %1712 = vrot.lane.b32.xlu0 %v1393, 42
        %v1713 = vpop.permute.xlu0 %1712
        %1714 = vrot.lane.b32.xlu0 %v1347, 42
        %v1715 = vpop.permute.xlu0 %1714
        %1716 = vrot.lane.b32.xlu0 %v1394, 42
        %v1717 = vpop.permute.xlu0 %1716
        %1718 = vrot.lane.b32.xlu0 %v1395, 42
        %v1719 = vpop.permute.xlu0 %1718
        %1720 = vrot.lane.b32.xlu0 %v1396, 42
        %v1721 = vpop.permute.xlu0 %1720
        %1722 = vrot.lane.b32.xlu0 %v1355, 42
        %v1723 = vpop.permute.xlu0 %1722
        %1724 = vrot.lane.b32.xlu0 %v1397, 42
        %v1725 = vpop.permute.xlu0 %1724
        %1726 = vrot.lane.b32.xlu0 %v1398, 42
        %v1727 = vpop.permute.xlu0 %1726
        %1728 = vrot.lane.b32.xlu0 %v1399, 42
        %v1729 = vpop.permute.xlu0 %1728
        %1730 = vrot.lane.b32.xlu0 %v1363, 42
        %v1731 = vpop.permute.xlu0 %1730
        %1732 = vrot.lane.b32.xlu0 %v1400, 42
        %v1733 = vpop.permute.xlu0 %1732
        %1734 = vrot.lane.b32.xlu0 %v1401, 42
        %v1735 = vpop.permute.xlu0 %1734
        %1736 = vrot.lane.b32.xlu0 %v1402, 42
        %v1737 = vpop.permute.xlu0 %1736
        %1738 = vrot.lane.b32.xlu0 %v1371, 42
        %v1739 = vpop.permute.xlu0 %1738
        %1740 = vrot.lane.b32.xlu0 %v1403, 42
        %v1741 = vpop.permute.xlu0 %1740
        %1742 = vrot.lane.b32.xlu0 %v1404, 42
        %v1743 = vpop.permute.xlu0 %1742
        %1744 = vrot.lane.b32.xlu0 %v1405, 42
        %v1745 = vpop.permute.xlu0 %1744
        %vm1746 = vcmask 343040
        %v1747 = vsel %vm1746, %v1547, %v1549
        %v1748 = vsel %vm1746, %v1549, %v1551
        %v1749 = vsel %vm1746, %v1551, %v1553
        %v1750 = vsel %vm1746, %v1555, %v1557
        %v1751 = vsel %vm1746, %v1557, %v1559
        %v1752 = vsel %vm1746, %v1559, %v1561
        %v1753 = vsel %vm1746, %v1563, %v1565
        %v1754 = vsel %vm1746, %v1565, %v1567
        %v1755 = vsel %vm1746, %v1567, %v1569
        %v1756 = vsel %vm1746, %v1571, %v1573
        %v1757 = vsel %vm1746, %v1573, %v1575
        %v1758 = vsel %vm1746, %v1575, %v1577
        %v1759 = vsel %vm1746, %v1579, %v1581
        %v1760 = vsel %vm1746, %v1581, %v1583
        %v1761 = vsel %vm1746, %v1583, %v1585
        %v1762 = vsel %vm1746, %v1587, %v1589
        %v1763 = vsel %vm1746, %v1589, %v1591
        %v1764 = vsel %vm1746, %v1591, %v1593
        %v1765 = vsel %vm1746, %v1595, %v1597
        %v1766 = vsel %vm1746, %v1597, %v1599
        %v1767 = vsel %vm1746, %v1599, %v1601
        %v1768 = vsel %vm1746, %v1603, %v1605
        %v1769 = vsel %vm1746, %v1605, %v1607
        %v1770 = vsel %vm1746, %v1607, %v1609
        %v1771 = vsel %vm1746, %v1611, %v1613
        %v1772 = vsel %vm1746, %v1613, %v1615
        %v1773 = vsel %vm1746, %v1615, %v1617
        %v1774 = vsel %vm1746, %v1619, %v1621
        %v1775 = vsel %vm1746, %v1621, %v1623
        %v1776 = vsel %vm1746, %v1623, %v1625
        %v1777 = vsel %vm1746, %v1627, %v1629
        %v1778 = vsel %vm1746, %v1629, %v1631
        %v1779 = vsel %vm1746, %v1631, %v1633
        %v1780 = vsel %vm1746, %v1635, %v1637
        %v1781 = vsel %vm1746, %v1637, %v1639
        %v1782 = vsel %vm1746, %v1639, %v1641
        %v1783 = vsel %vm1746, %v1643, %v1645
        %v1784 = vsel %vm1746, %v1645, %v1647
        %v1785 = vsel %vm1746, %v1647, %v1649
        %v1786 = vsel %vm1746, %v1651, %v1653
        %v1787 = vsel %vm1746, %v1653, %v1655
        %v1788 = vsel %vm1746, %v1655, %v1657
        %v1789 = vsel %vm1746, %v1659, %v1661
        %v1790 = vsel %vm1746, %v1661, %v1663
        %v1791 = vsel %vm1746, %v1663, %v1665
        %v1792 = vsel %vm1746, %v1667, %v1669
        %v1793 = vsel %vm1746, %v1669, %v1671
        %v1794 = vsel %vm1746, %v1671, %v1673
        %v1795 = vsel %vm1746, %v1675, %v1677
        %v1796 = vsel %vm1746, %v1677, %v1679
        %v1797 = vsel %vm1746, %v1679, %v1681
        %v1798 = vsel %vm1746, %v1683, %v1685
        %v1799 = vsel %vm1746, %v1685, %v1687
        %v1800 = vsel %vm1746, %v1687, %v1689
        %v1801 = vsel %vm1746, %v1691, %v1693
        %v1802 = vsel %vm1746, %v1693, %v1695
        %v1803 = vsel %vm1746, %v1695, %v1697
        %v1804 = vsel %vm1746, %v1699, %v1701
        %v1805 = vsel %vm1746, %v1701, %v1703
        %v1806 = vsel %vm1746, %v1703, %v1705
        %v1807 = vsel %vm1746, %v1707, %v1709
        %v1808 = vsel %vm1746, %v1709, %v1711
        %v1809 = vsel %vm1746, %v1711, %v1713
        %v1810 = vsel %vm1746, %v1715, %v1717
        %v1811 = vsel %vm1746, %v1717, %v1719
        %v1812 = vsel %vm1746, %v1719, %v1721
        %v1813 = vsel %vm1746, %v1723, %v1725
        %v1814 = vsel %vm1746, %v1725, %v1727
        %v1815 = vsel %vm1746, %v1727, %v1729
        %v1816 = vsel %vm1746, %v1731, %v1733
        %v1817 = vsel %vm1746, %v1733, %v1735
        %v1818 = vsel %vm1746, %v1735, %v1737
        %v1819 = vsel %vm1746, %v1739, %v1741
        %v1820 = vsel %vm1746, %v1741, %v1743
        %v1821 = vsel %vm1746, %v1743, %v1745
        %vm1897 = vcmask 130048
        %v1899 = vsel %vm1897, %v1521, 0
        %v1902 = vsel %vm1897, %v1525, 0
        %v1905 = vsel %vm1897, %v1529, 0
        %v1908 = vsel %vm1897, %v1533, 0
        %1910 = vmatpush.bf16.msra.mxu0 %v1768
        %1911 = vmatpush.bf16.msra.mxu0 %v1765
        %1912 = vmatpush.bf16.msra.mxu0 %v1762
        %1913 = vmatpush.bf16.msra.mxu0 %v1759
        %1914 = vmatpush.bf16.msra.mxu0 %v1756
        %1915 = vmatpush.bf16.msra.mxu0 %v1753
        %1916 = vmatpush.bf16.msra.mxu0 %v1750
        %1917 = vmatpush.bf16.msra.mxu0 %v1747
        %1918 = vmatmul.bf16.gmra.mxu0 %v1518
        %v1919 = vpop.f32.mrf.mxu0
        %v1920 = vadd.f32 %v1433, %v1919
        %v1921 = vpop.f32.mrf.mxu0
        %v1922 = vadd.f32 %v1438, %v1921
        %1923 = vmatmul.bf16.gmra.mxu0 %v1522
        %v1924 = vpop.f32.mrf.mxu0
        %v1925 = vadd.f32 %v1443, %v1924
        %v1926 = vpop.f32.mrf.mxu0
        %v1927 = vadd.f32 %v1448, %v1926
        %1928 = vmatmul.bf16.gmra.mxu0 %v1526
        %v1929 = vpop.f32.mrf.mxu0
        %v1930 = vadd.f32 %v1453, %v1929
        %v1931 = vpop.f32.mrf.mxu0
        %v1932 = vadd.f32 %v1458, %v1931
        %1933 = vmatmul.bf16.gmra.mxu0 %v1530
        %v1934 = vpop.f32.mrf.mxu0
        %v1935 = vadd.f32 %v1463, %v1934
        %v1936 = vpop.f32.mrf.mxu0
        %v1937 = vadd.f32 %v1468, %v1936
        %1938 = vdwg.mxu0
        %1939 = vmatpush.bf16.msra.mxu0 %v1792
        %1940 = vmatpush.bf16.msra.mxu0 %v1789
        %1941 = vmatpush.bf16.msra.mxu0 %v1786
        %1942 = vmatpush.bf16.msra.mxu0 %v1783
        %1943 = vmatpush.bf16.msra.mxu0 %v1780
        %1944 = vmatpush.bf16.msra.mxu0 %v1777
        %1945 = vmatpush.bf16.msra.mxu0 %v1774
        %1946 = vmatpush.bf16.msra.mxu0 %v1771
        %1947 = vmatmul.bf16.gmra.mxu0 %v1519
        %v1948 = vpop.f32.mrf.mxu0
        %v1949 = vadd.f32 %v1920, %v1948
        %v1950 = vpop.f32.mrf.mxu0
        %v1951 = vadd.f32 %v1922, %v1950
        %1952 = vmatmul.bf16.gmra.mxu0 %v1523
        %v1953 = vpop.f32.mrf.mxu0
        %v1954 = vadd.f32 %v1925, %v1953
        %v1955 = vpop.f32.mrf.mxu0
        %v1956 = vadd.f32 %v1927, %v1955
        %1957 = vmatmul.bf16.gmra.mxu0 %v1527
        %v1958 = vpop.f32.mrf.mxu0
        %v1959 = vadd.f32 %v1930, %v1958
        %v1960 = vpop.f32.mrf.mxu0
        %v1961 = vadd.f32 %v1932, %v1960
        %1962 = vmatmul.bf16.gmra.mxu0 %v1531
        %v1963 = vpop.f32.mrf.mxu0
        %v1964 = vadd.f32 %v1935, %v1963
        %v1965 = vpop.f32.mrf.mxu0
        %v1966 = vadd.f32 %v1937, %v1965
        %1967 = vdwg.mxu0
        %1968 = vmatpush.bf16.msra.mxu0 %v1816
        %1969 = vmatpush.bf16.msra.mxu0 %v1813
        %1970 = vmatpush.bf16.msra.mxu0 %v1810
        %1971 = vmatpush.bf16.msra.mxu0 %v1807
        %1972 = vmatpush.bf16.msra.mxu0 %v1804
        %1973 = vmatpush.bf16.msra.mxu0 %v1801
        %1974 = vmatpush.bf16.msra.mxu0 %v1798
        %1975 = vmatpush.bf16.msra.mxu0 %v1795
        %1976 = vmatmul.bf16.gmra.mxu0 %v1520
        %v1977 = vpop.f32.mrf.mxu0
        %v1978 = vadd.f32 %v1949, %v1977
        %v1979 = vpop.f32.mrf.mxu0
        %v1980 = vadd.f32 %v1951, %v1979
        %1981 = vmatmul.bf16.gmra.mxu0 %v1524
        %v1982 = vpop.f32.mrf.mxu0
        %v1983 = vadd.f32 %v1954, %v1982
        %v1984 = vpop.f32.mrf.mxu0
        %v1985 = vadd.f32 %v1956, %v1984
        %1986 = vmatmul.bf16.gmra.mxu0 %v1528
        %v1987 = vpop.f32.mrf.mxu0
        %v1988 = vadd.f32 %v1959, %v1987
        %v1989 = vpop.f32.mrf.mxu0
        %v1990 = vadd.f32 %v1961, %v1989
        %1991 = vmatmul.bf16.gmra.mxu0 %v1532
        %v1992 = vpop.f32.mrf.mxu0
        %v1993 = vadd.f32 %v1964, %v1992
        %v1994 = vpop.f32.mrf.mxu0
        %v1995 = vadd.f32 %v1966, %v1994
        %1996 = vdwg.mxu0
        %1997 = vmatpush.bf16.msra.mxu0 0
        %1998 = vmatpush.bf16.msra.mxu0 0
        %1999 = vmatpush.bf16.msra.mxu0 0
        %2000 = vmatpush.bf16.msra.mxu0 0
        %2001 = vmatpush.bf16.msra.mxu0 0
        %2002 = vmatpush.bf16.msra.mxu0 0
        %2003 = vmatpush.bf16.msra.mxu0 0
        %2004 = vmatpush.bf16.msra.mxu0 %v1819
        %2005 = vmatmul.bf16.gmra.mxu0 %v1899
        %v2006 = vpop.f32.mrf.mxu0
        %v2007 = vadd.f32 %v1978, %v2006
        %v2008 = vpop.f32.mrf.mxu0
        %v2009 = vadd.f32 %v1980, %v2008
        %2010 = vmatmul.bf16.gmra.mxu0 %v1902
        %v2011 = vpop.f32.mrf.mxu0
        %v2012 = vadd.f32 %v1983, %v2011
        %v2013 = vpop.f32.mrf.mxu0
        %v2014 = vadd.f32 %v1985, %v2013
        %2015 = vmatmul.bf16.gmra.mxu0 %v1905
        %v2016 = vpop.f32.mrf.mxu0
        %v2017 = vadd.f32 %v1988, %v2016
        %v2018 = vpop.f32.mrf.mxu0
        %v2019 = vadd.f32 %v1990, %v2018
        %2020 = vmatmul.bf16.gmra.mxu0 %v1908
        %v2021 = vpop.f32.mrf.mxu0
        %v2022 = vadd.f32 %v1993, %v2021
        %v2023 = vpop.f32.mrf.mxu0
        %v2024 = vadd.f32 %v1995, %v2023
        %2025 = vdwg.mxu0
        %2026 = vmatpush.bf16.msra.mxu0 %v1769
        %2027 = vmatpush.bf16.msra.mxu0 %v1766
        %2028 = vmatpush.bf16.msra.mxu0 %v1763
        %2029 = vmatpush.bf16.msra.mxu0 %v1760
        %2030 = vmatpush.bf16.msra.mxu0 %v1757
        %2031 = vmatpush.bf16.msra.mxu0 %v1754
        %2032 = vmatpush.bf16.msra.mxu0 %v1751
        %2033 = vmatpush.bf16.msra.mxu0 %v1748
        %2034 = vmatmul.bf16.gmra.mxu0 %v1518
        %v2035 = vpop.f32.mrf.mxu0
        %v2036 = vadd.f32 %v1433, %v2035
        %v2037 = vpop.f32.mrf.mxu0
        %v2038 = vadd.f32 %v1438, %v2037
        %2039 = vmatmul.bf16.gmra.mxu0 %v1522
        %v2040 = vpop.f32.mrf.mxu0
        %v2041 = vadd.f32 %v1443, %v2040
        %v2042 = vpop.f32.mrf.mxu0
        %v2043 = vadd.f32 %v1448, %v2042
        %2044 = vmatmul.bf16.gmra.mxu0 %v1526
        %v2045 = vpop.f32.mrf.mxu0
        %v2046 = vadd.f32 %v1453, %v2045
        %v2047 = vpop.f32.mrf.mxu0
        %v2048 = vadd.f32 %v1458, %v2047
        %2049 = vmatmul.bf16.gmra.mxu0 %v1530
        %v2050 = vpop.f32.mrf.mxu0
        %v2051 = vadd.f32 %v1463, %v2050
        %v2052 = vpop.f32.mrf.mxu0
        %v2053 = vadd.f32 %v1468, %v2052
        %2054 = vdwg.mxu0
        %2055 = vmatpush.bf16.msra.mxu0 %v1793
        %2056 = vmatpush.bf16.msra.mxu0 %v1790
        %2057 = vmatpush.bf16.msra.mxu0 %v1787
        %2058 = vmatpush.bf16.msra.mxu0 %v1784
        %2059 = vmatpush.bf16.msra.mxu0 %v1781
        %2060 = vmatpush.bf16.msra.mxu0 %v1778
        %2061 = vmatpush.bf16.msra.mxu0 %v1775
        %2062 = vmatpush.bf16.msra.mxu0 %v1772
        %2063 = vmatmul.bf16.gmra.mxu0 %v1519
        %v2064 = vpop.f32.mrf.mxu0
        %v2065 = vadd.f32 %v2036, %v2064
        %v2066 = vpop.f32.mrf.mxu0
        %v2067 = vadd.f32 %v2038, %v2066
        %2068 = vmatmul.bf16.gmra.mxu0 %v1523
        %v2069 = vpop.f32.mrf.mxu0
        %v2070 = vadd.f32 %v2041, %v2069
        %v2071 = vpop.f32.mrf.mxu0
        %v2072 = vadd.f32 %v2043, %v2071
        %2073 = vmatmul.bf16.gmra.mxu0 %v1527
        %v2074 = vpop.f32.mrf.mxu0
        %v2075 = vadd.f32 %v2046, %v2074
        %v2076 = vpop.f32.mrf.mxu0
        %v2077 = vadd.f32 %v2048, %v2076
        %2078 = vmatmul.bf16.gmra.mxu0 %v1531
        %v2079 = vpop.f32.mrf.mxu0
        %v2080 = vadd.f32 %v2051, %v2079
        %v2081 = vpop.f32.mrf.mxu0
        %v2082 = vadd.f32 %v2053, %v2081
        %2083 = vdwg.mxu0
        %2084 = vmatpush.bf16.msra.mxu0 %v1817
        %2085 = vmatpush.bf16.msra.mxu0 %v1814
        %2086 = vmatpush.bf16.msra.mxu0 %v1811
        %2087 = vmatpush.bf16.msra.mxu0 %v1808
        %2088 = vmatpush.bf16.msra.mxu0 %v1805
        %2089 = vmatpush.bf16.msra.mxu0 %v1802
        %2090 = vmatpush.bf16.msra.mxu0 %v1799
        %2091 = vmatpush.bf16.msra.mxu0 %v1796
        %2092 = vmatmul.bf16.gmra.mxu0 %v1520
        %v2093 = vpop.f32.mrf.mxu0
        %v2094 = vadd.f32 %v2065, %v2093
        %v2095 = vpop.f32.mrf.mxu0
        %v2096 = vadd.f32 %v2067, %v2095
        %2097 = vmatmul.bf16.gmra.mxu0 %v1524
        %v2098 = vpop.f32.mrf.mxu0
        %v2099 = vadd.f32 %v2070, %v2098
        %v2100 = vpop.f32.mrf.mxu0
        %v2101 = vadd.f32 %v2072, %v2100
        %2102 = vmatmul.bf16.gmra.mxu0 %v1528
        %v2103 = vpop.f32.mrf.mxu0
        %v2104 = vadd.f32 %v2075, %v2103
        %v2105 = vpop.f32.mrf.mxu0
        %v2106 = vadd.f32 %v2077, %v2105
        %2107 = vmatmul.bf16.gmra.mxu0 %v1532
        %v2108 = vpop.f32.mrf.mxu0
        %v2109 = vadd.f32 %v2080, %v2108
        %v2110 = vpop.f32.mrf.mxu0
        %v2111 = vadd.f32 %v2082, %v2110
        %2112 = vdwg.mxu0
        %2113 = vmatpush.bf16.msra.mxu0 0
        %2114 = vmatpush.bf16.msra.mxu0 0
        %2115 = vmatpush.bf16.msra.mxu0 0
        %2116 = vmatpush.bf16.msra.mxu0 0
        %2117 = vmatpush.bf16.msra.mxu0 0
        %2118 = vmatpush.bf16.msra.mxu0 0
        %2119 = vmatpush.bf16.msra.mxu0 0
        %2120 = vmatpush.bf16.msra.mxu0 %v1820
        %2121 = vmatmul.bf16.gmra.mxu0 %v1899
        %v2122 = vpop.f32.mrf.mxu0
        %v2123 = vadd.f32 %v2094, %v2122
        %v2124 = vpop.f32.mrf.mxu0
        %v2125 = vadd.f32 %v2096, %v2124
        %2126 = vmatmul.bf16.gmra.mxu0 %v1902
        %v2127 = vpop.f32.mrf.mxu0
        %v2128 = vadd.f32 %v2099, %v2127
        %v2129 = vpop.f32.mrf.mxu0
        %v2130 = vadd.f32 %v2101, %v2129
        %2131 = vmatmul.bf16.gmra.mxu0 %v1905
        %v2132 = vpop.f32.mrf.mxu0
        %v2133 = vadd.f32 %v2104, %v2132
        %v2134 = vpop.f32.mrf.mxu0
        %v2135 = vadd.f32 %v2106, %v2134
        %2136 = vmatmul.bf16.gmra.mxu0 %v1908
        %v2137 = vpop.f32.mrf.mxu0
        %v2138 = vadd.f32 %v2109, %v2137
        %v2139 = vpop.f32.mrf.mxu0
        %v2140 = vadd.f32 %v2111, %v2139
        %2141 = vdwg.mxu0
        %2142 = vmatpush.bf16.msra.mxu0 %v1770
        %2143 = vmatpush.bf16.msra.mxu0 %v1767
        %2144 = vmatpush.bf16.msra.mxu0 %v1764
        %2145 = vmatpush.bf16.msra.mxu0 %v1761
        %2146 = vmatpush.bf16.msra.mxu0 %v1758
        %2147 = vmatpush.bf16.msra.mxu0 %v1755
        %2148 = vmatpush.bf16.msra.mxu0 %v1752
        %2149 = vmatpush.bf16.msra.mxu0 %v1749
        %2150 = vmatmul.bf16.gmra.mxu0 %v1518
        %v2151 = vpop.f32.mrf.mxu0
        %v2152 = vadd.f32 %v1433, %v2151
        %v2153 = vpop.f32.mrf.mxu0
        %v2154 = vadd.f32 %v1438, %v2153
        %2155 = vmatmul.bf16.gmra.mxu0 %v1522
        %v2156 = vpop.f32.mrf.mxu0
        %v2157 = vadd.f32 %v1443, %v2156
        %v2158 = vpop.f32.mrf.mxu0
        %v2159 = vadd.f32 %v1448, %v2158
        %2160 = vmatmul.bf16.gmra.mxu0 %v1526
        %v2161 = vpop.f32.mrf.mxu0
        %v2162 = vadd.f32 %v1453, %v2161
        %v2163 = vpop.f32.mrf.mxu0
        %v2164 = vadd.f32 %v1458, %v2163
        %2165 = vmatmul.bf16.gmra.mxu0 %v1530
        %v2166 = vpop.f32.mrf.mxu0
        %v2167 = vadd.f32 %v1463, %v2166
        %v2168 = vpop.f32.mrf.mxu0
        %v2169 = vadd.f32 %v1468, %v2168
        %2170 = vdwg.mxu0
        %2171 = vmatpush.bf16.msra.mxu0 %v1794
        %2172 = vmatpush.bf16.msra.mxu0 %v1791
        %2173 = vmatpush.bf16.msra.mxu0 %v1788
        %2174 = vmatpush.bf16.msra.mxu0 %v1785
        %2175 = vmatpush.bf16.msra.mxu0 %v1782
        %2176 = vmatpush.bf16.msra.mxu0 %v1779
        %2177 = vmatpush.bf16.msra.mxu0 %v1776
        %2178 = vmatpush.bf16.msra.mxu0 %v1773
        %2179 = vmatmul.bf16.gmra.mxu0 %v1519
        %v2180 = vpop.f32.mrf.mxu0
        %v2181 = vadd.f32 %v2152, %v2180
        %v2182 = vpop.f32.mrf.mxu0
        %v2183 = vadd.f32 %v2154, %v2182
        %2184 = vmatmul.bf16.gmra.mxu0 %v1523
        %v2185 = vpop.f32.mrf.mxu0
        %v2186 = vadd.f32 %v2157, %v2185
        %v2187 = vpop.f32.mrf.mxu0
        %v2188 = vadd.f32 %v2159, %v2187
        %2189 = vmatmul.bf16.gmra.mxu0 %v1527
        %v2190 = vpop.f32.mrf.mxu0
        %v2191 = vadd.f32 %v2162, %v2190
        %v2192 = vpop.f32.mrf.mxu0
        %v2193 = vadd.f32 %v2164, %v2192
        %2194 = vmatmul.bf16.gmra.mxu0 %v1531
        %v2195 = vpop.f32.mrf.mxu0
        %v2196 = vadd.f32 %v2167, %v2195
        %v2197 = vpop.f32.mrf.mxu0
        %v2198 = vadd.f32 %v2169, %v2197
        %2199 = vdwg.mxu0
        %2200 = vmatpush.bf16.msra.mxu0 %v1818
        %2201 = vmatpush.bf16.msra.mxu0 %v1815
        %2202 = vmatpush.bf16.msra.mxu0 %v1812
        %2203 = vmatpush.bf16.msra.mxu0 %v1809
        %2204 = vmatpush.bf16.msra.mxu0 %v1806
        %2205 = vmatpush.bf16.msra.mxu0 %v1803
        %2206 = vmatpush.bf16.msra.mxu0 %v1800
        %2207 = vmatpush.bf16.msra.mxu0 %v1797
        %2208 = vmatmul.bf16.gmra.mxu0 %v1520
        %v2209 = vpop.f32.mrf.mxu0
        %v2210 = vadd.f32 %v2181, %v2209
        %v2211 = vpop.f32.mrf.mxu0
        %v2212 = vadd.f32 %v2183, %v2211
        %2213 = vmatmul.bf16.gmra.mxu0 %v1524
        %v2214 = vpop.f32.mrf.mxu0
        %v2215 = vadd.f32 %v2186, %v2214
        %v2216 = vpop.f32.mrf.mxu0
        %v2217 = vadd.f32 %v2188, %v2216
        %2218 = vmatmul.bf16.gmra.mxu0 %v1528
        %v2219 = vpop.f32.mrf.mxu0
        %v2220 = vadd.f32 %v2191, %v2219
        %v2221 = vpop.f32.mrf.mxu0
        %v2222 = vadd.f32 %v2193, %v2221
        %2223 = vmatmul.bf16.gmra.mxu0 %v1532
        %v2224 = vpop.f32.mrf.mxu0
        %v2225 = vadd.f32 %v2196, %v2224
        %v2226 = vpop.f32.mrf.mxu0
        %v2227 = vadd.f32 %v2198, %v2226
        %2228 = vdwg.mxu0
        %2229 = vmatpush.bf16.msra.mxu0 0
        %2230 = vmatpush.bf16.msra.mxu0 0
        %2231 = vmatpush.bf16.msra.mxu0 0
        %2232 = vmatpush.bf16.msra.mxu0 0
        %2233 = vmatpush.bf16.msra.mxu0 0
        %2234 = vmatpush.bf16.msra.mxu0 0
        %2235 = vmatpush.bf16.msra.mxu0 0
        %2236 = vmatpush.bf16.msra.mxu0 %v1821
        %2237 = vmatmul.bf16.gmra.mxu0 %v1899
        %v2238 = vpop.f32.mrf.mxu0
        %v2239 = vadd.f32 %v2210, %v2238
        %v2240 = vpop.f32.mrf.mxu0
        %v2241 = vadd.f32 %v2212, %v2240
        %2242 = vmatmul.bf16.gmra.mxu0 %v1902
        %v2243 = vpop.f32.mrf.mxu0
        %v2244 = vadd.f32 %v2215, %v2243
        %v2245 = vpop.f32.mrf.mxu0
        %v2246 = vadd.f32 %v2217, %v2245
        %2247 = vmatmul.bf16.gmra.mxu0 %v1905
        %v2248 = vpop.f32.mrf.mxu0
        %v2249 = vadd.f32 %v2220, %v2248
        %v2250 = vpop.f32.mrf.mxu0
        %v2251 = vadd.f32 %v2222, %v2250
        %2252 = vmatmul.bf16.gmra.mxu0 %v1908
        %v2253 = vpop.f32.mrf.mxu0
        %v2254 = vadd.f32 %v2225, %v2253
        %v2255 = vpop.f32.mrf.mxu0
        %v2256 = vadd.f32 %v2227, %v2255
        %2257 = vdwg.mxu0
        %v2258 = vld [vmem:[%s4] sm:$0xff]
        %v2259 = vld [vmem:[%s4 + $0x8] sm:$0xff]
        %v2260 = vld [vmem:[%s4 + $0x10] sm:$0xff]
        %v2261 = vld [vmem:[%s4 + $0x18] sm:$0xff]
        %v2262 = vld [vmem:[%s4 + $0x20] sm:$0xff]
        %v2263 = vld [vmem:[%s4 + $0x28] sm:$0xff]
        %v2264 = vld [vmem:[%s4 + $0x30] sm:$0xff]
        %v2265 = vld [vmem:[%s4 + $0x38] sm:$0xff]
        %vm2266 = vcmp.gt.f32.partialorder %v2007, 0.0
        %vm2267 = vcmp.gt.f32.partialorder %v2123, 0.0
        %vm2268 = vcmp.gt.f32.partialorder %v2239, 0.0
        %vm2269 = vcmp.gt.f32.partialorder %v2009, 0.0
        %vm2270 = vcmp.gt.f32.partialorder %v2125, 0.0
        %vm2271 = vcmp.gt.f32.partialorder %v2241, 0.0
        %vm2272 = vcmp.gt.f32.partialorder %v2012, 0.0
        %vm2273 = vcmp.gt.f32.partialorder %v2128, 0.0
        %vm2274 = vcmp.gt.f32.partialorder %v2244, 0.0
        %vm2275 = vcmp.gt.f32.partialorder %v2014, 0.0
        %vm2276 = vcmp.gt.f32.partialorder %v2130, 0.0
        %vm2277 = vcmp.gt.f32.partialorder %v2246, 0.0
        %vm2278 = vcmp.gt.f32.partialorder %v2017, 0.0
        %vm2279 = vcmp.gt.f32.partialorder %v2133, 0.0
        %vm2280 = vcmp.gt.f32.partialorder %v2249, 0.0
        %vm2281 = vcmp.gt.f32.partialorder %v2019, 0.0
        %vm2282 = vcmp.gt.f32.partialorder %v2135, 0.0
        %vm2283 = vcmp.gt.f32.partialorder %v2251, 0.0
        %vm2284 = vcmp.gt.f32.partialorder %v2022, 0.0
        %vm2285 = vcmp.gt.f32.partialorder %v2138, 0.0
        %vm2286 = vcmp.gt.f32.partialorder %v2254, 0.0
        %vm2287 = vcmp.gt.f32.partialorder %v2024, 0.0
        %vm2288 = vcmp.gt.f32.partialorder %v2140, 0.0
        %vm2289 = vcmp.gt.f32.partialorder %v2256, 0.0
        %2291 = vset.pattern.permute.xlu0 0
        %2292 = vperm.xlu0 %2291, %v2258
        %v2293 = vpop.permute.xlu0 %2292
        %2296 = vset.pattern.permute.xlu0 0
        %2297 = vperm.xlu0 %2296, %v2259
        %v2298 = vpop.permute.xlu0 %2297
        %2301 = vset.pattern.permute.xlu0 0
        %2302 = vperm.xlu0 %2301, %v2260
        %v2303 = vpop.permute.xlu0 %2302
        %2306 = vset.pattern.permute.xlu0 0
        %2307 = vperm.xlu0 %2306, %v2261
        %v2308 = vpop.permute.xlu0 %2307
        %2311 = vset.pattern.permute.xlu0 0
        %2312 = vperm.xlu0 %2311, %v2262
        %v2313 = vpop.permute.xlu0 %2312
        %2316 = vset.pattern.permute.xlu0 0
        %2317 = vperm.xlu0 %2316, %v2263
        %v2318 = vpop.permute.xlu0 %2317
        %2321 = vset.pattern.permute.xlu0 0
        %2322 = vperm.xlu0 %2321, %v2264
        %v2323 = vpop.permute.xlu0 %2322
        %2326 = vset.pattern.permute.xlu0 0
        %2327 = vperm.xlu0 %2326, %v2265
        %v2328 = vpop.permute.xlu0 %2327
        %v2330 = vmul.f32 %v2293, %v2007
        %v2331 = vmul.f32 %v2293, %v2123
        %v2332 = vmul.f32 %v2293, %v2239
        %v2333 = vmul.f32 %v2298, %v2009
        %v2334 = vmul.f32 %v2298, %v2125
        %v2335 = vmul.f32 %v2298, %v2241
        %v2336 = vmul.f32 %v2303, %v2012
        %v2337 = vmul.f32 %v2303, %v2128
        %v2338 = vmul.f32 %v2303, %v2244
        %v2339 = vmul.f32 %v2308, %v2014
        %v2340 = vmul.f32 %v2308, %v2130
        %v2341 = vmul.f32 %v2308, %v2246
        %v2342 = vmul.f32 %v2313, %v2017
        %v2343 = vmul.f32 %v2313, %v2133
        %v2344 = vmul.f32 %v2313, %v2249
        %v2345 = vmul.f32 %v2318, %v2019
        %v2346 = vmul.f32 %v2318, %v2135
        %v2347 = vmul.f32 %v2318, %v2251
        %v2348 = vmul.f32 %v2323, %v2022
        %v2349 = vmul.f32 %v2323, %v2138
        %v2350 = vmul.f32 %v2323, %v2254
        %v2351 = vmul.f32 %v2328, %v2024
        %v2352 = vmul.f32 %v2328, %v2140
        %v2353 = vmul.f32 %v2328, %v2256
        %v2354 = vsel %vm2266, %v2007, %v2330
        %v2355 = vsel %vm2267, %v2123, %v2331
        %v2356 = vsel %vm2268, %v2239, %v2332
        %v2357 = vsel %vm2269, %v2009, %v2333
        %v2358 = vsel %vm2270, %v2125, %v2334
        %v2359 = vsel %vm2271, %v2241, %v2335
        %v2360 = vsel %vm2272, %v2012, %v2336
        %v2361 = vsel %vm2273, %v2128, %v2337
        %v2362 = vsel %vm2274, %v2244, %v2338
        %v2363 = vsel %vm2275, %v2014, %v2339
        %v2364 = vsel %vm2276, %v2130, %v2340
        %v2365 = vsel %vm2277, %v2246, %v2341
        %v2366 = vsel %vm2278, %v2017, %v2342
        %v2367 = vsel %vm2279, %v2133, %v2343
        %v2368 = vsel %vm2280, %v2249, %v2344
        %v2369 = vsel %vm2281, %v2019, %v2345
        %v2370 = vsel %vm2282, %v2135, %v2346
        %v2371 = vsel %vm2283, %v2251, %v2347
        %v2372 = vsel %vm2284, %v2022, %v2348
        %v2373 = vsel %vm2285, %v2138, %v2349
        %v2374 = vsel %vm2286, %v2254, %v2350
        %v2375 = vsel %vm2287, %v2024, %v2351
        %v2376 = vsel %vm2288, %v2140, %v2352
        %v2377 = vsel %vm2289, %v2256, %v2353
        %v2379 = vperm.slane %v982, 0
        %v2380 = vperm.slane %v982, 1
        %v2381 = vperm.slane %v982, 2
        %v2385 = vmul.f32 %v2354, %v2379
        %v2386 = vmul.f32 %v2355, %v2380
        %v2387 = vmul.f32 %v2356, %v2381
        %v2388 = vmul.f32 %v2357, %v2379
        %v2389 = vmul.f32 %v2358, %v2380
        %v2390 = vmul.f32 %v2359, %v2381
        %v2391 = vmul.f32 %v2360, %v2379
        %v2392 = vmul.f32 %v2361, %v2380
        %v2393 = vmul.f32 %v2362, %v2381
        %v2394 = vmul.f32 %v2363, %v2379
        %v2395 = vmul.f32 %v2364, %v2380
        %v2396 = vmul.f32 %v2365, %v2381
        %v2397 = vmul.f32 %v2366, %v2379
        %v2398 = vmul.f32 %v2367, %v2380
        %v2399 = vmul.f32 %v2368, %v2381
        %v2400 = vmul.f32 %v2369, %v2379
        %v2401 = vmul.f32 %v2370, %v2380
        %v2402 = vmul.f32 %v2371, %v2381
        %v2403 = vmul.f32 %v2372, %v2379
        %v2404 = vmul.f32 %v2373, %v2380
        %v2405 = vmul.f32 %v2374, %v2381
        %v2406 = vmul.f32 %v2375, %v2379
        %v2407 = vmul.f32 %v2376, %v2380
        %v2408 = vmul.f32 %v2377, %v2381
        %v2409 = vpack.c.bf16 %v2386, %v2385
        %v2410 = vpack.c.bf16 %v2387, %v2387
        %v2411 = vpack.c.bf16 %v2389, %v2388
        %v2412 = vpack.c.bf16 %v2390, %v2390
        %v2413 = vpack.c.bf16 %v2392, %v2391
        %v2414 = vpack.c.bf16 %v2393, %v2393
        %v2415 = vpack.c.bf16 %v2395, %v2394
        %v2416 = vpack.c.bf16 %v2396, %v2396
        %v2417 = vpack.c.bf16 %v2398, %v2397
        %v2418 = vpack.c.bf16 %v2399, %v2399
        %v2419 = vpack.c.bf16 %v2401, %v2400
        %v2420 = vpack.c.bf16 %v2402, %v2402
        %v2421 = vpack.c.bf16 %v2404, %v2403
        %v2422 = vpack.c.bf16 %v2405, %v2405
        %v2423 = vpack.c.bf16 %v2407, %v2406
        %v2424 = vpack.c.bf16 %v2408, %v2408
        %2425 = vst [vmem:[#allocation3 + $0x4] sm:$0xff] %v2409
        %2426 = vst [vmem:[#allocation3 + $0xc] sm:$0xf] %v2410
        %2427 = vst [vmem:[#allocation3 + $0x18] sm:$0xff] %v2411
        %2428 = vst [vmem:[#allocation3 + $0x20] sm:$0xf] %v2412
        %2429 = vst [vmem:[#allocation3 + $0x2c] sm:$0xff] %v2413
        %2430 = vst [vmem:[#allocation3 + $0x34] sm:$0xf] %v2414
        %2431 = vst [vmem:[#allocation3 + $0x40] sm:$0xff] %v2415
        %2432 = vst [vmem:[#allocation3 + $0x48] sm:$0xf] %v2416
        %2433 = vst [vmem:[#allocation3 + $0x54] sm:$0xff] %v2417
        %2434 = vst [vmem:[#allocation3 + $0x5c] sm:$0xf] %v2418
        %2435 = vst [vmem:[#allocation3 + $0x68] sm:$0xff] %v2419
        %2436 = vst [vmem:[#allocation3 + $0x70] sm:$0xf] %v2420
        %2437 = vst [vmem:[#allocation3 + $0x7c] sm:$0xff] %v2421
        %2438 = vst [vmem:[#allocation3 + $0x84] sm:$0xf] %v2422
        %2439 = vst [vmem:[#allocation3 + $0x90] sm:$0xff] %v2423
        %2440 = vst [vmem:[#allocation3 + $0x98] sm:$0xf] %v2424
        %v2441 = vld [vmem:[#allocation3 + $0x4] sm:$0xff]
        %v2442 = vld [vmem:[#allocation3 + $0xc] sm:$0xf]
        %v2443 = vld [vmem:[#allocation3 + $0x18] sm:$0xff]
        %v2444 = vld [vmem:[#allocation3 + $0x20] sm:$0xf]
        %v2445 = vld [vmem:[#allocation3 + $0x2c] sm:$0xff]
        %v2446 = vld [vmem:[#allocation3 + $0x34] sm:$0xf]
        %v2447 = vld [vmem:[#allocation3 + $0x40] sm:$0xff]
        %v2448 = vld [vmem:[#allocation3 + $0x48] sm:$0xf]
        %v2449 = vld [vmem:[#allocation3 + $0x54] sm:$0xff]
        %v2450 = vld [vmem:[#allocation3 + $0x5c] sm:$0xf]
        %v2451 = vld [vmem:[#allocation3 + $0x68] sm:$0xff]
        %v2452 = vld [vmem:[#allocation3 + $0x70] sm:$0xf]
        %v2453 = vld [vmem:[#allocation3 + $0x7c] sm:$0xff]
        %v2454 = vld [vmem:[#allocation3 + $0x84] sm:$0xf]
        %v2455 = vld [vmem:[#allocation3 + $0x90] sm:$0xff]
        %v2456 = vld [vmem:[#allocation3 + $0x98] sm:$0xf]
        %v2457 = vld [vmem:[%s5] sm:$0xf]
        %v2458 = vld [vmem:[%s5 + $0x4] sm:$0xf]
        %v2459 = vld [vmem:[%s6] sm:$0xff]
        %v2460 = vld [vmem:[%s6 + $0x8] sm:$0xff]
        %2462 = vset.pattern.permute.xlu0 0
        %2463 = vperm.xlu0 %2462, %v2459
        %v2464 = vpop.permute.xlu0 %2463
        %2467 = vset.pattern.permute.xlu0 0
        %2468 = vperm.xlu0 %2467, %v2460
        %v2469 = vpop.permute.xlu0 %2468
        %v2473 = vunpack.c.l.b16 %v2457
        %v2474 = vunpack.c.l.b16 %v2458
        %v2475 = vpack.c.b16 %v2474, %v2473
        %v2492 = vunpack.c.l.b16 %v2441
        %v2493 = vunpack.c.h.b16 %v2441
        %v2494 = vunpack.c.l.b16 %v2442
        %v2495 = vunpack.c.l.b16 %v2443
        %v2496 = vunpack.c.h.b16 %v2443
        %v2497 = vunpack.c.l.b16 %v2444
        %v2498 = vunpack.c.l.b16 %v2445
        %v2499 = vunpack.c.h.b16 %v2445
        %v2500 = vunpack.c.l.b16 %v2446
        %v2501 = vunpack.c.l.b16 %v2447
        %v2502 = vunpack.c.h.b16 %v2447
        %v2503 = vunpack.c.l.b16 %v2448
        %v2504 = vunpack.c.l.b16 %v2449
        %v2505 = vunpack.c.h.b16 %v2449
        %v2506 = vunpack.c.l.b16 %v2450
        %v2507 = vunpack.c.l.b16 %v2451
        %v2508 = vunpack.c.h.b16 %v2451
        %v2509 = vunpack.c.l.b16 %v2452
        %v2510 = vunpack.c.l.b16 %v2453
        %v2511 = vunpack.c.h.b16 %v2453
        %v2512 = vunpack.c.l.b16 %v2454
        %v2513 = vunpack.c.l.b16 %v2455
        %v2514 = vunpack.c.h.b16 %v2455
        %v2515 = vunpack.c.l.b16 %v2456
        %v2516 = vpack.c.b16 %v2495, %v2492
        %v2517 = vpack.c.b16 %v2496, %v2493
        %v2518 = vpack.c.b16 %v2497, %v2494
        %v2519 = vpack.c.b16 %v2501, %v2498
        %v2520 = vpack.c.b16 %v2502, %v2499
        %v2521 = vpack.c.b16 %v2503, %v2500
        %v2522 = vpack.c.b16 %v2507, %v2504
        %v2523 = vpack.c.b16 %v2508, %v2505
        %v2524 = vpack.c.b16 %v2509, %v2506
        %v2525 = vpack.c.b16 %v2513, %v2510
        %v2526 = vpack.c.b16 %v2514, %v2511
        %v2527 = vpack.c.b16 %v2515, %v2512
        %vm2540 = vcmask 523264
        %v2542 = vsel %vm2540, %v2475, 0
        %2544 = vmatpush.bf16.msra.mxu0 0
        %2545 = vmatpush.bf16.msra.mxu0 0
        %2546 = vmatpush.bf16.msra.mxu0 0
        %2547 = vmatpush.bf16.msra.mxu0 0
        %2548 = vmatpush.bf16.msra.mxu0 %v2525
        %2549 = vmatpush.bf16.msra.mxu0 %v2522
        %2550 = vmatpush.bf16.msra.mxu0 %v2519
        %2551 = vmatpush.bf16.msra.mxu0 %v2516
        %2552 = vmatmul.bf16.gmra.mxu0 %v2542
        %v2553 = vpop.f32.mrf.mxu0
        %v2554 = vadd.f32 %v2464, %v2553
        %v2555 = vpop.f32.mrf.mxu0
        %v2556 = vadd.f32 %v2469, %v2555
        %2557 = vdwg.mxu0
        %2558 = vmatpush.bf16.msra.mxu0 0
        %2559 = vmatpush.bf16.msra.mxu0 0
        %2560 = vmatpush.bf16.msra.mxu0 0
        %2561 = vmatpush.bf16.msra.mxu0 0
        %2562 = vmatpush.bf16.msra.mxu0 %v2526
        %2563 = vmatpush.bf16.msra.mxu0 %v2523
        %2564 = vmatpush.bf16.msra.mxu0 %v2520
        %2565 = vmatpush.bf16.msra.mxu0 %v2517
        %2566 = vmatmul.bf16.gmra.mxu0 %v2542
        %v2567 = vpop.f32.mrf.mxu0
        %v2568 = vadd.f32 %v2464, %v2567
        %v2569 = vpop.f32.mrf.mxu0
        %v2570 = vadd.f32 %v2469, %v2569
        %2571 = vdwg.mxu0
        %2572 = vmatpush.bf16.msra.mxu0 0
        %2573 = vmatpush.bf16.msra.mxu0 0
        %2574 = vmatpush.bf16.msra.mxu0 0
        %2575 = vmatpush.bf16.msra.mxu0 0
        %2576 = vmatpush.bf16.msra.mxu0 %v2527
        %2577 = vmatpush.bf16.msra.mxu0 %v2524
        %2578 = vmatpush.bf16.msra.mxu0 %v2521
        %2579 = vmatpush.bf16.msra.mxu0 %v2518
        %2580 = vmatmul.bf16.gmra.mxu0 %v2542
        %v2581 = vpop.f32.mrf.mxu0
        %v2582 = vadd.f32 %v2464, %v2581
        %v2583 = vpop.f32.mrf.mxu0
        %v2584 = vadd.f32 %v2469, %v2583
        %2585 = vdwg.mxu0
        %v2586 = vld [vmem:[%s7] sm:$0xff]
        %v2587 = vld [vmem:[%s7 + $0x8] sm:$0xff]
        %vm2588 = vcmp.gt.f32.partialorder %v2554, 0.0
        %vm2589 = vcmp.gt.f32.partialorder %v2568, 0.0
        %vm2590 = vcmp.gt.f32.partialorder %v2582, 0.0
        %vm2591 = vcmp.gt.f32.partialorder %v2556, 0.0
        %vm2592 = vcmp.gt.f32.partialorder %v2570, 0.0
        %vm2593 = vcmp.gt.f32.partialorder %v2584, 0.0
        %2595 = vset.pattern.permute.xlu0 0
        %2596 = vperm.xlu0 %2595, %v2586
        %v2597 = vpop.permute.xlu0 %2596
        %2600 = vset.pattern.permute.xlu0 0
        %2601 = vperm.xlu0 %2600, %v2587
        %v2602 = vpop.permute.xlu0 %2601
        %v2604 = vmul.f32 %v2597, %v2554
        %v2605 = vmul.f32 %v2597, %v2568
        %v2606 = vmul.f32 %v2597, %v2582
        %v2607 = vmul.f32 %v2602, %v2556
        %v2608 = vmul.f32 %v2602, %v2570
        %v2609 = vmul.f32 %v2602, %v2584
        %v2610 = vsel %vm2588, %v2554, %v2604
        %v2611 = vsel %vm2589, %v2568, %v2605
        %v2612 = vsel %vm2590, %v2582, %v2606
        %v2613 = vsel %vm2591, %v2556, %v2607
        %v2614 = vsel %vm2592, %v2570, %v2608
        %v2615 = vsel %vm2593, %v2584, %v2609
        %v2616 = vmul.f32 %v2610, %v2379
        %v2617 = vmul.f32 %v2611, %v2380
        %v2618 = vmul.f32 %v2612, %v2381
        %v2619 = vmul.f32 %v2613, %v2379
        %v2620 = vmul.f32 %v2614, %v2380
        %v2621 = vmul.f32 %v2615, %v2381
        %v2622 = vpack.c.bf16 %v2617, %v2616
        %v2623 = vpack.c.bf16 %v2618, %v2618
        %v2624 = vpack.c.bf16 %v2620, %v2619
        %v2625 = vpack.c.bf16 %v2621, %v2621
        %2626 = vst [vmem:[#allocation2 + $0x4] sm:$0xff] %v2622
        %2627 = vst [vmem:[#allocation2 + $0xc] sm:$0xf] %v2623
        %2628 = vst [vmem:[#allocation2 + $0x18] sm:$0xff] %v2624
        %2629 = vst [vmem:[#allocation2 + $0x20] sm:$0xf] %v2625
        %v2630 = vld [vmem:[#allocation2] sm:$0xff]
        %v2631 = vld [vmem:[#allocation2 + $0x8] sm:$0xff]
        %v2632 = vld [vmem:[#allocation2 + $0x14] sm:$0xff]
        %v2633 = vld [vmem:[#allocation2 + $0x1c] sm:$0xff]
        %v2634 = vld [vmem:[#allocation2 + $0x4] sm:$0xff]
        %v2635 = vld [vmem:[#allocation2 + $0xc] sm:$0xf]
        %v2636 = vld [vmem:[#allocation2 + $0x18] sm:$0xff]
        %v2637 = vld [vmem:[#allocation2 + $0x20] sm:$0xf]
        %v2638 = vld [vmem:[#allocation2 + $0x4] sm:$0xff]
        %v2639 = vld [vmem:[#allocation2 + $0xc] sm:$0xff]
        %v2640 = vld [vmem:[#allocation2 + $0x18] sm:$0xff]
        %v2641 = vld [vmem:[#allocation2 + $0x20] sm:$0xff]
        %v2646 = vunpack.c.l.b16 %v2630
        %v2647 = vunpack.c.h.b16 %v2630
        %v2648 = vunpack.c.l.b16 %v2631
        %v2649 = vunpack.c.h.b16 %v2631
        %v2650 = vunpack.c.l.b16 %v2632
        %v2651 = vunpack.c.h.b16 %v2632
        %v2652 = vunpack.c.l.b16 %v2633
        %v2653 = vunpack.c.h.b16 %v2633
        %v2654 = vpack.c.b16 %v2650, %v2646
        %v2655 = vpack.c.b16 %v2651, %v2647
        %v2656 = vpack.c.b16 %v2652, %v2648
        %v2657 = vpack.c.b16 %v2653, %v2649
        %2658 = vrot.lane.b32.xlu0 %v2654, 127
        %v2659 = vpop.permute.xlu0 %2658
        %2660 = vrot.lane.b32.xlu0 %v2655, 127
        %v2661 = vpop.permute.xlu0 %2660
        %2662 = vrot.lane.b32.xlu0 %v2656, 127
        %v2663 = vpop.permute.xlu0 %2662
        %2664 = vrot.lane.b32.xlu0 %v2657, 127
        %v2665 = vpop.permute.xlu0 %2664
        %v2666 = vsel %vm1019, %v2659, %v2661
        %v2667 = vsel %vm1019, %v2661, %v2663
        %v2668 = vsel %vm1019, %v2663, %v2665
        %2669 = vrot.lane.b32.xlu0 %v2654, 126
        %v2670 = vpop.permute.xlu0 %2669
        %2671 = vrot.lane.b32.xlu0 %v2655, 126
        %v2672 = vpop.permute.xlu0 %2671
        %2673 = vrot.lane.b32.xlu0 %v2656, 126
        %v2674 = vpop.permute.xlu0 %2673
        %2675 = vrot.lane.b32.xlu0 %v2657, 126
        %v2676 = vpop.permute.xlu0 %2675
        %v2677 = vsel %vm1031, %v2670, %v2672
        %v2678 = vsel %vm1031, %v2672, %v2674
        %v2679 = vsel %vm1031, %v2674, %v2676
        %2680 = vrot.lane.b32.xlu0 %v2654, 108
        %v2681 = vpop.permute.xlu0 %2680
        %2682 = vrot.lane.b32.xlu0 %v2655, 108
        %v2683 = vpop.permute.xlu0 %2682
        %2684 = vrot.lane.b32.xlu0 %v2656, 108
        %v2685 = vpop.permute.xlu0 %2684
        %2686 = vrot.lane.b32.xlu0 %v2657, 108
        %v2687 = vpop.permute.xlu0 %2686
        %v2688 = vsel %vm1067, %v2681, %v2683
        %v2689 = vsel %vm1067, %v2683, %v2685
        %v2690 = vsel %vm1067, %v2685, %v2687
        %v2695 = vunpack.c.l.b16 %v2634
        %v2696 = vunpack.c.h.b16 %v2634
        %v2697 = vunpack.c.l.b16 %v2635
        %v2698 = vunpack.c.l.b16 %v2636
        %v2699 = vunpack.c.h.b16 %v2636
        %v2700 = vunpack.c.l.b16 %v2637
        %v2701 = vpack.c.b16 %v2698, %v2695
        %v2702 = vpack.c.b16 %v2699, %v2696
        %v2703 = vpack.c.b16 %v2700, %v2697
        %2704 = vrot.lane.b32.xlu0 %v2701, 107
        %v2705 = vpop.permute.xlu0 %2704
        %2706 = vrot.lane.b32.xlu0 %v2702, 107
        %v2707 = vpop.permute.xlu0 %2706
        %2708 = vrot.lane.b32.xlu0 %v2703, 107
        %v2709 = vpop.permute.xlu0 %2708
        %v2710 = vsel %vm1079, %v2705, %v2707
        %v2711 = vsel %vm1079, %v2707, %v2709
        %v2716 = vunpack.c.l.b16 %v2638
        %v2717 = vunpack.c.h.b16 %v2638
        %v2718 = vunpack.c.l.b16 %v2639
        %v2719 = vunpack.c.h.b16 %v2639
        %v2720 = vunpack.c.l.b16 %v2640
        %v2721 = vunpack.c.h.b16 %v2640
        %v2722 = vunpack.c.l.b16 %v2641
        %v2723 = vunpack.c.h.b16 %v2641
        %v2724 = vpack.c.b16 %v2720, %v2716
        %v2725 = vpack.c.b16 %v2721, %v2717
        %v2726 = vpack.c.b16 %v2722, %v2718
        %v2727 = vpack.c.b16 %v2723, %v2719
        %2728 = vrot.lane.b32.xlu0 %v2724, 106
        %v2729 = vpop.permute.xlu0 %2728
        %2730 = vrot.lane.b32.xlu0 %v2725, 106
        %v2731 = vpop.permute.xlu0 %2730
        %2732 = vrot.lane.b32.xlu0 %v2726, 106
        %v2733 = vpop.permute.xlu0 %2732
        %2734 = vrot.lane.b32.xlu0 %v2727, 106
        %v2735 = vpop.permute.xlu0 %2734
        %v2736 = vsel %vm1091, %v2729, %v2731
        %v2737 = vsel %vm1091, %v2731, %v2733
        %v2738 = vsel %vm1091, %v2733, %v2735
        %2739 = vrot.lane.b32.xlu0 %v2724, 88
        %v2740 = vpop.permute.xlu0 %2739
        %2741 = vrot.lane.b32.xlu0 %v2725, 88
        %v2742 = vpop.permute.xlu0 %2741
        %2743 = vrot.lane.b32.xlu0 %v2726, 88
        %v2744 = vpop.permute.xlu0 %2743
        %2745 = vrot.lane.b32.xlu0 %v2727, 88
        %v2746 = vpop.permute.xlu0 %2745
        %v2747 = vsel %vm1127, %v2740, %v2742
        %v2748 = vsel %vm1127, %v2742, %v2744
        %v2749 = vsel %vm1127, %v2744, %v2746
        %2750 = vrot.lane.b32.xlu0 %v2724, 87
        %v2751 = vpop.permute.xlu0 %2750
        %2752 = vrot.lane.b32.xlu0 %v2725, 87
        %v2753 = vpop.permute.xlu0 %2752
        %2754 = vrot.lane.b32.xlu0 %v2726, 87
        %v2755 = vpop.permute.xlu0 %2754
        %2756 = vrot.lane.b32.xlu0 %v2727, 87
        %v2757 = vpop.permute.xlu0 %2756
        %v2758 = vsel %vm1139, %v2751, %v2753
        %v2759 = vsel %vm1139, %v2753, %v2755
        %v2760 = vsel %vm1139, %v2755, %v2757
        %2761 = vrot.lane.b32.xlu0 %v2724, 86
        %v2762 = vpop.permute.xlu0 %2761
        %2763 = vrot.lane.b32.xlu0 %v2725, 86
        %v2764 = vpop.permute.xlu0 %2763
        %2765 = vrot.lane.b32.xlu0 %v2726, 86
        %v2766 = vpop.permute.xlu0 %2765
        %2767 = vrot.lane.b32.xlu0 %v2727, 86
        %v2768 = vpop.permute.xlu0 %2767
        %v2769 = vsel %vm1162, %v2762, %v2764
        %v2770 = vsel %vm1162, %v2764, %v2766
        %v2771 = vsel %vm1162, %v2766, %v2768
        %v2772 = vld [vmem:[%s8] sm:$0xff]
        %v2773 = vld [vmem:[%s8 + $0x8] sm:$0xff]
        %v2774 = vld [vmem:[%s9] sm:$0xff]
        %v2775 = vld [vmem:[%s9 + $0x8] sm:$0xff]
        %2777 = vset.pattern.permute.xlu0 0
        %2778 = vperm.xlu0 %2777, %v2774
        %v2779 = vpop.permute.xlu0 %2778
        %2782 = vset.pattern.permute.xlu0 0
        %2783 = vperm.xlu0 %2782, %v2775
        %v2784 = vpop.permute.xlu0 %2783
        %v2788 = vunpack.c.l.b16 %v2772
        %v2789 = vunpack.c.h.b16 %v2772
        %v2790 = vunpack.c.l.b16 %v2773
        %v2791 = vunpack.c.h.b16 %v2773
        %v2792 = vpack.c.b16 %v2790, %v2788
        %v2793 = vpack.c.b16 %v2791, %v2789
        %2795 = vrot.lane.b32.xlu0 %v2654, 21
        %v2796 = vpop.permute.xlu0 %2795
        %2797 = vrot.lane.b32.xlu0 %v2655, 21
        %v2798 = vpop.permute.xlu0 %2797
        %2799 = vrot.lane.b32.xlu0 %v2656, 21
        %v2800 = vpop.permute.xlu0 %2799
        %2801 = vrot.lane.b32.xlu0 %v2657, 21
        %v2802 = vpop.permute.xlu0 %2801
        %2803 = vrot.lane.b32.xlu0 %v2666, 21
        %v2804 = vpop.permute.xlu0 %2803
        %2805 = vrot.lane.b32.xlu0 %v2667, 21
        %v2806 = vpop.permute.xlu0 %2805
        %2807 = vrot.lane.b32.xlu0 %v2668, 21
        %v2808 = vpop.permute.xlu0 %2807
        %2809 = vrot.lane.b32.xlu0 %v2665, 21
        %v2810 = vpop.permute.xlu0 %2809
        %2811 = vrot.lane.b32.xlu0 %v2677, 21
        %v2812 = vpop.permute.xlu0 %2811
        %2813 = vrot.lane.b32.xlu0 %v2678, 21
        %v2814 = vpop.permute.xlu0 %2813
        %2815 = vrot.lane.b32.xlu0 %v2679, 21
        %v2816 = vpop.permute.xlu0 %2815
        %2817 = vrot.lane.b32.xlu0 %v2676, 21
        %v2818 = vpop.permute.xlu0 %2817
        %2819 = vrot.lane.b32.xlu0 %v2688, 21
        %v2820 = vpop.permute.xlu0 %2819
        %2821 = vrot.lane.b32.xlu0 %v2689, 21
        %v2822 = vpop.permute.xlu0 %2821
        %2823 = vrot.lane.b32.xlu0 %v2690, 21
        %v2824 = vpop.permute.xlu0 %2823
        %2825 = vrot.lane.b32.xlu0 %v2687, 21
        %v2826 = vpop.permute.xlu0 %2825
        %2827 = vrot.lane.b32.xlu0 %v2705, 21
        %v2828 = vpop.permute.xlu0 %2827
        %2829 = vrot.lane.b32.xlu0 %v2710, 21
        %v2830 = vpop.permute.xlu0 %2829
        %2831 = vrot.lane.b32.xlu0 %v2711, 21
        %v2832 = vpop.permute.xlu0 %2831
        %2833 = vrot.lane.b32.xlu0 %v2709, 21
        %v2834 = vpop.permute.xlu0 %2833
        %2835 = vrot.lane.b32.xlu0 %v2729, 21
        %v2836 = vpop.permute.xlu0 %2835
        %2837 = vrot.lane.b32.xlu0 %v2736, 21
        %v2838 = vpop.permute.xlu0 %2837
        %2839 = vrot.lane.b32.xlu0 %v2737, 21
        %v2840 = vpop.permute.xlu0 %2839
        %2841 = vrot.lane.b32.xlu0 %v2738, 21
        %v2842 = vpop.permute.xlu0 %2841
        %2843 = vrot.lane.b32.xlu0 %v2740, 21
        %v2844 = vpop.permute.xlu0 %2843
        %2845 = vrot.lane.b32.xlu0 %v2747, 21
        %v2846 = vpop.permute.xlu0 %2845
        %2847 = vrot.lane.b32.xlu0 %v2748, 21
        %v2848 = vpop.permute.xlu0 %2847
        %2849 = vrot.lane.b32.xlu0 %v2749, 21
        %v2850 = vpop.permute.xlu0 %2849
        %2851 = vrot.lane.b32.xlu0 %v2751, 21
        %v2852 = vpop.permute.xlu0 %2851
        %2853 = vrot.lane.b32.xlu0 %v2758, 21
        %v2854 = vpop.permute.xlu0 %2853
        %2855 = vrot.lane.b32.xlu0 %v2759, 21
        %v2856 = vpop.permute.xlu0 %2855
        %2857 = vrot.lane.b32.xlu0 %v2760, 21
        %v2858 = vpop.permute.xlu0 %2857
        %2859 = vrot.lane.b32.xlu0 %v2762, 21
        %v2860 = vpop.permute.xlu0 %2859
        %2861 = vrot.lane.b32.xlu0 %v2769, 21
        %v2862 = vpop.permute.xlu0 %2861
        %2863 = vrot.lane.b32.xlu0 %v2770, 21
        %v2864 = vpop.permute.xlu0 %2863
        %2865 = vrot.lane.b32.xlu0 %v2771, 21
        %v2866 = vpop.permute.xlu0 %2865
        %vm2867 = vcmask 171008
        %v2868 = vsel %vm2867, %v2796, %v2798
        %v2869 = vsel %vm2867, %v2798, %v2800
        %v2870 = vsel %vm2867, %v2800, %v2802
        %v2871 = vsel %vm2867, %v2804, %v2806
        %v2872 = vsel %vm2867, %v2806, %v2808
        %v2873 = vsel %vm2867, %v2808, %v2810
        %v2874 = vsel %vm2867, %v2812, %v2814
        %v2875 = vsel %vm2867, %v2814, %v2816
        %v2876 = vsel %vm2867, %v2816, %v2818
        %v2877 = vsel %vm2867, %v2820, %v2822
        %v2878 = vsel %vm2867, %v2822, %v2824
        %v2879 = vsel %vm2867, %v2824, %v2826
        %v2880 = vsel %vm2867, %v2828, %v2830
        %v2881 = vsel %vm2867, %v2830, %v2832
        %v2882 = vsel %vm2867, %v2832, %v2834
        %v2883 = vsel %vm2867, %v2836, %v2838
        %v2884 = vsel %vm2867, %v2838, %v2840
        %v2885 = vsel %vm2867, %v2840, %v2842
        %v2886 = vsel %vm2867, %v2844, %v2846
        %v2887 = vsel %vm2867, %v2846, %v2848
        %v2888 = vsel %vm2867, %v2848, %v2850
        %v2889 = vsel %vm2867, %v2852, %v2854
        %v2890 = vsel %vm2867, %v2854, %v2856
        %v2891 = vsel %vm2867, %v2856, %v2858
        %v2892 = vsel %vm2867, %v2860, %v2862
        %v2893 = vsel %vm2867, %v2862, %v2864
        %v2894 = vsel %vm2867, %v2864, %v2866
        %v2923 = vsel %vm1897, %v2793, 0
        %2925 = vmatpush.bf16.msra.mxu0 %v2889
        %2926 = vmatpush.bf16.msra.mxu0 %v2886
        %2927 = vmatpush.bf16.msra.mxu0 %v2883
        %2928 = vmatpush.bf16.msra.mxu0 %v2880
        %2929 = vmatpush.bf16.msra.mxu0 %v2877
        %2930 = vmatpush.bf16.msra.mxu0 %v2874
        %2931 = vmatpush.bf16.msra.mxu0 %v2871
        %2932 = vmatpush.bf16.msra.mxu0 %v2868
        %2933 = vmatmul.bf16.gmra.mxu0 %v2792
        %v2934 = vpop.f32.mrf.mxu0
        %v2935 = vadd.f32 %v2779, %v2934
        %v2936 = vpop.f32.mrf.mxu0
        %v2937 = vadd.f32 %v2784, %v2936
        %2938 = vdwg.mxu0
        %2939 = vmatpush.bf16.msra.mxu0 0
        %2940 = vmatpush.bf16.msra.mxu0 0
        %2941 = vmatpush.bf16.msra.mxu0 0
        %2942 = vmatpush.bf16.msra.mxu0 0
        %2943 = vmatpush.bf16.msra.mxu0 0
        %2944 = vmatpush.bf16.msra.mxu0 0
        %2945 = vmatpush.bf16.msra.mxu0 0
        %2946 = vmatpush.bf16.msra.mxu0 %v2892
        %2947 = vmatmul.bf16.gmra.mxu0 %v2923
        %v2948 = vpop.f32.mrf.mxu0
        %v2949 = vadd.f32 %v2935, %v2948
        %v2950 = vpop.f32.mrf.mxu0
        %v2951 = vadd.f32 %v2937, %v2950
        %2952 = vdwg.mxu0
        %2953 = vmatpush.bf16.msra.mxu0 %v2890
        %2954 = vmatpush.bf16.msra.mxu0 %v2887
        %2955 = vmatpush.bf16.msra.mxu0 %v2884
        %2956 = vmatpush.bf16.msra.mxu0 %v2881
        %2957 = vmatpush.bf16.msra.mxu0 %v2878
        %2958 = vmatpush.bf16.msra.mxu0 %v2875
        %2959 = vmatpush.bf16.msra.mxu0 %v2872
        %2960 = vmatpush.bf16.msra.mxu0 %v2869
        %2961 = vmatmul.bf16.gmra.mxu0 %v2792
        %v2962 = vpop.f32.mrf.mxu0
        %v2963 = vadd.f32 %v2779, %v2962
        %v2964 = vpop.f32.mrf.mxu0
        %v2965 = vadd.f32 %v2784, %v2964
        %2966 = vdwg.mxu0
        %2967 = vmatpush.bf16.msra.mxu0 0
        %2968 = vmatpush.bf16.msra.mxu0 0
        %2969 = vmatpush.bf16.msra.mxu0 0
        %2970 = vmatpush.bf16.msra.mxu0 0
        %2971 = vmatpush.bf16.msra.mxu0 0
        %2972 = vmatpush.bf16.msra.mxu0 0
        %2973 = vmatpush.bf16.msra.mxu0 0
        %2974 = vmatpush.bf16.msra.mxu0 %v2893
        %2975 = vmatmul.bf16.gmra.mxu0 %v2923
        %v2976 = vpop.f32.mrf.mxu0
        %v2977 = vadd.f32 %v2963, %v2976
        %v2978 = vpop.f32.mrf.mxu0
        %v2979 = vadd.f32 %v2965, %v2978
        %2980 = vdwg.mxu0
        %2981 = vmatpush.bf16.msra.mxu0 %v2891
        %2982 = vmatpush.bf16.msra.mxu0 %v2888
        %2983 = vmatpush.bf16.msra.mxu0 %v2885
        %2984 = vmatpush.bf16.msra.mxu0 %v2882
        %2985 = vmatpush.bf16.msra.mxu0 %v2879
        %2986 = vmatpush.bf16.msra.mxu0 %v2876
        %2987 = vmatpush.bf16.msra.mxu0 %v2873
        %2988 = vmatpush.bf16.msra.mxu0 %v2870
        %2989 = vmatmul.bf16.gmra.mxu0 %v2792
        %v2990 = vpop.f32.mrf.mxu0
        %v2991 = vadd.f32 %v2779, %v2990
        %v2992 = vpop.f32.mrf.mxu0
        %v2993 = vadd.f32 %v2784, %v2992
        %2994 = vdwg.mxu0
        %2995 = vmatpush.bf16.msra.mxu0 0
        %2996 = vmatpush.bf16.msra.mxu0 0
        %2997 = vmatpush.bf16.msra.mxu0 0
        %2998 = vmatpush.bf16.msra.mxu0 0
        %2999 = vmatpush.bf16.msra.mxu0 0
        %3000 = vmatpush.bf16.msra.mxu0 0
        %3001 = vmatpush.bf16.msra.mxu0 0
        %3002 = vmatpush.bf16.msra.mxu0 %v2894
        %3003 = vmatmul.bf16.gmra.mxu0 %v2923
        %v3004 = vpop.f32.mrf.mxu0
        %v3005 = vadd.f32 %v2991, %v3004
        %v3006 = vpop.f32.mrf.mxu0
        %v3007 = vadd.f32 %v2993, %v3006
        %3008 = vdwg.mxu0
        %v3009 = vld [vmem:[%s10] sm:$0xff]
        %v3010 = vld [vmem:[%s10 + $0x8] sm:$0xff]
        %vm3011 = vcmp.gt.f32.partialorder %v2949, 0.0
        %vm3012 = vcmp.gt.f32.partialorder %v2977, 0.0
        %vm3013 = vcmp.gt.f32.partialorder %v3005, 0.0
        %vm3014 = vcmp.gt.f32.partialorder %v2951, 0.0
        %vm3015 = vcmp.gt.f32.partialorder %v2979, 0.0
        %vm3016 = vcmp.gt.f32.partialorder %v3007, 0.0
        %3018 = vset.pattern.permute.xlu0 0
        %3019 = vperm.xlu0 %3018, %v3009
        %v3020 = vpop.permute.xlu0 %3019
        %3023 = vset.pattern.permute.xlu0 0
        %3024 = vperm.xlu0 %3023, %v3010
        %v3025 = vpop.permute.xlu0 %3024
        %v3027 = vmul.f32 %v3020, %v2949
        %v3028 = vmul.f32 %v3020, %v2977
        %v3029 = vmul.f32 %v3020, %v3005
        %v3030 = vmul.f32 %v3025, %v2951
        %v3031 = vmul.f32 %v3025, %v2979
        %v3032 = vmul.f32 %v3025, %v3007
        %v3033 = vsel %vm3011, %v2949, %v3027
        %v3034 = vsel %vm3012, %v2977, %v3028
        %v3035 = vsel %vm3013, %v3005, %v3029
        %v3036 = vsel %vm3014, %v2951, %v3030
        %v3037 = vsel %vm3015, %v2979, %v3031
        %v3038 = vsel %vm3016, %v3007, %v3032
        %v3039 = vmul.f32 %v3033, %v2379
        %v3040 = vmul.f32 %v3034, %v2380
        %v3041 = vmul.f32 %v3035, %v2381
        %v3042 = vmul.f32 %v3036, %v2379
        %v3043 = vmul.f32 %v3037, %v2380
        %v3044 = vmul.f32 %v3038, %v2381
        %v3045 = vpack.c.bf16 %v3040, %v3039
        %v3046 = vpack.c.bf16 %v3041, %v3041
        %v3047 = vpack.c.bf16 %v3043, %v3042
        %v3048 = vpack.c.bf16 %v3044, %v3044
        %3049 = vst [vmem:[#allocation3 + $0x4] sm:$0xff] %v3045
        %3050 = vst [vmem:[#allocation3 + $0xc] sm:$0xf] %v3046
        %3051 = vst [vmem:[#allocation3 + $0x18] sm:$0xff] %v3047
        %3052 = vst [vmem:[#allocation3 + $0x20] sm:$0xf] %v3048
        %v3053 = vld [vmem:[#allocation3] sm:$0xff]
        %v3054 = vld [vmem:[#allocation3 + $0x8] sm:$0xff]
        %v3055 = vld [vmem:[#allocation3 + $0x14] sm:$0xff]
        %v3056 = vld [vmem:[#allocation3 + $0x1c] sm:$0xff]
        %v3057 = vld [vmem:[#allocation3 + $0x4] sm:$0xff]
        %v3058 = vld [vmem:[#allocation3 + $0xc] sm:$0xf]
        %v3059 = vld [vmem:[#allocation3 + $0x18] sm:$0xff]
        %v3060 = vld [vmem:[#allocation3 + $0x20] sm:$0xf]
        %v3061 = vld [vmem:[#allocation3 + $0xc] sm:$0xff]
        %v3062 = vld [vmem:[#allocation3 + $0x20] sm:$0xff]
        %v3067 = vunpack.c.l.b16 %v3053
        %v3068 = vunpack.c.h.b16 %v3053
        %v3069 = vunpack.c.l.b16 %v3054
        %v3070 = vunpack.c.h.b16 %v3054
        %v3071 = vunpack.c.l.b16 %v3055
        %v3072 = vunpack.c.h.b16 %v3055
        %v3073 = vunpack.c.l.b16 %v3056
        %v3074 = vunpack.c.h.b16 %v3056
        %v3075 = vpack.c.b16 %v3071, %v3067
        %v3076 = vpack.c.b16 %v3072, %v3068
        %v3077 = vpack.c.b16 %v3073, %v3069
        %v3078 = vpack.c.b16 %v3074, %v3070
        %3079 = vrot.lane.b32.xlu0 %v3075, 127
        %v3080 = vpop.permute.xlu0 %3079
        %3081 = vrot.lane.b32.xlu0 %v3076, 127
        %v3082 = vpop.permute.xlu0 %3081
        %3083 = vrot.lane.b32.xlu0 %v3077, 127
        %v3084 = vpop.permute.xlu0 %3083
        %3085 = vrot.lane.b32.xlu0 %v3078, 127
        %v3086 = vpop.permute.xlu0 %3085
        %v3087 = vsel %vm1019, %v3080, %v3082
        %v3088 = vsel %vm1019, %v3082, %v3084
        %v3089 = vsel %vm1019, %v3084, %v3086
        %3090 = vrot.lane.b32.xlu0 %v3075, 126
        %v3091 = vpop.permute.xlu0 %3090
        %3092 = vrot.lane.b32.xlu0 %v3076, 126
        %v3093 = vpop.permute.xlu0 %3092
        %3094 = vrot.lane.b32.xlu0 %v3077, 126
        %v3095 = vpop.permute.xlu0 %3094
        %3096 = vrot.lane.b32.xlu0 %v3078, 126
        %v3097 = vpop.permute.xlu0 %3096
        %v3098 = vsel %vm1031, %v3091, %v3093
        %v3099 = vsel %vm1031, %v3093, %v3095
        %v3100 = vsel %vm1031, %v3095, %v3097
        %3101 = vrot.lane.b32.xlu0 %v3075, 108
        %v3102 = vpop.permute.xlu0 %3101
        %3103 = vrot.lane.b32.xlu0 %v3076, 108
        %v3104 = vpop.permute.xlu0 %3103
        %3105 = vrot.lane.b32.xlu0 %v3077, 108
        %v3106 = vpop.permute.xlu0 %3105
        %3107 = vrot.lane.b32.xlu0 %v3078, 108
        %v3108 = vpop.permute.xlu0 %3107
        %v3109 = vsel %vm1067, %v3102, %v3104
        %v3110 = vsel %vm1067, %v3104, %v3106
        %v3111 = vsel %vm1067, %v3106, %v3108
        %v3116 = vunpack.c.l.b16 %v3057
        %v3117 = vunpack.c.h.b16 %v3057
        %v3118 = vunpack.c.l.b16 %v3058
        %v3119 = vunpack.c.l.b16 %v3059
        %v3120 = vunpack.c.h.b16 %v3059
        %v3121 = vunpack.c.l.b16 %v3060
        %v3122 = vpack.c.b16 %v3119, %v3116
        %v3123 = vpack.c.b16 %v3120, %v3117
        %v3124 = vpack.c.b16 %v3121, %v3118
        %3125 = vrot.lane.b32.xlu0 %v3122, 107
        %v3126 = vpop.permute.xlu0 %3125
        %3127 = vrot.lane.b32.xlu0 %v3123, 107
        %v3128 = vpop.permute.xlu0 %3127
        %3129 = vrot.lane.b32.xlu0 %v3124, 107
        %v3130 = vpop.permute.xlu0 %3129
        %v3131 = vsel %vm1079, %v3126, %v3128
        %v3132 = vsel %vm1079, %v3128, %v3130
        %v3135 = vunpack.c.l.b16 %v3061
        %v3136 = vunpack.c.h.b16 %v3061
        %v3137 = vunpack.c.l.b16 %v3062
        %v3138 = vunpack.c.h.b16 %v3062
        %v3139 = vpack.c.b16 %v3137, %v3135
        %v3140 = vpack.c.b16 %v3138, %v3136
        %3141 = vrot.lane.b32.xlu0 %v3122, 106
        %v3142 = vpop.permute.xlu0 %3141
        %3143 = vrot.lane.b32.xlu0 %v3123, 106
        %v3144 = vpop.permute.xlu0 %3143
        %3145 = vrot.lane.b32.xlu0 %v3139, 106
        %v3146 = vpop.permute.xlu0 %3145
        %3147 = vrot.lane.b32.xlu0 %v3140, 106
        %v3148 = vpop.permute.xlu0 %3147
        %v3149 = vsel %vm1091, %v3142, %v3144
        %v3150 = vsel %vm1091, %v3144, %v3146
        %v3151 = vsel %vm1091, %v3146, %v3148
        %3152 = vrot.lane.b32.xlu0 %v3122, 88
        %v3153 = vpop.permute.xlu0 %3152
        %3154 = vrot.lane.b32.xlu0 %v3123, 88
        %v3155 = vpop.permute.xlu0 %3154
        %3156 = vrot.lane.b32.xlu0 %v3139, 88
        %v3157 = vpop.permute.xlu0 %3156
        %3158 = vrot.lane.b32.xlu0 %v3140, 88
        %v3159 = vpop.permute.xlu0 %3158
        %v3160 = vsel %vm1127, %v3153, %v3155
        %v3161 = vsel %vm1127, %v3155, %v3157
        %v3162 = vsel %vm1127, %v3157, %v3159
        %3163 = vrot.lane.b32.xlu0 %v3122, 87
        %v3164 = vpop.permute.xlu0 %3163
        %3165 = vrot.lane.b32.xlu0 %v3123, 87
        %v3166 = vpop.permute.xlu0 %3165
        %3167 = vrot.lane.b32.xlu0 %v3139, 87
        %v3168 = vpop.permute.xlu0 %3167
        %3169 = vrot.lane.b32.xlu0 %v3140, 87
        %v3170 = vpop.permute.xlu0 %3169
        %v3171 = vsel %vm1139, %v3164, %v3166
        %v3172 = vsel %vm1139, %v3166, %v3168
        %v3173 = vsel %vm1139, %v3168, %v3170
        %3174 = vrot.lane.b32.xlu0 %v3122, 86
        %v3175 = vpop.permute.xlu0 %3174
        %3176 = vrot.lane.b32.xlu0 %v3123, 86
        %v3177 = vpop.permute.xlu0 %3176
        %3178 = vrot.lane.b32.xlu0 %v3139, 86
        %v3179 = vpop.permute.xlu0 %3178
        %3180 = vrot.lane.b32.xlu0 %v3140, 86
        %v3181 = vpop.permute.xlu0 %3180
        %v3182 = vsel %vm1162, %v3175, %v3177
        %v3183 = vsel %vm1162, %v3177, %v3179
        %v3184 = vsel %vm1162, %v3179, %v3181
        %v3185 = vld [vmem:[%s11] sm:$0xff]
        %v3186 = vld [vmem:[%s11 + $0x8] sm:$0xff]
        %v3187 = vld [vmem:[%s12] sm:$0xff]
        %v3188 = vld [vmem:[%s12 + $0x8] sm:$0xff]
        %3190 = vset.pattern.permute.xlu0 0
        %3191 = vperm.xlu0 %3190, %v3187
        %v3192 = vpop.permute.xlu0 %3191
        %3195 = vset.pattern.permute.xlu0 0
        %3196 = vperm.xlu0 %3195, %v3188
        %v3197 = vpop.permute.xlu0 %3196
        %v3201 = vunpack.c.l.b16 %v3185
        %v3202 = vunpack.c.h.b16 %v3185
        %v3203 = vunpack.c.l.b16 %v3186
        %v3204 = vunpack.c.h.b16 %v3186
        %v3205 = vpack.c.b16 %v3203, %v3201
        %v3206 = vpack.c.b16 %v3204, %v3202
        %3208 = vrot.lane.b32.xlu0 %v3075, 21
        %v3209 = vpop.permute.xlu0 %3208
        %3210 = vrot.lane.b32.xlu0 %v3076, 21
        %v3211 = vpop.permute.xlu0 %3210
        %3212 = vrot.lane.b32.xlu0 %v3077, 21
        %v3213 = vpop.permute.xlu0 %3212
        %3214 = vrot.lane.b32.xlu0 %v3078, 21
        %v3215 = vpop.permute.xlu0 %3214
        %3216 = vrot.lane.b32.xlu0 %v3087, 21
        %v3217 = vpop.permute.xlu0 %3216
        %3218 = vrot.lane.b32.xlu0 %v3088, 21
        %v3219 = vpop.permute.xlu0 %3218
        %3220 = vrot.lane.b32.xlu0 %v3089, 21
        %v3221 = vpop.permute.xlu0 %3220
        %3222 = vrot.lane.b32.xlu0 %v3086, 21
        %v3223 = vpop.permute.xlu0 %3222
        %3224 = vrot.lane.b32.xlu0 %v3098, 21
        %v3225 = vpop.permute.xlu0 %3224
        %3226 = vrot.lane.b32.xlu0 %v3099, 21
        %v3227 = vpop.permute.xlu0 %3226
        %3228 = vrot.lane.b32.xlu0 %v3100, 21
        %v3229 = vpop.permute.xlu0 %3228
        %3230 = vrot.lane.b32.xlu0 %v3097, 21
        %v3231 = vpop.permute.xlu0 %3230
        %3232 = vrot.lane.b32.xlu0 %v3109, 21
        %v3233 = vpop.permute.xlu0 %3232
        %3234 = vrot.lane.b32.xlu0 %v3110, 21
        %v3235 = vpop.permute.xlu0 %3234
        %3236 = vrot.lane.b32.xlu0 %v3111, 21
        %v3237 = vpop.permute.xlu0 %3236
        %3238 = vrot.lane.b32.xlu0 %v3108, 21
        %v3239 = vpop.permute.xlu0 %3238
        %3240 = vrot.lane.b32.xlu0 %v3126, 21
        %v3241 = vpop.permute.xlu0 %3240
        %3242 = vrot.lane.b32.xlu0 %v3131, 21
        %v3243 = vpop.permute.xlu0 %3242
        %3244 = vrot.lane.b32.xlu0 %v3132, 21
        %v3245 = vpop.permute.xlu0 %3244
        %3246 = vrot.lane.b32.xlu0 %v3130, 21
        %v3247 = vpop.permute.xlu0 %3246
        %3248 = vrot.lane.b32.xlu0 %v3142, 21
        %v3249 = vpop.permute.xlu0 %3248
        %3250 = vrot.lane.b32.xlu0 %v3149, 21
        %v3251 = vpop.permute.xlu0 %3250
        %3252 = vrot.lane.b32.xlu0 %v3150, 21
        %v3253 = vpop.permute.xlu0 %3252
        %3254 = vrot.lane.b32.xlu0 %v3151, 21
        %v3255 = vpop.permute.xlu0 %3254
        %3256 = vrot.lane.b32.xlu0 %v3153, 21
        %v3257 = vpop.permute.xlu0 %3256
        %3258 = vrot.lane.b32.xlu0 %v3160, 21
        %v3259 = vpop.permute.xlu0 %3258
        %3260 = vrot.lane.b32.xlu0 %v3161, 21
        %v3261 = vpop.permute.xlu0 %3260
        %3262 = vrot.lane.b32.xlu0 %v3162, 21
        %v3263 = vpop.permute.xlu0 %3262
        %3264 = vrot.lane.b32.xlu0 %v3164, 21
        %v3265 = vpop.permute.xlu0 %3264
        %3266 = vrot.lane.b32.xlu0 %v3171, 21
        %v3267 = vpop.permute.xlu0 %3266
        %3268 = vrot.lane.b32.xlu0 %v3172, 21
        %v3269 = vpop.permute.xlu0 %3268
        %3270 = vrot.lane.b32.xlu0 %v3173, 21
        %v3271 = vpop.permute.xlu0 %3270
        %3272 = vrot.lane.b32.xlu0 %v3175, 21
        %v3273 = vpop.permute.xlu0 %3272
        %3274 = vrot.lane.b32.xlu0 %v3182, 21
        %v3275 = vpop.permute.xlu0 %3274
        %3276 = vrot.lane.b32.xlu0 %v3183, 21
        %v3277 = vpop.permute.xlu0 %3276
        %3278 = vrot.lane.b32.xlu0 %v3184, 21
        %v3279 = vpop.permute.xlu0 %3278
        %v3280 = vsel %vm2867, %v3209, %v3211
        %v3281 = vsel %vm2867, %v3211, %v3213
        %v3282 = vsel %vm2867, %v3213, %v3215
        %v3283 = vsel %vm2867, %v3217, %v3219
        %v3284 = vsel %vm2867, %v3219, %v3221
        %v3285 = vsel %vm2867, %v3221, %v3223
        %v3286 = vsel %vm2867, %v3225, %v3227
        %v3287 = vsel %vm2867, %v3227, %v3229
        %v3288 = vsel %vm2867, %v3229, %v3231
        %v3289 = vsel %vm2867, %v3233, %v3235
        %v3290 = vsel %vm2867, %v3235, %v3237
        %v3291 = vsel %vm2867, %v3237, %v3239
        %v3292 = vsel %vm2867, %v3241, %v3243
        %v3293 = vsel %vm2867, %v3243, %v3245
        %v3294 = vsel %vm2867, %v3245, %v3247
        %v3295 = vsel %vm2867, %v3249, %v3251
        %v3296 = vsel %vm2867, %v3251, %v3253
        %v3297 = vsel %vm2867, %v3253, %v3255
        %v3298 = vsel %vm2867, %v3257, %v3259
        %v3299 = vsel %vm2867, %v3259, %v3261
        %v3300 = vsel %vm2867, %v3261, %v3263
        %v3301 = vsel %vm2867, %v3265, %v3267
        %v3302 = vsel %vm2867, %v3267, %v3269
        %v3303 = vsel %vm2867, %v3269, %v3271
        %v3304 = vsel %vm2867, %v3273, %v3275
        %v3305 = vsel %vm2867, %v3275, %v3277
        %v3306 = vsel %vm2867, %v3277, %v3279
        %v3335 = vsel %vm1897, %v3206, 0
        %3337 = vmatpush.bf16.msra.mxu0 %v3301
        %3338 = vmatpush.bf16.msra.mxu0 %v3298
        %3339 = vmatpush.bf16.msra.mxu0 %v3295
        %3340 = vmatpush.bf16.msra.mxu0 %v3292
        %3341 = vmatpush.bf16.msra.mxu0 %v3289
        %3342 = vmatpush.bf16.msra.mxu0 %v3286
        %3343 = vmatpush.bf16.msra.mxu0 %v3283
        %3344 = vmatpush.bf16.msra.mxu0 %v3280
        %3345 = vmatmul.bf16.gmra.mxu0 %v3205
        %v3346 = vpop.f32.mrf.mxu0
        %v3347 = vadd.f32 %v3192, %v3346
        %v3348 = vpop.f32.mrf.mxu0
        %v3349 = vadd.f32 %v3197, %v3348
        %3350 = vdwg.mxu0
        %3351 = vmatpush.bf16.msra.mxu0 0
        %3352 = vmatpush.bf16.msra.mxu0 0
        %3353 = vmatpush.bf16.msra.mxu0 0
        %3354 = vmatpush.bf16.msra.mxu0 0
        %3355 = vmatpush.bf16.msra.mxu0 0
        %3356 = vmatpush.bf16.msra.mxu0 0
        %3357 = vmatpush.bf16.msra.mxu0 0
        %3358 = vmatpush.bf16.msra.mxu0 %v3304
        %3359 = vmatmul.bf16.gmra.mxu0 %v3335
        %v3360 = vpop.f32.mrf.mxu0
        %v3361 = vadd.f32 %v3347, %v3360
        %v3362 = vpop.f32.mrf.mxu0
        %v3363 = vadd.f32 %v3349, %v3362
        %3364 = vdwg.mxu0
        %3365 = vmatpush.bf16.msra.mxu0 %v3302
        %3366 = vmatpush.bf16.msra.mxu0 %v3299
        %3367 = vmatpush.bf16.msra.mxu0 %v3296
        %3368 = vmatpush.bf16.msra.mxu0 %v3293
        %3369 = vmatpush.bf16.msra.mxu0 %v3290
        %3370 = vmatpush.bf16.msra.mxu0 %v3287
        %3371 = vmatpush.bf16.msra.mxu0 %v3284
        %3372 = vmatpush.bf16.msra.mxu0 %v3281
        %3373 = vmatmul.bf16.gmra.mxu0 %v3205
        %v3374 = vpop.f32.mrf.mxu0
        %v3375 = vadd.f32 %v3192, %v3374
        %v3376 = vpop.f32.mrf.mxu0
        %v3377 = vadd.f32 %v3197, %v3376
        %3378 = vdwg.mxu0
        %3379 = vmatpush.bf16.msra.mxu0 0
        %3380 = vmatpush.bf16.msra.mxu0 0
        %3381 = vmatpush.bf16.msra.mxu0 0
        %3382 = vmatpush.bf16.msra.mxu0 0
        %3383 = vmatpush.bf16.msra.mxu0 0
        %3384 = vmatpush.bf16.msra.mxu0 0
        %3385 = vmatpush.bf16.msra.mxu0 0
        %3386 = vmatpush.bf16.msra.mxu0 %v3305
        %3387 = vmatmul.bf16.gmra.mxu0 %v3335
        %v3388 = vpop.f32.mrf.mxu0
        %v3389 = vadd.f32 %v3375, %v3388
        %v3390 = vpop.f32.mrf.mxu0
        %v3391 = vadd.f32 %v3377, %v3390
        %3392 = vdwg.mxu0
        %3393 = vmatpush.bf16.msra.mxu0 %v3303
        %3394 = vmatpush.bf16.msra.mxu0 %v3300
        %3395 = vmatpush.bf16.msra.mxu0 %v3297
        %3396 = vmatpush.bf16.msra.mxu0 %v3294
        %3397 = vmatpush.bf16.msra.mxu0 %v3291
        %3398 = vmatpush.bf16.msra.mxu0 %v3288
        %3399 = vmatpush.bf16.msra.mxu0 %v3285
        %3400 = vmatpush.bf16.msra.mxu0 %v3282
        %3401 = vmatmul.bf16.gmra.mxu0 %v3205
        %v3402 = vpop.f32.mrf.mxu0
        %v3403 = vadd.f32 %v3192, %v3402
        %v3404 = vpop.f32.mrf.mxu0
        %v3405 = vadd.f32 %v3197, %v3404
        %3406 = vdwg.mxu0
        %3407 = vmatpush.bf16.msra.mxu0 0
        %3408 = vmatpush.bf16.msra.mxu0 0
        %3409 = vmatpush.bf16.msra.mxu0 0
        %3410 = vmatpush.bf16.msra.mxu0 0
        %3411 = vmatpush.bf16.msra.mxu0 0
        %3412 = vmatpush.bf16.msra.mxu0 0
        %3413 = vmatpush.bf16.msra.mxu0 0
        %3414 = vmatpush.bf16.msra.mxu0 %v3306
        %3415 = vmatmul.bf16.gmra.mxu0 %v3335
        %v3416 = vpop.f32.mrf.mxu0
        %v3417 = vadd.f32 %v3403, %v3416
        %v3418 = vpop.f32.mrf.mxu0
        %v3419 = vadd.f32 %v3405, %v3418
        %3420 = vdwg.mxu0
        %v3421 = vld [vmem:[%s13] sm:$0xff]
        %v3422 = vld [vmem:[%s13 + $0x8] sm:$0xff]
        %vm3423 = vcmp.gt.f32.partialorder %v3361, 0.0
        %vm3424 = vcmp.gt.f32.partialorder %v3389, 0.0
        %vm3425 = vcmp.gt.f32.partialorder %v3417, 0.0
        %vm3426 = vcmp.gt.f32.partialorder %v3363, 0.0
        %vm3427 = vcmp.gt.f32.partialorder %v3391, 0.0
        %vm3428 = vcmp.gt.f32.partialorder %v3419, 0.0
        %3430 = vset.pattern.permute.xlu0 0
        %3431 = vperm.xlu0 %3430, %v3421
        %v3432 = vpop.permute.xlu0 %3431
        %3435 = vset.pattern.permute.xlu0 0
        %3436 = vperm.xlu0 %3435, %v3422
        %v3437 = vpop.permute.xlu0 %3436
        %v3439 = vmul.f32 %v3432, %v3361
        %v3440 = vmul.f32 %v3432, %v3389
        %v3441 = vmul.f32 %v3432, %v3417
        %v3442 = vmul.f32 %v3437, %v3363
        %v3443 = vmul.f32 %v3437, %v3391
        %v3444 = vmul.f32 %v3437, %v3419
        %v3445 = vsel %vm3423, %v3361, %v3439
        %v3446 = vsel %vm3424, %v3389, %v3440
        %v3447 = vsel %vm3425, %v3417, %v3441
        %v3448 = vsel %vm3426, %v3363, %v3442
        %v3449 = vsel %vm3427, %v3391, %v3443
        %v3450 = vsel %vm3428, %v3419, %v3444
        %v3451 = vmul.f32 %v3445, %v2379
        %v3452 = vmul.f32 %v3446, %v2380
        %v3453 = vmul.f32 %v3447, %v2381
        %v3454 = vmul.f32 %v3448, %v2379
        %v3455 = vmul.f32 %v3449, %v2380
        %v3456 = vmul.f32 %v3450, %v2381
        %v3457 = vpack.c.bf16 %v3452, %v3451
        %v3458 = vpack.c.bf16 %v3453, %v3453
        %v3459 = vpack.c.bf16 %v3455, %v3454
        %v3460 = vpack.c.bf16 %v3456, %v3456
        %3461 = vst [vmem:[#allocation2 + $0x4] sm:$0xff] %v3457
        %3462 = vst [vmem:[#allocation2 + $0xc] sm:$0xf] %v3458
        %3463 = vst [vmem:[#allocation2 + $0x18] sm:$0xff] %v3459
        %3464 = vst [vmem:[#allocation2 + $0x20] sm:$0xf] %v3460
        %v3465 = vld [vmem:[#allocation2] sm:$0xff]
        %v3466 = vld [vmem:[#allocation2 + $0x8] sm:$0xff]
        %v3467 = vld [vmem:[#allocation2 + $0x14] sm:$0xff]
        %v3468 = vld [vmem:[#allocation2 + $0x1c] sm:$0xff]
        %v3469 = vld [vmem:[#allocation2 + $0x4] sm:$0xff]
        %v3470 = vld [vmem:[#allocation2 + $0xc] sm:$0xf]
        %v3471 = vld [vmem:[#allocation2 + $0x18] sm:$0xff]
        %v3472 = vld [vmem:[#allocation2 + $0x20] sm:$0xf]
        %v3473 = vld [vmem:[#allocation2 + $0x4] sm:$0xff]
        %v3474 = vld [vmem:[#allocation2 + $0xc] sm:$0xff]
        %v3475 = vld [vmem:[#allocation2 + $0x18] sm:$0xff]
        %v3476 = vld [vmem:[#allocation2 + $0x20] sm:$0xff]
        %v3481 = vunpack.c.l.b16 %v3465
        %v3482 = vunpack.c.h.b16 %v3465
        %v3483 = vunpack.c.l.b16 %v3466
        %v3484 = vunpack.c.h.b16 %v3466
        %v3485 = vunpack.c.l.b16 %v3467
        %v3486 = vunpack.c.h.b16 %v3467
        %v3487 = vunpack.c.l.b16 %v3468
        %v3488 = vunpack.c.h.b16 %v3468
        %v3489 = vpack.c.b16 %v3485, %v3481
        %v3490 = vpack.c.b16 %v3486, %v3482
        %v3491 = vpack.c.b16 %v3487, %v3483
        %v3492 = vpack.c.b16 %v3488, %v3484
        %3493 = vrot.lane.b32.xlu0 %v3489, 127
        %v3494 = vpop.permute.xlu0 %3493
        %3495 = vrot.lane.b32.xlu0 %v3490, 127
        %v3496 = vpop.permute.xlu0 %3495
        %3497 = vrot.lane.b32.xlu0 %v3491, 127
        %v3498 = vpop.permute.xlu0 %3497
        %3499 = vrot.lane.b32.xlu0 %v3492, 127
        %v3500 = vpop.permute.xlu0 %3499
        %v3501 = vsel %vm1019, %v3494, %v3496
        %v3502 = vsel %vm1019, %v3496, %v3498
        %v3503 = vsel %vm1019, %v3498, %v3500
        %3504 = vrot.lane.b32.xlu0 %v3489, 126
        %v3505 = vpop.permute.xlu0 %3504
        %3506 = vrot.lane.b32.xlu0 %v3490, 126
        %v3507 = vpop.permute.xlu0 %3506
        %3508 = vrot.lane.b32.xlu0 %v3491, 126
        %v3509 = vpop.permute.xlu0 %3508
        %3510 = vrot.lane.b32.xlu0 %v3492, 126
        %v3511 = vpop.permute.xlu0 %3510
        %v3512 = vsel %vm1031, %v3505, %v3507
        %v3513 = vsel %vm1031, %v3507, %v3509
        %v3514 = vsel %vm1031, %v3509, %v3511
        %3515 = vrot.lane.b32.xlu0 %v3489, 108
        %v3516 = vpop.permute.xlu0 %3515
        %3517 = vrot.lane.b32.xlu0 %v3490, 108
        %v3518 = vpop.permute.xlu0 %3517
        %3519 = vrot.lane.b32.xlu0 %v3491, 108
        %v3520 = vpop.permute.xlu0 %3519
        %3521 = vrot.lane.b32.xlu0 %v3492, 108
        %v3522 = vpop.permute.xlu0 %3521
        %v3523 = vsel %vm1067, %v3516, %v3518
        %v3524 = vsel %vm1067, %v3518, %v3520
        %v3525 = vsel %vm1067, %v3520, %v3522
        %v3530 = vunpack.c.l.b16 %v3469
        %v3531 = vunpack.c.h.b16 %v3469
        %v3532 = vunpack.c.l.b16 %v3470
        %v3533 = vunpack.c.l.b16 %v3471
        %v3534 = vunpack.c.h.b16 %v3471
        %v3535 = vunpack.c.l.b16 %v3472
        %v3536 = vpack.c.b16 %v3533, %v3530
        %v3537 = vpack.c.b16 %v3534, %v3531
        %v3538 = vpack.c.b16 %v3535, %v3532
        %3539 = vrot.lane.b32.xlu0 %v3536, 107
        %v3540 = vpop.permute.xlu0 %3539
        %3541 = vrot.lane.b32.xlu0 %v3537, 107
        %v3542 = vpop.permute.xlu0 %3541
        %3543 = vrot.lane.b32.xlu0 %v3538, 107
        %v3544 = vpop.permute.xlu0 %3543
        %v3545 = vsel %vm1079, %v3540, %v3542
        %v3546 = vsel %vm1079, %v3542, %v3544
        %v3551 = vunpack.c.l.b16 %v3473
        %v3552 = vunpack.c.h.b16 %v3473
        %v3553 = vunpack.c.l.b16 %v3474
        %v3554 = vunpack.c.h.b16 %v3474
        %v3555 = vunpack.c.l.b16 %v3475
        %v3556 = vunpack.c.h.b16 %v3475
        %v3557 = vunpack.c.l.b16 %v3476
        %v3558 = vunpack.c.h.b16 %v3476
        %v3559 = vpack.c.b16 %v3555, %v3551
        %v3560 = vpack.c.b16 %v3556, %v3552
        %v3561 = vpack.c.b16 %v3557, %v3553
        %v3562 = vpack.c.b16 %v3558, %v3554
        %3563 = vrot.lane.b32.xlu0 %v3559, 106
        %v3564 = vpop.permute.xlu0 %3563
        %3565 = vrot.lane.b32.xlu0 %v3560, 106
        %v3566 = vpop.permute.xlu0 %3565
        %3567 = vrot.lane.b32.xlu0 %v3561, 106
        %v3568 = vpop.permute.xlu0 %3567
        %3569 = vrot.lane.b32.xlu0 %v3562, 106
        %v3570 = vpop.permute.xlu0 %3569
        %v3571 = vsel %vm1091, %v3564, %v3566
        %v3572 = vsel %vm1091, %v3566, %v3568
        %v3573 = vsel %vm1091, %v3568, %v3570
        %3574 = vrot.lane.b32.xlu0 %v3559, 88
        %v3575 = vpop.permute.xlu0 %3574
        %3576 = vrot.lane.b32.xlu0 %v3560, 88
        %v3577 = vpop.permute.xlu0 %3576
        %3578 = vrot.lane.b32.xlu0 %v3561, 88
        %v3579 = vpop.permute.xlu0 %3578
        %3580 = vrot.lane.b32.xlu0 %v3562, 88
        %v3581 = vpop.permute.xlu0 %3580
        %v3582 = vsel %vm1127, %v3575, %v3577
        %v3583 = vsel %vm1127, %v3577, %v3579
        %v3584 = vsel %vm1127, %v3579, %v3581
        %3585 = vrot.lane.b32.xlu0 %v3559, 87
        %v3586 = vpop.permute.xlu0 %3585
        %3587 = vrot.lane.b32.xlu0 %v3560, 87
        %v3588 = vpop.permute.xlu0 %3587
        %3589 = vrot.lane.b32.xlu0 %v3561, 87
        %v3590 = vpop.permute.xlu0 %3589
        %3591 = vrot.lane.b32.xlu0 %v3562, 87
        %v3592 = vpop.permute.xlu0 %3591
        %v3593 = vsel %vm1139, %v3586, %v3588
        %v3594 = vsel %vm1139, %v3588, %v3590
        %v3595 = vsel %vm1139, %v3590, %v3592
        %3596 = vrot.lane.b32.xlu0 %v3559, 86
        %v3597 = vpop.permute.xlu0 %3596
        %3598 = vrot.lane.b32.xlu0 %v3560, 86
        %v3599 = vpop.permute.xlu0 %3598
        %3600 = vrot.lane.b32.xlu0 %v3561, 86
        %v3601 = vpop.permute.xlu0 %3600
        %3602 = vrot.lane.b32.xlu0 %v3562, 86
        %v3603 = vpop.permute.xlu0 %3602
        %v3604 = vsel %vm1162, %v3597, %v3599
        %v3605 = vsel %vm1162, %v3599, %v3601
        %v3606 = vsel %vm1162, %v3601, %v3603
        %v3607 = vld [vmem:[%s14] sm:$0xff]
        %v3608 = vld [vmem:[%s14 + $0x8] sm:$0xff]
        %v3609 = vld [vmem:[%s15] sm:$0xff]
        %v3610 = vld [vmem:[%s15 + $0x8] sm:$0xff]
        %3612 = vset.pattern.permute.xlu0 0
        %3613 = vperm.xlu0 %3612, %v3609
        %v3614 = vpop.permute.xlu0 %3613
        %3617 = vset.pattern.permute.xlu0 0
        %3618 = vperm.xlu0 %3617, %v3610
        %v3619 = vpop.permute.xlu0 %3618
        %v3623 = vunpack.c.l.b16 %v3607
        %v3624 = vunpack.c.h.b16 %v3607
        %v3625 = vunpack.c.l.b16 %v3608
        %v3626 = vunpack.c.h.b16 %v3608
        %v3627 = vpack.c.b16 %v3625, %v3623
        %v3628 = vpack.c.b16 %v3626, %v3624
        %3630 = vrot.lane.b32.xlu0 %v3489, 21
        %v3631 = vpop.permute.xlu0 %3630
        %3632 = vrot.lane.b32.xlu0 %v3490, 21
        %v3633 = vpop.permute.xlu0 %3632
        %3634 = vrot.lane.b32.xlu0 %v3491, 21
        %v3635 = vpop.permute.xlu0 %3634
        %3636 = vrot.lane.b32.xlu0 %v3492, 21
        %v3637 = vpop.permute.xlu0 %3636
        %3638 = vrot.lane.b32.xlu0 %v3501, 21
        %v3639 = vpop.permute.xlu0 %3638
        %3640 = vrot.lane.b32.xlu0 %v3502, 21
        %v3641 = vpop.permute.xlu0 %3640
        %3642 = vrot.lane.b32.xlu0 %v3503, 21
        %v3643 = vpop.permute.xlu0 %3642
        %3644 = vrot.lane.b32.xlu0 %v3500, 21
        %v3645 = vpop.permute.xlu0 %3644
        %3646 = vrot.lane.b32.xlu0 %v3512, 21
        %v3647 = vpop.permute.xlu0 %3646
        %3648 = vrot.lane.b32.xlu0 %v3513, 21
        %v3649 = vpop.permute.xlu0 %3648
        %3650 = vrot.lane.b32.xlu0 %v3514, 21
        %v3651 = vpop.permute.xlu0 %3650
        %3652 = vrot.lane.b32.xlu0 %v3511, 21
        %v3653 = vpop.permute.xlu0 %3652
        %3654 = vrot.lane.b32.xlu0 %v3523, 21
        %v3655 = vpop.permute.xlu0 %3654
        %3656 = vrot.lane.b32.xlu0 %v3524, 21
        %v3657 = vpop.permute.xlu0 %3656
        %3658 = vrot.lane.b32.xlu0 %v3525, 21
        %v3659 = vpop.permute.xlu0 %3658
        %3660 = vrot.lane.b32.xlu0 %v3522, 21
        %v3661 = vpop.permute.xlu0 %3660
        %3662 = vrot.lane.b32.xlu0 %v3540, 21
        %v3663 = vpop.permute.xlu0 %3662
        %3664 = vrot.lane.b32.xlu0 %v3545, 21
        %v3665 = vpop.permute.xlu0 %3664
        %3666 = vrot.lane.b32.xlu0 %v3546, 21
        %v3667 = vpop.permute.xlu0 %3666
        %3668 = vrot.lane.b32.xlu0 %v3544, 21
        %v3669 = vpop.permute.xlu0 %3668
        %3670 = vrot.lane.b32.xlu0 %v3564, 21
        %v3671 = vpop.permute.xlu0 %3670
        %3672 = vrot.lane.b32.xlu0 %v3571, 21
        %v3673 = vpop.permute.xlu0 %3672
        %3674 = vrot.lane.b32.xlu0 %v3572, 21
        %v3675 = vpop.permute.xlu0 %3674
        %3676 = vrot.lane.b32.xlu0 %v3573, 21
        %v3677 = vpop.permute.xlu0 %3676
        %3678 = vrot.lane.b32.xlu0 %v3575, 21
        %v3679 = vpop.permute.xlu0 %3678
        %3680 = vrot.lane.b32.xlu0 %v3582, 21
        %v3681 = vpop.permute.xlu0 %3680
        %3682 = vrot.lane.b32.xlu0 %v3583, 21
        %v3683 = vpop.permute.xlu0 %3682
        %3684 = vrot.lane.b32.xlu0 %v3584, 21
        %v3685 = vpop.permute.xlu0 %3684
        %3686 = vrot.lane.b32.xlu0 %v3586, 21
        %v3687 = vpop.permute.xlu0 %3686
        %3688 = vrot.lane.b32.xlu0 %v3593, 21
        %v3689 = vpop.permute.xlu0 %3688
        %3690 = vrot.lane.b32.xlu0 %v3594, 21
        %v3691 = vpop.permute.xlu0 %3690
        %3692 = vrot.lane.b32.xlu0 %v3595, 21
        %v3693 = vpop.permute.xlu0 %3692
        %3694 = vrot.lane.b32.xlu0 %v3597, 21
        %v3695 = vpop.permute.xlu0 %3694
        %3696 = vrot.lane.b32.xlu0 %v3604, 21
        %v3697 = vpop.permute.xlu0 %3696
        %3698 = vrot.lane.b32.xlu0 %v3605, 21
        %v3699 = vpop.permute.xlu0 %3698
        %3700 = vrot.lane.b32.xlu0 %v3606, 21
        %v3701 = vpop.permute.xlu0 %3700
        %v3702 = vsel %vm2867, %v3631, %v3633
        %v3703 = vsel %vm2867, %v3633, %v3635
        %v3704 = vsel %vm2867, %v3635, %v3637
        %v3705 = vsel %vm2867, %v3639, %v3641
        %v3706 = vsel %vm2867, %v3641, %v3643
        %v3707 = vsel %vm2867, %v3643, %v3645
        %v3708 = vsel %vm2867, %v3647, %v3649
        %v3709 = vsel %vm2867, %v3649, %v3651
        %v3710 = vsel %vm2867, %v3651, %v3653
        %v3711 = vsel %vm2867, %v3655, %v3657
        %v3712 = vsel %vm2867, %v3657, %v3659
        %v3713 = vsel %vm2867, %v3659, %v3661
        %v3714 = vsel %vm2867, %v3663, %v3665
        %v3715 = vsel %vm2867, %v3665, %v3667
        %v3716 = vsel %vm2867, %v3667, %v3669
        %v3717 = vsel %vm2867, %v3671, %v3673
        %v3718 = vsel %vm2867, %v3673, %v3675
        %v3719 = vsel %vm2867, %v3675, %v3677
        %v3720 = vsel %vm2867, %v3679, %v3681
        %v3721 = vsel %vm2867, %v3681, %v3683
        %v3722 = vsel %vm2867, %v3683, %v3685
        %v3723 = vsel %vm2867, %v3687, %v3689
        %v3724 = vsel %vm2867, %v3689, %v3691
        %v3725 = vsel %vm2867, %v3691, %v3693
        %v3726 = vsel %vm2867, %v3695, %v3697
        %v3727 = vsel %vm2867, %v3697, %v3699
        %v3728 = vsel %vm2867, %v3699, %v3701
        %v3757 = vsel %vm1897, %v3628, 0
        %3759 = vmatpush.bf16.msra.mxu0 %v3723
        %3760 = vmatpush.bf16.msra.mxu0 %v3720
        %3761 = vmatpush.bf16.msra.mxu0 %v3717
        %3762 = vmatpush.bf16.msra.mxu0 %v3714
        %3763 = vmatpush.bf16.msra.mxu0 %v3711
        %3764 = vmatpush.bf16.msra.mxu0 %v3708
        %3765 = vmatpush.bf16.msra.mxu0 %v3705
        %3766 = vmatpush.bf16.msra.mxu0 %v3702
        %3767 = vmatmul.bf16.gmra.mxu0 %v3627
        %v3768 = vpop.f32.mrf.mxu0
        %v3769 = vadd.f32 %v3614, %v3768
        %v3770 = vpop.f32.mrf.mxu0
        %v3771 = vadd.f32 %v3619, %v3770
        %3772 = vdwg.mxu0
        %3773 = vmatpush.bf16.msra.mxu0 0
        %3774 = vmatpush.bf16.msra.mxu0 0
        %3775 = vmatpush.bf16.msra.mxu0 0
        %3776 = vmatpush.bf16.msra.mxu0 0
        %3777 = vmatpush.bf16.msra.mxu0 0
        %3778 = vmatpush.bf16.msra.mxu0 0
        %3779 = vmatpush.bf16.msra.mxu0 0
        %3780 = vmatpush.bf16.msra.mxu0 %v3726
        %3781 = vmatmul.bf16.gmra.mxu0 %v3757
        %v3782 = vpop.f32.mrf.mxu0
        %v3783 = vadd.f32 %v3769, %v3782
        %v3784 = vpop.f32.mrf.mxu0
        %v3785 = vadd.f32 %v3771, %v3784
        %3786 = vdwg.mxu0
        %3787 = vmatpush.bf16.msra.mxu0 %v3724
        %3788 = vmatpush.bf16.msra.mxu0 %v3721
        %3789 = vmatpush.bf16.msra.mxu0 %v3718
        %3790 = vmatpush.bf16.msra.mxu0 %v3715
        %3791 = vmatpush.bf16.msra.mxu0 %v3712
        %3792 = vmatpush.bf16.msra.mxu0 %v3709
        %3793 = vmatpush.bf16.msra.mxu0 %v3706
        %3794 = vmatpush.bf16.msra.mxu0 %v3703
        %3795 = vmatmul.bf16.gmra.mxu0 %v3627
        %v3796 = vpop.f32.mrf.mxu0
        %v3797 = vadd.f32 %v3614, %v3796
        %v3798 = vpop.f32.mrf.mxu0
        %v3799 = vadd.f32 %v3619, %v3798
        %3800 = vdwg.mxu0
        %3801 = vmatpush.bf16.msra.mxu0 0
        %3802 = vmatpush.bf16.msra.mxu0 0
        %3803 = vmatpush.bf16.msra.mxu0 0
        %3804 = vmatpush.bf16.msra.mxu0 0
        %3805 = vmatpush.bf16.msra.mxu0 0
        %3806 = vmatpush.bf16.msra.mxu0 0
        %3807 = vmatpush.bf16.msra.mxu0 0
        %3808 = vmatpush.bf16.msra.mxu0 %v3727
        %3809 = vmatmul.bf16.gmra.mxu0 %v3757
        %v3810 = vpop.f32.mrf.mxu0
        %v3811 = vadd.f32 %v3797, %v3810
        %v3812 = vpop.f32.mrf.mxu0
        %v3813 = vadd.f32 %v3799, %v3812
        %3814 = vdwg.mxu0
        %3815 = vmatpush.bf16.msra.mxu0 %v3725
        %3816 = vmatpush.bf16.msra.mxu0 %v3722
        %3817 = vmatpush.bf16.msra.mxu0 %v3719
        %3818 = vmatpush.bf16.msra.mxu0 %v3716
        %3819 = vmatpush.bf16.msra.mxu0 %v3713
        %3820 = vmatpush.bf16.msra.mxu0 %v3710
        %3821 = vmatpush.bf16.msra.mxu0 %v3707
        %3822 = vmatpush.bf16.msra.mxu0 %v3704
        %3823 = vmatmul.bf16.gmra.mxu0 %v3627
        %v3824 = vpop.f32.mrf.mxu0
        %v3825 = vadd.f32 %v3614, %v3824
        %v3826 = vpop.f32.mrf.mxu0
        %v3827 = vadd.f32 %v3619, %v3826
        %3828 = vdwg.mxu0
        %3829 = vmatpush.bf16.msra.mxu0 0
        %3830 = vmatpush.bf16.msra.mxu0 0
        %3831 = vmatpush.bf16.msra.mxu0 0
        %3832 = vmatpush.bf16.msra.mxu0 0
        %3833 = vmatpush.bf16.msra.mxu0 0
        %3834 = vmatpush.bf16.msra.mxu0 0
        %3835 = vmatpush.bf16.msra.mxu0 0
        %3836 = vmatpush.bf16.msra.mxu0 %v3728
        %3837 = vmatmul.bf16.gmra.mxu0 %v3757
        %v3838 = vpop.f32.mrf.mxu0
        %v3839 = vadd.f32 %v3825, %v3838
        %v3840 = vpop.f32.mrf.mxu0
        %v3841 = vadd.f32 %v3827, %v3840
        %3842 = vdwg.mxu0
        %v3843 = vld [vmem:[%s16] sm:$0xff]
        %v3844 = vld [vmem:[%s16 + $0x8] sm:$0xff]
        %vm3845 = vcmp.gt.f32.partialorder %v3783, 0.0
        %vm3846 = vcmp.gt.f32.partialorder %v3811, 0.0
        %vm3847 = vcmp.gt.f32.partialorder %v3839, 0.0
        %vm3848 = vcmp.gt.f32.partialorder %v3785, 0.0
        %vm3849 = vcmp.gt.f32.partialorder %v3813, 0.0
        %vm3850 = vcmp.gt.f32.partialorder %v3841, 0.0
        %3852 = vset.pattern.permute.xlu0 0
        %3853 = vperm.xlu0 %3852, %v3843
        %v3854 = vpop.permute.xlu0 %3853
        %3857 = vset.pattern.permute.xlu0 0
        %3858 = vperm.xlu0 %3857, %v3844
        %v3859 = vpop.permute.xlu0 %3858
        %v3861 = vmul.f32 %v3854, %v3783
        %v3862 = vmul.f32 %v3854, %v3811
        %v3863 = vmul.f32 %v3854, %v3839
        %v3864 = vmul.f32 %v3859, %v3785
        %v3865 = vmul.f32 %v3859, %v3813
        %v3866 = vmul.f32 %v3859, %v3841
        %v3867 = vsel %vm3845, %v3783, %v3861
        %v3868 = vsel %vm3846, %v3811, %v3862
        %v3869 = vsel %vm3847, %v3839, %v3863
        %v3870 = vsel %vm3848, %v3785, %v3864
        %v3871 = vsel %vm3849, %v3813, %v3865
        %v3872 = vsel %vm3850, %v3841, %v3866
        %v3873 = vmul.f32 %v3867, %v2379
        %v3874 = vmul.f32 %v3868, %v2380
        %v3875 = vmul.f32 %v3869, %v2381
        %v3876 = vmul.f32 %v3870, %v2379
        %v3877 = vmul.f32 %v3871, %v2380
        %v3878 = vmul.f32 %v3872, %v2381
        %v3879 = vpack.c.bf16 %v3874, %v3873
        %v3880 = vpack.c.bf16 %v3875, %v3875
        %v3881 = vpack.c.bf16 %v3877, %v3876
        %v3882 = vpack.c.bf16 %v3878, %v3878
        %3883 = vst [vmem:[#allocation3 + $0x4] sm:$0xff] %v3879
        %3884 = vst [vmem:[#allocation3 + $0xc] sm:$0xf] %v3880
        %3885 = vst [vmem:[#allocation3 + $0x18] sm:$0xff] %v3881
        %3886 = vst [vmem:[#allocation3 + $0x20] sm:$0xf] %v3882
        %v3887 = vld [vmem:[#allocation3] sm:$0xff]
        %v3888 = vld [vmem:[#allocation3 + $0x8] sm:$0xff]
        %v3889 = vld [vmem:[#allocation3 + $0x14] sm:$0xff]
        %v3890 = vld [vmem:[#allocation3 + $0x1c] sm:$0xff]
        %v3891 = vld [vmem:[#allocation3 + $0x4] sm:$0xff]
        %v3892 = vld [vmem:[#allocation3 + $0xc] sm:$0xf]
        %v3893 = vld [vmem:[#allocation3 + $0x18] sm:$0xff]
        %v3894 = vld [vmem:[#allocation3 + $0x20] sm:$0xf]
        %v3895 = vld [vmem:[#allocation3 + $0xc] sm:$0xff]
        %v3896 = vld [vmem:[#allocation3 + $0x20] sm:$0xff]
        %v3901 = vunpack.c.l.b16 %v3887
        %v3902 = vunpack.c.h.b16 %v3887
        %v3903 = vunpack.c.l.b16 %v3888
        %v3904 = vunpack.c.h.b16 %v3888
        %v3905 = vunpack.c.l.b16 %v3889
        %v3906 = vunpack.c.h.b16 %v3889
        %v3907 = vunpack.c.l.b16 %v3890
        %v3908 = vunpack.c.h.b16 %v3890
        %v3909 = vpack.c.b16 %v3905, %v3901
        %v3910 = vpack.c.b16 %v3906, %v3902
        %v3911 = vpack.c.b16 %v3907, %v3903
        %v3912 = vpack.c.b16 %v3908, %v3904
        %3913 = vrot.lane.b32.xlu0 %v3909, 127
        %v3914 = vpop.permute.xlu0 %3913
        %3915 = vrot.lane.b32.xlu0 %v3910, 127
        %v3916 = vpop.permute.xlu0 %3915
        %3917 = vrot.lane.b32.xlu0 %v3911, 127
        %v3918 = vpop.permute.xlu0 %3917
        %3919 = vrot.lane.b32.xlu0 %v3912, 127
        %v3920 = vpop.permute.xlu0 %3919
        %v3921 = vsel %vm1019, %v3914, %v3916
        %v3922 = vsel %vm1019, %v3916, %v3918
        %v3923 = vsel %vm1019, %v3918, %v3920
        %3924 = vrot.lane.b32.xlu0 %v3909, 126
        %v3925 = vpop.permute.xlu0 %3924
        %3926 = vrot.lane.b32.xlu0 %v3910, 126
        %v3927 = vpop.permute.xlu0 %3926
        %3928 = vrot.lane.b32.xlu0 %v3911, 126
        %v3929 = vpop.permute.xlu0 %3928
        %3930 = vrot.lane.b32.xlu0 %v3912, 126
        %v3931 = vpop.permute.xlu0 %3930
        %v3932 = vsel %vm1031, %v3925, %v3927
        %v3933 = vsel %vm1031, %v3927, %v3929
        %v3934 = vsel %vm1031, %v3929, %v3931
        %3935 = vrot.lane.b32.xlu0 %v3909, 108
        %v3936 = vpop.permute.xlu0 %3935
        %3937 = vrot.lane.b32.xlu0 %v3910, 108
        %v3938 = vpop.permute.xlu0 %3937
        %3939 = vrot.lane.b32.xlu0 %v3911, 108
        %v3940 = vpop.permute.xlu0 %3939
        %3941 = vrot.lane.b32.xlu0 %v3912, 108
        %v3942 = vpop.permute.xlu0 %3941
        %v3943 = vsel %vm1067, %v3936, %v3938
        %v3944 = vsel %vm1067, %v3938, %v3940
        %v3945 = vsel %vm1067, %v3940, %v3942
        %v3950 = vunpack.c.l.b16 %v3891
        %v3951 = vunpack.c.h.b16 %v3891
        %v3952 = vunpack.c.l.b16 %v3892
        %v3953 = vunpack.c.l.b16 %v3893
        %v3954 = vunpack.c.h.b16 %v3893
        %v3955 = vunpack.c.l.b16 %v3894
        %v3956 = vpack.c.b16 %v3953, %v3950
        %v3957 = vpack.c.b16 %v3954, %v3951
        %v3958 = vpack.c.b16 %v3955, %v3952
        %3959 = vrot.lane.b32.xlu0 %v3956, 107
        %v3960 = vpop.permute.xlu0 %3959
        %3961 = vrot.lane.b32.xlu0 %v3957, 107
        %v3962 = vpop.permute.xlu0 %3961
        %3963 = vrot.lane.b32.xlu0 %v3958, 107
        %v3964 = vpop.permute.xlu0 %3963
        %v3965 = vsel %vm1079, %v3960, %v3962
        %v3966 = vsel %vm1079, %v3962, %v3964
        %v3969 = vunpack.c.l.b16 %v3895
        %v3970 = vunpack.c.h.b16 %v3895
        %v3971 = vunpack.c.l.b16 %v3896
        %v3972 = vunpack.c.h.b16 %v3896
        %v3973 = vpack.c.b16 %v3971, %v3969
        %v3974 = vpack.c.b16 %v3972, %v3970
        %3975 = vrot.lane.b32.xlu0 %v3956, 106
        %v3976 = vpop.permute.xlu0 %3975
        %3977 = vrot.lane.b32.xlu0 %v3957, 106
        %v3978 = vpop.permute.xlu0 %3977
        %3979 = vrot.lane.b32.xlu0 %v3973, 106
        %v3980 = vpop.permute.xlu0 %3979
        %3981 = vrot.lane.b32.xlu0 %v3974, 106
        %v3982 = vpop.permute.xlu0 %3981
        %v3983 = vsel %vm1091, %v3976, %v3978
        %v3984 = vsel %vm1091, %v3978, %v3980
        %v3985 = vsel %vm1091, %v3980, %v3982
        %3986 = vrot.lane.b32.xlu0 %v3956, 88
        %v3987 = vpop.permute.xlu0 %3986
        %3988 = vrot.lane.b32.xlu0 %v3957, 88
        %v3989 = vpop.permute.xlu0 %3988
        %3990 = vrot.lane.b32.xlu0 %v3973, 88
        %v3991 = vpop.permute.xlu0 %3990
        %3992 = vrot.lane.b32.xlu0 %v3974, 88
        %v3993 = vpop.permute.xlu0 %3992
        %v3994 = vsel %vm1127, %v3987, %v3989
        %v3995 = vsel %vm1127, %v3989, %v3991
        %v3996 = vsel %vm1127, %v3991, %v3993
        %3997 = vrot.lane.b32.xlu0 %v3956, 87
        %v3998 = vpop.permute.xlu0 %3997
        %3999 = vrot.lane.b32.xlu0 %v3957, 87
        %v4000 = vpop.permute.xlu0 %3999
        %4001 = vrot.lane.b32.xlu0 %v3973, 87
        %v4002 = vpop.permute.xlu0 %4001
        %4003 = vrot.lane.b32.xlu0 %v3974, 87
        %v4004 = vpop.permute.xlu0 %4003
        %v4005 = vsel %vm1139, %v3998, %v4000
        %v4006 = vsel %vm1139, %v4000, %v4002
        %v4007 = vsel %vm1139, %v4002, %v4004
        %4008 = vrot.lane.b32.xlu0 %v3956, 86
        %v4009 = vpop.permute.xlu0 %4008
        %4010 = vrot.lane.b32.xlu0 %v3957, 86
        %v4011 = vpop.permute.xlu0 %4010
        %4012 = vrot.lane.b32.xlu0 %v3973, 86
        %v4013 = vpop.permute.xlu0 %4012
        %4014 = vrot.lane.b32.xlu0 %v3974, 86
        %v4015 = vpop.permute.xlu0 %4014
        %v4016 = vsel %vm1162, %v4009, %v4011
        %v4017 = vsel %vm1162, %v4011, %v4013
        %v4018 = vsel %vm1162, %v4013, %v4015
        %v4019 = vld [vmem:[%s17] sm:$0xff]
        %v4020 = vld [vmem:[%s17 + $0x8] sm:$0xff]
        %v4021 = vld [vmem:[%s18] sm:$0xff]
        %v4022 = vld [vmem:[%s18 + $0x8] sm:$0xff]
        %4024 = vset.pattern.permute.xlu0 0
        %4025 = vperm.xlu0 %4024, %v4021
        %v4026 = vpop.permute.xlu0 %4025
        %4029 = vset.pattern.permute.xlu0 0
        %4030 = vperm.xlu0 %4029, %v4022
        %v4031 = vpop.permute.xlu0 %4030
        %v4035 = vunpack.c.l.b16 %v4019
        %v4036 = vunpack.c.h.b16 %v4019
        %v4037 = vunpack.c.l.b16 %v4020
        %v4038 = vunpack.c.h.b16 %v4020
        %v4039 = vpack.c.b16 %v4037, %v4035
        %v4040 = vpack.c.b16 %v4038, %v4036
        %4042 = vrot.lane.b32.xlu0 %v3909, 21
        %v4043 = vpop.permute.xlu0 %4042
        %4044 = vrot.lane.b32.xlu0 %v3910, 21
        %v4045 = vpop.permute.xlu0 %4044
        %4046 = vrot.lane.b32.xlu0 %v3911, 21
        %v4047 = vpop.permute.xlu0 %4046
        %4048 = vrot.lane.b32.xlu0 %v3912, 21
        %v4049 = vpop.permute.xlu0 %4048
        %4050 = vrot.lane.b32.xlu0 %v3921, 21
        %v4051 = vpop.permute.xlu0 %4050
        %4052 = vrot.lane.b32.xlu0 %v3922, 21
        %v4053 = vpop.permute.xlu0 %4052
        %4054 = vrot.lane.b32.xlu0 %v3923, 21
        %v4055 = vpop.permute.xlu0 %4054
        %4056 = vrot.lane.b32.xlu0 %v3920, 21
        %v4057 = vpop.permute.xlu0 %4056
        %4058 = vrot.lane.b32.xlu0 %v3932, 21
        %v4059 = vpop.permute.xlu0 %4058
        %4060 = vrot.lane.b32.xlu0 %v3933, 21
        %v4061 = vpop.permute.xlu0 %4060
        %4062 = vrot.lane.b32.xlu0 %v3934, 21
        %v4063 = vpop.permute.xlu0 %4062
        %4064 = vrot.lane.b32.xlu0 %v3931, 21
        %v4065 = vpop.permute.xlu0 %4064
        %4066 = vrot.lane.b32.xlu0 %v3943, 21
        %v4067 = vpop.permute.xlu0 %4066
        %4068 = vrot.lane.b32.xlu0 %v3944, 21
        %v4069 = vpop.permute.xlu0 %4068
        %4070 = vrot.lane.b32.xlu0 %v3945, 21
        %v4071 = vpop.permute.xlu0 %4070
        %4072 = vrot.lane.b32.xlu0 %v3942, 21
        %v4073 = vpop.permute.xlu0 %4072
        %4074 = vrot.lane.b32.xlu0 %v3960, 21
        %v4075 = vpop.permute.xlu0 %4074
        %4076 = vrot.lane.b32.xlu0 %v3965, 21
        %v4077 = vpop.permute.xlu0 %4076
        %4078 = vrot.lane.b32.xlu0 %v3966, 21
        %v4079 = vpop.permute.xlu0 %4078
        %4080 = vrot.lane.b32.xlu0 %v3964, 21
        %v4081 = vpop.permute.xlu0 %4080
        %4082 = vrot.lane.b32.xlu0 %v3976, 21
        %v4083 = vpop.permute.xlu0 %4082
        %4084 = vrot.lane.b32.xlu0 %v3983, 21
        %v4085 = vpop.permute.xlu0 %4084
        %4086 = vrot.lane.b32.xlu0 %v3984, 21
        %v4087 = vpop.permute.xlu0 %4086
        %4088 = vrot.lane.b32.xlu0 %v3985, 21
        %v4089 = vpop.permute.xlu0 %4088
        %4090 = vrot.lane.b32.xlu0 %v3987, 21
        %v4091 = vpop.permute.xlu0 %4090
        %4092 = vrot.lane.b32.xlu0 %v3994, 21
        %v4093 = vpop.permute.xlu0 %4092
        %4094 = vrot.lane.b32.xlu0 %v3995, 21
        %v4095 = vpop.permute.xlu0 %4094
        %4096 = vrot.lane.b32.xlu0 %v3996, 21
        %v4097 = vpop.permute.xlu0 %4096
        %4098 = vrot.lane.b32.xlu0 %v3998, 21
        %v4099 = vpop.permute.xlu0 %4098
        %4100 = vrot.lane.b32.xlu0 %v4005, 21
        %v4101 = vpop.permute.xlu0 %4100
        %4102 = vrot.lane.b32.xlu0 %v4006, 21
        %v4103 = vpop.permute.xlu0 %4102
        %4104 = vrot.lane.b32.xlu0 %v4007, 21
        %v4105 = vpop.permute.xlu0 %4104
        %4106 = vrot.lane.b32.xlu0 %v4009, 21
        %v4107 = vpop.permute.xlu0 %4106
        %4108 = vrot.lane.b32.xlu0 %v4016, 21
        %v4109 = vpop.permute.xlu0 %4108
        %4110 = vrot.lane.b32.xlu0 %v4017, 21
        %v4111 = vpop.permute.xlu0 %4110
        %4112 = vrot.lane.b32.xlu0 %v4018, 21
        %v4113 = vpop.permute.xlu0 %4112
        %v4114 = vsel %vm2867, %v4043, %v4045
        %v4115 = vsel %vm2867, %v4045, %v4047
        %v4116 = vsel %vm2867, %v4047, %v4049
        %v4117 = vsel %vm2867, %v4051, %v4053
        %v4118 = vsel %vm2867, %v4053, %v4055
        %v4119 = vsel %vm2867, %v4055, %v4057
        %v4120 = vsel %vm2867, %v4059, %v4061
        %v4121 = vsel %vm2867, %v4061, %v4063
        %v4122 = vsel %vm2867, %v4063, %v4065
        %v4123 = vsel %vm2867, %v4067, %v4069
        %v4124 = vsel %vm2867, %v4069, %v4071
        %v4125 = vsel %vm2867, %v4071, %v4073
        %v4126 = vsel %vm2867, %v4075, %v4077
        %v4127 = vsel %vm2867, %v4077, %v4079
        %v4128 = vsel %vm2867, %v4079, %v4081
        %v4129 = vsel %vm2867, %v4083, %v4085
        %v4130 = vsel %vm2867, %v4085, %v4087
        %v4131 = vsel %vm2867, %v4087, %v4089
        %v4132 = vsel %vm2867, %v4091, %v4093
        %v4133 = vsel %vm2867, %v4093, %v4095
        %v4134 = vsel %vm2867, %v4095, %v4097
        %v4135 = vsel %vm2867, %v4099, %v4101
        %v4136 = vsel %vm2867, %v4101, %v4103
        %v4137 = vsel %vm2867, %v4103, %v4105
        %v4138 = vsel %vm2867, %v4107, %v4109
        %v4139 = vsel %vm2867, %v4109, %v4111
        %v4140 = vsel %vm2867, %v4111, %v4113
        %v4169 = vsel %vm1897, %v4040, 0
        %4171 = vmatpush.bf16.msra.mxu0 %v4135
        %4172 = vmatpush.bf16.msra.mxu0 %v4132
        %4173 = vmatpush.bf16.msra.mxu0 %v4129
        %4174 = vmatpush.bf16.msra.mxu0 %v4126
        %4175 = vmatpush.bf16.msra.mxu0 %v4123
        %4176 = vmatpush.bf16.msra.mxu0 %v4120
        %4177 = vmatpush.bf16.msra.mxu0 %v4117
        %4178 = vmatpush.bf16.msra.mxu0 %v4114
        %4179 = vmatmul.bf16.gmra.mxu0 %v4039
        %v4180 = vpop.f32.mrf.mxu0
        %v4181 = vadd.f32 %v4026, %v4180
        %v4182 = vpop.f32.mrf.mxu0
        %v4183 = vadd.f32 %v4031, %v4182
        %4184 = vdwg.mxu0
        %4185 = vmatpush.bf16.msra.mxu0 0
        %4186 = vmatpush.bf16.msra.mxu0 0
        %4187 = vmatpush.bf16.msra.mxu0 0
        %4188 = vmatpush.bf16.msra.mxu0 0
        %4189 = vmatpush.bf16.msra.mxu0 0
        %4190 = vmatpush.bf16.msra.mxu0 0
        %4191 = vmatpush.bf16.msra.mxu0 0
        %4192 = vmatpush.bf16.msra.mxu0 %v4138
        %4193 = vmatmul.bf16.gmra.mxu0 %v4169
        %v4194 = vpop.f32.mrf.mxu0
        %v4195 = vadd.f32 %v4181, %v4194
        %v4196 = vpop.f32.mrf.mxu0
        %v4197 = vadd.f32 %v4183, %v4196
        %4198 = vdwg.mxu0
        %4199 = vmatpush.bf16.msra.mxu0 %v4136
        %4200 = vmatpush.bf16.msra.mxu0 %v4133
        %4201 = vmatpush.bf16.msra.mxu0 %v4130
        %4202 = vmatpush.bf16.msra.mxu0 %v4127
        %4203 = vmatpush.bf16.msra.mxu0 %v4124
        %4204 = vmatpush.bf16.msra.mxu0 %v4121
        %4205 = vmatpush.bf16.msra.mxu0 %v4118
        %4206 = vmatpush.bf16.msra.mxu0 %v4115
        %4207 = vmatmul.bf16.gmra.mxu0 %v4039
        %v4208 = vpop.f32.mrf.mxu0
        %v4209 = vadd.f32 %v4026, %v4208
        %v4210 = vpop.f32.mrf.mxu0
        %v4211 = vadd.f32 %v4031, %v4210
        %4212 = vdwg.mxu0
        %4213 = vmatpush.bf16.msra.mxu0 0
        %4214 = vmatpush.bf16.msra.mxu0 0
        %4215 = vmatpush.bf16.msra.mxu0 0
        %4216 = vmatpush.bf16.msra.mxu0 0
        %4217 = vmatpush.bf16.msra.mxu0 0
        %4218 = vmatpush.bf16.msra.mxu0 0
        %4219 = vmatpush.bf16.msra.mxu0 0
        %4220 = vmatpush.bf16.msra.mxu0 %v4139
        %4221 = vmatmul.bf16.gmra.mxu0 %v4169
        %v4222 = vpop.f32.mrf.mxu0
        %v4223 = vadd.f32 %v4209, %v4222
        %v4224 = vpop.f32.mrf.mxu0
        %v4225 = vadd.f32 %v4211, %v4224
        %4226 = vdwg.mxu0
        %4227 = vmatpush.bf16.msra.mxu0 %v4137
        %4228 = vmatpush.bf16.msra.mxu0 %v4134
        %4229 = vmatpush.bf16.msra.mxu0 %v4131
        %4230 = vmatpush.bf16.msra.mxu0 %v4128
        %4231 = vmatpush.bf16.msra.mxu0 %v4125
        %4232 = vmatpush.bf16.msra.mxu0 %v4122
        %4233 = vmatpush.bf16.msra.mxu0 %v4119
        %4234 = vmatpush.bf16.msra.mxu0 %v4116
        %4235 = vmatmul.bf16.gmra.mxu0 %v4039
        %v4236 = vpop.f32.mrf.mxu0
        %v4237 = vadd.f32 %v4026, %v4236
        %v4238 = vpop.f32.mrf.mxu0
        %v4239 = vadd.f32 %v4031, %v4238
        %4240 = vdwg.mxu0
        %4241 = vmatpush.bf16.msra.mxu0 0
        %4242 = vmatpush.bf16.msra.mxu0 0
        %4243 = vmatpush.bf16.msra.mxu0 0
        %4244 = vmatpush.bf16.msra.mxu0 0
        %4245 = vmatpush.bf16.msra.mxu0 0
        %4246 = vmatpush.bf16.msra.mxu0 0
        %4247 = vmatpush.bf16.msra.mxu0 0
        %4248 = vmatpush.bf16.msra.mxu0 %v4140
        %4249 = vmatmul.bf16.gmra.mxu0 %v4169
        %v4250 = vpop.f32.mrf.mxu0
        %v4251 = vadd.f32 %v4237, %v4250
        %v4252 = vpop.f32.mrf.mxu0
        %v4253 = vadd.f32 %v4239, %v4252
        %4254 = vdwg.mxu0
        %v4255 = vld [vmem:[%s19] sm:$0xff]
        %v4256 = vld [vmem:[%s19 + $0x8] sm:$0xff]
        %vm4257 = vcmp.gt.f32.partialorder %v4195, 0.0
        %vm4258 = vcmp.gt.f32.partialorder %v4223, 0.0
        %vm4259 = vcmp.gt.f32.partialorder %v4251, 0.0
        %vm4260 = vcmp.gt.f32.partialorder %v4197, 0.0
        %vm4261 = vcmp.gt.f32.partialorder %v4225, 0.0
        %vm4262 = vcmp.gt.f32.partialorder %v4253, 0.0
        %4264 = vset.pattern.permute.xlu0 0
        %4265 = vperm.xlu0 %4264, %v4255
        %v4266 = vpop.permute.xlu0 %4265
        %4269 = vset.pattern.permute.xlu0 0
        %4270 = vperm.xlu0 %4269, %v4256
        %v4271 = vpop.permute.xlu0 %4270
        %v4273 = vmul.f32 %v4266, %v4195
        %v4274 = vmul.f32 %v4266, %v4223
        %v4275 = vmul.f32 %v4266, %v4251
        %v4276 = vmul.f32 %v4271, %v4197
        %v4277 = vmul.f32 %v4271, %v4225
        %v4278 = vmul.f32 %v4271, %v4253
        %v4279 = vsel %vm4257, %v4195, %v4273
        %v4280 = vsel %vm4258, %v4223, %v4274
        %v4281 = vsel %vm4259, %v4251, %v4275
        %v4282 = vsel %vm4260, %v4197, %v4276
        %v4283 = vsel %vm4261, %v4225, %v4277
        %v4284 = vsel %vm4262, %v4253, %v4278
        %v4285 = vmul.f32 %v4279, %v2379
        %v4286 = vmul.f32 %v4280, %v2380
        %v4287 = vmul.f32 %v4281, %v2381
        %v4288 = vmul.f32 %v4282, %v2379
        %v4289 = vmul.f32 %v4283, %v2380
        %v4290 = vmul.f32 %v4284, %v2381
        %v4291 = vpack.c.bf16 %v4286, %v4285
        %v4292 = vpack.c.bf16 %v4287, %v4287
        %v4293 = vpack.c.bf16 %v4289, %v4288
        %v4294 = vpack.c.bf16 %v4290, %v4290
        %4295 = vst [vmem:[#allocation2 + $0x4] sm:$0xff] %v4291
        %4296 = vst [vmem:[#allocation2 + $0xc] sm:$0xf] %v4292
        %4297 = vst [vmem:[#allocation2 + $0x18] sm:$0xff] %v4293
        %4298 = vst [vmem:[#allocation2 + $0x20] sm:$0xf] %v4294
        %v4299 = vld [vmem:[#allocation2 + $0x4] sm:$0xff]
        %v4300 = vld [vmem:[#allocation2 + $0xc] sm:$0xf]
        %v4301 = vld [vmem:[#allocation2 + $0x18] sm:$0xff]
        %v4302 = vld [vmem:[#allocation2 + $0x20] sm:$0xf]
        %v4303 = vld [vmem:[%s20] sm:$0xf]
        %v4304 = vld [vmem:[%s20 + $0x4] sm:$0xf]
        %v4305 = vld [vmem:[%s20 + $0x8] sm:$0xf]
        %v4306 = vld [vmem:[%s20 + $0xc] sm:$0xf]
        %v4307 = vld [vmem:[%s20 + $0x10] sm:$0xf]
        %v4308 = vld [vmem:[%s20 + $0x14] sm:$0xf]
        %v4309 = vld [vmem:[%s20 + $0x18] sm:$0xf]
        %v4310 = vld [vmem:[%s20 + $0x1c] sm:$0xf]
        %v4311 = vld [vmem:[%s21] sm:$0xff]
        %v4312 = vld [vmem:[%s21 + $0x8] sm:$0xff]
        %v4313 = vld [vmem:[%s21 + $0x10] sm:$0xff]
        %v4314 = vld [vmem:[%s21 + $0x18] sm:$0xff]
        %v4315 = vld [vmem:[%s21 + $0x20] sm:$0xff]
        %v4316 = vld [vmem:[%s21 + $0x28] sm:$0xff]
        %v4317 = vld [vmem:[%s21 + $0x30] sm:$0xff]
        %v4318 = vld [vmem:[%s21 + $0x38] sm:$0xff]
        %4320 = vset.pattern.permute.xlu0 0
        %4321 = vperm.xlu0 %4320, %v4311
        %v4322 = vpop.permute.xlu0 %4321
        %4325 = vset.pattern.permute.xlu0 0
        %4326 = vperm.xlu0 %4325, %v4312
        %v4327 = vpop.permute.xlu0 %4326
        %4330 = vset.pattern.permute.xlu0 0
        %4331 = vperm.xlu0 %4330, %v4313
        %v4332 = vpop.permute.xlu0 %4331
        %4335 = vset.pattern.permute.xlu0 0
        %4336 = vperm.xlu0 %4335, %v4314
        %v4337 = vpop.permute.xlu0 %4336
        %4340 = vset.pattern.permute.xlu0 0
        %4341 = vperm.xlu0 %4340, %v4315
        %v4342 = vpop.permute.xlu0 %4341
        %4345 = vset.pattern.permute.xlu0 0
        %4346 = vperm.xlu0 %4345, %v4316
        %v4347 = vpop.permute.xlu0 %4346
        %4350 = vset.pattern.permute.xlu0 0
        %4351 = vperm.xlu0 %4350, %v4317
        %v4352 = vpop.permute.xlu0 %4351
        %4355 = vset.pattern.permute.xlu0 0
        %4356 = vperm.xlu0 %4355, %v4318
        %v4357 = vpop.permute.xlu0 %4356
        %v4367 = vunpack.c.l.b16 %v4303
        %v4368 = vunpack.c.l.b16 %v4304
        %v4369 = vunpack.c.l.b16 %v4305
        %v4370 = vunpack.c.l.b16 %v4306
        %v4371 = vunpack.c.l.b16 %v4307
        %v4372 = vunpack.c.l.b16 %v4308
        %v4373 = vunpack.c.l.b16 %v4309
        %v4374 = vunpack.c.l.b16 %v4310
        %v4375 = vpack.c.b16 %v4368, %v4367
        %v4376 = vpack.c.b16 %v4370, %v4369
        %v4377 = vpack.c.b16 %v4372, %v4371
        %v4378 = vpack.c.b16 %v4374, %v4373
        %v4383 = vunpack.c.l.b16 %v4299
        %v4384 = vunpack.c.h.b16 %v4299
        %v4385 = vunpack.c.l.b16 %v4300
        %v4386 = vunpack.c.l.b16 %v4301
        %v4387 = vunpack.c.h.b16 %v4301
        %v4388 = vunpack.c.l.b16 %v4302
        %v4389 = vpack.c.b16 %v4386, %v4383
        %v4390 = vpack.c.b16 %v4387, %v4384
        %v4391 = vpack.c.b16 %v4388, %v4385
        %v4396 = vsel %vm1897, %v4375, 0
        %v4399 = vsel %vm1897, %v4376, 0
        %v4402 = vsel %vm1897, %v4377, 0
        %v4405 = vsel %vm1897, %v4378, 0
        %4407 = vmatpush.bf16.msra.mxu0 0
        %4408 = vmatpush.bf16.msra.mxu0 0
        %4409 = vmatpush.bf16.msra.mxu0 0
        %4410 = vmatpush.bf16.msra.mxu0 0
        %4411 = vmatpush.bf16.msra.mxu0 0
        %4412 = vmatpush.bf16.msra.mxu0 0
        %4413 = vmatpush.bf16.msra.mxu0 0
        %4414 = vmatpush.bf16.msra.mxu0 %v4389
        %4415 = vmatmul.bf16.gmra.mxu0 %v4396
        %v4416 = vpop.f32.mrf.mxu0
        %v4417 = vadd.f32 %v4322, %v4416
        %v4418 = vpop.f32.mrf.mxu0
        %v4419 = vadd.f32 %v4327, %v4418
        %4420 = vmatmul.bf16.gmra.mxu0 %v4399
        %v4421 = vpop.f32.mrf.mxu0
        %v4422 = vadd.f32 %v4332, %v4421
        %v4423 = vpop.f32.mrf.mxu0
        %v4424 = vadd.f32 %v4337, %v4423
        %4425 = vmatmul.bf16.gmra.mxu0 %v4402
        %v4426 = vpop.f32.mrf.mxu0
        %v4427 = vadd.f32 %v4342, %v4426
        %v4428 = vpop.f32.mrf.mxu0
        %v4429 = vadd.f32 %v4347, %v4428
        %4430 = vmatmul.bf16.gmra.mxu0 %v4405
        %v4431 = vpop.f32.mrf.mxu0
        %v4432 = vadd.f32 %v4352, %v4431
        %v4433 = vpop.f32.mrf.mxu0
        %v4434 = vadd.f32 %v4357, %v4433
        %4435 = vdwg.mxu0
        %4436 = vmatpush.bf16.msra.mxu0 0
        %4437 = vmatpush.bf16.msra.mxu0 0
        %4438 = vmatpush.bf16.msra.mxu0 0
        %4439 = vmatpush.bf16.msra.mxu0 0
        %4440 = vmatpush.bf16.msra.mxu0 0
        %4441 = vmatpush.bf16.msra.mxu0 0
        %4442 = vmatpush.bf16.msra.mxu0 0
        %4443 = vmatpush.bf16.msra.mxu0 %v4390
        %4444 = vmatmul.bf16.gmra.mxu0 %v4396
        %v4445 = vpop.f32.mrf.mxu0
        %v4446 = vadd.f32 %v4322, %v4445
        %v4447 = vpop.f32.mrf.mxu0
        %v4448 = vadd.f32 %v4327, %v4447
        %4449 = vmatmul.bf16.gmra.mxu0 %v4399
        %v4450 = vpop.f32.mrf.mxu0
        %v4451 = vadd.f32 %v4332, %v4450
        %v4452 = vpop.f32.mrf.mxu0
        %v4453 = vadd.f32 %v4337, %v4452
        %4454 = vmatmul.bf16.gmra.mxu0 %v4402
        %v4455 = vpop.f32.mrf.mxu0
        %v4456 = vadd.f32 %v4342, %v4455
        %v4457 = vpop.f32.mrf.mxu0
        %v4458 = vadd.f32 %v4347, %v4457
        %4459 = vmatmul.bf16.gmra.mxu0 %v4405
        %v4460 = vpop.f32.mrf.mxu0
        %v4461 = vadd.f32 %v4352, %v4460
        %v4462 = vpop.f32.mrf.mxu0
        %v4463 = vadd.f32 %v4357, %v4462
        %4464 = vdwg.mxu0
        %4465 = vmatpush.bf16.msra.mxu0 0
        %4466 = vmatpush.bf16.msra.mxu0 0
        %4467 = vmatpush.bf16.msra.mxu0 0
        %4468 = vmatpush.bf16.msra.mxu0 0
        %4469 = vmatpush.bf16.msra.mxu0 0
        %4470 = vmatpush.bf16.msra.mxu0 0
        %4471 = vmatpush.bf16.msra.mxu0 0
        %4472 = vmatpush.bf16.msra.mxu0 %v4391
        %4473 = vmatmul.bf16.gmra.mxu0 %v4396
        %v4474 = vpop.f32.mrf.mxu0
        %v4475 = vadd.f32 %v4322, %v4474
        %v4476 = vpop.f32.mrf.mxu0
        %v4477 = vadd.f32 %v4327, %v4476
        %4478 = vmatmul.bf16.gmra.mxu0 %v4399
        %v4479 = vpop.f32.mrf.mxu0
        %v4480 = vadd.f32 %v4332, %v4479
        %v4481 = vpop.f32.mrf.mxu0
        %v4482 = vadd.f32 %v4337, %v4481
        %4483 = vmatmul.bf16.gmra.mxu0 %v4402
        %v4484 = vpop.f32.mrf.mxu0
        %v4485 = vadd.f32 %v4342, %v4484
        %v4486 = vpop.f32.mrf.mxu0
        %v4487 = vadd.f32 %v4347, %v4486
        %4488 = vmatmul.bf16.gmra.mxu0 %v4405
        %v4489 = vpop.f32.mrf.mxu0
        %v4490 = vadd.f32 %v4352, %v4489
        %v4491 = vpop.f32.mrf.mxu0
        %v4492 = vadd.f32 %v4357, %v4491
        %4493 = vdwg.mxu0
        %v4494 = vld [vmem:[%s22] sm:$0xff]
        %v4495 = vld [vmem:[%s22 + $0x8] sm:$0xff]
        %v4496 = vld [vmem:[%s22 + $0x10] sm:$0xff]
        %v4497 = vld [vmem:[%s22 + $0x18] sm:$0xff]
        %v4498 = vld [vmem:[%s22 + $0x20] sm:$0xff]
        %v4499 = vld [vmem:[%s22 + $0x28] sm:$0xff]
        %v4500 = vld [vmem:[%s22 + $0x30] sm:$0xff]
        %v4501 = vld [vmem:[%s22 + $0x38] sm:$0xff]
        %vm4502 = vcmp.gt.f32.partialorder %v4417, 0.0
        %vm4503 = vcmp.gt.f32.partialorder %v4446, 0.0
        %vm4504 = vcmp.gt.f32.partialorder %v4475, 0.0
        %vm4505 = vcmp.gt.f32.partialorder %v4419, 0.0
        %vm4506 = vcmp.gt.f32.partialorder %v4448, 0.0
        %vm4507 = vcmp.gt.f32.partialorder %v4477, 0.0
        %vm4508 = vcmp.gt.f32.partialorder %v4422, 0.0
        %vm4509 = vcmp.gt.f32.partialorder %v4451, 0.0
        %vm4510 = vcmp.gt.f32.partialorder %v4480, 0.0
        %vm4511 = vcmp.gt.f32.partialorder %v4424, 0.0
        %vm4512 = vcmp.gt.f32.partialorder %v4453, 0.0
        %vm4513 = vcmp.gt.f32.partialorder %v4482, 0.0
        %vm4514 = vcmp.gt.f32.partialorder %v4427, 0.0
        %vm4515 = vcmp.gt.f32.partialorder %v4456, 0.0
        %vm4516 = vcmp.gt.f32.partialorder %v4485, 0.0
        %vm4517 = vcmp.gt.f32.partialorder %v4429, 0.0
        %vm4518 = vcmp.gt.f32.partialorder %v4458, 0.0
        %vm4519 = vcmp.gt.f32.partialorder %v4487, 0.0
        %vm4520 = vcmp.gt.f32.partialorder %v4432, 0.0
        %vm4521 = vcmp.gt.f32.partialorder %v4461, 0.0
        %vm4522 = vcmp.gt.f32.partialorder %v4490, 0.0
        %vm4523 = vcmp.gt.f32.partialorder %v4434, 0.0
        %vm4524 = vcmp.gt.f32.partialorder %v4463, 0.0
        %vm4525 = vcmp.gt.f32.partialorder %v4492, 0.0
        %4527 = vset.pattern.permute.xlu0 0
        %4528 = vperm.xlu0 %4527, %v4494
        %v4529 = vpop.permute.xlu0 %4528
        %4532 = vset.pattern.permute.xlu0 0
        %4533 = vperm.xlu0 %4532, %v4495
        %v4534 = vpop.permute.xlu0 %4533
        %4537 = vset.pattern.permute.xlu0 0
        %4538 = vperm.xlu0 %4537, %v4496
        %v4539 = vpop.permute.xlu0 %4538
        %4542 = vset.pattern.permute.xlu0 0
        %4543 = vperm.xlu0 %4542, %v4497
        %v4544 = vpop.permute.xlu0 %4543
        %4547 = vset.pattern.permute.xlu0 0
        %4548 = vperm.xlu0 %4547, %v4498
        %v4549 = vpop.permute.xlu0 %4548
        %4552 = vset.pattern.permute.xlu0 0
        %4553 = vperm.xlu0 %4552, %v4499
        %v4554 = vpop.permute.xlu0 %4553
        %4557 = vset.pattern.permute.xlu0 0
        %4558 = vperm.xlu0 %4557, %v4500
        %v4559 = vpop.permute.xlu0 %4558
        %4562 = vset.pattern.permute.xlu0 0
        %4563 = vperm.xlu0 %4562, %v4501
        %v4564 = vpop.permute.xlu0 %4563
        %v4566 = vmul.f32 %v4529, %v4417
        %v4567 = vmul.f32 %v4529, %v4446
        %v4568 = vmul.f32 %v4529, %v4475
        %v4569 = vmul.f32 %v4534, %v4419
        %v4570 = vmul.f32 %v4534, %v4448
        %v4571 = vmul.f32 %v4534, %v4477
        %v4572 = vmul.f32 %v4539, %v4422
        %v4573 = vmul.f32 %v4539, %v4451
        %v4574 = vmul.f32 %v4539, %v4480
        %v4575 = vmul.f32 %v4544, %v4424
        %v4576 = vmul.f32 %v4544, %v4453
        %v4577 = vmul.f32 %v4544, %v4482
        %v4578 = vmul.f32 %v4549, %v4427
        %v4579 = vmul.f32 %v4549, %v4456
        %v4580 = vmul.f32 %v4549, %v4485
        %v4581 = vmul.f32 %v4554, %v4429
        %v4582 = vmul.f32 %v4554, %v4458
        %v4583 = vmul.f32 %v4554, %v4487
        %v4584 = vmul.f32 %v4559, %v4432
        %v4585 = vmul.f32 %v4559, %v4461
        %v4586 = vmul.f32 %v4559, %v4490
        %v4587 = vmul.f32 %v4564, %v4434
        %v4588 = vmul.f32 %v4564, %v4463
        %v4589 = vmul.f32 %v4564, %v4492
        %v4590 = vsel %vm4502, %v4417, %v4566
        %v4591 = vsel %vm4503, %v4446, %v4567
        %v4592 = vsel %vm4504, %v4475, %v4568
        %v4593 = vsel %vm4505, %v4419, %v4569
        %v4594 = vsel %vm4506, %v4448, %v4570
        %v4595 = vsel %vm4507, %v4477, %v4571
        %v4596 = vsel %vm4508, %v4422, %v4572
        %v4597 = vsel %vm4509, %v4451, %v4573
        %v4598 = vsel %vm4510, %v4480, %v4574
        %v4599 = vsel %vm4511, %v4424, %v4575
        %v4600 = vsel %vm4512, %v4453, %v4576
        %v4601 = vsel %vm4513, %v4482, %v4577
        %v4602 = vsel %vm4514, %v4427, %v4578
        %v4603 = vsel %vm4515, %v4456, %v4579
        %v4604 = vsel %vm4516, %v4485, %v4580
        %v4605 = vsel %vm4517, %v4429, %v4581
        %v4606 = vsel %vm4518, %v4458, %v4582
        %v4607 = vsel %vm4519, %v4487, %v4583
        %v4608 = vsel %vm4520, %v4432, %v4584
        %v4609 = vsel %vm4521, %v4461, %v4585
        %v4610 = vsel %vm4522, %v4490, %v4586
        %v4611 = vsel %vm4523, %v4434, %v4587
        %v4612 = vsel %vm4524, %v4463, %v4588
        %v4613 = vsel %vm4525, %v4492, %v4589
        %v4614 = vmul.f32 %v4590, %v2379
        %v4615 = vmul.f32 %v4591, %v2380
        %v4616 = vmul.f32 %v4592, %v2381
        %v4617 = vmul.f32 %v4593, %v2379
        %v4618 = vmul.f32 %v4594, %v2380
        %v4619 = vmul.f32 %v4595, %v2381
        %v4620 = vmul.f32 %v4596, %v2379
        %v4621 = vmul.f32 %v4597, %v2380
        %v4622 = vmul.f32 %v4598, %v2381
        %v4623 = vmul.f32 %v4599, %v2379
        %v4624 = vmul.f32 %v4600, %v2380
        %v4625 = vmul.f32 %v4601, %v2381
        %v4626 = vmul.f32 %v4602, %v2379
        %v4627 = vmul.f32 %v4603, %v2380
        %v4628 = vmul.f32 %v4604, %v2381
        %v4629 = vmul.f32 %v4605, %v2379
        %v4630 = vmul.f32 %v4606, %v2380
        %v4631 = vmul.f32 %v4607, %v2381
        %v4632 = vmul.f32 %v4608, %v2379
        %v4633 = vmul.f32 %v4609, %v2380
        %v4634 = vmul.f32 %v4610, %v2381
        %v4635 = vmul.f32 %v4611, %v2379
        %v4636 = vmul.f32 %v4612, %v2380
        %v4637 = vmul.f32 %v4613, %v2381
        %v4638 = vpack.c.bf16 %v4615, %v4614
        %v4639 = vpack.c.bf16 %v4616, %v4616
        %v4640 = vpack.c.bf16 %v4618, %v4617
        %v4641 = vpack.c.bf16 %v4619, %v4619
        %v4642 = vpack.c.bf16 %v4621, %v4620
        %v4643 = vpack.c.bf16 %v4622, %v4622
        %v4644 = vpack.c.bf16 %v4624, %v4623
        %v4645 = vpack.c.bf16 %v4625, %v4625
        %v4646 = vpack.c.bf16 %v4627, %v4626
        %v4647 = vpack.c.bf16 %v4628, %v4628
        %v4648 = vpack.c.bf16 %v4630, %v4629
        %v4649 = vpack.c.bf16 %v4631, %v4631
        %v4650 = vpack.c.bf16 %v4633, %v4632
        %v4651 = vpack.c.bf16 %v4634, %v4634
        %v4652 = vpack.c.bf16 %v4636, %v4635
        %v4653 = vpack.c.bf16 %v4637, %v4637
        %4654 = vst [vmem:[#allocation3 + $0x4] sm:$0xff] %v4638
        %4655 = vst [vmem:[#allocation3 + $0xc] sm:$0xf] %v4639
        %4656 = vst [vmem:[#allocation3 + $0x18] sm:$0xff] %v4640
        %4657 = vst [vmem:[#allocation3 + $0x20] sm:$0xf] %v4641
        %4658 = vst [vmem:[#allocation3 + $0x2c] sm:$0xff] %v4642
        %4659 = vst [vmem:[#allocation3 + $0x34] sm:$0xf] %v4643
        %4660 = vst [vmem:[#allocation3 + $0x40] sm:$0xff] %v4644
        %4661 = vst [vmem:[#allocation3 + $0x48] sm:$0xf] %v4645
        %4662 = vst [vmem:[#allocation3 + $0x54] sm:$0xff] %v4646
        %4663 = vst [vmem:[#allocation3 + $0x5c] sm:$0xf] %v4647
        %4664 = vst [vmem:[#allocation3 + $0x68] sm:$0xff] %v4648
        %4665 = vst [vmem:[#allocation3 + $0x70] sm:$0xf] %v4649
        %4666 = vst [vmem:[#allocation3 + $0x7c] sm:$0xff] %v4650
        %4667 = vst [vmem:[#allocation3 + $0x84] sm:$0xf] %v4651
        %4668 = vst [vmem:[#allocation3 + $0x90] sm:$0xff] %v4652
        %4669 = vst [vmem:[#allocation3 + $0x98] sm:$0xf] %v4653
        %v4670 = vld [vmem:[#allocation3] sm:$0xff]
        %v4671 = vld [vmem:[#allocation3 + $0x8] sm:$0xff]
        %v4672 = vld [vmem:[#allocation3 + $0x14] sm:$0xff]
        %v4673 = vld [vmem:[#allocation3 + $0x1c] sm:$0xff]
        %v4674 = vld [vmem:[#allocation3 + $0x28] sm:$0xff]
        %v4675 = vld [vmem:[#allocation3 + $0x30] sm:$0xff]
        %v4676 = vld [vmem:[#allocation3 + $0x3c] sm:$0xff]
        %v4677 = vld [vmem:[#allocation3 + $0x44] sm:$0xff]
        %v4678 = vld [vmem:[#allocation3 + $0x50] sm:$0xff]
        %v4679 = vld [vmem:[#allocation3 + $0x58] sm:$0xff]
        %v4680 = vld [vmem:[#allocation3 + $0x64] sm:$0xff]
        %v4681 = vld [vmem:[#allocation3 + $0x6c] sm:$0xff]
        %v4682 = vld [vmem:[#allocation3 + $0x78] sm:$0xff]
        %v4683 = vld [vmem:[#allocation3 + $0x80] sm:$0xff]
        %v4684 = vld [vmem:[#allocation3 + $0x8c] sm:$0xff]
        %v4685 = vld [vmem:[#allocation3 + $0x94] sm:$0xff]
        %v4702 = vunpack.c.l.b16 %v4670
        %v4703 = vunpack.c.h.b16 %v4670
        %v4704 = vunpack.c.l.b16 %v4671
        %v4705 = vunpack.c.h.b16 %v4671
        %v4706 = vunpack.c.l.b16 %v4672
        %v4707 = vunpack.c.h.b16 %v4672
        %v4708 = vunpack.c.l.b16 %v4673
        %v4709 = vunpack.c.h.b16 %v4673
        %v4710 = vunpack.c.l.b16 %v4674
        %v4711 = vunpack.c.h.b16 %v4674
        %v4712 = vunpack.c.l.b16 %v4675
        %v4713 = vunpack.c.h.b16 %v4675
        %v4714 = vunpack.c.l.b16 %v4676
        %v4715 = vunpack.c.h.b16 %v4676
        %v4716 = vunpack.c.l.b16 %v4677
        %v4717 = vunpack.c.h.b16 %v4677
        %v4718 = vunpack.c.l.b16 %v4678
        %v4719 = vunpack.c.h.b16 %v4678
        %v4720 = vunpack.c.l.b16 %v4679
        %v4721 = vunpack.c.h.b16 %v4679
        %v4722 = vunpack.c.l.b16 %v4680
        %v4723 = vunpack.c.h.b16 %v4680
        %v4724 = vunpack.c.l.b16 %v4681
        %v4725 = vunpack.c.h.b16 %v4681
        %v4726 = vunpack.c.l.b16 %v4682
        %v4727 = vunpack.c.h.b16 %v4682
        %v4728 = vunpack.c.l.b16 %v4683
        %v4729 = vunpack.c.h.b16 %v4683
        %v4730 = vunpack.c.l.b16 %v4684
        %v4731 = vunpack.c.h.b16 %v4684
        %v4732 = vunpack.c.l.b16 %v4685
        %v4733 = vunpack.c.h.b16 %v4685
        %v4734 = vpack.c.b16 %v4706, %v4702
        %v4735 = vpack.c.b16 %v4707, %v4703
        %v4736 = vpack.c.b16 %v4708, %v4704
        %v4737 = vpack.c.b16 %v4709, %v4705
        %v4738 = vpack.c.b16 %v4714, %v4710
        %v4739 = vpack.c.b16 %v4715, %v4711
        %v4740 = vpack.c.b16 %v4716, %v4712
        %v4741 = vpack.c.b16 %v4717, %v4713
        %v4742 = vpack.c.b16 %v4722, %v4718
        %v4743 = vpack.c.b16 %v4723, %v4719
        %v4744 = vpack.c.b16 %v4724, %v4720
        %v4745 = vpack.c.b16 %v4725, %v4721
        %v4746 = vpack.c.b16 %v4730, %v4726
        %v4747 = vpack.c.b16 %v4731, %v4727
        %v4748 = vpack.c.b16 %v4732, %v4728
        %v4749 = vpack.c.b16 %v4733, %v4729
        %4750 = vrot.lane.b32.xlu0 %v4734, 127
        %v4751 = vpop.permute.xlu0 %4750
        %4752 = vrot.lane.b32.xlu0 %v4735, 127
        %v4753 = vpop.permute.xlu0 %4752
        %4754 = vrot.lane.b32.xlu0 %v4736, 127
        %v4755 = vpop.permute.xlu0 %4754
        %4756 = vrot.lane.b32.xlu0 %v4737, 127
        %v4757 = vpop.permute.xlu0 %4756
        %4758 = vrot.lane.b32.xlu0 %v4738, 127
        %v4759 = vpop.permute.xlu0 %4758
        %4760 = vrot.lane.b32.xlu0 %v4739, 127
        %v4761 = vpop.permute.xlu0 %4760
        %4762 = vrot.lane.b32.xlu0 %v4740, 127
        %v4763 = vpop.permute.xlu0 %4762
        %4764 = vrot.lane.b32.xlu0 %v4741, 127
        %v4765 = vpop.permute.xlu0 %4764
        %4766 = vrot.lane.b32.xlu0 %v4742, 127
        %v4767 = vpop.permute.xlu0 %4766
        %4768 = vrot.lane.b32.xlu0 %v4743, 127
        %v4769 = vpop.permute.xlu0 %4768
        %4770 = vrot.lane.b32.xlu0 %v4744, 127
        %v4771 = vpop.permute.xlu0 %4770
        %4772 = vrot.lane.b32.xlu0 %v4745, 127
        %v4773 = vpop.permute.xlu0 %4772
        %4774 = vrot.lane.b32.xlu0 %v4746, 127
        %v4775 = vpop.permute.xlu0 %4774
        %4776 = vrot.lane.b32.xlu0 %v4747, 127
        %v4777 = vpop.permute.xlu0 %4776
        %4778 = vrot.lane.b32.xlu0 %v4748, 127
        %v4779 = vpop.permute.xlu0 %4778
        %4780 = vrot.lane.b32.xlu0 %v4749, 127
        %v4781 = vpop.permute.xlu0 %4780
        %v4782 = vsel %vm1019, %v4751, %v4753
        %v4783 = vsel %vm1019, %v4753, %v4755
        %v4784 = vsel %vm1019, %v4755, %v4757
        %v4785 = vsel %vm1019, %v4759, %v4761
        %v4786 = vsel %vm1019, %v4761, %v4763
        %v4787 = vsel %vm1019, %v4763, %v4765
        %v4788 = vsel %vm1019, %v4767, %v4769
        %v4789 = vsel %vm1019, %v4769, %v4771
        %v4790 = vsel %vm1019, %v4771, %v4773
        %v4791 = vsel %vm1019, %v4775, %v4777
        %v4792 = vsel %vm1019, %v4777, %v4779
        %v4793 = vsel %vm1019, %v4779, %v4781
        %4794 = vrot.lane.b32.xlu0 %v4734, 126
        %v4795 = vpop.permute.xlu0 %4794
        %4796 = vrot.lane.b32.xlu0 %v4735, 126
        %v4797 = vpop.permute.xlu0 %4796
        %4798 = vrot.lane.b32.xlu0 %v4736, 126
        %v4799 = vpop.permute.xlu0 %4798
        %4800 = vrot.lane.b32.xlu0 %v4737, 126
        %v4801 = vpop.permute.xlu0 %4800
        %4802 = vrot.lane.b32.xlu0 %v4738, 126
        %v4803 = vpop.permute.xlu0 %4802
        %4804 = vrot.lane.b32.xlu0 %v4739, 126
        %v4805 = vpop.permute.xlu0 %4804
        %4806 = vrot.lane.b32.xlu0 %v4740, 126
        %v4807 = vpop.permute.xlu0 %4806
        %4808 = vrot.lane.b32.xlu0 %v4741, 126
        %v4809 = vpop.permute.xlu0 %4808
        %4810 = vrot.lane.b32.xlu0 %v4742, 126
        %v4811 = vpop.permute.xlu0 %4810
        %4812 = vrot.lane.b32.xlu0 %v4743, 126
        %v4813 = vpop.permute.xlu0 %4812
        %4814 = vrot.lane.b32.xlu0 %v4744, 126
        %v4815 = vpop.permute.xlu0 %4814
        %4816 = vrot.lane.b32.xlu0 %v4745, 126
        %v4817 = vpop.permute.xlu0 %4816
        %4818 = vrot.lane.b32.xlu0 %v4746, 126
        %v4819 = vpop.permute.xlu0 %4818
        %4820 = vrot.lane.b32.xlu0 %v4747, 126
        %v4821 = vpop.permute.xlu0 %4820
        %4822 = vrot.lane.b32.xlu0 %v4748, 126
        %v4823 = vpop.permute.xlu0 %4822
        %4824 = vrot.lane.b32.xlu0 %v4749, 126
        %v4825 = vpop.permute.xlu0 %4824
        %v4826 = vsel %vm1031, %v4795, %v4797
        %v4827 = vsel %vm1031, %v4797, %v4799
        %v4828 = vsel %vm1031, %v4799, %v4801
        %v4829 = vsel %vm1031, %v4803, %v4805
        %v4830 = vsel %vm1031, %v4805, %v4807
        %v4831 = vsel %vm1031, %v4807, %v4809
        %v4832 = vsel %vm1031, %v4811, %v4813
        %v4833 = vsel %vm1031, %v4813, %v4815
        %v4834 = vsel %vm1031, %v4815, %v4817
        %v4835 = vsel %vm1031, %v4819, %v4821
        %v4836 = vsel %vm1031, %v4821, %v4823
        %v4837 = vsel %vm1031, %v4823, %v4825
        %4838 = vrot.lane.b32.xlu0 %v4734, 125
        %v4839 = vpop.permute.xlu0 %4838
        %4840 = vrot.lane.b32.xlu0 %v4735, 125
        %v4841 = vpop.permute.xlu0 %4840
        %4842 = vrot.lane.b32.xlu0 %v4736, 125
        %v4843 = vpop.permute.xlu0 %4842
        %4844 = vrot.lane.b32.xlu0 %v4737, 125
        %v4845 = vpop.permute.xlu0 %4844
        %4846 = vrot.lane.b32.xlu0 %v4738, 125
        %v4847 = vpop.permute.xlu0 %4846
        %4848 = vrot.lane.b32.xlu0 %v4739, 125
        %v4849 = vpop.permute.xlu0 %4848
        %4850 = vrot.lane.b32.xlu0 %v4740, 125
        %v4851 = vpop.permute.xlu0 %4850
        %4852 = vrot.lane.b32.xlu0 %v4741, 125
        %v4853 = vpop.permute.xlu0 %4852
        %4854 = vrot.lane.b32.xlu0 %v4742, 125
        %v4855 = vpop.permute.xlu0 %4854
        %4856 = vrot.lane.b32.xlu0 %v4743, 125
        %v4857 = vpop.permute.xlu0 %4856
        %4858 = vrot.lane.b32.xlu0 %v4744, 125
        %v4859 = vpop.permute.xlu0 %4858
        %4860 = vrot.lane.b32.xlu0 %v4745, 125
        %v4861 = vpop.permute.xlu0 %4860
        %4862 = vrot.lane.b32.xlu0 %v4746, 125
        %v4863 = vpop.permute.xlu0 %4862
        %4864 = vrot.lane.b32.xlu0 %v4747, 125
        %v4865 = vpop.permute.xlu0 %4864
        %4866 = vrot.lane.b32.xlu0 %v4748, 125
        %v4867 = vpop.permute.xlu0 %4866
        %4868 = vrot.lane.b32.xlu0 %v4749, 125
        %v4869 = vpop.permute.xlu0 %4868
        %v4870 = vsel %vm1043, %v4839, %v4841
        %v4871 = vsel %vm1043, %v4841, %v4843
        %v4872 = vsel %vm1043, %v4843, %v4845
        %v4873 = vsel %vm1043, %v4847, %v4849
        %v4874 = vsel %vm1043, %v4849, %v4851
        %v4875 = vsel %vm1043, %v4851, %v4853
        %v4876 = vsel %vm1043, %v4855, %v4857
        %v4877 = vsel %vm1043, %v4857, %v4859
        %v4878 = vsel %vm1043, %v4859, %v4861
        %v4879 = vsel %vm1043, %v4863, %v4865
        %v4880 = vsel %vm1043, %v4865, %v4867
        %v4881 = vsel %vm1043, %v4867, %v4869
        %4882 = vrot.lane.b32.xlu0 %v4734, 124
        %v4883 = vpop.permute.xlu0 %4882
        %4884 = vrot.lane.b32.xlu0 %v4735, 124
        %v4885 = vpop.permute.xlu0 %4884
        %4886 = vrot.lane.b32.xlu0 %v4736, 124
        %v4887 = vpop.permute.xlu0 %4886
        %4888 = vrot.lane.b32.xlu0 %v4737, 124
        %v4889 = vpop.permute.xlu0 %4888
        %4890 = vrot.lane.b32.xlu0 %v4738, 124
        %v4891 = vpop.permute.xlu0 %4890
        %4892 = vrot.lane.b32.xlu0 %v4739, 124
        %v4893 = vpop.permute.xlu0 %4892
        %4894 = vrot.lane.b32.xlu0 %v4740, 124
        %v4895 = vpop.permute.xlu0 %4894
        %4896 = vrot.lane.b32.xlu0 %v4741, 124
        %v4897 = vpop.permute.xlu0 %4896
        %4898 = vrot.lane.b32.xlu0 %v4742, 124
        %v4899 = vpop.permute.xlu0 %4898
        %4900 = vrot.lane.b32.xlu0 %v4743, 124
        %v4901 = vpop.permute.xlu0 %4900
        %4902 = vrot.lane.b32.xlu0 %v4744, 124
        %v4903 = vpop.permute.xlu0 %4902
        %4904 = vrot.lane.b32.xlu0 %v4745, 124
        %v4905 = vpop.permute.xlu0 %4904
        %4906 = vrot.lane.b32.xlu0 %v4746, 124
        %v4907 = vpop.permute.xlu0 %4906
        %4908 = vrot.lane.b32.xlu0 %v4747, 124
        %v4909 = vpop.permute.xlu0 %4908
        %4910 = vrot.lane.b32.xlu0 %v4748, 124
        %v4911 = vpop.permute.xlu0 %4910
        %4912 = vrot.lane.b32.xlu0 %v4749, 124
        %v4913 = vpop.permute.xlu0 %4912
        %v4914 = vsel %vm1055, %v4883, %v4885
        %v4915 = vsel %vm1055, %v4885, %v4887
        %v4916 = vsel %vm1055, %v4887, %v4889
        %v4917 = vsel %vm1055, %v4891, %v4893
        %v4918 = vsel %vm1055, %v4893, %v4895
        %v4919 = vsel %vm1055, %v4895, %v4897
        %v4920 = vsel %vm1055, %v4899, %v4901
        %v4921 = vsel %vm1055, %v4901, %v4903
        %v4922 = vsel %vm1055, %v4903, %v4905
        %v4923 = vsel %vm1055, %v4907, %v4909
        %v4924 = vsel %vm1055, %v4909, %v4911
        %v4925 = vsel %vm1055, %v4911, %v4913
        %4926 = vrot.lane.b32.xlu0 %v4734, 108
        %v4927 = vpop.permute.xlu0 %4926
        %4928 = vrot.lane.b32.xlu0 %v4735, 108
        %v4929 = vpop.permute.xlu0 %4928
        %4930 = vrot.lane.b32.xlu0 %v4736, 108
        %v4931 = vpop.permute.xlu0 %4930
        %4932 = vrot.lane.b32.xlu0 %v4737, 108
        %v4933 = vpop.permute.xlu0 %4932
        %4934 = vrot.lane.b32.xlu0 %v4738, 108
        %v4935 = vpop.permute.xlu0 %4934
        %4936 = vrot.lane.b32.xlu0 %v4739, 108
        %v4937 = vpop.permute.xlu0 %4936
        %4938 = vrot.lane.b32.xlu0 %v4740, 108
        %v4939 = vpop.permute.xlu0 %4938
        %4940 = vrot.lane.b32.xlu0 %v4741, 108
        %v4941 = vpop.permute.xlu0 %4940
        %4942 = vrot.lane.b32.xlu0 %v4742, 108
        %v4943 = vpop.permute.xlu0 %4942
        %4944 = vrot.lane.b32.xlu0 %v4743, 108
        %v4945 = vpop.permute.xlu0 %4944
        %4946 = vrot.lane.b32.xlu0 %v4744, 108
        %v4947 = vpop.permute.xlu0 %4946
        %4948 = vrot.lane.b32.xlu0 %v4745, 108
        %v4949 = vpop.permute.xlu0 %4948
        %4950 = vrot.lane.b32.xlu0 %v4746, 108
        %v4951 = vpop.permute.xlu0 %4950
        %4952 = vrot.lane.b32.xlu0 %v4747, 108
        %v4953 = vpop.permute.xlu0 %4952
        %4954 = vrot.lane.b32.xlu0 %v4748, 108
        %v4955 = vpop.permute.xlu0 %4954
        %4956 = vrot.lane.b32.xlu0 %v4749, 108
        %v4957 = vpop.permute.xlu0 %4956
        %v4958 = vsel %vm1067, %v4927, %v4929
        %v4959 = vsel %vm1067, %v4929, %v4931
        %v4960 = vsel %vm1067, %v4931, %v4933
        %v4961 = vsel %vm1067, %v4935, %v4937
        %v4962 = vsel %vm1067, %v4937, %v4939
        %v4963 = vsel %vm1067, %v4939, %v4941
        %v4964 = vsel %vm1067, %v4943, %v4945
        %v4965 = vsel %vm1067, %v4945, %v4947
        %v4966 = vsel %vm1067, %v4947, %v4949
        %v4967 = vsel %vm1067, %v4951, %v4953
        %v4968 = vsel %vm1067, %v4953, %v4955
        %v4969 = vsel %vm1067, %v4955, %v4957
        %4970 = vrot.lane.b32.xlu0 %v4734, 107
        %v4971 = vpop.permute.xlu0 %4970
        %4972 = vrot.lane.b32.xlu0 %v4735, 107
        %v4973 = vpop.permute.xlu0 %4972
        %4974 = vrot.lane.b32.xlu0 %v4736, 107
        %v4975 = vpop.permute.xlu0 %4974
        %4976 = vrot.lane.b32.xlu0 %v4737, 107
        %v4977 = vpop.permute.xlu0 %4976
        %4978 = vrot.lane.b32.xlu0 %v4738, 107
        %v4979 = vpop.permute.xlu0 %4978
        %4980 = vrot.lane.b32.xlu0 %v4739, 107
        %v4981 = vpop.permute.xlu0 %4980
        %4982 = vrot.lane.b32.xlu0 %v4740, 107
        %v4983 = vpop.permute.xlu0 %4982
        %4984 = vrot.lane.b32.xlu0 %v4741, 107
        %v4985 = vpop.permute.xlu0 %4984
        %4986 = vrot.lane.b32.xlu0 %v4742, 107
        %v4987 = vpop.permute.xlu0 %4986
        %4988 = vrot.lane.b32.xlu0 %v4743, 107
        %v4989 = vpop.permute.xlu0 %4988
        %4990 = vrot.lane.b32.xlu0 %v4744, 107
        %v4991 = vpop.permute.xlu0 %4990
        %4992 = vrot.lane.b32.xlu0 %v4745, 107
        %v4993 = vpop.permute.xlu0 %4992
        %4994 = vrot.lane.b32.xlu0 %v4746, 107
        %v4995 = vpop.permute.xlu0 %4994
        %4996 = vrot.lane.b32.xlu0 %v4747, 107
        %v4997 = vpop.permute.xlu0 %4996
        %4998 = vrot.lane.b32.xlu0 %v4748, 107
        %v4999 = vpop.permute.xlu0 %4998
        %5000 = vrot.lane.b32.xlu0 %v4749, 107
        %v5001 = vpop.permute.xlu0 %5000
        %v5002 = vsel %vm1079, %v4971, %v4973
        %v5003 = vsel %vm1079, %v4973, %v4975
        %v5004 = vsel %vm1079, %v4975, %v4977
        %v5005 = vsel %vm1079, %v4979, %v4981
        %v5006 = vsel %vm1079, %v4981, %v4983
        %v5007 = vsel %vm1079, %v4983, %v4985
        %v5008 = vsel %vm1079, %v4987, %v4989
        %v5009 = vsel %vm1079, %v4989, %v4991
        %v5010 = vsel %vm1079, %v4991, %v4993
        %v5011 = vsel %vm1079, %v4995, %v4997
        %v5012 = vsel %vm1079, %v4997, %v4999
        %v5013 = vsel %vm1079, %v4999, %v5001
        %5014 = vrot.lane.b32.xlu0 %v4734, 106
        %v5015 = vpop.permute.xlu0 %5014
        %5016 = vrot.lane.b32.xlu0 %v4735, 106
        %v5017 = vpop.permute.xlu0 %5016
        %5018 = vrot.lane.b32.xlu0 %v4736, 106
        %v5019 = vpop.permute.xlu0 %5018
        %5020 = vrot.lane.b32.xlu0 %v4737, 106
        %v5021 = vpop.permute.xlu0 %5020
        %5022 = vrot.lane.b32.xlu0 %v4738, 106
        %v5023 = vpop.permute.xlu0 %5022
        %5024 = vrot.lane.b32.xlu0 %v4739, 106
        %v5025 = vpop.permute.xlu0 %5024
        %5026 = vrot.lane.b32.xlu0 %v4740, 106
        %v5027 = vpop.permute.xlu0 %5026
        %5028 = vrot.lane.b32.xlu0 %v4741, 106
        %v5029 = vpop.permute.xlu0 %5028
        %5030 = vrot.lane.b32.xlu0 %v4742, 106
        %v5031 = vpop.permute.xlu0 %5030
        %5032 = vrot.lane.b32.xlu0 %v4743, 106
        %v5033 = vpop.permute.xlu0 %5032
        %5034 = vrot.lane.b32.xlu0 %v4744, 106
        %v5035 = vpop.permute.xlu0 %5034
        %5036 = vrot.lane.b32.xlu0 %v4745, 106
        %v5037 = vpop.permute.xlu0 %5036
        %5038 = vrot.lane.b32.xlu0 %v4746, 106
        %v5039 = vpop.permute.xlu0 %5038
        %5040 = vrot.lane.b32.xlu0 %v4747, 106
        %v5041 = vpop.permute.xlu0 %5040
        %5042 = vrot.lane.b32.xlu0 %v4748, 106
        %v5043 = vpop.permute.xlu0 %5042
        %5044 = vrot.lane.b32.xlu0 %v4749, 106
        %v5045 = vpop.permute.xlu0 %5044
        %v5046 = vsel %vm1091, %v5015, %v5017
        %v5047 = vsel %vm1091, %v5017, %v5019
        %v5048 = vsel %vm1091, %v5019, %v5021
        %v5049 = vsel %vm1091, %v5023, %v5025
        %v5050 = vsel %vm1091, %v5025, %v5027
        %v5051 = vsel %vm1091, %v5027, %v5029
        %v5052 = vsel %vm1091, %v5031, %v5033
        %v5053 = vsel %vm1091, %v5033, %v5035
        %v5054 = vsel %vm1091, %v5035, %v5037
        %v5055 = vsel %vm1091, %v5039, %v5041
        %v5056 = vsel %vm1091, %v5041, %v5043
        %v5057 = vsel %vm1091, %v5043, %v5045
        %v5058 = vld [vmem:[#allocation4] sm:$0xff]
        %v5059 = vld [vmem:[#allocation4 + $0x8] sm:$0xff]
        %v5060 = vld [vmem:[#allocation4 + $0x34] sm:$0xff]
        %v5061 = vld [vmem:[#allocation4 + $0x3c] sm:$0xff]
        %v5062 = vld [vmem:[#allocation4 + $0x68] sm:$0xff]
        %v5063 = vld [vmem:[#allocation4 + $0x70] sm:$0xff]
        %v5064 = vld [vmem:[#allocation4 + $0x9c] sm:$0xff]
        %v5065 = vld [vmem:[#allocation4 + $0xa4] sm:$0xff]
        %v5066 = vld [vmem:[#allocation4 + $0xd0] sm:$0xff]
        %v5067 = vld [vmem:[#allocation4 + $0xd8] sm:$0xff]
        %v5068 = vld [vmem:[#allocation4 + $0x104] sm:$0xff]
        %v5069 = vld [vmem:[#allocation4 + $0x10c] sm:$0xff]
        %v5070 = vld [vmem:[#allocation4 + $0x138] sm:$0xff]
        %v5071 = vld [vmem:[#allocation4 + $0x140] sm:$0xff]
        %v5072 = vld [vmem:[#allocation4 + $0x16c] sm:$0xff]
        %v5073 = vld [vmem:[#allocation4 + $0x174] sm:$0xff]
        %v5074 = vld [vmem:[#allocation3 + $0x4] sm:$0xff]
        %v5075 = vld [vmem:[#allocation3 + $0xc] sm:$0xf]
        %v5076 = vld [vmem:[#allocation3 + $0x18] sm:$0xff]
        %v5077 = vld [vmem:[#allocation3 + $0x20] sm:$0xf]
        %v5078 = vld [vmem:[#allocation3 + $0x2c] sm:$0xff]
        %v5079 = vld [vmem:[#allocation3 + $0x34] sm:$0xf]
        %v5080 = vld [vmem:[#allocation3 + $0x40] sm:$0xff]
        %v5081 = vld [vmem:[#allocation3 + $0x48] sm:$0xf]
        %v5082 = vld [vmem:[#allocation3 + $0x54] sm:$0xff]
        %v5083 = vld [vmem:[#allocation3 + $0x5c] sm:$0xf]
        %v5084 = vld [vmem:[#allocation3 + $0x68] sm:$0xff]
        %v5085 = vld [vmem:[#allocation3 + $0x70] sm:$0xf]
        %v5086 = vld [vmem:[#allocation3 + $0x7c] sm:$0xff]
        %v5087 = vld [vmem:[#allocation3 + $0x84] sm:$0xf]
        %v5088 = vld [vmem:[#allocation3 + $0x90] sm:$0xff]
        %v5089 = vld [vmem:[#allocation3 + $0x98] sm:$0xf]
        %v5090 = vld [vmem:[#allocation3 + $0x4] sm:$0xff]
        %v5091 = vld [vmem:[#allocation3 + $0xc] sm:$0xff]
        %v5092 = vld [vmem:[#allocation3 + $0x18] sm:$0xff]
        %v5093 = vld [vmem:[#allocation3 + $0x20] sm:$0xff]
        %v5094 = vld [vmem:[#allocation3 + $0x2c] sm:$0xff]
        %v5095 = vld [vmem:[#allocation3 + $0x34] sm:$0xff]
        %v5096 = vld [vmem:[#allocation3 + $0x40] sm:$0xff]
        %v5097 = vld [vmem:[#allocation3 + $0x48] sm:$0xff]
        %v5098 = vld [vmem:[#allocation3 + $0x54] sm:$0xff]
        %v5099 = vld [vmem:[#allocation3 + $0x5c] sm:$0xff]
        %v5100 = vld [vmem:[#allocation3 + $0x68] sm:$0xff]
        %v5101 = vld [vmem:[#allocation3 + $0x70] sm:$0xff]
        %v5102 = vld [vmem:[#allocation3 + $0x7c] sm:$0xff]
        %v5103 = vld [vmem:[#allocation3 + $0x84] sm:$0xff]
        %v5104 = vld [vmem:[#allocation3 + $0x90] sm:$0xff]
        %v5105 = vld [vmem:[#allocation3 + $0x98] sm:$0xff]
        %5106 = vrot.lane.b32.xlu0 %v4734, 111
        %v5107 = vpop.permute.xlu0 %5106
        %5108 = vrot.lane.b32.xlu0 %v4735, 111
        %v5109 = vpop.permute.xlu0 %5108
        %5110 = vrot.lane.b32.xlu0 %v4736, 111
        %v5111 = vpop.permute.xlu0 %5110
        %5112 = vrot.lane.b32.xlu0 %v4737, 111
        %v5113 = vpop.permute.xlu0 %5112
        %5114 = vrot.lane.b32.xlu0 %v4738, 111
        %v5115 = vpop.permute.xlu0 %5114
        %5116 = vrot.lane.b32.xlu0 %v4739, 111
        %v5117 = vpop.permute.xlu0 %5116
        %5118 = vrot.lane.b32.xlu0 %v4740, 111
        %v5119 = vpop.permute.xlu0 %5118
        %5120 = vrot.lane.b32.xlu0 %v4741, 111
        %v5121 = vpop.permute.xlu0 %5120
        %5122 = vrot.lane.b32.xlu0 %v4742, 111
        %v5123 = vpop.permute.xlu0 %5122
        %5124 = vrot.lane.b32.xlu0 %v4743, 111
        %v5125 = vpop.permute.xlu0 %5124
        %5126 = vrot.lane.b32.xlu0 %v4744, 111
        %v5127 = vpop.permute.xlu0 %5126
        %5128 = vrot.lane.b32.xlu0 %v4745, 111
        %v5129 = vpop.permute.xlu0 %5128
        %5130 = vrot.lane.b32.xlu0 %v4746, 111
        %v5131 = vpop.permute.xlu0 %5130
        %5132 = vrot.lane.b32.xlu0 %v4747, 111
        %v5133 = vpop.permute.xlu0 %5132
        %5134 = vrot.lane.b32.xlu0 %v4748, 111
        %v5135 = vpop.permute.xlu0 %5134
        %5136 = vrot.lane.b32.xlu0 %v4749, 111
        %v5137 = vpop.permute.xlu0 %5136
        %vm5138 = vcmask 908288
        %v5139 = vsel %vm5138, %v5107, %v5109
        %v5140 = vsel %vm5138, %v5109, %v5111
        %v5141 = vsel %vm5138, %v5111, %v5113
        %v5142 = vsel %vm5138, %v5115, %v5117
        %v5143 = vsel %vm5138, %v5117, %v5119
        %v5144 = vsel %vm5138, %v5119, %v5121
        %v5145 = vsel %vm5138, %v5123, %v5125
        %v5146 = vsel %vm5138, %v5125, %v5127
        %v5147 = vsel %vm5138, %v5127, %v5129
        %v5148 = vsel %vm5138, %v5131, %v5133
        %v5149 = vsel %vm5138, %v5133, %v5135
        %v5150 = vsel %vm5138, %v5135, %v5137
        %5151 = vrot.lane.b32.xlu0 %v4734, 110
        %v5152 = vpop.permute.xlu0 %5151
        %5153 = vrot.lane.b32.xlu0 %v4735, 110
        %v5154 = vpop.permute.xlu0 %5153
        %5155 = vrot.lane.b32.xlu0 %v4736, 110
        %v5156 = vpop.permute.xlu0 %5155
        %5157 = vrot.lane.b32.xlu0 %v4737, 110
        %v5158 = vpop.permute.xlu0 %5157
        %5159 = vrot.lane.b32.xlu0 %v4738, 110
        %v5160 = vpop.permute.xlu0 %5159
        %5161 = vrot.lane.b32.xlu0 %v4739, 110
        %v5162 = vpop.permute.xlu0 %5161
        %5163 = vrot.lane.b32.xlu0 %v4740, 110
        %v5164 = vpop.permute.xlu0 %5163
        %5165 = vrot.lane.b32.xlu0 %v4741, 110
        %v5166 = vpop.permute.xlu0 %5165
        %5167 = vrot.lane.b32.xlu0 %v4742, 110
        %v5168 = vpop.permute.xlu0 %5167
        %5169 = vrot.lane.b32.xlu0 %v4743, 110
        %v5170 = vpop.permute.xlu0 %5169
        %5171 = vrot.lane.b32.xlu0 %v4744, 110
        %v5172 = vpop.permute.xlu0 %5171
        %5173 = vrot.lane.b32.xlu0 %v4745, 110
        %v5174 = vpop.permute.xlu0 %5173
        %5175 = vrot.lane.b32.xlu0 %v4746, 110
        %v5176 = vpop.permute.xlu0 %5175
        %5177 = vrot.lane.b32.xlu0 %v4747, 110
        %v5178 = vpop.permute.xlu0 %5177
        %5179 = vrot.lane.b32.xlu0 %v4748, 110
        %v5180 = vpop.permute.xlu0 %5179
        %5181 = vrot.lane.b32.xlu0 %v4749, 110
        %v5182 = vpop.permute.xlu0 %5181
        %vm5183 = vcmask 900096
        %v5184 = vsel %vm5183, %v5152, %v5154
        %v5185 = vsel %vm5183, %v5154, %v5156
        %v5186 = vsel %vm5183, %v5156, %v5158
        %v5187 = vsel %vm5183, %v5160, %v5162
        %v5188 = vsel %vm5183, %v5162, %v5164
        %v5189 = vsel %vm5183, %v5164, %v5166
        %v5190 = vsel %vm5183, %v5168, %v5170
        %v5191 = vsel %vm5183, %v5170, %v5172
        %v5192 = vsel %vm5183, %v5172, %v5174
        %v5193 = vsel %vm5183, %v5176, %v5178
        %v5194 = vsel %vm5183, %v5178, %v5180
        %v5195 = vsel %vm5183, %v5180, %v5182
        %v5212 = vunpack.c.l.b16 %v5074
        %v5213 = vunpack.c.h.b16 %v5074
        %v5214 = vunpack.c.l.b16 %v5075
        %v5215 = vunpack.c.l.b16 %v5076
        %v5216 = vunpack.c.h.b16 %v5076
        %v5217 = vunpack.c.l.b16 %v5077
        %v5218 = vunpack.c.l.b16 %v5078
        %v5219 = vunpack.c.h.b16 %v5078
        %v5220 = vunpack.c.l.b16 %v5079
        %v5221 = vunpack.c.l.b16 %v5080
        %v5222 = vunpack.c.h.b16 %v5080
        %v5223 = vunpack.c.l.b16 %v5081
        %v5224 = vunpack.c.l.b16 %v5082
        %v5225 = vunpack.c.h.b16 %v5082
        %v5226 = vunpack.c.l.b16 %v5083
        %v5227 = vunpack.c.l.b16 %v5084
        %v5228 = vunpack.c.h.b16 %v5084
        %v5229 = vunpack.c.l.b16 %v5085
        %v5230 = vunpack.c.l.b16 %v5086
        %v5231 = vunpack.c.h.b16 %v5086
        %v5232 = vunpack.c.l.b16 %v5087
        %v5233 = vunpack.c.l.b16 %v5088
        %v5234 = vunpack.c.h.b16 %v5088
        %v5235 = vunpack.c.l.b16 %v5089
        %v5236 = vpack.c.b16 %v5215, %v5212
        %v5237 = vpack.c.b16 %v5216, %v5213
        %v5238 = vpack.c.b16 %v5217, %v5214
        %v5239 = vpack.c.b16 %v5221, %v5218
        %v5240 = vpack.c.b16 %v5222, %v5219
        %v5241 = vpack.c.b16 %v5223, %v5220
        %v5242 = vpack.c.b16 %v5227, %v5224
        %v5243 = vpack.c.b16 %v5228, %v5225
        %v5244 = vpack.c.b16 %v5229, %v5226
        %v5245 = vpack.c.b16 %v5233, %v5230
        %v5246 = vpack.c.b16 %v5234, %v5231
        %v5247 = vpack.c.b16 %v5235, %v5232
        %5248 = vrot.lane.b32.xlu0 %v5236, 109
        %v5249 = vpop.permute.xlu0 %5248
        %5250 = vrot.lane.b32.xlu0 %v5237, 109
        %v5251 = vpop.permute.xlu0 %5250
        %5252 = vrot.lane.b32.xlu0 %v5238, 109
        %v5253 = vpop.permute.xlu0 %5252
        %5254 = vrot.lane.b32.xlu0 %v5239, 109
        %v5255 = vpop.permute.xlu0 %5254
        %5256 = vrot.lane.b32.xlu0 %v5240, 109
        %v5257 = vpop.permute.xlu0 %5256
        %5258 = vrot.lane.b32.xlu0 %v5241, 109
        %v5259 = vpop.permute.xlu0 %5258
        %5260 = vrot.lane.b32.xlu0 %v5242, 109
        %v5261 = vpop.permute.xlu0 %5260
        %5262 = vrot.lane.b32.xlu0 %v5243, 109
        %v5263 = vpop.permute.xlu0 %5262
        %5264 = vrot.lane.b32.xlu0 %v5244, 109
        %v5265 = vpop.permute.xlu0 %5264
        %5266 = vrot.lane.b32.xlu0 %v5245, 109
        %v5267 = vpop.permute.xlu0 %5266
        %5268 = vrot.lane.b32.xlu0 %v5246, 109
        %v5269 = vpop.permute.xlu0 %5268
        %5270 = vrot.lane.b32.xlu0 %v5247, 109
        %v5271 = vpop.permute.xlu0 %5270
        %v5272 = vsel %vm1258, %v5249, %v5251
        %v5273 = vsel %vm1258, %v5251, %v5253
        %v5274 = vsel %vm1258, %v5255, %v5257
        %v5275 = vsel %vm1258, %v5257, %v5259
        %v5276 = vsel %vm1258, %v5261, %v5263
        %v5277 = vsel %vm1258, %v5263, %v5265
        %v5278 = vsel %vm1258, %v5267, %v5269
        %v5279 = vsel %vm1258, %v5269, %v5271
        %v5296 = vunpack.c.l.b16 %v5090
        %v5297 = vunpack.c.h.b16 %v5090
        %v5298 = vunpack.c.l.b16 %v5091
        %v5299 = vunpack.c.h.b16 %v5091
        %v5300 = vunpack.c.l.b16 %v5092
        %v5301 = vunpack.c.h.b16 %v5092
        %v5302 = vunpack.c.l.b16 %v5093
        %v5303 = vunpack.c.h.b16 %v5093
        %v5304 = vunpack.c.l.b16 %v5094
        %v5305 = vunpack.c.h.b16 %v5094
        %v5306 = vunpack.c.l.b16 %v5095
        %v5307 = vunpack.c.h.b16 %v5095
        %v5308 = vunpack.c.l.b16 %v5096
        %v5309 = vunpack.c.h.b16 %v5096
        %v5310 = vunpack.c.l.b16 %v5097
        %v5311 = vunpack.c.h.b16 %v5097
        %v5312 = vunpack.c.l.b16 %v5098
        %v5313 = vunpack.c.h.b16 %v5098
        %v5314 = vunpack.c.l.b16 %v5099
        %v5315 = vunpack.c.h.b16 %v5099
        %v5316 = vunpack.c.l.b16 %v5100
        %v5317 = vunpack.c.h.b16 %v5100
        %v5318 = vunpack.c.l.b16 %v5101
        %v5319 = vunpack.c.h.b16 %v5101
        %v5320 = vunpack.c.l.b16 %v5102
        %v5321 = vunpack.c.h.b16 %v5102
        %v5322 = vunpack.c.l.b16 %v5103
        %v5323 = vunpack.c.h.b16 %v5103
        %v5324 = vunpack.c.l.b16 %v5104
        %v5325 = vunpack.c.h.b16 %v5104
        %v5326 = vunpack.c.l.b16 %v5105
        %v5327 = vunpack.c.h.b16 %v5105
        %v5328 = vpack.c.b16 %v5300, %v5296
        %v5329 = vpack.c.b16 %v5301, %v5297
        %v5330 = vpack.c.b16 %v5302, %v5298
        %v5331 = vpack.c.b16 %v5303, %v5299
        %v5332 = vpack.c.b16 %v5308, %v5304
        %v5333 = vpack.c.b16 %v5309, %v5305
        %v5334 = vpack.c.b16 %v5310, %v5306
        %v5335 = vpack.c.b16 %v5311, %v5307
        %v5336 = vpack.c.b16 %v5316, %v5312
        %v5337 = vpack.c.b16 %v5317, %v5313
        %v5338 = vpack.c.b16 %v5318, %v5314
        %v5339 = vpack.c.b16 %v5319, %v5315
        %v5340 = vpack.c.b16 %v5324, %v5320
        %v5341 = vpack.c.b16 %v5325, %v5321
        %v5342 = vpack.c.b16 %v5326, %v5322
        %v5343 = vpack.c.b16 %v5327, %v5323
        %5344 = vrot.lane.b32.xlu0 %v5328, 108
        %v5345 = vpop.permute.xlu0 %5344
        %5346 = vrot.lane.b32.xlu0 %v5329, 108
        %v5347 = vpop.permute.xlu0 %5346
        %5348 = vrot.lane.b32.xlu0 %v5330, 108
        %v5349 = vpop.permute.xlu0 %5348
        %5350 = vrot.lane.b32.xlu0 %v5331, 108
        %v5351 = vpop.permute.xlu0 %5350
        %5352 = vrot.lane.b32.xlu0 %v5332, 108
        %v5353 = vpop.permute.xlu0 %5352
        %5354 = vrot.lane.b32.xlu0 %v5333, 108
        %v5355 = vpop.permute.xlu0 %5354
        %5356 = vrot.lane.b32.xlu0 %v5334, 108
        %v5357 = vpop.permute.xlu0 %5356
        %5358 = vrot.lane.b32.xlu0 %v5335, 108
        %v5359 = vpop.permute.xlu0 %5358
        %5360 = vrot.lane.b32.xlu0 %v5336, 108
        %v5361 = vpop.permute.xlu0 %5360
        %5362 = vrot.lane.b32.xlu0 %v5337, 108
        %v5363 = vpop.permute.xlu0 %5362
        %5364 = vrot.lane.b32.xlu0 %v5338, 108
        %v5365 = vpop.permute.xlu0 %5364
        %5366 = vrot.lane.b32.xlu0 %v5339, 108
        %v5367 = vpop.permute.xlu0 %5366
        %5368 = vrot.lane.b32.xlu0 %v5340, 108
        %v5369 = vpop.permute.xlu0 %5368
        %5370 = vrot.lane.b32.xlu0 %v5341, 108
        %v5371 = vpop.permute.xlu0 %5370
        %5372 = vrot.lane.b32.xlu0 %v5342, 108
        %v5373 = vpop.permute.xlu0 %5372
        %5374 = vrot.lane.b32.xlu0 %v5343, 108
        %v5375 = vpop.permute.xlu0 %5374
        %v5376 = vsel %vm1067, %v5345, %v5347
        %v5377 = vsel %vm1067, %v5347, %v5349
        %v5378 = vsel %vm1067, %v5349, %v5351
        %v5379 = vsel %vm1067, %v5353, %v5355
        %v5380 = vsel %vm1067, %v5355, %v5357
        %v5381 = vsel %vm1067, %v5357, %v5359
        %v5382 = vsel %vm1067, %v5361, %v5363
        %v5383 = vsel %vm1067, %v5363, %v5365
        %v5384 = vsel %vm1067, %v5365, %v5367
        %v5385 = vsel %vm1067, %v5369, %v5371
        %v5386 = vsel %vm1067, %v5371, %v5373
        %v5387 = vsel %vm1067, %v5373, %v5375
        %5388 = vrot.lane.b32.xlu0 %v5328, 107
        %v5389 = vpop.permute.xlu0 %5388
        %5390 = vrot.lane.b32.xlu0 %v5329, 107
        %v5391 = vpop.permute.xlu0 %5390
        %5392 = vrot.lane.b32.xlu0 %v5330, 107
        %v5393 = vpop.permute.xlu0 %5392
        %5394 = vrot.lane.b32.xlu0 %v5331, 107
        %v5395 = vpop.permute.xlu0 %5394
        %5396 = vrot.lane.b32.xlu0 %v5332, 107
        %v5397 = vpop.permute.xlu0 %5396
        %5398 = vrot.lane.b32.xlu0 %v5333, 107
        %v5399 = vpop.permute.xlu0 %5398
        %5400 = vrot.lane.b32.xlu0 %v5334, 107
        %v5401 = vpop.permute.xlu0 %5400
        %5402 = vrot.lane.b32.xlu0 %v5335, 107
        %v5403 = vpop.permute.xlu0 %5402
        %5404 = vrot.lane.b32.xlu0 %v5336, 107
        %v5405 = vpop.permute.xlu0 %5404
        %5406 = vrot.lane.b32.xlu0 %v5337, 107
        %v5407 = vpop.permute.xlu0 %5406
        %5408 = vrot.lane.b32.xlu0 %v5338, 107
        %v5409 = vpop.permute.xlu0 %5408
        %5410 = vrot.lane.b32.xlu0 %v5339, 107
        %v5411 = vpop.permute.xlu0 %5410
        %5412 = vrot.lane.b32.xlu0 %v5340, 107
        %v5413 = vpop.permute.xlu0 %5412
        %5414 = vrot.lane.b32.xlu0 %v5341, 107
        %v5415 = vpop.permute.xlu0 %5414
        %5416 = vrot.lane.b32.xlu0 %v5342, 107
        %v5417 = vpop.permute.xlu0 %5416
        %5418 = vrot.lane.b32.xlu0 %v5343, 107
        %v5419 = vpop.permute.xlu0 %5418
        %v5420 = vsel %vm1079, %v5389, %v5391
        %v5421 = vsel %vm1079, %v5391, %v5393
        %v5422 = vsel %vm1079, %v5393, %v5395
        %v5423 = vsel %vm1079, %v5397, %v5399
        %v5424 = vsel %vm1079, %v5399, %v5401
        %v5425 = vsel %vm1079, %v5401, %v5403
        %v5426 = vsel %vm1079, %v5405, %v5407
        %v5427 = vsel %vm1079, %v5407, %v5409
        %v5428 = vsel %vm1079, %v5409, %v5411
        %v5429 = vsel %vm1079, %v5413, %v5415
        %v5430 = vsel %vm1079, %v5415, %v5417
        %v5431 = vsel %vm1079, %v5417, %v5419
        %5432 = vrot.lane.b32.xlu0 %v5328, 91
        %v5433 = vpop.permute.xlu0 %5432
        %5434 = vrot.lane.b32.xlu0 %v5329, 91
        %v5435 = vpop.permute.xlu0 %5434
        %5436 = vrot.lane.b32.xlu0 %v5330, 91
        %v5437 = vpop.permute.xlu0 %5436
        %5438 = vrot.lane.b32.xlu0 %v5331, 91
        %v5439 = vpop.permute.xlu0 %5438
        %5440 = vrot.lane.b32.xlu0 %v5332, 91
        %v5441 = vpop.permute.xlu0 %5440
        %5442 = vrot.lane.b32.xlu0 %v5333, 91
        %v5443 = vpop.permute.xlu0 %5442
        %5444 = vrot.lane.b32.xlu0 %v5334, 91
        %v5445 = vpop.permute.xlu0 %5444
        %5446 = vrot.lane.b32.xlu0 %v5335, 91
        %v5447 = vpop.permute.xlu0 %5446
        %5448 = vrot.lane.b32.xlu0 %v5336, 91
        %v5449 = vpop.permute.xlu0 %5448
        %5450 = vrot.lane.b32.xlu0 %v5337, 91
        %v5451 = vpop.permute.xlu0 %5450
        %5452 = vrot.lane.b32.xlu0 %v5338, 91
        %v5453 = vpop.permute.xlu0 %5452
        %5454 = vrot.lane.b32.xlu0 %v5339, 91
        %v5455 = vpop.permute.xlu0 %5454
        %5456 = vrot.lane.b32.xlu0 %v5340, 91
        %v5457 = vpop.permute.xlu0 %5456
        %5458 = vrot.lane.b32.xlu0 %v5341, 91
        %v5459 = vpop.permute.xlu0 %5458
        %5460 = vrot.lane.b32.xlu0 %v5342, 91
        %v5461 = vpop.permute.xlu0 %5460
        %5462 = vrot.lane.b32.xlu0 %v5343, 91
        %v5463 = vpop.permute.xlu0 %5462
        %vm5464 = vcmask 744448
        %v5465 = vsel %vm5464, %v5433, %v5435
        %v5466 = vsel %vm5464, %v5435, %v5437
        %v5467 = vsel %vm5464, %v5437, %v5439
        %v5468 = vsel %vm5464, %v5441, %v5443
        %v5469 = vsel %vm5464, %v5443, %v5445
        %v5470 = vsel %vm5464, %v5445, %v5447
        %v5471 = vsel %vm5464, %v5449, %v5451
        %v5472 = vsel %vm5464, %v5451, %v5453
        %v5473 = vsel %vm5464, %v5453, %v5455
        %v5474 = vsel %vm5464, %v5457, %v5459
        %v5475 = vsel %vm5464, %v5459, %v5461
        %v5476 = vsel %vm5464, %v5461, %v5463
        %v5477 = vld [vmem:[#allocation4 + $0x10] sm:$0xff]
        %v5478 = vld [vmem:[#allocation4 + $0x18] sm:$0xff]
        %v5479 = vld [vmem:[#allocation4 + $0x44] sm:$0xff]
        %v5480 = vld [vmem:[#allocation4 + $0x4c] sm:$0xff]
        %v5481 = vld [vmem:[#allocation4 + $0x78] sm:$0xff]
        %v5482 = vld [vmem:[#allocation4 + $0x80] sm:$0xff]
        %v5483 = vld [vmem:[#allocation4 + $0xac] sm:$0xff]
        %v5484 = vld [vmem:[#allocation4 + $0xb4] sm:$0xff]
        %v5485 = vld [vmem:[#allocation4 + $0xe0] sm:$0xff]
        %v5486 = vld [vmem:[#allocation4 + $0xe8] sm:$0xff]
        %v5487 = vld [vmem:[#allocation4 + $0x114] sm:$0xff]
        %v5488 = vld [vmem:[#allocation4 + $0x11c] sm:$0xff]
        %v5489 = vld [vmem:[#allocation4 + $0x148] sm:$0xff]
        %v5490 = vld [vmem:[#allocation4 + $0x150] sm:$0xff]
        %v5491 = vld [vmem:[#allocation4 + $0x17c] sm:$0xff]
        %v5492 = vld [vmem:[#allocation4 + $0x184] sm:$0xff]
        %v5509 = vunpack.c.l.b16 %v5477
        %v5510 = vunpack.c.h.b16 %v5477
        %v5511 = vunpack.c.l.b16 %v5478
        %v5512 = vunpack.c.h.b16 %v5478
        %v5513 = vunpack.c.l.b16 %v5479
        %v5514 = vunpack.c.h.b16 %v5479
        %v5515 = vunpack.c.l.b16 %v5480
        %v5516 = vunpack.c.h.b16 %v5480
        %v5517 = vunpack.c.l.b16 %v5481
        %v5518 = vunpack.c.h.b16 %v5481
        %v5519 = vunpack.c.l.b16 %v5482
        %v5520 = vunpack.c.h.b16 %v5482
        %v5521 = vunpack.c.l.b16 %v5483
        %v5522 = vunpack.c.h.b16 %v5483
        %v5523 = vunpack.c.l.b16 %v5484
        %v5524 = vunpack.c.h.b16 %v5484
        %v5525 = vunpack.c.l.b16 %v5485
        %v5526 = vunpack.c.h.b16 %v5485
        %v5527 = vunpack.c.l.b16 %v5486
        %v5528 = vunpack.c.h.b16 %v5486
        %v5529 = vunpack.c.l.b16 %v5487
        %v5530 = vunpack.c.h.b16 %v5487
        %v5531 = vunpack.c.l.b16 %v5488
        %v5532 = vunpack.c.h.b16 %v5488
        %v5533 = vunpack.c.l.b16 %v5489
        %v5534 = vunpack.c.h.b16 %v5489
        %v5535 = vunpack.c.l.b16 %v5490
        %v5536 = vunpack.c.h.b16 %v5490
        %v5537 = vunpack.c.l.b16 %v5491
        %v5538 = vunpack.c.h.b16 %v5491
        %v5539 = vunpack.c.l.b16 %v5492
        %v5540 = vunpack.c.h.b16 %v5492
        %v5541 = vpack.c.b16 %v5513, %v5509
        %v5542 = vpack.c.b16 %v5514, %v5510
        %v5543 = vpack.c.b16 %v5515, %v5511
        %v5544 = vpack.c.b16 %v5516, %v5512
        %v5545 = vpack.c.b16 %v5521, %v5517
        %v5546 = vpack.c.b16 %v5522, %v5518
        %v5547 = vpack.c.b16 %v5523, %v5519
        %v5548 = vpack.c.b16 %v5524, %v5520
        %v5549 = vpack.c.b16 %v5529, %v5525
        %v5550 = vpack.c.b16 %v5530, %v5526
        %v5551 = vpack.c.b16 %v5531, %v5527
        %v5552 = vpack.c.b16 %v5532, %v5528
        %v5553 = vpack.c.b16 %v5537, %v5533
        %v5554 = vpack.c.b16 %v5538, %v5534
        %v5555 = vpack.c.b16 %v5539, %v5535
        %v5556 = vpack.c.b16 %v5540, %v5536
        %5573 = vrot.lane.b32.xlu0 %v4734, 19
        %v5574 = vpop.permute.xlu0 %5573
        %5575 = vrot.lane.b32.xlu0 %v4735, 19
        %v5576 = vpop.permute.xlu0 %5575
        %5577 = vrot.lane.b32.xlu0 %v4736, 19
        %v5578 = vpop.permute.xlu0 %5577
        %5579 = vrot.lane.b32.xlu0 %v4737, 19
        %v5580 = vpop.permute.xlu0 %5579
        %5581 = vrot.lane.b32.xlu0 %v4738, 19
        %v5582 = vpop.permute.xlu0 %5581
        %5583 = vrot.lane.b32.xlu0 %v4739, 19
        %v5584 = vpop.permute.xlu0 %5583
        %5585 = vrot.lane.b32.xlu0 %v4740, 19
        %v5586 = vpop.permute.xlu0 %5585
        %5587 = vrot.lane.b32.xlu0 %v4741, 19
        %v5588 = vpop.permute.xlu0 %5587
        %5589 = vrot.lane.b32.xlu0 %v4742, 19
        %v5590 = vpop.permute.xlu0 %5589
        %5591 = vrot.lane.b32.xlu0 %v4743, 19
        %v5592 = vpop.permute.xlu0 %5591
        %5593 = vrot.lane.b32.xlu0 %v4744, 19
        %v5594 = vpop.permute.xlu0 %5593
        %5595 = vrot.lane.b32.xlu0 %v4745, 19
        %v5596 = vpop.permute.xlu0 %5595
        %5597 = vrot.lane.b32.xlu0 %v4746, 19
        %v5598 = vpop.permute.xlu0 %5597
        %5599 = vrot.lane.b32.xlu0 %v4747, 19
        %v5600 = vpop.permute.xlu0 %5599
        %5601 = vrot.lane.b32.xlu0 %v4748, 19
        %v5602 = vpop.permute.xlu0 %5601
        %5603 = vrot.lane.b32.xlu0 %v4749, 19
        %v5604 = vpop.permute.xlu0 %5603
        %5605 = vrot.lane.b32.xlu0 %v4782, 19
        %v5606 = vpop.permute.xlu0 %5605
        %5607 = vrot.lane.b32.xlu0 %v4783, 19
        %v5608 = vpop.permute.xlu0 %5607
        %5609 = vrot.lane.b32.xlu0 %v4784, 19
        %v5610 = vpop.permute.xlu0 %5609
        %5611 = vrot.lane.b32.xlu0 %v4757, 19
        %v5612 = vpop.permute.xlu0 %5611
        %5613 = vrot.lane.b32.xlu0 %v4785, 19
        %v5614 = vpop.permute.xlu0 %5613
        %5615 = vrot.lane.b32.xlu0 %v4786, 19
        %v5616 = vpop.permute.xlu0 %5615
        %5617 = vrot.lane.b32.xlu0 %v4787, 19
        %v5618 = vpop.permute.xlu0 %5617
        %5619 = vrot.lane.b32.xlu0 %v4765, 19
        %v5620 = vpop.permute.xlu0 %5619
        %5621 = vrot.lane.b32.xlu0 %v4788, 19
        %v5622 = vpop.permute.xlu0 %5621
        %5623 = vrot.lane.b32.xlu0 %v4789, 19
        %v5624 = vpop.permute.xlu0 %5623
        %5625 = vrot.lane.b32.xlu0 %v4790, 19
        %v5626 = vpop.permute.xlu0 %5625
        %5627 = vrot.lane.b32.xlu0 %v4773, 19
        %v5628 = vpop.permute.xlu0 %5627
        %5629 = vrot.lane.b32.xlu0 %v4791, 19
        %v5630 = vpop.permute.xlu0 %5629
        %5631 = vrot.lane.b32.xlu0 %v4792, 19
        %v5632 = vpop.permute.xlu0 %5631
        %5633 = vrot.lane.b32.xlu0 %v4793, 19
        %v5634 = vpop.permute.xlu0 %5633
        %5635 = vrot.lane.b32.xlu0 %v4781, 19
        %v5636 = vpop.permute.xlu0 %5635
        %5637 = vrot.lane.b32.xlu0 %v5139, 19
        %v5638 = vpop.permute.xlu0 %5637
        %5639 = vrot.lane.b32.xlu0 %v5140, 19
        %v5640 = vpop.permute.xlu0 %5639
        %5641 = vrot.lane.b32.xlu0 %v5141, 19
        %v5642 = vpop.permute.xlu0 %5641
        %5643 = vrot.lane.b32.xlu0 %v5113, 19
        %v5644 = vpop.permute.xlu0 %5643
        %5645 = vrot.lane.b32.xlu0 %v5142, 19
        %v5646 = vpop.permute.xlu0 %5645
        %5647 = vrot.lane.b32.xlu0 %v5143, 19
        %v5648 = vpop.permute.xlu0 %5647
        %5649 = vrot.lane.b32.xlu0 %v5144, 19
        %v5650 = vpop.permute.xlu0 %5649
        %5651 = vrot.lane.b32.xlu0 %v5121, 19
        %v5652 = vpop.permute.xlu0 %5651
        %5653 = vrot.lane.b32.xlu0 %v5145, 19
        %v5654 = vpop.permute.xlu0 %5653
        %5655 = vrot.lane.b32.xlu0 %v5146, 19
        %v5656 = vpop.permute.xlu0 %5655
        %5657 = vrot.lane.b32.xlu0 %v5147, 19
        %v5658 = vpop.permute.xlu0 %5657
        %5659 = vrot.lane.b32.xlu0 %v5129, 19
        %v5660 = vpop.permute.xlu0 %5659
        %5661 = vrot.lane.b32.xlu0 %v5148, 19
        %v5662 = vpop.permute.xlu0 %5661
        %5663 = vrot.lane.b32.xlu0 %v5149, 19
        %v5664 = vpop.permute.xlu0 %5663
        %5665 = vrot.lane.b32.xlu0 %v5150, 19
        %v5666 = vpop.permute.xlu0 %5665
        %5667 = vrot.lane.b32.xlu0 %v5137, 19
        %v5668 = vpop.permute.xlu0 %5667
        %5669 = vrot.lane.b32.xlu0 %v5184, 19
        %v5670 = vpop.permute.xlu0 %5669
        %5671 = vrot.lane.b32.xlu0 %v5185, 19
        %v5672 = vpop.permute.xlu0 %5671
        %5673 = vrot.lane.b32.xlu0 %v5186, 19
        %v5674 = vpop.permute.xlu0 %5673
        %5675 = vrot.lane.b32.xlu0 %v5158, 19
        %v5676 = vpop.permute.xlu0 %5675
        %5677 = vrot.lane.b32.xlu0 %v5187, 19
        %v5678 = vpop.permute.xlu0 %5677
        %5679 = vrot.lane.b32.xlu0 %v5188, 19
        %v5680 = vpop.permute.xlu0 %5679
        %5681 = vrot.lane.b32.xlu0 %v5189, 19
        %v5682 = vpop.permute.xlu0 %5681
        %5683 = vrot.lane.b32.xlu0 %v5166, 19
        %v5684 = vpop.permute.xlu0 %5683
        %5685 = vrot.lane.b32.xlu0 %v5190, 19
        %v5686 = vpop.permute.xlu0 %5685
        %5687 = vrot.lane.b32.xlu0 %v5191, 19
        %v5688 = vpop.permute.xlu0 %5687
        %5689 = vrot.lane.b32.xlu0 %v5192, 19
        %v5690 = vpop.permute.xlu0 %5689
        %5691 = vrot.lane.b32.xlu0 %v5174, 19
        %v5692 = vpop.permute.xlu0 %5691
        %5693 = vrot.lane.b32.xlu0 %v5193, 19
        %v5694 = vpop.permute.xlu0 %5693
        %5695 = vrot.lane.b32.xlu0 %v5194, 19
        %v5696 = vpop.permute.xlu0 %5695
        %5697 = vrot.lane.b32.xlu0 %v5195, 19
        %v5698 = vpop.permute.xlu0 %5697
        %5699 = vrot.lane.b32.xlu0 %v5182, 19
        %v5700 = vpop.permute.xlu0 %5699
        %5701 = vrot.lane.b32.xlu0 %v5249, 19
        %v5702 = vpop.permute.xlu0 %5701
        %5703 = vrot.lane.b32.xlu0 %v5272, 19
        %v5704 = vpop.permute.xlu0 %5703
        %5705 = vrot.lane.b32.xlu0 %v5273, 19
        %v5706 = vpop.permute.xlu0 %5705
        %5707 = vrot.lane.b32.xlu0 %v5253, 19
        %v5708 = vpop.permute.xlu0 %5707
        %5709 = vrot.lane.b32.xlu0 %v5255, 19
        %v5710 = vpop.permute.xlu0 %5709
        %5711 = vrot.lane.b32.xlu0 %v5274, 19
        %v5712 = vpop.permute.xlu0 %5711
        %5713 = vrot.lane.b32.xlu0 %v5275, 19
        %v5714 = vpop.permute.xlu0 %5713
        %5715 = vrot.lane.b32.xlu0 %v5259, 19
        %v5716 = vpop.permute.xlu0 %5715
        %5717 = vrot.lane.b32.xlu0 %v5261, 19
        %v5718 = vpop.permute.xlu0 %5717
        %5719 = vrot.lane.b32.xlu0 %v5276, 19
        %v5720 = vpop.permute.xlu0 %5719
        %5721 = vrot.lane.b32.xlu0 %v5277, 19
        %v5722 = vpop.permute.xlu0 %5721
        %5723 = vrot.lane.b32.xlu0 %v5265, 19
        %v5724 = vpop.permute.xlu0 %5723
        %5725 = vrot.lane.b32.xlu0 %v5267, 19
        %v5726 = vpop.permute.xlu0 %5725
        %5727 = vrot.lane.b32.xlu0 %v5278, 19
        %v5728 = vpop.permute.xlu0 %5727
        %5729 = vrot.lane.b32.xlu0 %v5279, 19
        %v5730 = vpop.permute.xlu0 %5729
        %5731 = vrot.lane.b32.xlu0 %v5271, 19
        %v5732 = vpop.permute.xlu0 %5731
        %5733 = vrot.lane.b32.xlu0 %v5345, 19
        %v5734 = vpop.permute.xlu0 %5733
        %5735 = vrot.lane.b32.xlu0 %v5376, 19
        %v5736 = vpop.permute.xlu0 %5735
        %5737 = vrot.lane.b32.xlu0 %v5377, 19
        %v5738 = vpop.permute.xlu0 %5737
        %5739 = vrot.lane.b32.xlu0 %v5378, 19
        %v5740 = vpop.permute.xlu0 %5739
        %5741 = vrot.lane.b32.xlu0 %v5353, 19
        %v5742 = vpop.permute.xlu0 %5741
        %5743 = vrot.lane.b32.xlu0 %v5379, 19
        %v5744 = vpop.permute.xlu0 %5743
        %5745 = vrot.lane.b32.xlu0 %v5380, 19
        %v5746 = vpop.permute.xlu0 %5745
        %5747 = vrot.lane.b32.xlu0 %v5381, 19
        %v5748 = vpop.permute.xlu0 %5747
        %5749 = vrot.lane.b32.xlu0 %v5361, 19
        %v5750 = vpop.permute.xlu0 %5749
        %5751 = vrot.lane.b32.xlu0 %v5382, 19
        %v5752 = vpop.permute.xlu0 %5751
        %5753 = vrot.lane.b32.xlu0 %v5383, 19
        %v5754 = vpop.permute.xlu0 %5753
        %5755 = vrot.lane.b32.xlu0 %v5384, 19
        %v5756 = vpop.permute.xlu0 %5755
        %5757 = vrot.lane.b32.xlu0 %v5369, 19
        %v5758 = vpop.permute.xlu0 %5757
        %5759 = vrot.lane.b32.xlu0 %v5385, 19
        %v5760 = vpop.permute.xlu0 %5759
        %5761 = vrot.lane.b32.xlu0 %v5386, 19
        %v5762 = vpop.permute.xlu0 %5761
        %5763 = vrot.lane.b32.xlu0 %v5387, 19
        %v5764 = vpop.permute.xlu0 %5763
        %5765 = vrot.lane.b32.xlu0 %v5389, 19
        %v5766 = vpop.permute.xlu0 %5765
        %5767 = vrot.lane.b32.xlu0 %v5420, 19
        %v5768 = vpop.permute.xlu0 %5767
        %5769 = vrot.lane.b32.xlu0 %v5421, 19
        %v5770 = vpop.permute.xlu0 %5769
        %5771 = vrot.lane.b32.xlu0 %v5422, 19
        %v5772 = vpop.permute.xlu0 %5771
        %5773 = vrot.lane.b32.xlu0 %v5397, 19
        %v5774 = vpop.permute.xlu0 %5773
        %5775 = vrot.lane.b32.xlu0 %v5423, 19
        %v5776 = vpop.permute.xlu0 %5775
        %5777 = vrot.lane.b32.xlu0 %v5424, 19
        %v5778 = vpop.permute.xlu0 %5777
        %5779 = vrot.lane.b32.xlu0 %v5425, 19
        %v5780 = vpop.permute.xlu0 %5779
        %5781 = vrot.lane.b32.xlu0 %v5405, 19
        %v5782 = vpop.permute.xlu0 %5781
        %5783 = vrot.lane.b32.xlu0 %v5426, 19
        %v5784 = vpop.permute.xlu0 %5783
        %5785 = vrot.lane.b32.xlu0 %v5427, 19
        %v5786 = vpop.permute.xlu0 %5785
        %5787 = vrot.lane.b32.xlu0 %v5428, 19
        %v5788 = vpop.permute.xlu0 %5787
        %5789 = vrot.lane.b32.xlu0 %v5413, 19
        %v5790 = vpop.permute.xlu0 %5789
        %5791 = vrot.lane.b32.xlu0 %v5429, 19
        %v5792 = vpop.permute.xlu0 %5791
        %5793 = vrot.lane.b32.xlu0 %v5430, 19
        %v5794 = vpop.permute.xlu0 %5793
        %5795 = vrot.lane.b32.xlu0 %v5431, 19
        %v5796 = vpop.permute.xlu0 %5795
        %5797 = vrot.lane.b32.xlu0 %v5433, 19
        %v5798 = vpop.permute.xlu0 %5797
        %5799 = vrot.lane.b32.xlu0 %v5465, 19
        %v5800 = vpop.permute.xlu0 %5799
        %5801 = vrot.lane.b32.xlu0 %v5466, 19
        %v5802 = vpop.permute.xlu0 %5801
        %5803 = vrot.lane.b32.xlu0 %v5467, 19
        %v5804 = vpop.permute.xlu0 %5803
        %5805 = vrot.lane.b32.xlu0 %v5441, 19
        %v5806 = vpop.permute.xlu0 %5805
        %5807 = vrot.lane.b32.xlu0 %v5468, 19
        %v5808 = vpop.permute.xlu0 %5807
        %5809 = vrot.lane.b32.xlu0 %v5469, 19
        %v5810 = vpop.permute.xlu0 %5809
        %5811 = vrot.lane.b32.xlu0 %v5470, 19
        %v5812 = vpop.permute.xlu0 %5811
        %5813 = vrot.lane.b32.xlu0 %v5449, 19
        %v5814 = vpop.permute.xlu0 %5813
        %5815 = vrot.lane.b32.xlu0 %v5471, 19
        %v5816 = vpop.permute.xlu0 %5815
        %5817 = vrot.lane.b32.xlu0 %v5472, 19
        %v5818 = vpop.permute.xlu0 %5817
        %5819 = vrot.lane.b32.xlu0 %v5473, 19
        %v5820 = vpop.permute.xlu0 %5819
        %5821 = vrot.lane.b32.xlu0 %v5457, 19
        %v5822 = vpop.permute.xlu0 %5821
        %5823 = vrot.lane.b32.xlu0 %v5474, 19
        %v5824 = vpop.permute.xlu0 %5823
        %5825 = vrot.lane.b32.xlu0 %v5475, 19
        %v5826 = vpop.permute.xlu0 %5825
        %5827 = vrot.lane.b32.xlu0 %v5476, 19
        %v5828 = vpop.permute.xlu0 %5827
        %vm5829 = vcmask 154624
        %v5830 = vsel %vm5829, %v5574, %v5576
        %v5831 = vsel %vm5829, %v5576, %v5578
        %v5832 = vsel %vm5829, %v5578, %v5580
        %v5833 = vsel %vm5829, %v5582, %v5584
        %v5834 = vsel %vm5829, %v5584, %v5586
        %v5835 = vsel %vm5829, %v5586, %v5588
        %v5836 = vsel %vm5829, %v5590, %v5592
        %v5837 = vsel %vm5829, %v5592, %v5594
        %v5838 = vsel %vm5829, %v5594, %v5596
        %v5839 = vsel %vm5829, %v5598, %v5600
        %v5840 = vsel %vm5829, %v5600, %v5602
        %v5841 = vsel %vm5829, %v5602, %v5604
        %v5842 = vsel %vm5829, %v5606, %v5608
        %v5843 = vsel %vm5829, %v5608, %v5610
        %v5844 = vsel %vm5829, %v5610, %v5612
        %v5845 = vsel %vm5829, %v5614, %v5616
        %v5846 = vsel %vm5829, %v5616, %v5618
        %v5847 = vsel %vm5829, %v5618, %v5620
        %v5848 = vsel %vm5829, %v5622, %v5624
        %v5849 = vsel %vm5829, %v5624, %v5626
        %v5850 = vsel %vm5829, %v5626, %v5628
        %v5851 = vsel %vm5829, %v5630, %v5632
        %v5852 = vsel %vm5829, %v5632, %v5634
        %v5853 = vsel %vm5829, %v5634, %v5636
        %v5854 = vsel %vm5829, %v5638, %v5640
        %v5855 = vsel %vm5829, %v5640, %v5642
        %v5856 = vsel %vm5829, %v5642, %v5644
        %v5857 = vsel %vm5829, %v5646, %v5648
        %v5858 = vsel %vm5829, %v5648, %v5650
        %v5859 = vsel %vm5829, %v5650, %v5652
        %v5860 = vsel %vm5829, %v5654, %v5656
        %v5861 = vsel %vm5829, %v5656, %v5658
        %v5862 = vsel %vm5829, %v5658, %v5660
        %v5863 = vsel %vm5829, %v5662, %v5664
        %v5864 = vsel %vm5829, %v5664, %v5666
        %v5865 = vsel %vm5829, %v5666, %v5668
        %v5866 = vsel %vm5829, %v5670, %v5672
        %v5867 = vsel %vm5829, %v5672, %v5674
        %v5868 = vsel %vm5829, %v5674, %v5676
        %v5869 = vsel %vm5829, %v5678, %v5680
        %v5870 = vsel %vm5829, %v5680, %v5682
        %v5871 = vsel %vm5829, %v5682, %v5684
        %v5872 = vsel %vm5829, %v5686, %v5688
        %v5873 = vsel %vm5829, %v5688, %v5690
        %v5874 = vsel %vm5829, %v5690, %v5692
        %v5875 = vsel %vm5829, %v5694, %v5696
        %v5876 = vsel %vm5829, %v5696, %v5698
        %v5877 = vsel %vm5829, %v5698, %v5700
        %v5878 = vsel %vm5829, %v5702, %v5704
        %v5879 = vsel %vm5829, %v5704, %v5706
        %v5880 = vsel %vm5829, %v5706, %v5708
        %v5881 = vsel %vm5829, %v5710, %v5712
        %v5882 = vsel %vm5829, %v5712, %v5714
        %v5883 = vsel %vm5829, %v5714, %v5716
        %v5884 = vsel %vm5829, %v5718, %v5720
        %v5885 = vsel %vm5829, %v5720, %v5722
        %v5886 = vsel %vm5829, %v5722, %v5724
        %v5887 = vsel %vm5829, %v5726, %v5728
        %v5888 = vsel %vm5829, %v5728, %v5730
        %v5889 = vsel %vm5829, %v5730, %v5732
        %v5890 = vsel %vm5829, %v5734, %v5736
        %v5891 = vsel %vm5829, %v5736, %v5738
        %v5892 = vsel %vm5829, %v5738, %v5740
        %v5893 = vsel %vm5829, %v5742, %v5744
        %v5894 = vsel %vm5829, %v5744, %v5746
        %v5895 = vsel %vm5829, %v5746, %v5748
        %v5896 = vsel %vm5829, %v5750, %v5752
        %v5897 = vsel %vm5829, %v5752, %v5754
        %v5898 = vsel %vm5829, %v5754, %v5756
        %v5899 = vsel %vm5829, %v5758, %v5760
        %v5900 = vsel %vm5829, %v5760, %v5762
        %v5901 = vsel %vm5829, %v5762, %v5764
        %v5902 = vsel %vm5829, %v5766, %v5768
        %v5903 = vsel %vm5829, %v5768, %v5770
        %v5904 = vsel %vm5829, %v5770, %v5772
        %v5905 = vsel %vm5829, %v5774, %v5776
        %v5906 = vsel %vm5829, %v5776, %v5778
        %v5907 = vsel %vm5829, %v5778, %v5780
        %v5908 = vsel %vm5829, %v5782, %v5784
        %v5909 = vsel %vm5829, %v5784, %v5786
        %v5910 = vsel %vm5829, %v5786, %v5788
        %v5911 = vsel %vm5829, %v5790, %v5792
        %v5912 = vsel %vm5829, %v5792, %v5794
        %v5913 = vsel %vm5829, %v5794, %v5796
        %v5914 = vsel %vm5829, %v5798, %v5800
        %v5915 = vsel %vm5829, %v5800, %v5802
        %v5916 = vsel %vm5829, %v5802, %v5804
        %v5917 = vsel %vm5829, %v5806, %v5808
        %v5918 = vsel %vm5829, %v5808, %v5810
        %v5919 = vsel %vm5829, %v5810, %v5812
        %v5920 = vsel %vm5829, %v5814, %v5816
        %v5921 = vsel %vm5829, %v5816, %v5818
        %v5922 = vsel %vm5829, %v5818, %v5820
        %v5923 = vsel %vm5829, %v5822, %v5824
        %v5924 = vsel %vm5829, %v5824, %v5826
        %v5925 = vsel %vm5829, %v5826, %v5828
        %6022 = vmatpush.bf16.msra.mxu0 %v5851
        %6023 = vmatpush.bf16.msra.mxu0 %v5848
        %6024 = vmatpush.bf16.msra.mxu0 %v5845
        %6025 = vmatpush.bf16.msra.mxu0 %v5842
        %6026 = vmatpush.bf16.msra.mxu0 %v5839
        %6027 = vmatpush.bf16.msra.mxu0 %v5836
        %6028 = vmatpush.bf16.msra.mxu0 %v5833
        %6029 = vmatpush.bf16.msra.mxu0 %v5830
        %6030 = vmatmul.bf16.gmra.mxu0 %v5541
        %v6031 = vpop.f32.mrf.mxu0
        %v6032 = vadd.f32 0.0, %v6031
        %v6033 = vpop.f32.mrf.mxu0
        %6034 = vmatmul.bf16.gmra.mxu0 %v5545
        %v6035 = vpop.f32.mrf.mxu0
        %v6036 = vadd.f32 0.0, %v6035
        %v6037 = vpop.f32.mrf.mxu0
        %6038 = vmatmul.bf16.gmra.mxu0 %v5549
        %v6039 = vpop.f32.mrf.mxu0
        %v6040 = vadd.f32 0.0, %v6039
        %v6041 = vpop.f32.mrf.mxu0
        %6042 = vmatmul.bf16.gmra.mxu0 %v5553
        %v6043 = vpop.f32.mrf.mxu0
        %v6044 = vadd.f32 0.0, %v6043
        %v6045 = vpop.f32.mrf.mxu0
        %6046 = vdwg.mxu0
        %6047 = vmatpush.bf16.msra.mxu0 %v5875
        %6048 = vmatpush.bf16.msra.mxu0 %v5872
        %6049 = vmatpush.bf16.msra.mxu0 %v5869
        %6050 = vmatpush.bf16.msra.mxu0 %v5866
        %6051 = vmatpush.bf16.msra.mxu0 %v5863
        %6052 = vmatpush.bf16.msra.mxu0 %v5860
        %6053 = vmatpush.bf16.msra.mxu0 %v5857
        %6054 = vmatpush.bf16.msra.mxu0 %v5854
        %6055 = vmatmul.bf16.gmra.mxu0 %v5542
        %v6056 = vpop.f32.mrf.mxu0
        %v6057 = vadd.f32 %v6032, %v6056
        %v6058 = vpop.f32.mrf.mxu0
        %6059 = vmatmul.bf16.gmra.mxu0 %v5546
        %v6060 = vpop.f32.mrf.mxu0
        %v6061 = vadd.f32 %v6036, %v6060
        %v6062 = vpop.f32.mrf.mxu0
        %6063 = vmatmul.bf16.gmra.mxu0 %v5550
        %v6064 = vpop.f32.mrf.mxu0
        %v6065 = vadd.f32 %v6040, %v6064
        %v6066 = vpop.f32.mrf.mxu0
        %6067 = vmatmul.bf16.gmra.mxu0 %v5554
        %v6068 = vpop.f32.mrf.mxu0
        %v6069 = vadd.f32 %v6044, %v6068
        %v6070 = vpop.f32.mrf.mxu0
        %6071 = vdwg.mxu0
        %6072 = vmatpush.bf16.msra.mxu0 %v5899
        %6073 = vmatpush.bf16.msra.mxu0 %v5896
        %6074 = vmatpush.bf16.msra.mxu0 %v5893
        %6075 = vmatpush.bf16.msra.mxu0 %v5890
        %6076 = vmatpush.bf16.msra.mxu0 %v5887
        %6077 = vmatpush.bf16.msra.mxu0 %v5884
        %6078 = vmatpush.bf16.msra.mxu0 %v5881
        %6079 = vmatpush.bf16.msra.mxu0 %v5878
        %6080 = vmatmul.bf16.gmra.mxu0 %v5543
        %v6081 = vpop.f32.mrf.mxu0
        %v6082 = vadd.f32 %v6057, %v6081
        %v6083 = vpop.f32.mrf.mxu0
        %6084 = vmatmul.bf16.gmra.mxu0 %v5547
        %v6085 = vpop.f32.mrf.mxu0
        %v6086 = vadd.f32 %v6061, %v6085
        %v6087 = vpop.f32.mrf.mxu0
        %6088 = vmatmul.bf16.gmra.mxu0 %v5551
        %v6089 = vpop.f32.mrf.mxu0
        %v6090 = vadd.f32 %v6065, %v6089
        %v6091 = vpop.f32.mrf.mxu0
        %6092 = vmatmul.bf16.gmra.mxu0 %v5555
        %v6093 = vpop.f32.mrf.mxu0
        %v6094 = vadd.f32 %v6069, %v6093
        %v6095 = vpop.f32.mrf.mxu0
        %6096 = vdwg.mxu0
        %6097 = vmatpush.bf16.msra.mxu0 %v5923
        %6098 = vmatpush.bf16.msra.mxu0 %v5920
        %6099 = vmatpush.bf16.msra.mxu0 %v5917
        %6100 = vmatpush.bf16.msra.mxu0 %v5914
        %6101 = vmatpush.bf16.msra.mxu0 %v5911
        %6102 = vmatpush.bf16.msra.mxu0 %v5908
        %6103 = vmatpush.bf16.msra.mxu0 %v5905
        %6104 = vmatpush.bf16.msra.mxu0 %v5902
        %6105 = vmatmul.bf16.gmra.mxu0 %v5544
        %v6106 = vpop.f32.mrf.mxu0
        %v6107 = vadd.f32 %v6082, %v6106
        %v6108 = vpop.f32.mrf.mxu0
        %6109 = vmatmul.bf16.gmra.mxu0 %v5548
        %v6110 = vpop.f32.mrf.mxu0
        %v6111 = vadd.f32 %v6086, %v6110
        %v6112 = vpop.f32.mrf.mxu0
        %6113 = vmatmul.bf16.gmra.mxu0 %v5552
        %v6114 = vpop.f32.mrf.mxu0
        %v6115 = vadd.f32 %v6090, %v6114
        %v6116 = vpop.f32.mrf.mxu0
        %6117 = vmatmul.bf16.gmra.mxu0 %v5556
        %v6118 = vpop.f32.mrf.mxu0
        %v6119 = vadd.f32 %v6094, %v6118
        %v6120 = vpop.f32.mrf.mxu0
        %6121 = vdwg.mxu0
        %6122 = vmatpush.bf16.msra.mxu0 %v5852
        %6123 = vmatpush.bf16.msra.mxu0 %v5849
        %6124 = vmatpush.bf16.msra.mxu0 %v5846
        %6125 = vmatpush.bf16.msra.mxu0 %v5843
        %6126 = vmatpush.bf16.msra.mxu0 %v5840
        %6127 = vmatpush.bf16.msra.mxu0 %v5837
        %6128 = vmatpush.bf16.msra.mxu0 %v5834
        %6129 = vmatpush.bf16.msra.mxu0 %v5831
        %6130 = vmatmul.bf16.gmra.mxu0 %v5541
        %v6131 = vpop.f32.mrf.mxu0
        %v6132 = vadd.f32 0.0, %v6131
        %v6133 = vpop.f32.mrf.mxu0
        %6134 = vmatmul.bf16.gmra.mxu0 %v5545
        %v6135 = vpop.f32.mrf.mxu0
        %v6136 = vadd.f32 0.0, %v6135
        %v6137 = vpop.f32.mrf.mxu0
        %6138 = vmatmul.bf16.gmra.mxu0 %v5549
        %v6139 = vpop.f32.mrf.mxu0
        %v6140 = vadd.f32 0.0, %v6139
        %v6141 = vpop.f32.mrf.mxu0
        %6142 = vmatmul.bf16.gmra.mxu0 %v5553
        %v6143 = vpop.f32.mrf.mxu0
        %v6144 = vadd.f32 0.0, %v6143
        %v6145 = vpop.f32.mrf.mxu0
        %6146 = vdwg.mxu0
        %6147 = vmatpush.bf16.msra.mxu0 %v5876
        %6148 = vmatpush.bf16.msra.mxu0 %v5873
        %6149 = vmatpush.bf16.msra.mxu0 %v5870
        %6150 = vmatpush.bf16.msra.mxu0 %v5867
        %6151 = vmatpush.bf16.msra.mxu0 %v5864
        %6152 = vmatpush.bf16.msra.mxu0 %v5861
        %6153 = vmatpush.bf16.msra.mxu0 %v5858
        %6154 = vmatpush.bf16.msra.mxu0 %v5855
        %6155 = vmatmul.bf16.gmra.mxu0 %v5542
        %v6156 = vpop.f32.mrf.mxu0
        %v6157 = vadd.f32 %v6132, %v6156
        %v6158 = vpop.f32.mrf.mxu0
        %6159 = vmatmul.bf16.gmra.mxu0 %v5546
        %v6160 = vpop.f32.mrf.mxu0
        %v6161 = vadd.f32 %v6136, %v6160
        %v6162 = vpop.f32.mrf.mxu0
        %6163 = vmatmul.bf16.gmra.mxu0 %v5550
        %v6164 = vpop.f32.mrf.mxu0
        %v6165 = vadd.f32 %v6140, %v6164
        %v6166 = vpop.f32.mrf.mxu0
        %6167 = vmatmul.bf16.gmra.mxu0 %v5554
        %v6168 = vpop.f32.mrf.mxu0
        %v6169 = vadd.f32 %v6144, %v6168
        %v6170 = vpop.f32.mrf.mxu0
        %6171 = vdwg.mxu0
        %6172 = vmatpush.bf16.msra.mxu0 %v5900
        %6173 = vmatpush.bf16.msra.mxu0 %v5897
        %6174 = vmatpush.bf16.msra.mxu0 %v5894
        %6175 = vmatpush.bf16.msra.mxu0 %v5891
        %6176 = vmatpush.bf16.msra.mxu0 %v5888
        %6177 = vmatpush.bf16.msra.mxu0 %v5885
        %6178 = vmatpush.bf16.msra.mxu0 %v5882
        %6179 = vmatpush.bf16.msra.mxu0 %v5879
        %6180 = vmatmul.bf16.gmra.mxu0 %v5543
        %v6181 = vpop.f32.mrf.mxu0
        %v6182 = vadd.f32 %v6157, %v6181
        %v6183 = vpop.f32.mrf.mxu0
        %6184 = vmatmul.bf16.gmra.mxu0 %v5547
        %v6185 = vpop.f32.mrf.mxu0
        %v6186 = vadd.f32 %v6161, %v6185
        %v6187 = vpop.f32.mrf.mxu0
        %6188 = vmatmul.bf16.gmra.mxu0 %v5551
        %v6189 = vpop.f32.mrf.mxu0
        %v6190 = vadd.f32 %v6165, %v6189
        %v6191 = vpop.f32.mrf.mxu0
        %6192 = vmatmul.bf16.gmra.mxu0 %v5555
        %v6193 = vpop.f32.mrf.mxu0
        %v6194 = vadd.f32 %v6169, %v6193
        %v6195 = vpop.f32.mrf.mxu0
        %6196 = vdwg.mxu0
        %6197 = vmatpush.bf16.msra.mxu0 %v5924
        %6198 = vmatpush.bf16.msra.mxu0 %v5921
        %6199 = vmatpush.bf16.msra.mxu0 %v5918
        %6200 = vmatpush.bf16.msra.mxu0 %v5915
        %6201 = vmatpush.bf16.msra.mxu0 %v5912
        %6202 = vmatpush.bf16.msra.mxu0 %v5909
        %6203 = vmatpush.bf16.msra.mxu0 %v5906
        %6204 = vmatpush.bf16.msra.mxu0 %v5903
        %6205 = vmatmul.bf16.gmra.mxu0 %v5544
        %v6206 = vpop.f32.mrf.mxu0
        %v6207 = vadd.f32 %v6182, %v6206
        %v6208 = vpop.f32.mrf.mxu0
        %6209 = vmatmul.bf16.gmra.mxu0 %v5548
        %v6210 = vpop.f32.mrf.mxu0
        %v6211 = vadd.f32 %v6186, %v6210
        %v6212 = vpop.f32.mrf.mxu0
        %6213 = vmatmul.bf16.gmra.mxu0 %v5552
        %v6214 = vpop.f32.mrf.mxu0
        %v6215 = vadd.f32 %v6190, %v6214
        %v6216 = vpop.f32.mrf.mxu0
        %6217 = vmatmul.bf16.gmra.mxu0 %v5556
        %v6218 = vpop.f32.mrf.mxu0
        %v6219 = vadd.f32 %v6194, %v6218
        %v6220 = vpop.f32.mrf.mxu0
        %6221 = vdwg.mxu0
        %6222 = vmatpush.bf16.msra.mxu0 %v5853
        %6223 = vmatpush.bf16.msra.mxu0 %v5850
        %6224 = vmatpush.bf16.msra.mxu0 %v5847
        %6225 = vmatpush.bf16.msra.mxu0 %v5844
        %6226 = vmatpush.bf16.msra.mxu0 %v5841
        %6227 = vmatpush.bf16.msra.mxu0 %v5838
        %6228 = vmatpush.bf16.msra.mxu0 %v5835
        %6229 = vmatpush.bf16.msra.mxu0 %v5832
        %6230 = vmatmul.bf16.gmra.mxu0 %v5541
        %v6231 = vpop.f32.mrf.mxu0
        %v6232 = vadd.f32 0.0, %v6231
        %v6233 = vpop.f32.mrf.mxu0
        %6234 = vmatmul.bf16.gmra.mxu0 %v5545
        %v6235 = vpop.f32.mrf.mxu0
        %v6236 = vadd.f32 0.0, %v6235
        %v6237 = vpop.f32.mrf.mxu0
        %6238 = vmatmul.bf16.gmra.mxu0 %v5549
        %v6239 = vpop.f32.mrf.mxu0
        %v6240 = vadd.f32 0.0, %v6239
        %v6241 = vpop.f32.mrf.mxu0
        %6242 = vmatmul.bf16.gmra.mxu0 %v5553
        %v6243 = vpop.f32.mrf.mxu0
        %v6244 = vadd.f32 0.0, %v6243
        %v6245 = vpop.f32.mrf.mxu0
        %6246 = vdwg.mxu0
        %6247 = vmatpush.bf16.msra.mxu0 %v5877
        %6248 = vmatpush.bf16.msra.mxu0 %v5874
        %6249 = vmatpush.bf16.msra.mxu0 %v5871
        %6250 = vmatpush.bf16.msra.mxu0 %v5868
        %6251 = vmatpush.bf16.msra.mxu0 %v5865
        %6252 = vmatpush.bf16.msra.mxu0 %v5862
        %6253 = vmatpush.bf16.msra.mxu0 %v5859
        %6254 = vmatpush.bf16.msra.mxu0 %v5856
        %6255 = vmatmul.bf16.gmra.mxu0 %v5542
        %v6256 = vpop.f32.mrf.mxu0
        %v6257 = vadd.f32 %v6232, %v6256
        %v6258 = vpop.f32.mrf.mxu0
        %6259 = vmatmul.bf16.gmra.mxu0 %v5546
        %v6260 = vpop.f32.mrf.mxu0
        %v6261 = vadd.f32 %v6236, %v6260
        %v6262 = vpop.f32.mrf.mxu0
        %6263 = vmatmul.bf16.gmra.mxu0 %v5550
        %v6264 = vpop.f32.mrf.mxu0
        %v6265 = vadd.f32 %v6240, %v6264
        %v6266 = vpop.f32.mrf.mxu0
        %6267 = vmatmul.bf16.gmra.mxu0 %v5554
        %v6268 = vpop.f32.mrf.mxu0
        %v6269 = vadd.f32 %v6244, %v6268
        %v6270 = vpop.f32.mrf.mxu0
        %6271 = vdwg.mxu0
        %6272 = vmatpush.bf16.msra.mxu0 %v5901
        %6273 = vmatpush.bf16.msra.mxu0 %v5898
        %6274 = vmatpush.bf16.msra.mxu0 %v5895
        %6275 = vmatpush.bf16.msra.mxu0 %v5892
        %6276 = vmatpush.bf16.msra.mxu0 %v5889
        %6277 = vmatpush.bf16.msra.mxu0 %v5886
        %6278 = vmatpush.bf16.msra.mxu0 %v5883
        %6279 = vmatpush.bf16.msra.mxu0 %v5880
        %6280 = vmatmul.bf16.gmra.mxu0 %v5543
        %v6281 = vpop.f32.mrf.mxu0
        %v6282 = vadd.f32 %v6257, %v6281
        %v6283 = vpop.f32.mrf.mxu0
        %6284 = vmatmul.bf16.gmra.mxu0 %v5547
        %v6285 = vpop.f32.mrf.mxu0
        %v6286 = vadd.f32 %v6261, %v6285
        %v6287 = vpop.f32.mrf.mxu0
        %6288 = vmatmul.bf16.gmra.mxu0 %v5551
        %v6289 = vpop.f32.mrf.mxu0
        %v6290 = vadd.f32 %v6265, %v6289
        %v6291 = vpop.f32.mrf.mxu0
        %6292 = vmatmul.bf16.gmra.mxu0 %v5555
        %v6293 = vpop.f32.mrf.mxu0
        %v6294 = vadd.f32 %v6269, %v6293
        %v6295 = vpop.f32.mrf.mxu0
        %6296 = vdwg.mxu0
        %6297 = vmatpush.bf16.msra.mxu0 %v5925
        %6298 = vmatpush.bf16.msra.mxu0 %v5922
        %6299 = vmatpush.bf16.msra.mxu0 %v5919
        %6300 = vmatpush.bf16.msra.mxu0 %v5916
        %6301 = vmatpush.bf16.msra.mxu0 %v5913
        %6302 = vmatpush.bf16.msra.mxu0 %v5910
        %6303 = vmatpush.bf16.msra.mxu0 %v5907
        %6304 = vmatpush.bf16.msra.mxu0 %v5904
        %6305 = vmatmul.bf16.gmra.mxu0 %v5544
        %v6306 = vpop.f32.mrf.mxu0
        %v6307 = vadd.f32 %v6282, %v6306
        %v6308 = vpop.f32.mrf.mxu0
        %6309 = vmatmul.bf16.gmra.mxu0 %v5548
        %v6310 = vpop.f32.mrf.mxu0
        %v6311 = vadd.f32 %v6286, %v6310
        %v6312 = vpop.f32.mrf.mxu0
        %6313 = vmatmul.bf16.gmra.mxu0 %v5552
        %v6314 = vpop.f32.mrf.mxu0
        %v6315 = vadd.f32 %v6290, %v6314
        %v6316 = vpop.f32.mrf.mxu0
        %6317 = vmatmul.bf16.gmra.mxu0 %v5556
        %v6318 = vpop.f32.mrf.mxu0
        %v6319 = vadd.f32 %v6294, %v6318
        %v6320 = vpop.f32.mrf.mxu0
        %6321 = vdwg.mxu0
        %v6338 = vunpack.c.l.b16 %v5058
        %v6339 = vunpack.c.h.b16 %v5058
        %v6340 = vunpack.c.l.b16 %v5059
        %v6341 = vunpack.c.h.b16 %v5059
        %v6342 = vunpack.c.l.b16 %v5060
        %v6343 = vunpack.c.h.b16 %v5060
        %v6344 = vunpack.c.l.b16 %v5061
        %v6345 = vunpack.c.h.b16 %v5061
        %v6346 = vunpack.c.l.b16 %v5062
        %v6347 = vunpack.c.h.b16 %v5062
        %v6348 = vunpack.c.l.b16 %v5063
        %v6349 = vunpack.c.h.b16 %v5063
        %v6350 = vunpack.c.l.b16 %v5064
        %v6351 = vunpack.c.h.b16 %v5064
        %v6352 = vunpack.c.l.b16 %v5065
        %v6353 = vunpack.c.h.b16 %v5065
        %v6354 = vunpack.c.l.b16 %v5066
        %v6355 = vunpack.c.h.b16 %v5066
        %v6356 = vunpack.c.l.b16 %v5067
        %v6357 = vunpack.c.h.b16 %v5067
        %v6358 = vunpack.c.l.b16 %v5068
        %v6359 = vunpack.c.h.b16 %v5068
        %v6360 = vunpack.c.l.b16 %v5069
        %v6361 = vunpack.c.h.b16 %v5069
        %v6362 = vunpack.c.l.b16 %v5070
        %v6363 = vunpack.c.h.b16 %v5070
        %v6364 = vunpack.c.l.b16 %v5071
        %v6365 = vunpack.c.h.b16 %v5071
        %v6366 = vunpack.c.l.b16 %v5072
        %v6367 = vunpack.c.h.b16 %v5072
        %v6368 = vunpack.c.l.b16 %v5073
        %v6369 = vunpack.c.h.b16 %v5073
        %v6370 = vpack.c.b16 %v6342, %v6338
        %v6371 = vpack.c.b16 %v6343, %v6339
        %v6372 = vpack.c.b16 %v6344, %v6340
        %v6373 = vpack.c.b16 %v6345, %v6341
        %v6374 = vpack.c.b16 %v6350, %v6346
        %v6375 = vpack.c.b16 %v6351, %v6347
        %v6376 = vpack.c.b16 %v6352, %v6348
        %v6377 = vpack.c.b16 %v6353, %v6349
        %v6378 = vpack.c.b16 %v6358, %v6354
        %v6379 = vpack.c.b16 %v6359, %v6355
        %v6380 = vpack.c.b16 %v6360, %v6356
        %v6381 = vpack.c.b16 %v6361, %v6357
        %v6382 = vpack.c.b16 %v6366, %v6362
        %v6383 = vpack.c.b16 %v6367, %v6363
        %v6384 = vpack.c.b16 %v6368, %v6364
        %v6385 = vpack.c.b16 %v6369, %v6365
        %6402 = vrot.lane.b32.xlu0 %v4734, 42
        %v6403 = vpop.permute.xlu0 %6402
        %6404 = vrot.lane.b32.xlu0 %v4735, 42
        %v6405 = vpop.permute.xlu0 %6404
        %6406 = vrot.lane.b32.xlu0 %v4736, 42
        %v6407 = vpop.permute.xlu0 %6406
        %6408 = vrot.lane.b32.xlu0 %v4737, 42
        %v6409 = vpop.permute.xlu0 %6408
        %6410 = vrot.lane.b32.xlu0 %v4738, 42
        %v6411 = vpop.permute.xlu0 %6410
        %6412 = vrot.lane.b32.xlu0 %v4739, 42
        %v6413 = vpop.permute.xlu0 %6412
        %6414 = vrot.lane.b32.xlu0 %v4740, 42
        %v6415 = vpop.permute.xlu0 %6414
        %6416 = vrot.lane.b32.xlu0 %v4741, 42
        %v6417 = vpop.permute.xlu0 %6416
        %6418 = vrot.lane.b32.xlu0 %v4742, 42
        %v6419 = vpop.permute.xlu0 %6418
        %6420 = vrot.lane.b32.xlu0 %v4743, 42
        %v6421 = vpop.permute.xlu0 %6420
        %6422 = vrot.lane.b32.xlu0 %v4744, 42
        %v6423 = vpop.permute.xlu0 %6422
        %6424 = vrot.lane.b32.xlu0 %v4745, 42
        %v6425 = vpop.permute.xlu0 %6424
        %6426 = vrot.lane.b32.xlu0 %v4746, 42
        %v6427 = vpop.permute.xlu0 %6426
        %6428 = vrot.lane.b32.xlu0 %v4747, 42
        %v6429 = vpop.permute.xlu0 %6428
        %6430 = vrot.lane.b32.xlu0 %v4748, 42
        %v6431 = vpop.permute.xlu0 %6430
        %6432 = vrot.lane.b32.xlu0 %v4749, 42
        %v6433 = vpop.permute.xlu0 %6432
        %6434 = vrot.lane.b32.xlu0 %v4782, 42
        %v6435 = vpop.permute.xlu0 %6434
        %6436 = vrot.lane.b32.xlu0 %v4783, 42
        %v6437 = vpop.permute.xlu0 %6436
        %6438 = vrot.lane.b32.xlu0 %v4784, 42
        %v6439 = vpop.permute.xlu0 %6438
        %6440 = vrot.lane.b32.xlu0 %v4757, 42
        %v6441 = vpop.permute.xlu0 %6440
        %6442 = vrot.lane.b32.xlu0 %v4785, 42
        %v6443 = vpop.permute.xlu0 %6442
        %6444 = vrot.lane.b32.xlu0 %v4786, 42
        %v6445 = vpop.permute.xlu0 %6444
        %6446 = vrot.lane.b32.xlu0 %v4787, 42
        %v6447 = vpop.permute.xlu0 %6446
        %6448 = vrot.lane.b32.xlu0 %v4765, 42
        %v6449 = vpop.permute.xlu0 %6448
        %6450 = vrot.lane.b32.xlu0 %v4788, 42
        %v6451 = vpop.permute.xlu0 %6450
        %6452 = vrot.lane.b32.xlu0 %v4789, 42
        %v6453 = vpop.permute.xlu0 %6452
        %6454 = vrot.lane.b32.xlu0 %v4790, 42
        %v6455 = vpop.permute.xlu0 %6454
        %6456 = vrot.lane.b32.xlu0 %v4773, 42
        %v6457 = vpop.permute.xlu0 %6456
        %6458 = vrot.lane.b32.xlu0 %v4791, 42
        %v6459 = vpop.permute.xlu0 %6458
        %6460 = vrot.lane.b32.xlu0 %v4792, 42
        %v6461 = vpop.permute.xlu0 %6460
        %6462 = vrot.lane.b32.xlu0 %v4793, 42
        %v6463 = vpop.permute.xlu0 %6462
        %6464 = vrot.lane.b32.xlu0 %v4781, 42
        %v6465 = vpop.permute.xlu0 %6464
        %6466 = vrot.lane.b32.xlu0 %v4826, 42
        %v6467 = vpop.permute.xlu0 %6466
        %6468 = vrot.lane.b32.xlu0 %v4827, 42
        %v6469 = vpop.permute.xlu0 %6468
        %6470 = vrot.lane.b32.xlu0 %v4828, 42
        %v6471 = vpop.permute.xlu0 %6470
        %6472 = vrot.lane.b32.xlu0 %v4801, 42
        %v6473 = vpop.permute.xlu0 %6472
        %6474 = vrot.lane.b32.xlu0 %v4829, 42
        %v6475 = vpop.permute.xlu0 %6474
        %6476 = vrot.lane.b32.xlu0 %v4830, 42
        %v6477 = vpop.permute.xlu0 %6476
        %6478 = vrot.lane.b32.xlu0 %v4831, 42
        %v6479 = vpop.permute.xlu0 %6478
        %6480 = vrot.lane.b32.xlu0 %v4809, 42
        %v6481 = vpop.permute.xlu0 %6480
        %6482 = vrot.lane.b32.xlu0 %v4832, 42
        %v6483 = vpop.permute.xlu0 %6482
        %6484 = vrot.lane.b32.xlu0 %v4833, 42
        %v6485 = vpop.permute.xlu0 %6484
        %6486 = vrot.lane.b32.xlu0 %v4834, 42
        %v6487 = vpop.permute.xlu0 %6486
        %6488 = vrot.lane.b32.xlu0 %v4817, 42
        %v6489 = vpop.permute.xlu0 %6488
        %6490 = vrot.lane.b32.xlu0 %v4835, 42
        %v6491 = vpop.permute.xlu0 %6490
        %6492 = vrot.lane.b32.xlu0 %v4836, 42
        %v6493 = vpop.permute.xlu0 %6492
        %6494 = vrot.lane.b32.xlu0 %v4837, 42
        %v6495 = vpop.permute.xlu0 %6494
        %6496 = vrot.lane.b32.xlu0 %v4825, 42
        %v6497 = vpop.permute.xlu0 %6496
        %6498 = vrot.lane.b32.xlu0 %v4870, 42
        %v6499 = vpop.permute.xlu0 %6498
        %6500 = vrot.lane.b32.xlu0 %v4871, 42
        %v6501 = vpop.permute.xlu0 %6500
        %6502 = vrot.lane.b32.xlu0 %v4872, 42
        %v6503 = vpop.permute.xlu0 %6502
        %6504 = vrot.lane.b32.xlu0 %v4845, 42
        %v6505 = vpop.permute.xlu0 %6504
        %6506 = vrot.lane.b32.xlu0 %v4873, 42
        %v6507 = vpop.permute.xlu0 %6506
        %6508 = vrot.lane.b32.xlu0 %v4874, 42
        %v6509 = vpop.permute.xlu0 %6508
        %6510 = vrot.lane.b32.xlu0 %v4875, 42
        %v6511 = vpop.permute.xlu0 %6510
        %6512 = vrot.lane.b32.xlu0 %v4853, 42
        %v6513 = vpop.permute.xlu0 %6512
        %6514 = vrot.lane.b32.xlu0 %v4876, 42
        %v6515 = vpop.permute.xlu0 %6514
        %6516 = vrot.lane.b32.xlu0 %v4877, 42
        %v6517 = vpop.permute.xlu0 %6516
        %6518 = vrot.lane.b32.xlu0 %v4878, 42
        %v6519 = vpop.permute.xlu0 %6518
        %6520 = vrot.lane.b32.xlu0 %v4861, 42
        %v6521 = vpop.permute.xlu0 %6520
        %6522 = vrot.lane.b32.xlu0 %v4879, 42
        %v6523 = vpop.permute.xlu0 %6522
        %6524 = vrot.lane.b32.xlu0 %v4880, 42
        %v6525 = vpop.permute.xlu0 %6524
        %6526 = vrot.lane.b32.xlu0 %v4881, 42
        %v6527 = vpop.permute.xlu0 %6526
        %6528 = vrot.lane.b32.xlu0 %v4869, 42
        %v6529 = vpop.permute.xlu0 %6528
        %6530 = vrot.lane.b32.xlu0 %v4914, 42
        %v6531 = vpop.permute.xlu0 %6530
        %6532 = vrot.lane.b32.xlu0 %v4915, 42
        %v6533 = vpop.permute.xlu0 %6532
        %6534 = vrot.lane.b32.xlu0 %v4916, 42
        %v6535 = vpop.permute.xlu0 %6534
        %6536 = vrot.lane.b32.xlu0 %v4889, 42
        %v6537 = vpop.permute.xlu0 %6536
        %6538 = vrot.lane.b32.xlu0 %v4917, 42
        %v6539 = vpop.permute.xlu0 %6538
        %6540 = vrot.lane.b32.xlu0 %v4918, 42
        %v6541 = vpop.permute.xlu0 %6540
        %6542 = vrot.lane.b32.xlu0 %v4919, 42
        %v6543 = vpop.permute.xlu0 %6542
        %6544 = vrot.lane.b32.xlu0 %v4897, 42
        %v6545 = vpop.permute.xlu0 %6544
        %6546 = vrot.lane.b32.xlu0 %v4920, 42
        %v6547 = vpop.permute.xlu0 %6546
        %6548 = vrot.lane.b32.xlu0 %v4921, 42
        %v6549 = vpop.permute.xlu0 %6548
        %6550 = vrot.lane.b32.xlu0 %v4922, 42
        %v6551 = vpop.permute.xlu0 %6550
        %6552 = vrot.lane.b32.xlu0 %v4905, 42
        %v6553 = vpop.permute.xlu0 %6552
        %6554 = vrot.lane.b32.xlu0 %v4923, 42
        %v6555 = vpop.permute.xlu0 %6554
        %6556 = vrot.lane.b32.xlu0 %v4924, 42
        %v6557 = vpop.permute.xlu0 %6556
        %6558 = vrot.lane.b32.xlu0 %v4925, 42
        %v6559 = vpop.permute.xlu0 %6558
        %6560 = vrot.lane.b32.xlu0 %v4913, 42
        %v6561 = vpop.permute.xlu0 %6560
        %6562 = vrot.lane.b32.xlu0 %v4958, 42
        %v6563 = vpop.permute.xlu0 %6562
        %6564 = vrot.lane.b32.xlu0 %v4959, 42
        %v6565 = vpop.permute.xlu0 %6564
        %6566 = vrot.lane.b32.xlu0 %v4960, 42
        %v6567 = vpop.permute.xlu0 %6566
        %6568 = vrot.lane.b32.xlu0 %v4933, 42
        %v6569 = vpop.permute.xlu0 %6568
        %6570 = vrot.lane.b32.xlu0 %v4961, 42
        %v6571 = vpop.permute.xlu0 %6570
        %6572 = vrot.lane.b32.xlu0 %v4962, 42
        %v6573 = vpop.permute.xlu0 %6572
        %6574 = vrot.lane.b32.xlu0 %v4963, 42
        %v6575 = vpop.permute.xlu0 %6574
        %6576 = vrot.lane.b32.xlu0 %v4941, 42
        %v6577 = vpop.permute.xlu0 %6576
        %6578 = vrot.lane.b32.xlu0 %v4964, 42
        %v6579 = vpop.permute.xlu0 %6578
        %6580 = vrot.lane.b32.xlu0 %v4965, 42
        %v6581 = vpop.permute.xlu0 %6580
        %6582 = vrot.lane.b32.xlu0 %v4966, 42
        %v6583 = vpop.permute.xlu0 %6582
        %6584 = vrot.lane.b32.xlu0 %v4949, 42
        %v6585 = vpop.permute.xlu0 %6584
        %6586 = vrot.lane.b32.xlu0 %v4967, 42
        %v6587 = vpop.permute.xlu0 %6586
        %6588 = vrot.lane.b32.xlu0 %v4968, 42
        %v6589 = vpop.permute.xlu0 %6588
        %6590 = vrot.lane.b32.xlu0 %v4969, 42
        %v6591 = vpop.permute.xlu0 %6590
        %6592 = vrot.lane.b32.xlu0 %v4957, 42
        %v6593 = vpop.permute.xlu0 %6592
        %6594 = vrot.lane.b32.xlu0 %v5002, 42
        %v6595 = vpop.permute.xlu0 %6594
        %6596 = vrot.lane.b32.xlu0 %v5003, 42
        %v6597 = vpop.permute.xlu0 %6596
        %6598 = vrot.lane.b32.xlu0 %v5004, 42
        %v6599 = vpop.permute.xlu0 %6598
        %6600 = vrot.lane.b32.xlu0 %v4977, 42
        %v6601 = vpop.permute.xlu0 %6600
        %6602 = vrot.lane.b32.xlu0 %v5005, 42
        %v6603 = vpop.permute.xlu0 %6602
        %6604 = vrot.lane.b32.xlu0 %v5006, 42
        %v6605 = vpop.permute.xlu0 %6604
        %6606 = vrot.lane.b32.xlu0 %v5007, 42
        %v6607 = vpop.permute.xlu0 %6606
        %6608 = vrot.lane.b32.xlu0 %v4985, 42
        %v6609 = vpop.permute.xlu0 %6608
        %6610 = vrot.lane.b32.xlu0 %v5008, 42
        %v6611 = vpop.permute.xlu0 %6610
        %6612 = vrot.lane.b32.xlu0 %v5009, 42
        %v6613 = vpop.permute.xlu0 %6612
        %6614 = vrot.lane.b32.xlu0 %v5010, 42
        %v6615 = vpop.permute.xlu0 %6614
        %6616 = vrot.lane.b32.xlu0 %v4993, 42
        %v6617 = vpop.permute.xlu0 %6616
        %6618 = vrot.lane.b32.xlu0 %v5011, 42
        %v6619 = vpop.permute.xlu0 %6618
        %6620 = vrot.lane.b32.xlu0 %v5012, 42
        %v6621 = vpop.permute.xlu0 %6620
        %6622 = vrot.lane.b32.xlu0 %v5013, 42
        %v6623 = vpop.permute.xlu0 %6622
        %6624 = vrot.lane.b32.xlu0 %v5001, 42
        %v6625 = vpop.permute.xlu0 %6624
        %6626 = vrot.lane.b32.xlu0 %v5046, 42
        %v6627 = vpop.permute.xlu0 %6626
        %6628 = vrot.lane.b32.xlu0 %v5047, 42
        %v6629 = vpop.permute.xlu0 %6628
        %6630 = vrot.lane.b32.xlu0 %v5048, 42
        %v6631 = vpop.permute.xlu0 %6630
        %6632 = vrot.lane.b32.xlu0 %v5021, 42
        %v6633 = vpop.permute.xlu0 %6632
        %6634 = vrot.lane.b32.xlu0 %v5049, 42
        %v6635 = vpop.permute.xlu0 %6634
        %6636 = vrot.lane.b32.xlu0 %v5050, 42
        %v6637 = vpop.permute.xlu0 %6636
        %6638 = vrot.lane.b32.xlu0 %v5051, 42
        %v6639 = vpop.permute.xlu0 %6638
        %6640 = vrot.lane.b32.xlu0 %v5029, 42
        %v6641 = vpop.permute.xlu0 %6640
        %6642 = vrot.lane.b32.xlu0 %v5052, 42
        %v6643 = vpop.permute.xlu0 %6642
        %6644 = vrot.lane.b32.xlu0 %v5053, 42
        %v6645 = vpop.permute.xlu0 %6644
        %6646 = vrot.lane.b32.xlu0 %v5054, 42
        %v6647 = vpop.permute.xlu0 %6646
        %6648 = vrot.lane.b32.xlu0 %v5037, 42
        %v6649 = vpop.permute.xlu0 %6648
        %6650 = vrot.lane.b32.xlu0 %v5055, 42
        %v6651 = vpop.permute.xlu0 %6650
        %6652 = vrot.lane.b32.xlu0 %v5056, 42
        %v6653 = vpop.permute.xlu0 %6652
        %6654 = vrot.lane.b32.xlu0 %v5057, 42
        %v6655 = vpop.permute.xlu0 %6654
        %6656 = vrot.lane.b32.xlu0 %v5045, 42
        %v6657 = vpop.permute.xlu0 %6656
        %v6658 = vsel %vm1746, %v6403, %v6405
        %v6659 = vsel %vm1746, %v6405, %v6407
        %v6660 = vsel %vm1746, %v6407, %v6409
        %v6661 = vsel %vm1746, %v6411, %v6413
        %v6662 = vsel %vm1746, %v6413, %v6415
        %v6663 = vsel %vm1746, %v6415, %v6417
        %v6664 = vsel %vm1746, %v6419, %v6421
        %v6665 = vsel %vm1746, %v6421, %v6423
        %v6666 = vsel %vm1746, %v6423, %v6425
        %v6667 = vsel %vm1746, %v6427, %v6429
        %v6668 = vsel %vm1746, %v6429, %v6431
        %v6669 = vsel %vm1746, %v6431, %v6433
        %v6670 = vsel %vm1746, %v6435, %v6437
        %v6671 = vsel %vm1746, %v6437, %v6439
        %v6672 = vsel %vm1746, %v6439, %v6441
        %v6673 = vsel %vm1746, %v6443, %v6445
        %v6674 = vsel %vm1746, %v6445, %v6447
        %v6675 = vsel %vm1746, %v6447, %v6449
        %v6676 = vsel %vm1746, %v6451, %v6453
        %v6677 = vsel %vm1746, %v6453, %v6455
        %v6678 = vsel %vm1746, %v6455, %v6457
        %v6679 = vsel %vm1746, %v6459, %v6461
        %v6680 = vsel %vm1746, %v6461, %v6463
        %v6681 = vsel %vm1746, %v6463, %v6465
        %v6682 = vsel %vm1746, %v6467, %v6469
        %v6683 = vsel %vm1746, %v6469, %v6471
        %v6684 = vsel %vm1746, %v6471, %v6473
        %v6685 = vsel %vm1746, %v6475, %v6477
        %v6686 = vsel %vm1746, %v6477, %v6479
        %v6687 = vsel %vm1746, %v6479, %v6481
        %v6688 = vsel %vm1746, %v6483, %v6485
        %v6689 = vsel %vm1746, %v6485, %v6487
        %v6690 = vsel %vm1746, %v6487, %v6489
        %v6691 = vsel %vm1746, %v6491, %v6493
        %v6692 = vsel %vm1746, %v6493, %v6495
        %v6693 = vsel %vm1746, %v6495, %v6497
        %v6694 = vsel %vm1746, %v6499, %v6501
        %v6695 = vsel %vm1746, %v6501, %v6503
        %v6696 = vsel %vm1746, %v6503, %v6505
        %v6697 = vsel %vm1746, %v6507, %v6509
        %v6698 = vsel %vm1746, %v6509, %v6511
        %v6699 = vsel %vm1746, %v6511, %v6513
        %v6700 = vsel %vm1746, %v6515, %v6517
        %v6701 = vsel %vm1746, %v6517, %v6519
        %v6702 = vsel %vm1746, %v6519, %v6521
        %v6703 = vsel %vm1746, %v6523, %v6525
        %v6704 = vsel %vm1746, %v6525, %v6527
        %v6705 = vsel %vm1746, %v6527, %v6529
        %v6706 = vsel %vm1746, %v6531, %v6533
        %v6707 = vsel %vm1746, %v6533, %v6535
        %v6708 = vsel %vm1746, %v6535, %v6537
        %v6709 = vsel %vm1746, %v6539, %v6541
        %v6710 = vsel %vm1746, %v6541, %v6543
        %v6711 = vsel %vm1746, %v6543, %v6545
        %v6712 = vsel %vm1746, %v6547, %v6549
        %v6713 = vsel %vm1746, %v6549, %v6551
        %v6714 = vsel %vm1746, %v6551, %v6553
        %v6715 = vsel %vm1746, %v6555, %v6557
        %v6716 = vsel %vm1746, %v6557, %v6559
        %v6717 = vsel %vm1746, %v6559, %v6561
        %v6718 = vsel %vm1746, %v6563, %v6565
        %v6719 = vsel %vm1746, %v6565, %v6567
        %v6720 = vsel %vm1746, %v6567, %v6569
        %v6721 = vsel %vm1746, %v6571, %v6573
        %v6722 = vsel %vm1746, %v6573, %v6575
        %v6723 = vsel %vm1746, %v6575, %v6577
        %v6724 = vsel %vm1746, %v6579, %v6581
        %v6725 = vsel %vm1746, %v6581, %v6583
        %v6726 = vsel %vm1746, %v6583, %v6585
        %v6727 = vsel %vm1746, %v6587, %v6589
        %v6728 = vsel %vm1746, %v6589, %v6591
        %v6729 = vsel %vm1746, %v6591, %v6593
        %v6730 = vsel %vm1746, %v6595, %v6597
        %v6731 = vsel %vm1746, %v6597, %v6599
        %v6732 = vsel %vm1746, %v6599, %v6601
        %v6733 = vsel %vm1746, %v6603, %v6605
        %v6734 = vsel %vm1746, %v6605, %v6607
        %v6735 = vsel %vm1746, %v6607, %v6609
        %v6736 = vsel %vm1746, %v6611, %v6613
        %v6737 = vsel %vm1746, %v6613, %v6615
        %v6738 = vsel %vm1746, %v6615, %v6617
        %v6739 = vsel %vm1746, %v6619, %v6621
        %v6740 = vsel %vm1746, %v6621, %v6623
        %v6741 = vsel %vm1746, %v6623, %v6625
        %v6742 = vsel %vm1746, %v6627, %v6629
        %v6743 = vsel %vm1746, %v6629, %v6631
        %v6744 = vsel %vm1746, %v6631, %v6633
        %v6745 = vsel %vm1746, %v6635, %v6637
        %v6746 = vsel %vm1746, %v6637, %v6639
        %v6747 = vsel %vm1746, %v6639, %v6641
        %v6748 = vsel %vm1746, %v6643, %v6645
        %v6749 = vsel %vm1746, %v6645, %v6647
        %v6750 = vsel %vm1746, %v6647, %v6649
        %v6751 = vsel %vm1746, %v6651, %v6653
        %v6752 = vsel %vm1746, %v6653, %v6655
        %v6753 = vsel %vm1746, %v6655, %v6657
        %6850 = vmatpush.bf16.msra.mxu0 %v6679
        %6851 = vmatpush.bf16.msra.mxu0 %v6676
        %6852 = vmatpush.bf16.msra.mxu0 %v6673
        %6853 = vmatpush.bf16.msra.mxu0 %v6670
        %6854 = vmatpush.bf16.msra.mxu0 %v6667
        %6855 = vmatpush.bf16.msra.mxu0 %v6664
        %6856 = vmatpush.bf16.msra.mxu0 %v6661
        %6857 = vmatpush.bf16.msra.mxu0 %v6658
        %6858 = vmatmul.bf16.gmra.mxu0 %v6370
        %v6859 = vpop.f32.mrf.mxu0
        %v6860 = vadd.f32 %v6107, %v6859
        %v6861 = vpop.f32.mrf.mxu0
        %6862 = vmatmul.bf16.gmra.mxu0 %v6374
        %v6863 = vpop.f32.mrf.mxu0
        %v6864 = vadd.f32 %v6111, %v6863
        %v6865 = vpop.f32.mrf.mxu0
        %6866 = vmatmul.bf16.gmra.mxu0 %v6378
        %v6867 = vpop.f32.mrf.mxu0
        %v6868 = vadd.f32 %v6115, %v6867
        %v6869 = vpop.f32.mrf.mxu0
        %6870 = vmatmul.bf16.gmra.mxu0 %v6382
        %v6871 = vpop.f32.mrf.mxu0
        %v6872 = vadd.f32 %v6119, %v6871
        %v6873 = vpop.f32.mrf.mxu0
        %6874 = vdwg.mxu0
        %6875 = vmatpush.bf16.msra.mxu0 %v6703
        %6876 = vmatpush.bf16.msra.mxu0 %v6700
        %6877 = vmatpush.bf16.msra.mxu0 %v6697
        %6878 = vmatpush.bf16.msra.mxu0 %v6694
        %6879 = vmatpush.bf16.msra.mxu0 %v6691
        %6880 = vmatpush.bf16.msra.mxu0 %v6688
        %6881 = vmatpush.bf16.msra.mxu0 %v6685
        %6882 = vmatpush.bf16.msra.mxu0 %v6682
        %6883 = vmatmul.bf16.gmra.mxu0 %v6371
        %v6884 = vpop.f32.mrf.mxu0
        %v6885 = vadd.f32 %v6860, %v6884
        %v6886 = vpop.f32.mrf.mxu0
        %6887 = vmatmul.bf16.gmra.mxu0 %v6375
        %v6888 = vpop.f32.mrf.mxu0
        %v6889 = vadd.f32 %v6864, %v6888
        %v6890 = vpop.f32.mrf.mxu0
        %6891 = vmatmul.bf16.gmra.mxu0 %v6379
        %v6892 = vpop.f32.mrf.mxu0
        %v6893 = vadd.f32 %v6868, %v6892
        %v6894 = vpop.f32.mrf.mxu0
        %6895 = vmatmul.bf16.gmra.mxu0 %v6383
        %v6896 = vpop.f32.mrf.mxu0
        %v6897 = vadd.f32 %v6872, %v6896
        %v6898 = vpop.f32.mrf.mxu0
        %6899 = vdwg.mxu0
        %6900 = vmatpush.bf16.msra.mxu0 %v6727
        %6901 = vmatpush.bf16.msra.mxu0 %v6724
        %6902 = vmatpush.bf16.msra.mxu0 %v6721
        %6903 = vmatpush.bf16.msra.mxu0 %v6718
        %6904 = vmatpush.bf16.msra.mxu0 %v6715
        %6905 = vmatpush.bf16.msra.mxu0 %v6712
        %6906 = vmatpush.bf16.msra.mxu0 %v6709
        %6907 = vmatpush.bf16.msra.mxu0 %v6706
        %6908 = vmatmul.bf16.gmra.mxu0 %v6372
        %v6909 = vpop.f32.mrf.mxu0
        %v6910 = vadd.f32 %v6885, %v6909
        %v6911 = vpop.f32.mrf.mxu0
        %6912 = vmatmul.bf16.gmra.mxu0 %v6376
        %v6913 = vpop.f32.mrf.mxu0
        %v6914 = vadd.f32 %v6889, %v6913
        %v6915 = vpop.f32.mrf.mxu0
        %6916 = vmatmul.bf16.gmra.mxu0 %v6380
        %v6917 = vpop.f32.mrf.mxu0
        %v6918 = vadd.f32 %v6893, %v6917
        %v6919 = vpop.f32.mrf.mxu0
        %6920 = vmatmul.bf16.gmra.mxu0 %v6384
        %v6921 = vpop.f32.mrf.mxu0
        %v6922 = vadd.f32 %v6897, %v6921
        %v6923 = vpop.f32.mrf.mxu0
        %6924 = vdwg.mxu0
        %6925 = vmatpush.bf16.msra.mxu0 %v6751
        %6926 = vmatpush.bf16.msra.mxu0 %v6748
        %6927 = vmatpush.bf16.msra.mxu0 %v6745
        %6928 = vmatpush.bf16.msra.mxu0 %v6742
        %6929 = vmatpush.bf16.msra.mxu0 %v6739
        %6930 = vmatpush.bf16.msra.mxu0 %v6736
        %6931 = vmatpush.bf16.msra.mxu0 %v6733
        %6932 = vmatpush.bf16.msra.mxu0 %v6730
        %6933 = vmatmul.bf16.gmra.mxu0 %v6373
        %v6934 = vpop.f32.mrf.mxu0
        %v6935 = vadd.f32 %v6910, %v6934
        %v6936 = vpop.f32.mrf.mxu0
        %6937 = vmatmul.bf16.gmra.mxu0 %v6377
        %v6938 = vpop.f32.mrf.mxu0
        %v6939 = vadd.f32 %v6914, %v6938
        %v6940 = vpop.f32.mrf.mxu0
        %6941 = vmatmul.bf16.gmra.mxu0 %v6381
        %v6942 = vpop.f32.mrf.mxu0
        %v6943 = vadd.f32 %v6918, %v6942
        %v6944 = vpop.f32.mrf.mxu0
        %6945 = vmatmul.bf16.gmra.mxu0 %v6385
        %v6946 = vpop.f32.mrf.mxu0
        %v6947 = vadd.f32 %v6922, %v6946
        %v6948 = vpop.f32.mrf.mxu0
        %6949 = vdwg.mxu0
        %6950 = vmatpush.bf16.msra.mxu0 %v6680
        %6951 = vmatpush.bf16.msra.mxu0 %v6677
        %6952 = vmatpush.bf16.msra.mxu0 %v6674
        %6953 = vmatpush.bf16.msra.mxu0 %v6671
        %6954 = vmatpush.bf16.msra.mxu0 %v6668
        %6955 = vmatpush.bf16.msra.mxu0 %v6665
        %6956 = vmatpush.bf16.msra.mxu0 %v6662
        %6957 = vmatpush.bf16.msra.mxu0 %v6659
        %6958 = vmatmul.bf16.gmra.mxu0 %v6370
        %v6959 = vpop.f32.mrf.mxu0
        %v6960 = vadd.f32 %v6207, %v6959
        %v6961 = vpop.f32.mrf.mxu0
        %6962 = vmatmul.bf16.gmra.mxu0 %v6374
        %v6963 = vpop.f32.mrf.mxu0
        %v6964 = vadd.f32 %v6211, %v6963
        %v6965 = vpop.f32.mrf.mxu0
        %6966 = vmatmul.bf16.gmra.mxu0 %v6378
        %v6967 = vpop.f32.mrf.mxu0
        %v6968 = vadd.f32 %v6215, %v6967
        %v6969 = vpop.f32.mrf.mxu0
        %6970 = vmatmul.bf16.gmra.mxu0 %v6382
        %v6971 = vpop.f32.mrf.mxu0
        %v6972 = vadd.f32 %v6219, %v6971
        %v6973 = vpop.f32.mrf.mxu0
        %6974 = vdwg.mxu0
        %6975 = vmatpush.bf16.msra.mxu0 %v6704
        %6976 = vmatpush.bf16.msra.mxu0 %v6701
        %6977 = vmatpush.bf16.msra.mxu0 %v6698
        %6978 = vmatpush.bf16.msra.mxu0 %v6695
        %6979 = vmatpush.bf16.msra.mxu0 %v6692
        %6980 = vmatpush.bf16.msra.mxu0 %v6689
        %6981 = vmatpush.bf16.msra.mxu0 %v6686
        %6982 = vmatpush.bf16.msra.mxu0 %v6683
        %6983 = vmatmul.bf16.gmra.mxu0 %v6371
        %v6984 = vpop.f32.mrf.mxu0
        %v6985 = vadd.f32 %v6960, %v6984
        %v6986 = vpop.f32.mrf.mxu0
        %6987 = vmatmul.bf16.gmra.mxu0 %v6375
        %v6988 = vpop.f32.mrf.mxu0
        %v6989 = vadd.f32 %v6964, %v6988
        %v6990 = vpop.f32.mrf.mxu0
        %6991 = vmatmul.bf16.gmra.mxu0 %v6379
        %v6992 = vpop.f32.mrf.mxu0
        %v6993 = vadd.f32 %v6968, %v6992
        %v6994 = vpop.f32.mrf.mxu0
        %6995 = vmatmul.bf16.gmra.mxu0 %v6383
        %v6996 = vpop.f32.mrf.mxu0
        %v6997 = vadd.f32 %v6972, %v6996
        %v6998 = vpop.f32.mrf.mxu0
        %6999 = vdwg.mxu0
        %7000 = vmatpush.bf16.msra.mxu0 %v6728
        %7001 = vmatpush.bf16.msra.mxu0 %v6725
        %7002 = vmatpush.bf16.msra.mxu0 %v6722
        %7003 = vmatpush.bf16.msra.mxu0 %v6719
        %7004 = vmatpush.bf16.msra.mxu0 %v6716
        %7005 = vmatpush.bf16.msra.mxu0 %v6713
        %7006 = vmatpush.bf16.msra.mxu0 %v6710
        %7007 = vmatpush.bf16.msra.mxu0 %v6707
        %7008 = vmatmul.bf16.gmra.mxu0 %v6372
        %v7009 = vpop.f32.mrf.mxu0
        %v7010 = vadd.f32 %v6985, %v7009
        %v7011 = vpop.f32.mrf.mxu0
        %7012 = vmatmul.bf16.gmra.mxu0 %v6376
        %v7013 = vpop.f32.mrf.mxu0
        %v7014 = vadd.f32 %v6989, %v7013
        %v7015 = vpop.f32.mrf.mxu0
        %7016 = vmatmul.bf16.gmra.mxu0 %v6380
        %v7017 = vpop.f32.mrf.mxu0
        %v7018 = vadd.f32 %v6993, %v7017
        %v7019 = vpop.f32.mrf.mxu0
        %7020 = vmatmul.bf16.gmra.mxu0 %v6384
        %v7021 = vpop.f32.mrf.mxu0
        %v7022 = vadd.f32 %v6997, %v7021
        %v7023 = vpop.f32.mrf.mxu0
        %7024 = vdwg.mxu0
        %7025 = vmatpush.bf16.msra.mxu0 %v6752
        %7026 = vmatpush.bf16.msra.mxu0 %v6749
        %7027 = vmatpush.bf16.msra.mxu0 %v6746
        %7028 = vmatpush.bf16.msra.mxu0 %v6743
        %7029 = vmatpush.bf16.msra.mxu0 %v6740
        %7030 = vmatpush.bf16.msra.mxu0 %v6737
        %7031 = vmatpush.bf16.msra.mxu0 %v6734
        %7032 = vmatpush.bf16.msra.mxu0 %v6731
        %7033 = vmatmul.bf16.gmra.mxu0 %v6373
        %v7034 = vpop.f32.mrf.mxu0
        %v7035 = vadd.f32 %v7010, %v7034
        %v7036 = vpop.f32.mrf.mxu0
        %7037 = vmatmul.bf16.gmra.mxu0 %v6377
        %v7038 = vpop.f32.mrf.mxu0
        %v7039 = vadd.f32 %v7014, %v7038
        %v7040 = vpop.f32.mrf.mxu0
        %7041 = vmatmul.bf16.gmra.mxu0 %v6381
        %v7042 = vpop.f32.mrf.mxu0
        %v7043 = vadd.f32 %v7018, %v7042
        %v7044 = vpop.f32.mrf.mxu0
        %7045 = vmatmul.bf16.gmra.mxu0 %v6385
        %v7046 = vpop.f32.mrf.mxu0
        %v7047 = vadd.f32 %v7022, %v7046
        %v7048 = vpop.f32.mrf.mxu0
        %7049 = vdwg.mxu0
        %7050 = vmatpush.bf16.msra.mxu0 %v6681
        %7051 = vmatpush.bf16.msra.mxu0 %v6678
        %7052 = vmatpush.bf16.msra.mxu0 %v6675
        %7053 = vmatpush.bf16.msra.mxu0 %v6672
        %7054 = vmatpush.bf16.msra.mxu0 %v6669
        %7055 = vmatpush.bf16.msra.mxu0 %v6666
        %7056 = vmatpush.bf16.msra.mxu0 %v6663
        %7057 = vmatpush.bf16.msra.mxu0 %v6660
        %7058 = vmatmul.bf16.gmra.mxu0 %v6370
        %v7059 = vpop.f32.mrf.mxu0
        %v7060 = vadd.f32 %v6307, %v7059
        %v7061 = vpop.f32.mrf.mxu0
        %7062 = vmatmul.bf16.gmra.mxu0 %v6374
        %v7063 = vpop.f32.mrf.mxu0
        %v7064 = vadd.f32 %v6311, %v7063
        %v7065 = vpop.f32.mrf.mxu0
        %7066 = vmatmul.bf16.gmra.mxu0 %v6378
        %v7067 = vpop.f32.mrf.mxu0
        %v7068 = vadd.f32 %v6315, %v7067
        %v7069 = vpop.f32.mrf.mxu0
        %7070 = vmatmul.bf16.gmra.mxu0 %v6382
        %v7071 = vpop.f32.mrf.mxu0
        %v7072 = vadd.f32 %v6319, %v7071
        %v7073 = vpop.f32.mrf.mxu0
        %7074 = vdwg.mxu0
        %7075 = vmatpush.bf16.msra.mxu0 %v6705
        %7076 = vmatpush.bf16.msra.mxu0 %v6702
        %7077 = vmatpush.bf16.msra.mxu0 %v6699
        %7078 = vmatpush.bf16.msra.mxu0 %v6696
        %7079 = vmatpush.bf16.msra.mxu0 %v6693
        %7080 = vmatpush.bf16.msra.mxu0 %v6690
        %7081 = vmatpush.bf16.msra.mxu0 %v6687
        %7082 = vmatpush.bf16.msra.mxu0 %v6684
        %7083 = vmatmul.bf16.gmra.mxu0 %v6371
        %v7084 = vpop.f32.mrf.mxu0
        %v7085 = vadd.f32 %v7060, %v7084
        %v7086 = vpop.f32.mrf.mxu0
        %7087 = vmatmul.bf16.gmra.mxu0 %v6375
        %v7088 = vpop.f32.mrf.mxu0
        %v7089 = vadd.f32 %v7064, %v7088
        %v7090 = vpop.f32.mrf.mxu0
        %7091 = vmatmul.bf16.gmra.mxu0 %v6379
        %v7092 = vpop.f32.mrf.mxu0
        %v7093 = vadd.f32 %v7068, %v7092
        %v7094 = vpop.f32.mrf.mxu0
        %7095 = vmatmul.bf16.gmra.mxu0 %v6383
        %v7096 = vpop.f32.mrf.mxu0
        %v7097 = vadd.f32 %v7072, %v7096
        %v7098 = vpop.f32.mrf.mxu0
        %7099 = vdwg.mxu0
        %7100 = vmatpush.bf16.msra.mxu0 %v6729
        %7101 = vmatpush.bf16.msra.mxu0 %v6726
        %7102 = vmatpush.bf16.msra.mxu0 %v6723
        %7103 = vmatpush.bf16.msra.mxu0 %v6720
        %7104 = vmatpush.bf16.msra.mxu0 %v6717
        %7105 = vmatpush.bf16.msra.mxu0 %v6714
        %7106 = vmatpush.bf16.msra.mxu0 %v6711
        %7107 = vmatpush.bf16.msra.mxu0 %v6708
        %7108 = vmatmul.bf16.gmra.mxu0 %v6372
        %v7109 = vpop.f32.mrf.mxu0
        %v7110 = vadd.f32 %v7085, %v7109
        %v7111 = vpop.f32.mrf.mxu0
        %7112 = vmatmul.bf16.gmra.mxu0 %v6376
        %v7113 = vpop.f32.mrf.mxu0
        %v7114 = vadd.f32 %v7089, %v7113
        %v7115 = vpop.f32.mrf.mxu0
        %7116 = vmatmul.bf16.gmra.mxu0 %v6380
        %v7117 = vpop.f32.mrf.mxu0
        %v7118 = vadd.f32 %v7093, %v7117
        %v7119 = vpop.f32.mrf.mxu0
        %7120 = vmatmul.bf16.gmra.mxu0 %v6384
        %v7121 = vpop.f32.mrf.mxu0
        %v7122 = vadd.f32 %v7097, %v7121
        %v7123 = vpop.f32.mrf.mxu0
        %7124 = vdwg.mxu0
        %7125 = vmatpush.bf16.msra.mxu0 %v6753
        %7126 = vmatpush.bf16.msra.mxu0 %v6750
        %7127 = vmatpush.bf16.msra.mxu0 %v6747
        %7128 = vmatpush.bf16.msra.mxu0 %v6744
        %7129 = vmatpush.bf16.msra.mxu0 %v6741
        %7130 = vmatpush.bf16.msra.mxu0 %v6738
        %7131 = vmatpush.bf16.msra.mxu0 %v6735
        %7132 = vmatpush.bf16.msra.mxu0 %v6732
        %7133 = vmatmul.bf16.gmra.mxu0 %v6373
        %v7134 = vpop.f32.mrf.mxu0
        %v7135 = vadd.f32 %v7110, %v7134
        %v7136 = vpop.f32.mrf.mxu0
        %7137 = vmatmul.bf16.gmra.mxu0 %v6377
        %v7138 = vpop.f32.mrf.mxu0
        %v7139 = vadd.f32 %v7114, %v7138
        %v7140 = vpop.f32.mrf.mxu0
        %7141 = vmatmul.bf16.gmra.mxu0 %v6381
        %v7142 = vpop.f32.mrf.mxu0
        %v7143 = vadd.f32 %v7118, %v7142
        %v7144 = vpop.f32.mrf.mxu0
        %7145 = vmatmul.bf16.gmra.mxu0 %v6385
        %v7146 = vpop.f32.mrf.mxu0
        %v7147 = vadd.f32 %v7122, %v7146
        %v7148 = vpop.f32.mrf.mxu0
        %7149 = vdwg.mxu0
        %7150 = vrot.lane.b32.xlu0 %v5328, 127
        %v7151 = vpop.permute.xlu0 %7150
        %7152 = vrot.lane.b32.xlu0 %v5329, 127
        %v7153 = vpop.permute.xlu0 %7152
        %7154 = vrot.lane.b32.xlu0 %v5330, 127
        %v7155 = vpop.permute.xlu0 %7154
        %7156 = vrot.lane.b32.xlu0 %v5331, 127
        %v7157 = vpop.permute.xlu0 %7156
        %7158 = vrot.lane.b32.xlu0 %v5332, 127
        %v7159 = vpop.permute.xlu0 %7158
        %7160 = vrot.lane.b32.xlu0 %v5333, 127
        %v7161 = vpop.permute.xlu0 %7160
        %7162 = vrot.lane.b32.xlu0 %v5334, 127
        %v7163 = vpop.permute.xlu0 %7162
        %7164 = vrot.lane.b32.xlu0 %v5335, 127
        %v7165 = vpop.permute.xlu0 %7164
        %7166 = vrot.lane.b32.xlu0 %v5336, 127
        %v7167 = vpop.permute.xlu0 %7166
        %7168 = vrot.lane.b32.xlu0 %v5337, 127
        %v7169 = vpop.permute.xlu0 %7168
        %7170 = vrot.lane.b32.xlu0 %v5338, 127
        %v7171 = vpop.permute.xlu0 %7170
        %7172 = vrot.lane.b32.xlu0 %v5339, 127
        %v7173 = vpop.permute.xlu0 %7172
        %7174 = vrot.lane.b32.xlu0 %v5340, 127
        %v7175 = vpop.permute.xlu0 %7174
        %7176 = vrot.lane.b32.xlu0 %v5341, 127
        %v7177 = vpop.permute.xlu0 %7176
        %7178 = vrot.lane.b32.xlu0 %v5342, 127
        %v7179 = vpop.permute.xlu0 %7178
        %7180 = vrot.lane.b32.xlu0 %v5343, 127
        %v7181 = vpop.permute.xlu0 %7180
        %v7182 = vsel %vm1019, %v7151, %v7153
        %v7183 = vsel %vm1019, %v7153, %v7155
        %v7184 = vsel %vm1019, %v7155, %v7157
        %v7185 = vsel %vm1019, %v7159, %v7161
        %v7186 = vsel %vm1019, %v7161, %v7163
        %v7187 = vsel %vm1019, %v7163, %v7165
        %v7188 = vsel %vm1019, %v7167, %v7169
        %v7189 = vsel %vm1019, %v7169, %v7171
        %v7190 = vsel %vm1019, %v7171, %v7173
        %v7191 = vsel %vm1019, %v7175, %v7177
        %v7192 = vsel %vm1019, %v7177, %v7179
        %v7193 = vsel %vm1019, %v7179, %v7181
        %7194 = vrot.lane.b32.xlu0 %v5328, 126
        %v7195 = vpop.permute.xlu0 %7194
        %7196 = vrot.lane.b32.xlu0 %v5329, 126
        %v7197 = vpop.permute.xlu0 %7196
        %7198 = vrot.lane.b32.xlu0 %v5330, 126
        %v7199 = vpop.permute.xlu0 %7198
        %7200 = vrot.lane.b32.xlu0 %v5331, 126
        %v7201 = vpop.permute.xlu0 %7200
        %7202 = vrot.lane.b32.xlu0 %v5332, 126
        %v7203 = vpop.permute.xlu0 %7202
        %7204 = vrot.lane.b32.xlu0 %v5333, 126
        %v7205 = vpop.permute.xlu0 %7204
        %7206 = vrot.lane.b32.xlu0 %v5334, 126
        %v7207 = vpop.permute.xlu0 %7206
        %7208 = vrot.lane.b32.xlu0 %v5335, 126
        %v7209 = vpop.permute.xlu0 %7208
        %7210 = vrot.lane.b32.xlu0 %v5336, 126
        %v7211 = vpop.permute.xlu0 %7210
        %7212 = vrot.lane.b32.xlu0 %v5337, 126
        %v7213 = vpop.permute.xlu0 %7212
        %7214 = vrot.lane.b32.xlu0 %v5338, 126
        %v7215 = vpop.permute.xlu0 %7214
        %7216 = vrot.lane.b32.xlu0 %v5339, 126
        %v7217 = vpop.permute.xlu0 %7216
        %7218 = vrot.lane.b32.xlu0 %v5340, 126
        %v7219 = vpop.permute.xlu0 %7218
        %7220 = vrot.lane.b32.xlu0 %v5341, 126
        %v7221 = vpop.permute.xlu0 %7220
        %7222 = vrot.lane.b32.xlu0 %v5342, 126
        %v7223 = vpop.permute.xlu0 %7222
        %7224 = vrot.lane.b32.xlu0 %v5343, 126
        %v7225 = vpop.permute.xlu0 %7224
        %v7226 = vsel %vm1031, %v7195, %v7197
        %v7227 = vsel %vm1031, %v7197, %v7199
        %v7228 = vsel %vm1031, %v7199, %v7201
        %v7229 = vsel %vm1031, %v7203, %v7205
        %v7230 = vsel %vm1031, %v7205, %v7207
        %v7231 = vsel %vm1031, %v7207, %v7209
        %v7232 = vsel %vm1031, %v7211, %v7213
        %v7233 = vsel %vm1031, %v7213, %v7215
        %v7234 = vsel %vm1031, %v7215, %v7217
        %v7235 = vsel %vm1031, %v7219, %v7221
        %v7236 = vsel %vm1031, %v7221, %v7223
        %v7237 = vsel %vm1031, %v7223, %v7225
        %7238 = vrot.lane.b32.xlu0 %v5328, 125
        %v7239 = vpop.permute.xlu0 %7238
        %7240 = vrot.lane.b32.xlu0 %v5329, 125
        %v7241 = vpop.permute.xlu0 %7240
        %7242 = vrot.lane.b32.xlu0 %v5330, 125
        %v7243 = vpop.permute.xlu0 %7242
        %7244 = vrot.lane.b32.xlu0 %v5331, 125
        %v7245 = vpop.permute.xlu0 %7244
        %7246 = vrot.lane.b32.xlu0 %v5332, 125
        %v7247 = vpop.permute.xlu0 %7246
        %7248 = vrot.lane.b32.xlu0 %v5333, 125
        %v7249 = vpop.permute.xlu0 %7248
        %7250 = vrot.lane.b32.xlu0 %v5334, 125
        %v7251 = vpop.permute.xlu0 %7250
        %7252 = vrot.lane.b32.xlu0 %v5335, 125
        %v7253 = vpop.permute.xlu0 %7252
        %7254 = vrot.lane.b32.xlu0 %v5336, 125
        %v7255 = vpop.permute.xlu0 %7254
        %7256 = vrot.lane.b32.xlu0 %v5337, 125
        %v7257 = vpop.permute.xlu0 %7256
        %7258 = vrot.lane.b32.xlu0 %v5338, 125
        %v7259 = vpop.permute.xlu0 %7258
        %7260 = vrot.lane.b32.xlu0 %v5339, 125
        %v7261 = vpop.permute.xlu0 %7260
        %7262 = vrot.lane.b32.xlu0 %v5340, 125
        %v7263 = vpop.permute.xlu0 %7262
        %7264 = vrot.lane.b32.xlu0 %v5341, 125
        %v7265 = vpop.permute.xlu0 %7264
        %7266 = vrot.lane.b32.xlu0 %v5342, 125
        %v7267 = vpop.permute.xlu0 %7266
        %7268 = vrot.lane.b32.xlu0 %v5343, 125
        %v7269 = vpop.permute.xlu0 %7268
        %v7270 = vsel %vm1043, %v7239, %v7241
        %v7271 = vsel %vm1043, %v7241, %v7243
        %v7272 = vsel %vm1043, %v7243, %v7245
        %v7273 = vsel %vm1043, %v7247, %v7249
        %v7274 = vsel %vm1043, %v7249, %v7251
        %v7275 = vsel %vm1043, %v7251, %v7253
        %v7276 = vsel %vm1043, %v7255, %v7257
        %v7277 = vsel %vm1043, %v7257, %v7259
        %v7278 = vsel %vm1043, %v7259, %v7261
        %v7279 = vsel %vm1043, %v7263, %v7265
        %v7280 = vsel %vm1043, %v7265, %v7267
        %v7281 = vsel %vm1043, %v7267, %v7269
        %7282 = vrot.lane.b32.xlu0 %v5328, 109
        %v7283 = vpop.permute.xlu0 %7282
        %7284 = vrot.lane.b32.xlu0 %v5329, 109
        %v7285 = vpop.permute.xlu0 %7284
        %7286 = vrot.lane.b32.xlu0 %v5330, 109
        %v7287 = vpop.permute.xlu0 %7286
        %7288 = vrot.lane.b32.xlu0 %v5331, 109
        %v7289 = vpop.permute.xlu0 %7288
        %7290 = vrot.lane.b32.xlu0 %v5332, 109
        %v7291 = vpop.permute.xlu0 %7290
        %7292 = vrot.lane.b32.xlu0 %v5333, 109
        %v7293 = vpop.permute.xlu0 %7292
        %7294 = vrot.lane.b32.xlu0 %v5334, 109
        %v7295 = vpop.permute.xlu0 %7294
        %7296 = vrot.lane.b32.xlu0 %v5335, 109
        %v7297 = vpop.permute.xlu0 %7296
        %7298 = vrot.lane.b32.xlu0 %v5336, 109
        %v7299 = vpop.permute.xlu0 %7298
        %7300 = vrot.lane.b32.xlu0 %v5337, 109
        %v7301 = vpop.permute.xlu0 %7300
        %7302 = vrot.lane.b32.xlu0 %v5338, 109
        %v7303 = vpop.permute.xlu0 %7302
        %7304 = vrot.lane.b32.xlu0 %v5339, 109
        %v7305 = vpop.permute.xlu0 %7304
        %7306 = vrot.lane.b32.xlu0 %v5340, 109
        %v7307 = vpop.permute.xlu0 %7306
        %7308 = vrot.lane.b32.xlu0 %v5341, 109
        %v7309 = vpop.permute.xlu0 %7308
        %7310 = vrot.lane.b32.xlu0 %v5342, 109
        %v7311 = vpop.permute.xlu0 %7310
        %7312 = vrot.lane.b32.xlu0 %v5343, 109
        %v7313 = vpop.permute.xlu0 %7312
        %v7314 = vsel %vm1258, %v7283, %v7285
        %v7315 = vsel %vm1258, %v7285, %v7287
        %v7316 = vsel %vm1258, %v7287, %v7289
        %v7317 = vsel %vm1258, %v7291, %v7293
        %v7318 = vsel %vm1258, %v7293, %v7295
        %v7319 = vsel %vm1258, %v7295, %v7297
        %v7320 = vsel %vm1258, %v7299, %v7301
        %v7321 = vsel %vm1258, %v7301, %v7303
        %v7322 = vsel %vm1258, %v7303, %v7305
        %v7323 = vsel %vm1258, %v7307, %v7309
        %v7324 = vsel %vm1258, %v7309, %v7311
        %v7325 = vsel %vm1258, %v7311, %v7313
        %7326 = vrot.lane.b32.xlu0 %v5328, 106
        %v7327 = vpop.permute.xlu0 %7326
        %7328 = vrot.lane.b32.xlu0 %v5329, 106
        %v7329 = vpop.permute.xlu0 %7328
        %7330 = vrot.lane.b32.xlu0 %v5330, 106
        %v7331 = vpop.permute.xlu0 %7330
        %7332 = vrot.lane.b32.xlu0 %v5331, 106
        %v7333 = vpop.permute.xlu0 %7332
        %7334 = vrot.lane.b32.xlu0 %v5332, 106
        %v7335 = vpop.permute.xlu0 %7334
        %7336 = vrot.lane.b32.xlu0 %v5333, 106
        %v7337 = vpop.permute.xlu0 %7336
        %7338 = vrot.lane.b32.xlu0 %v5334, 106
        %v7339 = vpop.permute.xlu0 %7338
        %7340 = vrot.lane.b32.xlu0 %v5335, 106
        %v7341 = vpop.permute.xlu0 %7340
        %7342 = vrot.lane.b32.xlu0 %v5336, 106
        %v7343 = vpop.permute.xlu0 %7342
        %7344 = vrot.lane.b32.xlu0 %v5337, 106
        %v7345 = vpop.permute.xlu0 %7344
        %7346 = vrot.lane.b32.xlu0 %v5338, 106
        %v7347 = vpop.permute.xlu0 %7346
        %7348 = vrot.lane.b32.xlu0 %v5339, 106
        %v7349 = vpop.permute.xlu0 %7348
        %7350 = vrot.lane.b32.xlu0 %v5340, 106
        %v7351 = vpop.permute.xlu0 %7350
        %7352 = vrot.lane.b32.xlu0 %v5341, 106
        %v7353 = vpop.permute.xlu0 %7352
        %7354 = vrot.lane.b32.xlu0 %v5342, 106
        %v7355 = vpop.permute.xlu0 %7354
        %7356 = vrot.lane.b32.xlu0 %v5343, 106
        %v7357 = vpop.permute.xlu0 %7356
        %v7358 = vsel %vm1091, %v7327, %v7329
        %v7359 = vsel %vm1091, %v7329, %v7331
        %v7360 = vsel %vm1091, %v7331, %v7333
        %v7361 = vsel %vm1091, %v7335, %v7337
        %v7362 = vsel %vm1091, %v7337, %v7339
        %v7363 = vsel %vm1091, %v7339, %v7341
        %v7364 = vsel %vm1091, %v7343, %v7345
        %v7365 = vsel %vm1091, %v7345, %v7347
        %v7366 = vsel %vm1091, %v7347, %v7349
        %v7367 = vsel %vm1091, %v7351, %v7353
        %v7368 = vsel %vm1091, %v7353, %v7355
        %v7369 = vsel %vm1091, %v7355, %v7357
        %v7370 = vld [vmem:[#allocation4 + $0x20] sm:$0xff]
        %v7371 = vld [vmem:[#allocation4 + $0x28] sm:$0xff]
        %v7372 = vld [vmem:[#allocation4 + $0x54] sm:$0xff]
        %v7373 = vld [vmem:[#allocation4 + $0x5c] sm:$0xff]
        %v7374 = vld [vmem:[#allocation4 + $0x88] sm:$0xff]
        %v7375 = vld [vmem:[#allocation4 + $0x90] sm:$0xff]
        %v7376 = vld [vmem:[#allocation4 + $0xbc] sm:$0xff]
        %v7377 = vld [vmem:[#allocation4 + $0xc4] sm:$0xff]
        %v7378 = vld [vmem:[#allocation4 + $0xf0] sm:$0xff]
        %v7379 = vld [vmem:[#allocation4 + $0xf8] sm:$0xff]
        %v7380 = vld [vmem:[#allocation4 + $0x124] sm:$0xff]
        %v7381 = vld [vmem:[#allocation4 + $0x12c] sm:$0xff]
        %v7382 = vld [vmem:[#allocation4 + $0x158] sm:$0xff]
        %v7383 = vld [vmem:[#allocation4 + $0x160] sm:$0xff]
        %v7384 = vld [vmem:[#allocation4 + $0x18c] sm:$0xff]
        %v7385 = vld [vmem:[#allocation4 + $0x194] sm:$0xff]
        %v7402 = vunpack.c.l.b16 %v7370
        %v7403 = vunpack.c.h.b16 %v7370
        %v7404 = vunpack.c.l.b16 %v7371
        %v7405 = vunpack.c.h.b16 %v7371
        %v7406 = vunpack.c.l.b16 %v7372
        %v7407 = vunpack.c.h.b16 %v7372
        %v7408 = vunpack.c.l.b16 %v7373
        %v7409 = vunpack.c.h.b16 %v7373
        %v7410 = vunpack.c.l.b16 %v7374
        %v7411 = vunpack.c.h.b16 %v7374
        %v7412 = vunpack.c.l.b16 %v7375
        %v7413 = vunpack.c.h.b16 %v7375
        %v7414 = vunpack.c.l.b16 %v7376
        %v7415 = vunpack.c.h.b16 %v7376
        %v7416 = vunpack.c.l.b16 %v7377
        %v7417 = vunpack.c.h.b16 %v7377
        %v7418 = vunpack.c.l.b16 %v7378
        %v7419 = vunpack.c.h.b16 %v7378
        %v7420 = vunpack.c.l.b16 %v7379
        %v7421 = vunpack.c.h.b16 %v7379
        %v7422 = vunpack.c.l.b16 %v7380
        %v7423 = vunpack.c.h.b16 %v7380
        %v7424 = vunpack.c.l.b16 %v7381
        %v7425 = vunpack.c.h.b16 %v7381
        %v7426 = vunpack.c.l.b16 %v7382
        %v7427 = vunpack.c.h.b16 %v7382
        %v7428 = vunpack.c.l.b16 %v7383
        %v7429 = vunpack.c.h.b16 %v7383
        %v7430 = vunpack.c.l.b16 %v7384
        %v7431 = vunpack.c.h.b16 %v7384
        %v7432 = vunpack.c.l.b16 %v7385
        %v7433 = vunpack.c.h.b16 %v7385
        %v7434 = vpack.c.b16 %v7406, %v7402
        %v7435 = vpack.c.b16 %v7407, %v7403
        %v7436 = vpack.c.b16 %v7408, %v7404
        %v7437 = vpack.c.b16 %v7409, %v7405
        %v7438 = vpack.c.b16 %v7414, %v7410
        %v7439 = vpack.c.b16 %v7415, %v7411
        %v7440 = vpack.c.b16 %v7416, %v7412
        %v7441 = vpack.c.b16 %v7417, %v7413
        %v7442 = vpack.c.b16 %v7422, %v7418
        %v7443 = vpack.c.b16 %v7423, %v7419
        %v7444 = vpack.c.b16 %v7424, %v7420
        %v7445 = vpack.c.b16 %v7425, %v7421
        %v7446 = vpack.c.b16 %v7430, %v7426
        %v7447 = vpack.c.b16 %v7431, %v7427
        %v7448 = vpack.c.b16 %v7432, %v7428
        %v7449 = vpack.c.b16 %v7433, %v7429
        %7466 = vrot.lane.b32.xlu0 %v7182, 109
        %v7467 = vpop.permute.xlu0 %7466
        %7468 = vrot.lane.b32.xlu0 %v7183, 109
        %v7469 = vpop.permute.xlu0 %7468
        %7470 = vrot.lane.b32.xlu0 %v7184, 109
        %v7471 = vpop.permute.xlu0 %7470
        %7472 = vrot.lane.b32.xlu0 %v7157, 109
        %v7473 = vpop.permute.xlu0 %7472
        %7474 = vrot.lane.b32.xlu0 %v7185, 109
        %v7475 = vpop.permute.xlu0 %7474
        %7476 = vrot.lane.b32.xlu0 %v7186, 109
        %v7477 = vpop.permute.xlu0 %7476
        %7478 = vrot.lane.b32.xlu0 %v7187, 109
        %v7479 = vpop.permute.xlu0 %7478
        %7480 = vrot.lane.b32.xlu0 %v7165, 109
        %v7481 = vpop.permute.xlu0 %7480
        %7482 = vrot.lane.b32.xlu0 %v7188, 109
        %v7483 = vpop.permute.xlu0 %7482
        %7484 = vrot.lane.b32.xlu0 %v7189, 109
        %v7485 = vpop.permute.xlu0 %7484
        %7486 = vrot.lane.b32.xlu0 %v7190, 109
        %v7487 = vpop.permute.xlu0 %7486
        %7488 = vrot.lane.b32.xlu0 %v7173, 109
        %v7489 = vpop.permute.xlu0 %7488
        %7490 = vrot.lane.b32.xlu0 %v7191, 109
        %v7491 = vpop.permute.xlu0 %7490
        %7492 = vrot.lane.b32.xlu0 %v7192, 109
        %v7493 = vpop.permute.xlu0 %7492
        %7494 = vrot.lane.b32.xlu0 %v7193, 109
        %v7495 = vpop.permute.xlu0 %7494
        %7496 = vrot.lane.b32.xlu0 %v7181, 109
        %v7497 = vpop.permute.xlu0 %7496
        %7498 = vrot.lane.b32.xlu0 %v7226, 109
        %v7499 = vpop.permute.xlu0 %7498
        %7500 = vrot.lane.b32.xlu0 %v7227, 109
        %v7501 = vpop.permute.xlu0 %7500
        %7502 = vrot.lane.b32.xlu0 %v7228, 109
        %v7503 = vpop.permute.xlu0 %7502
        %7504 = vrot.lane.b32.xlu0 %v7201, 109
        %v7505 = vpop.permute.xlu0 %7504
        %7506 = vrot.lane.b32.xlu0 %v7229, 109
        %v7507 = vpop.permute.xlu0 %7506
        %7508 = vrot.lane.b32.xlu0 %v7230, 109
        %v7509 = vpop.permute.xlu0 %7508
        %7510 = vrot.lane.b32.xlu0 %v7231, 109
        %v7511 = vpop.permute.xlu0 %7510
        %7512 = vrot.lane.b32.xlu0 %v7209, 109
        %v7513 = vpop.permute.xlu0 %7512
        %7514 = vrot.lane.b32.xlu0 %v7232, 109
        %v7515 = vpop.permute.xlu0 %7514
        %7516 = vrot.lane.b32.xlu0 %v7233, 109
        %v7517 = vpop.permute.xlu0 %7516
        %7518 = vrot.lane.b32.xlu0 %v7234, 109
        %v7519 = vpop.permute.xlu0 %7518
        %7520 = vrot.lane.b32.xlu0 %v7217, 109
        %v7521 = vpop.permute.xlu0 %7520
        %7522 = vrot.lane.b32.xlu0 %v7235, 109
        %v7523 = vpop.permute.xlu0 %7522
        %7524 = vrot.lane.b32.xlu0 %v7236, 109
        %v7525 = vpop.permute.xlu0 %7524
        %7526 = vrot.lane.b32.xlu0 %v7237, 109
        %v7527 = vpop.permute.xlu0 %7526
        %7528 = vrot.lane.b32.xlu0 %v7225, 109
        %v7529 = vpop.permute.xlu0 %7528
        %7530 = vrot.lane.b32.xlu0 %v7270, 109
        %v7531 = vpop.permute.xlu0 %7530
        %7532 = vrot.lane.b32.xlu0 %v7271, 109
        %v7533 = vpop.permute.xlu0 %7532
        %7534 = vrot.lane.b32.xlu0 %v7272, 109
        %v7535 = vpop.permute.xlu0 %7534
        %7536 = vrot.lane.b32.xlu0 %v7245, 109
        %v7537 = vpop.permute.xlu0 %7536
        %7538 = vrot.lane.b32.xlu0 %v7273, 109
        %v7539 = vpop.permute.xlu0 %7538
        %7540 = vrot.lane.b32.xlu0 %v7274, 109
        %v7541 = vpop.permute.xlu0 %7540
        %7542 = vrot.lane.b32.xlu0 %v7275, 109
        %v7543 = vpop.permute.xlu0 %7542
        %7544 = vrot.lane.b32.xlu0 %v7253, 109
        %v7545 = vpop.permute.xlu0 %7544
        %7546 = vrot.lane.b32.xlu0 %v7276, 109
        %v7547 = vpop.permute.xlu0 %7546
        %7548 = vrot.lane.b32.xlu0 %v7277, 109
        %v7549 = vpop.permute.xlu0 %7548
        %7550 = vrot.lane.b32.xlu0 %v7278, 109
        %v7551 = vpop.permute.xlu0 %7550
        %7552 = vrot.lane.b32.xlu0 %v7261, 109
        %v7553 = vpop.permute.xlu0 %7552
        %7554 = vrot.lane.b32.xlu0 %v7279, 109
        %v7555 = vpop.permute.xlu0 %7554
        %7556 = vrot.lane.b32.xlu0 %v7280, 109
        %v7557 = vpop.permute.xlu0 %7556
        %7558 = vrot.lane.b32.xlu0 %v7281, 109
        %v7559 = vpop.permute.xlu0 %7558
        %7560 = vrot.lane.b32.xlu0 %v7269, 109
        %v7561 = vpop.permute.xlu0 %7560
        %7562 = vrot.lane.b32.xlu0 %v7314, 109
        %v7563 = vpop.permute.xlu0 %7562
        %7564 = vrot.lane.b32.xlu0 %v7315, 109
        %v7565 = vpop.permute.xlu0 %7564
        %7566 = vrot.lane.b32.xlu0 %v7316, 109
        %v7567 = vpop.permute.xlu0 %7566
        %7568 = vrot.lane.b32.xlu0 %v7289, 109
        %v7569 = vpop.permute.xlu0 %7568
        %7570 = vrot.lane.b32.xlu0 %v7317, 109
        %v7571 = vpop.permute.xlu0 %7570
        %7572 = vrot.lane.b32.xlu0 %v7318, 109
        %v7573 = vpop.permute.xlu0 %7572
        %7574 = vrot.lane.b32.xlu0 %v7319, 109
        %v7575 = vpop.permute.xlu0 %7574
        %7576 = vrot.lane.b32.xlu0 %v7297, 109
        %v7577 = vpop.permute.xlu0 %7576
        %7578 = vrot.lane.b32.xlu0 %v7320, 109
        %v7579 = vpop.permute.xlu0 %7578
        %7580 = vrot.lane.b32.xlu0 %v7321, 109
        %v7581 = vpop.permute.xlu0 %7580
        %7582 = vrot.lane.b32.xlu0 %v7322, 109
        %v7583 = vpop.permute.xlu0 %7582
        %7584 = vrot.lane.b32.xlu0 %v7305, 109
        %v7585 = vpop.permute.xlu0 %7584
        %7586 = vrot.lane.b32.xlu0 %v7323, 109
        %v7587 = vpop.permute.xlu0 %7586
        %7588 = vrot.lane.b32.xlu0 %v7324, 109
        %v7589 = vpop.permute.xlu0 %7588
        %7590 = vrot.lane.b32.xlu0 %v7325, 109
        %v7591 = vpop.permute.xlu0 %7590
        %7592 = vrot.lane.b32.xlu0 %v7313, 109
        %v7593 = vpop.permute.xlu0 %7592
        %7594 = vrot.lane.b32.xlu0 %v5376, 109
        %v7595 = vpop.permute.xlu0 %7594
        %7596 = vrot.lane.b32.xlu0 %v5377, 109
        %v7597 = vpop.permute.xlu0 %7596
        %7598 = vrot.lane.b32.xlu0 %v5378, 109
        %v7599 = vpop.permute.xlu0 %7598
        %7600 = vrot.lane.b32.xlu0 %v5351, 109
        %v7601 = vpop.permute.xlu0 %7600
        %7602 = vrot.lane.b32.xlu0 %v5379, 109
        %v7603 = vpop.permute.xlu0 %7602
        %7604 = vrot.lane.b32.xlu0 %v5380, 109
        %v7605 = vpop.permute.xlu0 %7604
        %7606 = vrot.lane.b32.xlu0 %v5381, 109
        %v7607 = vpop.permute.xlu0 %7606
        %7608 = vrot.lane.b32.xlu0 %v5359, 109
        %v7609 = vpop.permute.xlu0 %7608
        %7610 = vrot.lane.b32.xlu0 %v5382, 109
        %v7611 = vpop.permute.xlu0 %7610
        %7612 = vrot.lane.b32.xlu0 %v5383, 109
        %v7613 = vpop.permute.xlu0 %7612
        %7614 = vrot.lane.b32.xlu0 %v5384, 109
        %v7615 = vpop.permute.xlu0 %7614
        %7616 = vrot.lane.b32.xlu0 %v5367, 109
        %v7617 = vpop.permute.xlu0 %7616
        %7618 = vrot.lane.b32.xlu0 %v5385, 109
        %v7619 = vpop.permute.xlu0 %7618
        %7620 = vrot.lane.b32.xlu0 %v5386, 109
        %v7621 = vpop.permute.xlu0 %7620
        %7622 = vrot.lane.b32.xlu0 %v5387, 109
        %v7623 = vpop.permute.xlu0 %7622
        %7624 = vrot.lane.b32.xlu0 %v5375, 109
        %v7625 = vpop.permute.xlu0 %7624
        %7626 = vrot.lane.b32.xlu0 %v5420, 109
        %v7627 = vpop.permute.xlu0 %7626
        %7628 = vrot.lane.b32.xlu0 %v5421, 109
        %v7629 = vpop.permute.xlu0 %7628
        %7630 = vrot.lane.b32.xlu0 %v5422, 109
        %v7631 = vpop.permute.xlu0 %7630
        %7632 = vrot.lane.b32.xlu0 %v5395, 109
        %v7633 = vpop.permute.xlu0 %7632
        %7634 = vrot.lane.b32.xlu0 %v5423, 109
        %v7635 = vpop.permute.xlu0 %7634
        %7636 = vrot.lane.b32.xlu0 %v5424, 109
        %v7637 = vpop.permute.xlu0 %7636
        %7638 = vrot.lane.b32.xlu0 %v5425, 109
        %v7639 = vpop.permute.xlu0 %7638
        %7640 = vrot.lane.b32.xlu0 %v5403, 109
        %v7641 = vpop.permute.xlu0 %7640
        %7642 = vrot.lane.b32.xlu0 %v5426, 109
        %v7643 = vpop.permute.xlu0 %7642
        %7644 = vrot.lane.b32.xlu0 %v5427, 109
        %v7645 = vpop.permute.xlu0 %7644
        %7646 = vrot.lane.b32.xlu0 %v5428, 109
        %v7647 = vpop.permute.xlu0 %7646
        %7648 = vrot.lane.b32.xlu0 %v5411, 109
        %v7649 = vpop.permute.xlu0 %7648
        %7650 = vrot.lane.b32.xlu0 %v5429, 109
        %v7651 = vpop.permute.xlu0 %7650
        %7652 = vrot.lane.b32.xlu0 %v5430, 109
        %v7653 = vpop.permute.xlu0 %7652
        %7654 = vrot.lane.b32.xlu0 %v5431, 109
        %v7655 = vpop.permute.xlu0 %7654
        %7656 = vrot.lane.b32.xlu0 %v5419, 109
        %v7657 = vpop.permute.xlu0 %7656
        %7658 = vrot.lane.b32.xlu0 %v7358, 109
        %v7659 = vpop.permute.xlu0 %7658
        %7660 = vrot.lane.b32.xlu0 %v7359, 109
        %v7661 = vpop.permute.xlu0 %7660
        %7662 = vrot.lane.b32.xlu0 %v7360, 109
        %v7663 = vpop.permute.xlu0 %7662
        %7664 = vrot.lane.b32.xlu0 %v7333, 109
        %v7665 = vpop.permute.xlu0 %7664
        %7666 = vrot.lane.b32.xlu0 %v7361, 109
        %v7667 = vpop.permute.xlu0 %7666
        %7668 = vrot.lane.b32.xlu0 %v7362, 109
        %v7669 = vpop.permute.xlu0 %7668
        %7670 = vrot.lane.b32.xlu0 %v7363, 109
        %v7671 = vpop.permute.xlu0 %7670
        %7672 = vrot.lane.b32.xlu0 %v7341, 109
        %v7673 = vpop.permute.xlu0 %7672
        %7674 = vrot.lane.b32.xlu0 %v7364, 109
        %v7675 = vpop.permute.xlu0 %7674
        %7676 = vrot.lane.b32.xlu0 %v7365, 109
        %v7677 = vpop.permute.xlu0 %7676
        %7678 = vrot.lane.b32.xlu0 %v7366, 109
        %v7679 = vpop.permute.xlu0 %7678
        %7680 = vrot.lane.b32.xlu0 %v7349, 109
        %v7681 = vpop.permute.xlu0 %7680
        %7682 = vrot.lane.b32.xlu0 %v7367, 109
        %v7683 = vpop.permute.xlu0 %7682
        %7684 = vrot.lane.b32.xlu0 %v7368, 109
        %v7685 = vpop.permute.xlu0 %7684
        %7686 = vrot.lane.b32.xlu0 %v7369, 109
        %v7687 = vpop.permute.xlu0 %7686
        %7688 = vrot.lane.b32.xlu0 %v7357, 109
        %v7689 = vpop.permute.xlu0 %7688
        %v7690 = vsel %vm1258, %v7467, %v7469
        %v7691 = vsel %vm1258, %v7469, %v7471
        %v7692 = vsel %vm1258, %v7471, %v7473
        %v7693 = vsel %vm1258, %v7475, %v7477
        %v7694 = vsel %vm1258, %v7477, %v7479
        %v7695 = vsel %vm1258, %v7479, %v7481
        %v7696 = vsel %vm1258, %v7483, %v7485
        %v7697 = vsel %vm1258, %v7485, %v7487
        %v7698 = vsel %vm1258, %v7487, %v7489
        %v7699 = vsel %vm1258, %v7491, %v7493
        %v7700 = vsel %vm1258, %v7493, %v7495
        %v7701 = vsel %vm1258, %v7495, %v7497
        %v7702 = vsel %vm1258, %v7499, %v7501
        %v7703 = vsel %vm1258, %v7501, %v7503
        %v7704 = vsel %vm1258, %v7503, %v7505
        %v7705 = vsel %vm1258, %v7507, %v7509
        %v7706 = vsel %vm1258, %v7509, %v7511
        %v7707 = vsel %vm1258, %v7511, %v7513
        %v7708 = vsel %vm1258, %v7515, %v7517
        %v7709 = vsel %vm1258, %v7517, %v7519
        %v7710 = vsel %vm1258, %v7519, %v7521
        %v7711 = vsel %vm1258, %v7523, %v7525
        %v7712 = vsel %vm1258, %v7525, %v7527
        %v7713 = vsel %vm1258, %v7527, %v7529
        %v7714 = vsel %vm1258, %v7531, %v7533
        %v7715 = vsel %vm1258, %v7533, %v7535
        %v7716 = vsel %vm1258, %v7535, %v7537
        %v7717 = vsel %vm1258, %v7539, %v7541
        %v7718 = vsel %vm1258, %v7541, %v7543
        %v7719 = vsel %vm1258, %v7543, %v7545
        %v7720 = vsel %vm1258, %v7547, %v7549
        %v7721 = vsel %vm1258, %v7549, %v7551
        %v7722 = vsel %vm1258, %v7551, %v7553
        %v7723 = vsel %vm1258, %v7555, %v7557
        %v7724 = vsel %vm1258, %v7557, %v7559
        %v7725 = vsel %vm1258, %v7559, %v7561
        %v7726 = vsel %vm1258, %v7563, %v7565
        %v7727 = vsel %vm1258, %v7565, %v7567
        %v7728 = vsel %vm1258, %v7567, %v7569
        %v7729 = vsel %vm1258, %v7571, %v7573
        %v7730 = vsel %vm1258, %v7573, %v7575
        %v7731 = vsel %vm1258, %v7575, %v7577
        %v7732 = vsel %vm1258, %v7579, %v7581
        %v7733 = vsel %vm1258, %v7581, %v7583
        %v7734 = vsel %vm1258, %v7583, %v7585
        %v7735 = vsel %vm1258, %v7587, %v7589
        %v7736 = vsel %vm1258, %v7589, %v7591
        %v7737 = vsel %vm1258, %v7591, %v7593
        %v7738 = vsel %vm1258, %v7595, %v7597
        %v7739 = vsel %vm1258, %v7597, %v7599
        %v7740 = vsel %vm1258, %v7599, %v7601
        %v7741 = vsel %vm1258, %v7603, %v7605
        %v7742 = vsel %vm1258, %v7605, %v7607
        %v7743 = vsel %vm1258, %v7607, %v7609
        %v7744 = vsel %vm1258, %v7611, %v7613
        %v7745 = vsel %vm1258, %v7613, %v7615
        %v7746 = vsel %vm1258, %v7615, %v7617
        %v7747 = vsel %vm1258, %v7619, %v7621
        %v7748 = vsel %vm1258, %v7621, %v7623
        %v7749 = vsel %vm1258, %v7623, %v7625
        %v7750 = vsel %vm1258, %v7627, %v7629
        %v7751 = vsel %vm1258, %v7629, %v7631
        %v7752 = vsel %vm1258, %v7631, %v7633
        %v7753 = vsel %vm1258, %v7635, %v7637
        %v7754 = vsel %vm1258, %v7637, %v7639
        %v7755 = vsel %vm1258, %v7639, %v7641
        %v7756 = vsel %vm1258, %v7643, %v7645
        %v7757 = vsel %vm1258, %v7645, %v7647
        %v7758 = vsel %vm1258, %v7647, %v7649
        %v7759 = vsel %vm1258, %v7651, %v7653
        %v7760 = vsel %vm1258, %v7653, %v7655
        %v7761 = vsel %vm1258, %v7655, %v7657
        %v7762 = vsel %vm1258, %v7659, %v7661
        %v7763 = vsel %vm1258, %v7661, %v7663
        %v7764 = vsel %vm1258, %v7663, %v7665
        %v7765 = vsel %vm1258, %v7667, %v7669
        %v7766 = vsel %vm1258, %v7669, %v7671
        %v7767 = vsel %vm1258, %v7671, %v7673
        %v7768 = vsel %vm1258, %v7675, %v7677
        %v7769 = vsel %vm1258, %v7677, %v7679
        %v7770 = vsel %vm1258, %v7679, %v7681
        %v7771 = vsel %vm1258, %v7683, %v7685
        %v7772 = vsel %vm1258, %v7685, %v7687
        %v7773 = vsel %vm1258, %v7687, %v7689
        %7870 = vmatpush.bf16.msra.mxu0 %v7699
        %7871 = vmatpush.bf16.msra.mxu0 %v7696
        %7872 = vmatpush.bf16.msra.mxu0 %v7693
        %7873 = vmatpush.bf16.msra.mxu0 %v7690
        %7874 = vmatpush.bf16.msra.mxu0 %v7323
        %7875 = vmatpush.bf16.msra.mxu0 %v7320
        %7876 = vmatpush.bf16.msra.mxu0 %v7317
        %7877 = vmatpush.bf16.msra.mxu0 %v7314
        %7878 = vmatmul.bf16.gmra.mxu0 %v7434
        %v7879 = vpop.f32.mrf.mxu0
        %v7880 = vadd.f32 0.0, %v7879
        %v7881 = vpop.f32.mrf.mxu0
        %7882 = vmatmul.bf16.gmra.mxu0 %v7438
        %v7883 = vpop.f32.mrf.mxu0
        %v7884 = vadd.f32 0.0, %v7883
        %v7885 = vpop.f32.mrf.mxu0
        %7886 = vmatmul.bf16.gmra.mxu0 %v7442
        %v7887 = vpop.f32.mrf.mxu0
        %v7888 = vadd.f32 0.0, %v7887
        %v7889 = vpop.f32.mrf.mxu0
        %7890 = vmatmul.bf16.gmra.mxu0 %v7446
        %v7891 = vpop.f32.mrf.mxu0
        %v7892 = vadd.f32 0.0, %v7891
        %v7893 = vpop.f32.mrf.mxu0
        %7894 = vdwg.mxu0
        %7895 = vmatpush.bf16.msra.mxu0 %v7723
        %7896 = vmatpush.bf16.msra.mxu0 %v7720
        %7897 = vmatpush.bf16.msra.mxu0 %v7717
        %7898 = vmatpush.bf16.msra.mxu0 %v7714
        %7899 = vmatpush.bf16.msra.mxu0 %v7711
        %7900 = vmatpush.bf16.msra.mxu0 %v7708
        %7901 = vmatpush.bf16.msra.mxu0 %v7705
        %7902 = vmatpush.bf16.msra.mxu0 %v7702
        %7903 = vmatmul.bf16.gmra.mxu0 %v7435
        %v7904 = vpop.f32.mrf.mxu0
        %v7905 = vadd.f32 %v7880, %v7904
        %v7906 = vpop.f32.mrf.mxu0
        %7907 = vmatmul.bf16.gmra.mxu0 %v7439
        %v7908 = vpop.f32.mrf.mxu0
        %v7909 = vadd.f32 %v7884, %v7908
        %v7910 = vpop.f32.mrf.mxu0
        %7911 = vmatmul.bf16.gmra.mxu0 %v7443
        %v7912 = vpop.f32.mrf.mxu0
        %v7913 = vadd.f32 %v7888, %v7912
        %v7914 = vpop.f32.mrf.mxu0
        %7915 = vmatmul.bf16.gmra.mxu0 %v7447
        %v7916 = vpop.f32.mrf.mxu0
        %v7917 = vadd.f32 %v7892, %v7916
        %v7918 = vpop.f32.mrf.mxu0
        %7919 = vdwg.mxu0
        %7920 = vmatpush.bf16.msra.mxu0 %v7747
        %7921 = vmatpush.bf16.msra.mxu0 %v7744
        %7922 = vmatpush.bf16.msra.mxu0 %v7741
        %7923 = vmatpush.bf16.msra.mxu0 %v7738
        %7924 = vmatpush.bf16.msra.mxu0 %v7735
        %7925 = vmatpush.bf16.msra.mxu0 %v7732
        %7926 = vmatpush.bf16.msra.mxu0 %v7729
        %7927 = vmatpush.bf16.msra.mxu0 %v7726
        %7928 = vmatmul.bf16.gmra.mxu0 %v7436
        %v7929 = vpop.f32.mrf.mxu0
        %v7930 = vadd.f32 %v7905, %v7929
        %v7931 = vpop.f32.mrf.mxu0
        %7932 = vmatmul.bf16.gmra.mxu0 %v7440
        %v7933 = vpop.f32.mrf.mxu0
        %v7934 = vadd.f32 %v7909, %v7933
        %v7935 = vpop.f32.mrf.mxu0
        %7936 = vmatmul.bf16.gmra.mxu0 %v7444
        %v7937 = vpop.f32.mrf.mxu0
        %v7938 = vadd.f32 %v7913, %v7937
        %v7939 = vpop.f32.mrf.mxu0
        %7940 = vmatmul.bf16.gmra.mxu0 %v7448
        %v7941 = vpop.f32.mrf.mxu0
        %v7942 = vadd.f32 %v7917, %v7941
        %v7943 = vpop.f32.mrf.mxu0
        %7944 = vdwg.mxu0
        %7945 = vmatpush.bf16.msra.mxu0 %v7771
        %7946 = vmatpush.bf16.msra.mxu0 %v7768
        %7947 = vmatpush.bf16.msra.mxu0 %v7765
        %7948 = vmatpush.bf16.msra.mxu0 %v7762
        %7949 = vmatpush.bf16.msra.mxu0 %v7759
        %7950 = vmatpush.bf16.msra.mxu0 %v7756
        %7951 = vmatpush.bf16.msra.mxu0 %v7753
        %7952 = vmatpush.bf16.msra.mxu0 %v7750
        %7953 = vmatmul.bf16.gmra.mxu0 %v7437
        %v7954 = vpop.f32.mrf.mxu0
        %v7955 = vadd.f32 %v7930, %v7954
        %v7956 = vpop.f32.mrf.mxu0
        %7957 = vmatmul.bf16.gmra.mxu0 %v7441
        %v7958 = vpop.f32.mrf.mxu0
        %v7959 = vadd.f32 %v7934, %v7958
        %v7960 = vpop.f32.mrf.mxu0
        %7961 = vmatmul.bf16.gmra.mxu0 %v7445
        %v7962 = vpop.f32.mrf.mxu0
        %v7963 = vadd.f32 %v7938, %v7962
        %v7964 = vpop.f32.mrf.mxu0
        %7965 = vmatmul.bf16.gmra.mxu0 %v7449
        %v7966 = vpop.f32.mrf.mxu0
        %v7967 = vadd.f32 %v7942, %v7966
        %v7968 = vpop.f32.mrf.mxu0
        %7969 = vdwg.mxu0
        %7970 = vmatpush.bf16.msra.mxu0 %v7700
        %7971 = vmatpush.bf16.msra.mxu0 %v7697
        %7972 = vmatpush.bf16.msra.mxu0 %v7694
        %7973 = vmatpush.bf16.msra.mxu0 %v7691
        %7974 = vmatpush.bf16.msra.mxu0 %v7324
        %7975 = vmatpush.bf16.msra.mxu0 %v7321
        %7976 = vmatpush.bf16.msra.mxu0 %v7318
        %7977 = vmatpush.bf16.msra.mxu0 %v7315
        %7978 = vmatmul.bf16.gmra.mxu0 %v7434
        %v7979 = vpop.f32.mrf.mxu0
        %v7980 = vadd.f32 0.0, %v7979
        %v7981 = vpop.f32.mrf.mxu0
        %7982 = vmatmul.bf16.gmra.mxu0 %v7438
        %v7983 = vpop.f32.mrf.mxu0
        %v7984 = vadd.f32 0.0, %v7983
        %v7985 = vpop.f32.mrf.mxu0
        %7986 = vmatmul.bf16.gmra.mxu0 %v7442
        %v7987 = vpop.f32.mrf.mxu0
        %v7988 = vadd.f32 0.0, %v7987
        %v7989 = vpop.f32.mrf.mxu0
        %7990 = vmatmul.bf16.gmra.mxu0 %v7446
        %v7991 = vpop.f32.mrf.mxu0
        %v7992 = vadd.f32 0.0, %v7991
        %v7993 = vpop.f32.mrf.mxu0
        %7994 = vdwg.mxu0
        %7995 = vmatpush.bf16.msra.mxu0 %v7724
        %7996 = vmatpush.bf16.msra.mxu0 %v7721
        %7997 = vmatpush.bf16.msra.mxu0 %v7718
        %7998 = vmatpush.bf16.msra.mxu0 %v7715
        %7999 = vmatpush.bf16.msra.mxu0 %v7712
        %8000 = vmatpush.bf16.msra.mxu0 %v7709
        %8001 = vmatpush.bf16.msra.mxu0 %v7706
        %8002 = vmatpush.bf16.msra.mxu0 %v7703
        %8003 = vmatmul.bf16.gmra.mxu0 %v7435
        %v8004 = vpop.f32.mrf.mxu0
        %v8005 = vadd.f32 %v7980, %v8004
        %v8006 = vpop.f32.mrf.mxu0
        %8007 = vmatmul.bf16.gmra.mxu0 %v7439
        %v8008 = vpop.f32.mrf.mxu0
        %v8009 = vadd.f32 %v7984, %v8008
        %v8010 = vpop.f32.mrf.mxu0
        %8011 = vmatmul.bf16.gmra.mxu0 %v7443
        %v8012 = vpop.f32.mrf.mxu0
        %v8013 = vadd.f32 %v7988, %v8012
        %v8014 = vpop.f32.mrf.mxu0
        %8015 = vmatmul.bf16.gmra.mxu0 %v7447
        %v8016 = vpop.f32.mrf.mxu0
        %v8017 = vadd.f32 %v7992, %v8016
        %v8018 = vpop.f32.mrf.mxu0
        %8019 = vdwg.mxu0
        %8020 = vmatpush.bf16.msra.mxu0 %v7748
        %8021 = vmatpush.bf16.msra.mxu0 %v7745
        %8022 = vmatpush.bf16.msra.mxu0 %v7742
        %8023 = vmatpush.bf16.msra.mxu0 %v7739
        %8024 = vmatpush.bf16.msra.mxu0 %v7736
        %8025 = vmatpush.bf16.msra.mxu0 %v7733
        %8026 = vmatpush.bf16.msra.mxu0 %v7730
        %8027 = vmatpush.bf16.msra.mxu0 %v7727
        %8028 = vmatmul.bf16.gmra.mxu0 %v7436
        %v8029 = vpop.f32.mrf.mxu0
        %v8030 = vadd.f32 %v8005, %v8029
        %v8031 = vpop.f32.mrf.mxu0
        %8032 = vmatmul.bf16.gmra.mxu0 %v7440
        %v8033 = vpop.f32.mrf.mxu0
        %v8034 = vadd.f32 %v8009, %v8033
        %v8035 = vpop.f32.mrf.mxu0
        %8036 = vmatmul.bf16.gmra.mxu0 %v7444
        %v8037 = vpop.f32.mrf.mxu0
        %v8038 = vadd.f32 %v8013, %v8037
        %v8039 = vpop.f32.mrf.mxu0
        %8040 = vmatmul.bf16.gmra.mxu0 %v7448
        %v8041 = vpop.f32.mrf.mxu0
        %v8042 = vadd.f32 %v8017, %v8041
        %v8043 = vpop.f32.mrf.mxu0
        %8044 = vdwg.mxu0
        %8045 = vmatpush.bf16.msra.mxu0 %v7772
        %8046 = vmatpush.bf16.msra.mxu0 %v7769
        %8047 = vmatpush.bf16.msra.mxu0 %v7766
        %8048 = vmatpush.bf16.msra.mxu0 %v7763
        %8049 = vmatpush.bf16.msra.mxu0 %v7760
        %8050 = vmatpush.bf16.msra.mxu0 %v7757
        %8051 = vmatpush.bf16.msra.mxu0 %v7754
        %8052 = vmatpush.bf16.msra.mxu0 %v7751
        %8053 = vmatmul.bf16.gmra.mxu0 %v7437
        %v8054 = vpop.f32.mrf.mxu0
        %v8055 = vadd.f32 %v8030, %v8054
        %v8056 = vpop.f32.mrf.mxu0
        %8057 = vmatmul.bf16.gmra.mxu0 %v7441
        %v8058 = vpop.f32.mrf.mxu0
        %v8059 = vadd.f32 %v8034, %v8058
        %v8060 = vpop.f32.mrf.mxu0
        %8061 = vmatmul.bf16.gmra.mxu0 %v7445
        %v8062 = vpop.f32.mrf.mxu0
        %v8063 = vadd.f32 %v8038, %v8062
        %v8064 = vpop.f32.mrf.mxu0
        %8065 = vmatmul.bf16.gmra.mxu0 %v7449
        %v8066 = vpop.f32.mrf.mxu0
        %v8067 = vadd.f32 %v8042, %v8066
        %v8068 = vpop.f32.mrf.mxu0
        %8069 = vdwg.mxu0
        %8070 = vmatpush.bf16.msra.mxu0 %v7701
        %8071 = vmatpush.bf16.msra.mxu0 %v7698
        %8072 = vmatpush.bf16.msra.mxu0 %v7695
        %8073 = vmatpush.bf16.msra.mxu0 %v7692
        %8074 = vmatpush.bf16.msra.mxu0 %v7325
        %8075 = vmatpush.bf16.msra.mxu0 %v7322
        %8076 = vmatpush.bf16.msra.mxu0 %v7319
        %8077 = vmatpush.bf16.msra.mxu0 %v7316
        %8078 = vmatmul.bf16.gmra.mxu0 %v7434
        %v8079 = vpop.f32.mrf.mxu0
        %v8080 = vadd.f32 0.0, %v8079
        %v8081 = vpop.f32.mrf.mxu0
        %8082 = vmatmul.bf16.gmra.mxu0 %v7438
        %v8083 = vpop.f32.mrf.mxu0
        %v8084 = vadd.f32 0.0, %v8083
        %v8085 = vpop.f32.mrf.mxu0
        %8086 = vmatmul.bf16.gmra.mxu0 %v7442
        %v8087 = vpop.f32.mrf.mxu0
        %v8088 = vadd.f32 0.0, %v8087
        %v8089 = vpop.f32.mrf.mxu0
        %8090 = vmatmul.bf16.gmra.mxu0 %v7446
        %v8091 = vpop.f32.mrf.mxu0
        %v8092 = vadd.f32 0.0, %v8091
        %v8093 = vpop.f32.mrf.mxu0
        %8094 = vdwg.mxu0
        %8095 = vmatpush.bf16.msra.mxu0 %v7725
        %8096 = vmatpush.bf16.msra.mxu0 %v7722
        %8097 = vmatpush.bf16.msra.mxu0 %v7719
        %8098 = vmatpush.bf16.msra.mxu0 %v7716
        %8099 = vmatpush.bf16.msra.mxu0 %v7713
        %8100 = vmatpush.bf16.msra.mxu0 %v7710
        %8101 = vmatpush.bf16.msra.mxu0 %v7707
        %8102 = vmatpush.bf16.msra.mxu0 %v7704
        %8103 = vmatmul.bf16.gmra.mxu0 %v7435
        %v8104 = vpop.f32.mrf.mxu0
        %v8105 = vadd.f32 %v8080, %v8104
        %v8106 = vpop.f32.mrf.mxu0
        %8107 = vmatmul.bf16.gmra.mxu0 %v7439
        %v8108 = vpop.f32.mrf.mxu0
        %v8109 = vadd.f32 %v8084, %v8108
        %v8110 = vpop.f32.mrf.mxu0
        %8111 = vmatmul.bf16.gmra.mxu0 %v7443
        %v8112 = vpop.f32.mrf.mxu0
        %v8113 = vadd.f32 %v8088, %v8112
        %v8114 = vpop.f32.mrf.mxu0
        %8115 = vmatmul.bf16.gmra.mxu0 %v7447
        %v8116 = vpop.f32.mrf.mxu0
        %v8117 = vadd.f32 %v8092, %v8116
        %v8118 = vpop.f32.mrf.mxu0
        %8119 = vdwg.mxu0
        %8120 = vmatpush.bf16.msra.mxu0 %v7749
        %8121 = vmatpush.bf16.msra.mxu0 %v7746
        %8122 = vmatpush.bf16.msra.mxu0 %v7743
        %8123 = vmatpush.bf16.msra.mxu0 %v7740
        %8124 = vmatpush.bf16.msra.mxu0 %v7737
        %8125 = vmatpush.bf16.msra.mxu0 %v7734
        %8126 = vmatpush.bf16.msra.mxu0 %v7731
        %8127 = vmatpush.bf16.msra.mxu0 %v7728
        %8128 = vmatmul.bf16.gmra.mxu0 %v7436
        %v8129 = vpop.f32.mrf.mxu0
        %v8130 = vadd.f32 %v8105, %v8129
        %v8131 = vpop.f32.mrf.mxu0
        %8132 = vmatmul.bf16.gmra.mxu0 %v7440
        %v8133 = vpop.f32.mrf.mxu0
        %v8134 = vadd.f32 %v8109, %v8133
        %v8135 = vpop.f32.mrf.mxu0
        %8136 = vmatmul.bf16.gmra.mxu0 %v7444
        %v8137 = vpop.f32.mrf.mxu0
        %v8138 = vadd.f32 %v8113, %v8137
        %v8139 = vpop.f32.mrf.mxu0
        %8140 = vmatmul.bf16.gmra.mxu0 %v7448
        %v8141 = vpop.f32.mrf.mxu0
        %v8142 = vadd.f32 %v8117, %v8141
        %v8143 = vpop.f32.mrf.mxu0
        %8144 = vdwg.mxu0
        %8145 = vmatpush.bf16.msra.mxu0 %v7773
        %8146 = vmatpush.bf16.msra.mxu0 %v7770
        %8147 = vmatpush.bf16.msra.mxu0 %v7767
        %8148 = vmatpush.bf16.msra.mxu0 %v7764
        %8149 = vmatpush.bf16.msra.mxu0 %v7761
        %8150 = vmatpush.bf16.msra.mxu0 %v7758
        %8151 = vmatpush.bf16.msra.mxu0 %v7755
        %8152 = vmatpush.bf16.msra.mxu0 %v7752
        %8153 = vmatmul.bf16.gmra.mxu0 %v7437
        %v8154 = vpop.f32.mrf.mxu0
        %v8155 = vadd.f32 %v8130, %v8154
        %v8156 = vpop.f32.mrf.mxu0
        %8157 = vmatmul.bf16.gmra.mxu0 %v7441
        %v8158 = vpop.f32.mrf.mxu0
        %v8159 = vadd.f32 %v8134, %v8158
        %v8160 = vpop.f32.mrf.mxu0
        %8161 = vmatmul.bf16.gmra.mxu0 %v7445
        %v8162 = vpop.f32.mrf.mxu0
        %v8163 = vadd.f32 %v8138, %v8162
        %v8164 = vpop.f32.mrf.mxu0
        %8165 = vmatmul.bf16.gmra.mxu0 %v7449
        %v8166 = vpop.f32.mrf.mxu0
        %v8167 = vadd.f32 %v8142, %v8166
        %v8168 = vpop.f32.mrf.mxu0
        %8169 = vdwg.mxu0
        %v8170 = vadd.f32 %v6935, %v7955
        %v8171 = vadd.f32 %v7035, %v8055
        %v8172 = vadd.f32 %v7135, %v8155
        %v8173 = vadd.f32 %v6939, %v7959
        %v8174 = vadd.f32 %v7039, %v8059
        %v8175 = vadd.f32 %v7139, %v8159
        %v8176 = vadd.f32 %v6943, %v7963
        %v8177 = vadd.f32 %v7043, %v8063
        %v8178 = vadd.f32 %v7143, %v8163
        %v8179 = vadd.f32 %v6947, %v7967
        %v8180 = vadd.f32 %v7047, %v8067
        %v8181 = vadd.f32 %v7147, %v8167
        %v8182 = vld [vmem:[#allocation4 + $0x30] sm:$0xf]
        %v8183 = vld [vmem:[#allocation4 + $0x64] sm:$0xf]
        %v8184 = vld [vmem:[#allocation4 + $0x98] sm:$0xf]
        %v8185 = vld [vmem:[#allocation4 + $0xcc] sm:$0xf]
        %v8186 = vld [vmem:[#allocation4 + $0x100] sm:$0xf]
        %v8187 = vld [vmem:[#allocation4 + $0x134] sm:$0xf]
        %v8188 = vld [vmem:[#allocation4 + $0x168] sm:$0xf]
        %v8189 = vld [vmem:[#allocation4 + $0x19c] sm:$0xf]
        %v8198 = vunpack.c.l.b16 %v8182
        %v8199 = vunpack.c.l.b16 %v8183
        %v8200 = vunpack.c.l.b16 %v8184
        %v8201 = vunpack.c.l.b16 %v8185
        %v8202 = vunpack.c.l.b16 %v8186
        %v8203 = vunpack.c.l.b16 %v8187
        %v8204 = vunpack.c.l.b16 %v8188
        %v8205 = vunpack.c.l.b16 %v8189
        %v8206 = vpack.c.b16 %v8199, %v8198
        %v8207 = vpack.c.b16 %v8201, %v8200
        %v8208 = vpack.c.b16 %v8203, %v8202
        %v8209 = vpack.c.b16 %v8205, %v8204
        %8210 = vrot.lane.b32.xlu0 %v5328, 86
        %v8211 = vpop.permute.xlu0 %8210
        %8212 = vrot.lane.b32.xlu0 %v5329, 86
        %v8213 = vpop.permute.xlu0 %8212
        %8214 = vrot.lane.b32.xlu0 %v5330, 86
        %v8215 = vpop.permute.xlu0 %8214
        %8216 = vrot.lane.b32.xlu0 %v5331, 86
        %v8217 = vpop.permute.xlu0 %8216
        %8218 = vrot.lane.b32.xlu0 %v5332, 86
        %v8219 = vpop.permute.xlu0 %8218
        %8220 = vrot.lane.b32.xlu0 %v5333, 86
        %v8221 = vpop.permute.xlu0 %8220
        %8222 = vrot.lane.b32.xlu0 %v5334, 86
        %v8223 = vpop.permute.xlu0 %8222
        %8224 = vrot.lane.b32.xlu0 %v5335, 86
        %v8225 = vpop.permute.xlu0 %8224
        %8226 = vrot.lane.b32.xlu0 %v5336, 86
        %v8227 = vpop.permute.xlu0 %8226
        %8228 = vrot.lane.b32.xlu0 %v5337, 86
        %v8229 = vpop.permute.xlu0 %8228
        %8230 = vrot.lane.b32.xlu0 %v5338, 86
        %v8231 = vpop.permute.xlu0 %8230
        %8232 = vrot.lane.b32.xlu0 %v5339, 86
        %v8233 = vpop.permute.xlu0 %8232
        %8234 = vrot.lane.b32.xlu0 %v5340, 86
        %v8235 = vpop.permute.xlu0 %8234
        %8236 = vrot.lane.b32.xlu0 %v5341, 86
        %v8237 = vpop.permute.xlu0 %8236
        %8238 = vrot.lane.b32.xlu0 %v5342, 86
        %v8239 = vpop.permute.xlu0 %8238
        %8240 = vrot.lane.b32.xlu0 %v5343, 86
        %v8241 = vpop.permute.xlu0 %8240
        %v8242 = vsel %vm1162, %v8211, %v8213
        %v8243 = vsel %vm1162, %v8213, %v8215
        %v8244 = vsel %vm1162, %v8215, %v8217
        %v8245 = vsel %vm1162, %v8219, %v8221
        %v8246 = vsel %vm1162, %v8221, %v8223
        %v8247 = vsel %vm1162, %v8223, %v8225
        %v8248 = vsel %vm1162, %v8227, %v8229
        %v8249 = vsel %vm1162, %v8229, %v8231
        %v8250 = vsel %vm1162, %v8231, %v8233
        %v8251 = vsel %vm1162, %v8235, %v8237
        %v8252 = vsel %vm1162, %v8237, %v8239
        %v8253 = vsel %vm1162, %v8239, %v8241
        %v8267 = vsel %vm2540, %v8206, 0
        %v8270 = vsel %vm2540, %v8207, 0
        %v8273 = vsel %vm2540, %v8208, 0
        %v8276 = vsel %vm2540, %v8209, 0
        %8278 = vmatpush.bf16.msra.mxu0 0
        %8279 = vmatpush.bf16.msra.mxu0 0
        %8280 = vmatpush.bf16.msra.mxu0 0
        %8281 = vmatpush.bf16.msra.mxu0 0
        %8282 = vmatpush.bf16.msra.mxu0 %v8251
        %8283 = vmatpush.bf16.msra.mxu0 %v8248
        %8284 = vmatpush.bf16.msra.mxu0 %v8245
        %8285 = vmatpush.bf16.msra.mxu0 %v8242
        %8286 = vmatmul.bf16.gmra.mxu0 %v8267
        %v8287 = vpop.f32.mrf.mxu0
        %v8288 = vadd.f32 0.0, %v8287
        %v8289 = vpop.f32.mrf.mxu0
        %8290 = vmatmul.bf16.gmra.mxu0 %v8270
        %v8291 = vpop.f32.mrf.mxu0
        %v8292 = vadd.f32 0.0, %v8291
        %v8293 = vpop.f32.mrf.mxu0
        %8294 = vmatmul.bf16.gmra.mxu0 %v8273
        %v8295 = vpop.f32.mrf.mxu0
        %v8296 = vadd.f32 0.0, %v8295
        %v8297 = vpop.f32.mrf.mxu0
        %8298 = vmatmul.bf16.gmra.mxu0 %v8276
        %v8299 = vpop.f32.mrf.mxu0
        %v8300 = vadd.f32 0.0, %v8299
        %v8301 = vpop.f32.mrf.mxu0
        %8302 = vdwg.mxu0
        %8303 = vmatpush.bf16.msra.mxu0 0
        %8304 = vmatpush.bf16.msra.mxu0 0
        %8305 = vmatpush.bf16.msra.mxu0 0
        %8306 = vmatpush.bf16.msra.mxu0 0
        %8307 = vmatpush.bf16.msra.mxu0 %v8252
        %8308 = vmatpush.bf16.msra.mxu0 %v8249
        %8309 = vmatpush.bf16.msra.mxu0 %v8246
        %8310 = vmatpush.bf16.msra.mxu0 %v8243
        %8311 = vmatmul.bf16.gmra.mxu0 %v8267
        %v8312 = vpop.f32.mrf.mxu0
        %v8313 = vadd.f32 0.0, %v8312
        %v8314 = vpop.f32.mrf.mxu0
        %8315 = vmatmul.bf16.gmra.mxu0 %v8270
        %v8316 = vpop.f32.mrf.mxu0
        %v8317 = vadd.f32 0.0, %v8316
        %v8318 = vpop.f32.mrf.mxu0
        %8319 = vmatmul.bf16.gmra.mxu0 %v8273
        %v8320 = vpop.f32.mrf.mxu0
        %v8321 = vadd.f32 0.0, %v8320
        %v8322 = vpop.f32.mrf.mxu0
        %8323 = vmatmul.bf16.gmra.mxu0 %v8276
        %v8324 = vpop.f32.mrf.mxu0
        %v8325 = vadd.f32 0.0, %v8324
        %v8326 = vpop.f32.mrf.mxu0
        %8327 = vdwg.mxu0
        %8328 = vmatpush.bf16.msra.mxu0 0
        %8329 = vmatpush.bf16.msra.mxu0 0
        %8330 = vmatpush.bf16.msra.mxu0 0
        %8331 = vmatpush.bf16.msra.mxu0 0
        %8332 = vmatpush.bf16.msra.mxu0 %v8253
        %8333 = vmatpush.bf16.msra.mxu0 %v8250
        %8334 = vmatpush.bf16.msra.mxu0 %v8247
        %8335 = vmatpush.bf16.msra.mxu0 %v8244
        %8336 = vmatmul.bf16.gmra.mxu0 %v8267
        %v8337 = vpop.f32.mrf.mxu0
        %v8338 = vadd.f32 0.0, %v8337
        %v8339 = vpop.f32.mrf.mxu0
        %8340 = vmatmul.bf16.gmra.mxu0 %v8270
        %v8341 = vpop.f32.mrf.mxu0
        %v8342 = vadd.f32 0.0, %v8341
        %v8343 = vpop.f32.mrf.mxu0
        %8344 = vmatmul.bf16.gmra.mxu0 %v8273
        %v8345 = vpop.f32.mrf.mxu0
        %v8346 = vadd.f32 0.0, %v8345
        %v8347 = vpop.f32.mrf.mxu0
        %8348 = vmatmul.bf16.gmra.mxu0 %v8276
        %v8349 = vpop.f32.mrf.mxu0
        %v8350 = vadd.f32 0.0, %v8349
        %v8351 = vpop.f32.mrf.mxu0
        %8352 = vdwg.mxu0
        %v8353 = vadd.f32 %v8170, %v8288
        %v8354 = vadd.f32 %v8171, %v8313
        %v8355 = vadd.f32 %v8172, %v8338
        %v8356 = vadd.f32 %v8173, %v8292
        %v8357 = vadd.f32 %v8174, %v8317
        %v8358 = vadd.f32 %v8175, %v8342
        %v8359 = vadd.f32 %v8176, %v8296
        %v8360 = vadd.f32 %v8177, %v8321
        %v8361 = vadd.f32 %v8178, %v8346
        %v8362 = vadd.f32 %v8179, %v8300
        %v8363 = vadd.f32 %v8180, %v8325
        %v8364 = vadd.f32 %v8181, %v8350
        %v8365 = vld [vmem:[%s24] sm:$0xff]
        %v8366 = vld [vmem:[%s24 + $0x10] sm:$0xff]
        %v8367 = vld [vmem:[%s24 + $0x20] sm:$0xff]
        %v8368 = vld [vmem:[%s24 + $0x30] sm:$0xff]
        %8370 = vset.pattern.permute.xlu0 0
        %8371 = vperm.xlu0 %8370, %v8365
        %v8372 = vpop.permute.xlu0 %8371
        %8375 = vset.pattern.permute.xlu0 0
        %8376 = vperm.xlu0 %8375, %v8366
        %v8377 = vpop.permute.xlu0 %8376
        %8380 = vset.pattern.permute.xlu0 0
        %8381 = vperm.xlu0 %8380, %v8367
        %v8382 = vpop.permute.xlu0 %8381
        %8385 = vset.pattern.permute.xlu0 0
        %8386 = vperm.xlu0 %8385, %v8368
        %v8387 = vpop.permute.xlu0 %8386
        %v8389 = vadd.f32 %v8353, %v8372
        %v8390 = vadd.f32 %v8354, %v8372
        %v8391 = vadd.f32 %v8355, %v8372
        %v8392 = vadd.f32 %v8356, %v8377
        %v8393 = vadd.f32 %v8357, %v8377
        %v8394 = vadd.f32 %v8358, %v8377
        %v8395 = vadd.f32 %v8359, %v8382
        %v8396 = vadd.f32 %v8360, %v8382
        %v8397 = vadd.f32 %v8361, %v8382
        %v8398 = vadd.f32 %v8362, %v8387
        %v8399 = vadd.f32 %v8363, %v8387
        %v8400 = vadd.f32 %v8364, %v8387
        %v8404 = vrot.slane %v8390, 7
        %v8405 = vrot.slane %v8391, 6
        %vm8406 = vcmask 1040384
        %v8407 = vsel %vm8406, %v8389, %v8404
        %vm8408 = vcmask 1041408
        %v8409 = vsel %vm8408, %v8407, %v8405
        %v8411 = vlaneseq
        %vm8412 = vcmp.ge.s32.totalorder %v8411, 0
        %vm8413 = vcmp.lt.s32.totalorder %v8411, 384
        %vm8414 = vmand %vm8412, %vm8413
        %8415 = vst.msk [vmem:[%s772] sm:$0x7] %vm8414, %v8409
        %v8419 = vrot.slane %v8393, 7
        %v8420 = vrot.slane %v8394, 6
        %v8421 = vsel %vm8406, %v8392, %v8419
        %v8422 = vsel %vm8408, %v8421, %v8420
        %s8424 = scalar_lea.vmem %s772, 3 [#allocation7]
        %8425 = vst.msk [vmem:[%s8424] sm:$0x7] %vm8414, %v8422
        %v8429 = vrot.slane %v8396, 7
        %v8430 = vrot.slane %v8397, 6
        %v8431 = vsel %vm8406, %v8395, %v8429
        %v8432 = vsel %vm8408, %v8431, %v8430
        %s8434 = scalar_lea.vmem %s772, 6 [#allocation7]
        %8435 = vst.msk [vmem:[%s8434] sm:$0x7] %vm8414, %v8432
        %v8439 = vrot.slane %v8399, 7
        %v8440 = vrot.slane %v8400, 6
        %v8441 = vsel %vm8406, %v8398, %v8439
        %v8442 = vsel %vm8408, %v8441, %v8440
        %s8444 = scalar_lea.vmem %s772, 9 [#allocation7]
        %8445 = vst.msk [vmem:[%s8444] sm:$0x7] %vm8414, %v8442
        %s8446 = sand.u32 %s578, 1
        %s8447 = scalar_lea.sflag [#allocation6], %s8446
        %s8448 = sand.u32 %s578, 1
        %s8449 = smul.addr %s8448, 12
        %s8450 = scalar_lea.vmem [#allocation7], %s8449
        // Predicated region
        $region125: #{tpu_custom_call.1} parent=119 // pred_check
          %p8451 = pneg %p588
        $region126: #{tpu_custom_call.1} parent=119 // pred_check_branch
          %8453 = sbr.rel (%p8451) target = $region128
        $region127: #{tpu_custom_call.1} parent=119 // pred_region
          %8455 = vsyncadd %s8447, 0
          %s8456 = smul.addr %s40, 12
          %s8457 = scalar_lea.hbm %s25, %s8456
          %s8458 = sshll.u32 %s8450, 4
          %s8459 = int_to_ptr.vmem [resolvable:$true] %s8458
          %s8460 = sshll.u32 %s8457, 4
          %s8461 = int_to_ptr.hbm [resolvable:$true] %s8460
          %8466 = dma.vmem_to_hbm [thread:$0]  %s8459, 192, %s8461, %s8447, 48, 48, 3
        $region128: #{tpu_custom_call.1} parent=119 // pred_fallthru
          _
      $region120: #{tpu_custom_call.1} parent=5 // pred_fallthru
        _
      %p8467 = scmp.le.s32.totalorder 2, %s35
      // Predicated region
      $region129: #{tpu_custom_call.1} parent=5 // pred_check
        %p8468 = pneg %p8467
      $region130: #{tpu_custom_call.1} parent=5 // pred_check_branch
        %8470 = sbr.rel (%p8468) target = $region132
      $region131: #{tpu_custom_call.1} parent=5 // pred_region
        %s8471 = ssub.s32 %s35, 2
        // Predicated region
        $region133: #{tpu_custom_call.1} parent=131 // pred_check
          %p8472 = pneg %p594
        $region134: #{tpu_custom_call.1} parent=131 // pred_check_branch
          %8474 = sbr.rel (%p8472) target = $region136
        $region135: #{tpu_custom_call.1} parent=131 // pred_region
          %s8475 = sand.u32 %s579, 1
          %s8476 = scalar_lea.sflag [#allocation6], %s8475
          %s8477 = sand.u32 %s579, 1
          %s8478 = smul.addr %s8477, 12
          %s8479 = scalar_lea.vmem [#allocation7], %s8478
          %8481 = dma.done %s8476, 192
        $region136: #{tpu_custom_call.1} parent=131 // pred_fallthru
          _
      $region132: #{tpu_custom_call.1} parent=5 // pred_fallthru
        _
    $region6: #{tpu_custom_call.1} parent=1 // loop_footer
      %s39 = sadd.s32 1, %s35
    $region7: #{tpu_custom_call.1} parent=1 // loop_footer_branch
      %34 = sbr.rel target = $region3
    $region8: #{tpu_custom_call.1} parent=1 // loop_exit
      _
    %8482 = vsyncpa [#allocation5], 1
    %s8483 = scalar_lea.sflag [#allocation5], 1
    %8484 = vsyncpa %s8483, 1
    %8485 = vsyncpa [#allocation6], 1
    %s8486 = scalar_lea.sflag [#allocation6], 1
    %8487 = vsyncpa %s8486, 1

</llo_original>
